<compile_context>
chip_gen: v7x
topology: tpu7x:2x2x1
jax: 0.10.0
libtpu: 0.0.40
codegen_flags: <defaults>
</compile_context>

<pallas_src>
import math

import numpy as np
import jax
import jax.numpy as jnp
from jax.experimental import pallas as pl
from jax.experimental.pallas import tpu as pltpu


def _shifted_dft_matrix(n: int) -> np.ndarray:
    """Matrix W with W @ x == fftshift(fft(ifftshift(x))) for length-n x (symmetric)."""
    eye = np.eye(n, dtype=np.float64)
    return np.fft.fftshift(
        np.fft.fft(np.fft.ifftshift(eye, axes=0), axis=0), axes=0
    )


def _split_bf16(x):
    """Split an f32 array into a (hi, lo) bf16 pair with hi + lo ~ x (~16 mantissa bits)."""
    hi = x.astype(jnp.bfloat16)
    lo = (x - hi.astype(jnp.float32)).astype(jnp.bfloat16)
    return hi, lo


def _dot3(xh, xl, yh, yl):
    """x @ y with operands given as (hi, lo) bf16 splits: three single-pass bf16
    MXU matmuls with f32 accumulation (bf16_3x; the lo@lo term is negligible)."""
    acc = jnp.dot(xh, yh, preferred_element_type=jnp.float32)
    acc = acc + jnp.dot(xh, yl, preferred_element_type=jnp.float32)
    acc = acc + jnp.dot(xl, yh, preferred_element_type=jnp.float32)
    return acc


# --------------------------------------------------------------------------
# Prologue:  U_in = exp(i*pi*P) * sqrt(I), emitted as bf16 hi/lo splits of
# (re, im, re+im) so the matmul stages are pure MXU work (sin/cos hoisted out
# of the k/i re-read loop).
# --------------------------------------------------------------------------
def _prologue_kernel(i_ref, p_ref, a_ref):
    amp = jnp.sqrt(i_ref[...])
    ph = p_ref[...] * jnp.float32(math.pi)
    a_re = jnp.cos(ph) * amp
    a_im = jnp.sin(ph) * amp
    for idx, v in enumerate((a_re, a_im, a_re + a_im)):
        hi, lo = _split_bf16(v)
        a_ref[2 * idx] = hi
        a_ref[2 * idx + 1] = lo


# --------------------------------------------------------------------------
# Stage 1:  T = Wm @ U_in   (Karatsuba complex matmul, 9 bf16 MXU passes/step;
# output refs double as the f32 K-accumulators)
# --------------------------------------------------------------------------
def _stage1_kernel(w_ref, a_ref, t_re_ref, t_im_ref):
    @pl.when(pl.program_id(2) == 0)
    def _init():
        t_re_ref[...] = jnp.zeros_like(t_re_ref)
        t_im_ref[...] = jnp.zeros_like(t_im_ref)

    m1 = _dot3(w_ref[0], w_ref[1], a_ref[0], a_ref[1])   # Wr @ Ar
    m2 = _dot3(w_ref[2], w_ref[3], a_ref[2], a_ref[3])   # Wi @ Ai
    m3 = _dot3(w_ref[4], w_ref[5], a_ref[4], a_ref[5])   # (Wr+Wi) @ (Ar+Ai)
    t_re_ref[...] += m1 - m2
    t_im_ref[...] += m3 - m1 - m2


# --------------------------------------------------------------------------
# Stage 2:  U = T @ Wm, with |.|^2 / log / atan2 epilogue and a per-tile max
# fused into the k==last finalize.  i1_ref / phi_ref double as the f32 re / im
# accumulators until the finalize overwrites them.
# --------------------------------------------------------------------------
def _stage2_kernel(t_re_ref, t_im_ref, w_ref, i1_ref, phi_ref, tmax_ref):
    k = pl.program_id(2)

    @pl.when(k == 0)
    def _init():
        i1_ref[...] = jnp.zeros_like(i1_ref)
        phi_ref[...] = jnp.zeros_like(phi_ref)

    t_re = t_re_ref[...]
    t_im = t_im_ref[...]
    trh, trl = _split_bf16(t_re)
    tih, til = _split_bf16(t_im)
    tsh, tsl = _split_bf16(t_re + t_im)
    m1 = _dot3(trh, trl, w_ref[0], w_ref[1])   # Tr @ Wr
    m2 = _dot3(tih, til, w_ref[2], w_ref[3])   # Ti @ Wi
    m3 = _dot3(tsh, tsl, w_ref[4], w_ref[5])   # (Tr+Ti) @ (Wr+Wi)
    i1_ref[...] += m1 - m2                      # U_re accumulator
    phi_ref[...] += m3 - m1 - m2                # U_im accumulator

    @pl.when(k == pl.num_programs(2) - 1)
    def _fin():
        u_re = i1_ref[...]
        u_im = phi_ref[...]
        i1 = jnp.log(u_re * u_re + u_im * u_im + jnp.float32(1.0))
        phi_ref[...] = jnp.arctan2(u_im, u_re)            # angle(U_out)
        i1_ref[...] = i1                                  # un-normalized log-intensity
        tile_max = jnp.max(jnp.max(i1, axis=1, keepdims=True), axis=0, keepdims=True)
        tmax_ref[...] = jnp.broadcast_to(tile_max, tmax_ref.shape)


# --------------------------------------------------------------------------
# Host-side helpers
# --------------------------------------------------------------------------
def _pad_to(x, hp, wp):
    h, w = x.shape
    if h == hp and w == wp:
        return x
    return jnp.pad(x, ((0, hp - h), (0, wp - w)))


def _fit_tile(t, dim):
    t = max(128, min(int(t), dim))
    t -= t % 128
    while dim % t:
        t -= 128
    return t


def _default_tiles():
    # Big output tiles on 128-MiB-VMEM parts (v5e/v6e) halve the W/RHS HBM
    # re-read factors; stay conservative elsewhere (v7x: 64 MiB VMEM, 3.2 TB/s
    # HBM, so big tiles are unnecessary and risk VMEM pressure).
    kind = ""
    try:
        kind = jax.devices()[0].device_kind.lower()
    except Exception:
        pass
    if any(s in kind for s in ("v5 lite", "v5e", "v6 lite", "v6e")):
        return 1024, 1024, 512
    return 512, 512, 512


def myfft_forward(I, P, *, tm=None, tn=None, tk=None):
    """Forward pass of myFFT: returns (outI, phi) as float32 (H, W) arrays."""
    H, W = I.shape
    assert P.shape == (H, W)
    # TODO(synk): rectangular (H != W) needs a second DFT matrix; the module is square.
    assert H == W, "myFFT module uses a square plane (M == N)"

    f32 = jnp.float32
    Hp = ((H + 127) // 128) * 128      # lane-dense padded size
    Wp = Hp

    if tm is None or tn is None or tk is None:
        dm, dn, dk = _default_tiles()
        tm = dm if tm is None else tm
        tn = dn if tn is None else tn
        tk = dk if tk is None else tk
    tm = _fit_tile(tm, Hp)
    tn = _fit_tile(tn, Wp)
    tk = _fit_tile(tk, Hp)

    # Shift-folded DFT matrix (symmetric => reused on both sides; self.fra from
    # __init__ is never used in forward).  Padded rows/cols are zero, so the
    # valid output region is exact and the padded region is exactly 0.
    wmat = np.zeros((Hp, Hp), np.complex128)
    wmat[:H, :H] = _shifted_dft_matrix(H)
    w_re = jnp.asarray(wmat.real, f32)
    w_im = jnp.asarray(wmat.imag, f32)
    w_stack = jnp.concatenate(                              # (6, Hp, Hp) bf16
        [jnp.stack(_split_bf16(w_re)),
         jnp.stack(_split_bf16(w_im)),
         jnp.stack(_split_bf16(w_re + w_im))], axis=0)

    I_p = _pad_to(I.astype(f32), Hp, Wp)
    P_p = _pad_to(P.astype(f32), Hp, Wp)

    # ---------------- Prologue: U_in planes (bf16 hi/lo splits) ----------------
    tp = 128
    a_stack = pl.pallas_call(
        _prologue_kernel,
        out_shape=jax.ShapeDtypeStruct((6, Hp, Wp), jnp.bfloat16),
        grid_spec=pltpu.PrefetchScalarGridSpec(
            num_scalar_prefetch=0,
            grid=(Hp // tp,),
            in_specs=[pl.BlockSpec((tp, Wp), lambda r: (r, 0)),
                      pl.BlockSpec((tp, Wp), lambda r: (r, 0))],
            out_specs=pl.BlockSpec((6, tp, Wp), lambda r: (0, r, 0))),
        compiler_params=pltpu.CompilerParams(
            dimension_semantics=("parallel",)),
    )(I_p, P_p)

    vmem_limit = (100 if max(tm, tn) >= 1024 else 48) * 1024 * 1024
    mm_params = pltpu.CompilerParams(
        dimension_semantics=("parallel", "parallel", "arbitrary"),
        vmem_limit_bytes=vmem_limit)
    bf2, f4 = 2, 4

    # ---------------- Stage 1: T = Wm @ U_in ----------------
    t_re, t_im = pl.pallas_call(
        _stage1_kernel,
        out_shape=(jax.ShapeDtypeStruct((Hp, Wp), f32),
                   jax.ShapeDtypeStruct((Hp, Wp), f32)),
        grid_spec=pltpu.PrefetchScalarGridSpec(
            num_scalar_prefetch=0,
            grid=(Hp // tm, Wp // tn, Hp // tk),
            in_specs=[
                pl.BlockSpec((6, tm, tk), lambda i, j, k: (0, i, k)),   # W planes
                pl.BlockSpec((6, tk, tn), lambda i, j, k: (0, k, j)),   # U_in planes
            ],
            out_specs=(
                pl.BlockSpec((tm, tn), lambda i, j, k: (i, j)),         # t_re
                pl.BlockSpec((tm, tn), lambda i, j, k: (i, j)),         # t_im
            )),
        compiler_params=mm_params,
        cost_estimate=pl.CostEstimate(
            flops=2 * 9 * Hp * Hp * Wp,
            transcendentals=0,
            bytes_accessed=(6 * Hp * Hp * bf2) * (Wp // tn)
                           + (6 * Hp * Wp * bf2) * (Hp // tm)
                           + 2 * Hp * Wp * f4),
    )(w_stack, a_stack)

    # ---------------- Stage 2: U = T @ Wm (+ fused epilogue) ----------------
    n_i, n_j = Hp // tm, Wp // tn
    i1_log, phi_p, tile_max = pl.pallas_call(
        _stage2_kernel,
        out_shape=(jax.ShapeDtypeStruct((Hp, Wp), f32),
                   jax.ShapeDtypeStruct((Hp, Wp), f32),
                   jax.ShapeDtypeStruct((8 * n_i, 128 * n_j), f32)),
        grid_spec=pltpu.PrefetchScalarGridSpec(
            num_scalar_prefetch=0,
            grid=(n_i, n_j, Hp // tk),
            in_specs=[
                pl.BlockSpec((tm, tk), lambda i, j, k: (i, k)),         # t_re
                pl.BlockSpec((tm, tk), lambda i, j, k: (i, k)),         # t_im
                pl.BlockSpec((6, tk, tn), lambda i, j, k: (0, k, j)),   # W planes
            ],
            out_specs=(
                pl.BlockSpec((tm, tn), lambda i, j, k: (i, j)),         # i1_log
                pl.BlockSpec((tm, tn), lambda i, j, k: (i, j)),         # phi
                pl.BlockSpec((8, 128), lambda i, j, k: (i, j)),         # per-tile max
            )),
        compiler_params=mm_params,
        cost_estimate=pl.CostEstimate(
            flops=2 * 9 * Hp * Wp * Wp,
            transcendentals=2 * Hp * Wp,
            bytes_accessed=(2 * Hp * Wp * f4) * (Wp // tn)
                           + (6 * Hp * Wp * bf2) * (Hp // tm)
                           + 2 * Hp * Wp * f4),
    )(t_re, t_im, w_stack)

    # ---------------- Normalization (tiny max + fused XLA multiply) ----------
    gmax = jnp.max(tile_max)        # padded tiles contribute exactly 0, never the max
    # NaN if the plane is identically zero (gmax == 0) — matches PyTorch I1/max(I1).
    outI_p = i1_log * (jnp.float32(1.0) / gmax)

    return outI_p[:H, :W], phi_p[:H, :W]


if __name__ == "__main__":
    # Small spatial size consistent with the module (square plane; the module's
    # M=2000 is only the default grid size).  200 is intentionally NOT a
    # multiple of 128 so the pad-to-lane-dense path is exercised
    # (200 -> 256, tiled with a (2, 2, 2) grid of 128-tiles).
    H = W = 200
    key = jax.random.PRNGKey(0)
    k1, k2 = jax.random.split(key)
    I = jax.random.uniform(k1, (H, W), jnp.float32, minval=0.0, maxval=1.0)
    P = jax.random.uniform(k2, (H, W), jnp.float32, minval=-1.0, maxval=1.0)

    outI, phi = myfft_forward(I, P, tm=128, tn=128, tk=128)
    jax.block_until_ready((outI, phi))

    # Pure-JAX reference (float32 / complex64) sanity check.
    pi32 = jnp.float32(math.pi)
    U_in = ((jnp.cos(P * pi32) + 1j * jnp.sin(P * pi32))
            * jnp.sqrt(I)).astype(jnp.complex64)
    U_out = jnp.fft.fftshift(jnp.fft.fft2(jnp.fft.ifftshift(U_in)))
    I1 = jnp.log(jnp.abs(U_out) ** 2 + 1.0)
    outI_ref = I1 / jnp.max(I1)
    phi_ref = jnp.angle(U_out)

    assert outI.shape == (H, W) and phi.shape == (H, W)
    # Tolerances sized for the bf16_3x (split-operand) matmul precision.
    assert float(jnp.max(jnp.abs(outI - outI_ref))) < 2e-3
    mag = jnp.abs(U_out)
    mask = mag > 1e-2 * jnp.max(mag)
    dphi = jnp.abs(jnp.angle(jnp.exp(1j * (phi - phi_ref))))   # wrap-safe angle diff
    assert float(jnp.max(jnp.where(mask, dphi, 0.0))) < 1e-2

    print("KERNEL_OK")
</pallas_src>

<mosaic_0001>
module attributes {stable_mosaic.version = 11 : i64} {
  func.func @_prologue_kernel(%arg0: i32, %arg1: memref<128x256xf32, #tpu.memory_space<vmem>>, %arg2: memref<128x256xf32, #tpu.memory_space<vmem>>, %arg3: memref<6x128x256xbf16, #tpu.memory_space<vmem>>) attributes {dimension_semantics = [#tpu.dimension_semantics<parallel>], iteration_bounds = array<i64: 2>, scalar_prefetch = 0 : i64, scratch_operands = 0 : i64, tpu.core_type = #tpu.core_type<tc>, window_params = [{transform_indices = @transform_0, window_bounds = array<i64: 128, 256>}, {transform_indices = @transform_1, window_bounds = array<i64: 128, 256>}, {transform_indices = @transform_2, window_bounds = array<i64: 6, 128, 256>}]} {
    %c0 = arith.constant 0 : index
    %c0_0 = arith.constant 0 : index
    %0 = vector.load %arg1[%c0, %c0_0] : memref<128x256xf32, #tpu.memory_space<vmem>>, vector<128x256xf32>
    %1 = math.sqrt %0 : vector<128x256xf32>
    %c0_1 = arith.constant 0 : index
    %c0_2 = arith.constant 0 : index
    %2 = vector.load %arg2[%c0_1, %c0_2] : memref<128x256xf32, #tpu.memory_space<vmem>>, vector<128x256xf32>
    %cst = arith.constant 3.14159274 : f32
    %3 = vector.broadcast %cst : f32 to vector<128x256xf32>
    %4 = arith.mulf %2, %3 : vector<128x256xf32>
    %5 = math.cos %4 : vector<128x256xf32>
    %6 = arith.mulf %5, %1 : vector<128x256xf32>
    %7 = math.sin %4 : vector<128x256xf32>
    %8 = arith.mulf %7, %1 : vector<128x256xf32>
    %9 = arith.addf %6, %8 : vector<128x256xf32>
    %10 = arith.truncf %6 : vector<128x256xf32> to vector<128x256xbf16>
    %11 = arith.extf %10 : vector<128x256xbf16> to vector<128x256xf32>
    %12 = arith.subf %6, %11 : vector<128x256xf32>
    %13 = arith.truncf %12 : vector<128x256xf32> to vector<128x256xbf16>
    %c0_3 = arith.constant 0 : index
    %c0_4 = arith.constant 0 : index
    %c0_5 = arith.constant 0 : index
    %14 = vector.load %arg3[%c0_3, %c0_4, %c0_5] : memref<6x128x256xbf16, #tpu.memory_space<vmem>>, vector<1x128x256xbf16>
    %15 = vector.shape_cast %14 : vector<1x128x256xbf16> to vector<128x256xbf16>
    %16 = vector.shape_cast %10 : vector<128x256xbf16> to vector<1x128x256xbf16>
    tpu.vector_store %arg3[%c0_3, %c0_4, %c0_5], %16 {strides = array<i32>} : memref<6x128x256xbf16, #tpu.memory_space<vmem>>, vector<1x128x256xbf16>,
    %c1 = arith.constant 1 : index
    %c0_6 = arith.constant 0 : index
    %c0_7 = arith.constant 0 : index
    %17 = vector.load %arg3[%c1, %c0_6, %c0_7] : memref<6x128x256xbf16, #tpu.memory_space<vmem>>, vector<1x128x256xbf16>
    %18 = vector.shape_cast %17 : vector<1x128x256xbf16> to vector<128x256xbf16>
    %19 = vector.shape_cast %13 : vector<128x256xbf16> to vector<1x128x256xbf16>
    tpu.vector_store %arg3[%c1, %c0_6, %c0_7], %19 {strides = array<i32>} : memref<6x128x256xbf16, #tpu.memory_space<vmem>>, vector<1x128x256xbf16>,
    %20 = arith.truncf %8 : vector<128x256xf32> to vector<128x256xbf16>
    %21 = arith.extf %20 : vector<128x256xbf16> to vector<128x256xf32>
    %22 = arith.subf %8, %21 : vector<128x256xf32>
    %23 = arith.truncf %22 : vector<128x256xf32> to vector<128x256xbf16>
    %c2 = arith.constant 2 : index
    %c0_8 = arith.constant 0 : index
    %c0_9 = arith.constant 0 : index
    %24 = vector.load %arg3[%c2, %c0_8, %c0_9] : memref<6x128x256xbf16, #tpu.memory_space<vmem>>, vector<1x128x256xbf16>
    %25 = vector.shape_cast %24 : vector<1x128x256xbf16> to vector<128x256xbf16>
    %26 = vector.shape_cast %20 : vector<128x256xbf16> to vector<1x128x256xbf16>
    tpu.vector_store %arg3[%c2, %c0_8, %c0_9], %26 {strides = array<i32>} : memref<6x128x256xbf16, #tpu.memory_space<vmem>>, vector<1x128x256xbf16>,
    %c3 = arith.constant 3 : index
    %c0_10 = arith.constant 0 : index
    %c0_11 = arith.constant 0 : index
    %27 = vector.load %arg3[%c3, %c0_10, %c0_11] : memref<6x128x256xbf16, #tpu.memory_space<vmem>>, vector<1x128x256xbf16>
    %28 = vector.shape_cast %27 : vector<1x128x256xbf16> to vector<128x256xbf16>
    %29 = vector.shape_cast %23 : vector<128x256xbf16> to vector<1x128x256xbf16>
    tpu.vector_store %arg3[%c3, %c0_10, %c0_11], %29 {strides = array<i32>} : memref<6x128x256xbf16, #tpu.memory_space<vmem>>, vector<1x128x256xbf16>,
    %30 = arith.truncf %9 : vector<128x256xf32> to vector<128x256xbf16>
    %31 = arith.extf %30 : vector<128x256xbf16> to vector<128x256xf32>
    %32 = arith.subf %9, %31 : vector<128x256xf32>
    %33 = arith.truncf %32 : vector<128x256xf32> to vector<128x256xbf16>
    %c4 = arith.constant 4 : index
    %c0_12 = arith.constant 0 : index
    %c0_13 = arith.constant 0 : index
    %34 = vector.load %arg3[%c4, %c0_12, %c0_13] : memref<6x128x256xbf16, #tpu.memory_space<vmem>>, vector<1x128x256xbf16>
    %35 = vector.shape_cast %34 : vector<1x128x256xbf16> to vector<128x256xbf16>
    %36 = vector.shape_cast %30 : vector<128x256xbf16> to vector<1x128x256xbf16>
    tpu.vector_store %arg3[%c4, %c0_12, %c0_13], %36 {strides = array<i32>} : memref<6x128x256xbf16, #tpu.memory_space<vmem>>, vector<1x128x256xbf16>,
    %c5 = arith.constant 5 : index
    %c0_14 = arith.constant 0 : index
    %c0_15 = arith.constant 0 : index
    %37 = vector.load %arg3[%c5, %c0_14, %c0_15] : memref<6x128x256xbf16, #tpu.memory_space<vmem>>, vector<1x128x256xbf16>
    %38 = vector.shape_cast %37 : vector<1x128x256xbf16> to vector<128x256xbf16>
    %39 = vector.shape_cast %33 : vector<128x256xbf16> to vector<1x128x256xbf16>
    tpu.vector_store %arg3[%c5, %c0_14, %c0_15], %39 {strides = array<i32>} : memref<6x128x256xbf16, #tpu.memory_space<vmem>>, vector<1x128x256xbf16>,
    return
  }
  func.func @transform_0(%arg0: i32) -> (i32, i32) {
    %c0_i32 = arith.constant 0 : i32
    %c0_i32_0 = arith.constant 0 : i32
    return %arg0, %c0_i32 : i32, i32
  }
  func.func @transform_1(%arg0: i32) -> (i32, i32) {
    %c0_i32 = arith.constant 0 : i32
    %c0_i32_0 = arith.constant 0 : i32
    return %arg0, %c0_i32 : i32, i32
  }
  func.func @transform_2(%arg0: i32) -> (i32, i32, i32) {
    %c0_i32 = arith.constant 0 : i32
    %c0_i32_0 = arith.constant 0 : i32
    %c0_i32_1 = arith.constant 0 : i32
    return %c0_i32, %arg0, %c0_i32_0 : i32, i32, i32
  }
}

</mosaic_0001>

<llo_original>
// kernel: tpu_custom_call.1
$region0: #{tpu_custom_call.1}
  #allocation0 [shape = 'u32[]', space=smem, size = 0x4, offset = 0x4, fixed_abs, tag = 'smem constant byte address 0x4 - core index']
  #allocation1 [shape = 'u32[144,128]{1,0:T(1,128)}', space=vmem, size = 0x12000, scoped, tag = 'internal scratch']
  #allocation8 [shape = 's32[]', space=sflag, size = 0x4, offset = 0, fixed_abs, tag = 'sflag constant byte address 0x0 - dummy sync flag']
  %s0 = inlined_call_operand.hbm [shape: f32[256,256], index: 0, kind: input, shape index: {}]
  %s1 = inlined_call_operand.hbm [shape: f32[256,256], index: 1, kind: input, shape index: {}]
  %s2 = inlined_call_operand.hbm [shape: bf16[6,256,256], index: 2, kind: output, shape index: {}]
  %s3 = sld [smem:[#allocation0]]
  $region49: #{tpu_custom_call.1} parent=0
    _
  %s5 = ssub.s32 1, %s3
  %s6 = scalar_select 0, %s5, %s3
  $region1: #{tpu_custom_call.1} parent=0
    #allocation2 [shape = 'u8[262144]{0}', space=vmem, size = 0x40000, scoped, tag = 'input window, operand 0']
    #allocation3 [shape = 's32[2]{0}', space=sflag, size = 0x8, scoped, tag = 'scoped memory for tpu_custom_call.1']
    #allocation4 [shape = 's32[2]{0}', space=sflag, size = 0x8, scoped, tag = 'scoped memory for tpu_custom_call.1']
    #allocation5 [shape = 'u8[262144]{0}', space=vmem, size = 0x40000, scoped, tag = 'input window, operand 1']
    #allocation6 [shape = 's32[2]{0}', space=sflag, size = 0x8, scoped, tag = 'scoped memory for tpu_custom_call.1']
    #allocation7 [shape = 'u8[786432]{0}', space=vmem, size = 0xc0000, scoped, tag = 'output window, operand 0']
    %7 = vsyncpa [#allocation3], 0
    %s8 = scalar_lea.sflag [#allocation3], 1
    %9 = vsyncpa %s8, 0
    %10 = vsyncpa [#allocation6], 0
    %s11 = scalar_lea.sflag [#allocation6], 1
    %12 = vsyncpa %s11, 0
    %13 = vsyncpa [#allocation4], 0
    %s14 = scalar_lea.sflag [#allocation4], 1
    %15 = vsyncpa %s14, 0
    loop: start=0, step=1, limit=4
    $region2: #{tpu_custom_call.1} parent=1 // loop_pre_header
      _
    $region3: #{tpu_custom_call.1} parent=1 // loop_header
      %s17 = sphi 0, %s21
      %p18 = scmp.ge.s32.totalorder %s17, 4
      %s27 = sphi 0, %s29
      %s30 = sphi 0, %s27
      %s31 = sphi 0, %s30
      %s47 = sphi 0, %s31
      %s53 = sphi 0, %s55
      %s56 = sphi 0, %s53
      %s57 = sphi 0, %s56
      %s73 = sphi 0, %s57
      %s79 = sphi 0, %s81
      %s82 = sphi 0, %s79
      %s83 = sphi 0, %s82
      %s99 = sphi 0, %s83
    $region4: #{tpu_custom_call.1} parent=1 // loop_header_branch
      %20 = sbr.rel (%p18) target = $region8
    $region5: #{tpu_custom_call.1} parent=1 // loop_body
      %s22 = ssub.s32 %s17, 1
      %s23 = ssub.s32 %s17, 2
      %s24 = sadd.s32 %s17, 1
      %s25 = ssub.s32 %s17, %s24
      %p26 = scmp.eq.s32.totalorder %s25, 0
      %s28 = sadd.s32 %s27, 1
      %s29 = scalar_select %p26, %s27, %s28
      %p32 = pneg %p26
      %p33 = scmp.eq.s32.totalorder %s17, 1
      %p34 = por %p32, %p33
      %p35 = scmp.ne.s32.totalorder %s27, %s30
      %p36 = scmp.eq.s32.totalorder %s17, 0
      %p37 = por %p35, %p36
      %p38 = scmp.ne.s32.totalorder %s27, %s30
      %p39 = scmp.eq.s32.totalorder %s22, 1
      %p40 = por %p38, %p39
      %p41 = scmp.ne.s32.totalorder %s30, %s31
      %p42 = scmp.eq.s32.totalorder %s22, 0
      %p43 = por %p41, %p42
      %p44 = scmp.ne.s32.totalorder %s30, %s31
      %p45 = scmp.eq.s32.totalorder %s23, 1
      %p46 = por %p44, %p45
      %p48 = scmp.ne.s32.totalorder %s31, %s47
      %p49 = scmp.eq.s32.totalorder %s23, 0
      %p50 = por %p48, %p49
      %s51 = ssub.s32 %s17, %s24
      %p52 = scmp.eq.s32.totalorder %s51, 0
      %s54 = sadd.s32 %s53, 1
      %s55 = scalar_select %p52, %s53, %s54
      %p58 = pneg %p52
      %p59 = scmp.eq.s32.totalorder %s17, 1
      %p60 = por %p58, %p59
      %p61 = scmp.ne.s32.totalorder %s53, %s56
      %p62 = scmp.eq.s32.totalorder %s17, 0
      %p63 = por %p61, %p62
      %p64 = scmp.ne.s32.totalorder %s53, %s56
      %p65 = scmp.eq.s32.totalorder %s22, 1
      %p66 = por %p64, %p65
      %p67 = scmp.ne.s32.totalorder %s56, %s57
      %p68 = scmp.eq.s32.totalorder %s22, 0
      %p69 = por %p67, %p68
      %p70 = scmp.ne.s32.totalorder %s56, %s57
      %p71 = scmp.eq.s32.totalorder %s23, 1
      %p72 = por %p70, %p71
      %p74 = scmp.ne.s32.totalorder %s57, %s73
      %p75 = scmp.eq.s32.totalorder %s23, 0
      %p76 = por %p74, %p75
      %s77 = ssub.s32 %s17, %s24
      %p78 = scmp.eq.s32.totalorder %s77, 0
      %s80 = sadd.s32 %s79, 1
      %s81 = scalar_select %p78, %s79, %s80
      %p84 = pneg %p78
      %p85 = scmp.eq.s32.totalorder %s17, 1
      %p86 = por %p84, %p85
      %p87 = scmp.ne.s32.totalorder %s79, %s82
      %p88 = scmp.eq.s32.totalorder %s17, 0
      %p89 = por %p87, %p88
      %p90 = scmp.ne.s32.totalorder %s79, %s82
      %p91 = scmp.eq.s32.totalorder %s22, 1
      %p92 = por %p90, %p91
      %p93 = scmp.ne.s32.totalorder %s82, %s83
      %p94 = scmp.eq.s32.totalorder %s22, 0
      %p95 = por %p93, %p94
      %p96 = scmp.ne.s32.totalorder %s82, %s83
      %p97 = scmp.eq.s32.totalorder %s23, 1
      %p98 = por %p96, %p97
      %p100 = scmp.ne.s32.totalorder %s83, %s99
      %p101 = scmp.eq.s32.totalorder %s23, 0
      %p102 = por %p100, %p101
      %p103 = scmp.le.s32.totalorder 1, %s17
      %p104 = scmp.lt.s32.totalorder %s17, 3
      %p105 = pnand %p103, %p104
      %p106 = pneg %p105
      // Predicated region
      $region9: #{tpu_custom_call.1} parent=5 // pred_check
        _
      $region10: #{tpu_custom_call.1} parent=5 // pred_check_branch
        %108 = sbr.rel (%p105) target = $region12
      $region11: #{tpu_custom_call.1} parent=5 // pred_region
        %s109 = ssub.s32 %s17, 1
      $region12: #{tpu_custom_call.1} parent=5 // pred_fallthru
        _
      %p110 = scmp.lt.s32.totalorder %s17, 2
      // Predicated region
      $region13: #{tpu_custom_call.1} parent=5 // pred_check
        %p111 = pneg %p110
      $region14: #{tpu_custom_call.1} parent=5 // pred_check_branch
        %113 = sbr.rel (%p111) target = $region16
      $region15: #{tpu_custom_call.1} parent=5 // pred_region
        // Predicated region
        $region17: #{tpu_custom_call.1} parent=15 // pred_check
          %p114 = pneg %p37
        $region18: #{tpu_custom_call.1} parent=15 // pred_check_branch
          %116 = sbr.rel (%p114) target = $region20
        $region19: #{tpu_custom_call.1} parent=15 // pred_region
          %s117 = sand.u32 %s27, 1
          %s118 = scalar_lea.sflag [#allocation3], %s117
          %s119 = sand.u32 %s27, 1
          %s120 = smul.addr %s119, 256
          %s121 = scalar_lea.vmem [#allocation2], %s120
          %s122 = smul.u32 16, %s17
          %s124 = ssub.s32 4096, 4096
          %125 = vsyncadd %s118, %s124
          %s126 = smul.addr %s122, 2
          %s127 = smul.addr %s126, 128
          %s128 = scalar_lea.hbm %s0, %s127
          %s129 = sshll.u32 %s121, 4
          %s130 = int_to_ptr.vmem [resolvable:$true] %s129
          %135 = dma.hbm_to_vmem [thread:$0]  %s128, 4096, %s130, %s118, 256, 256, 16
        $region20: #{tpu_custom_call.1} parent=15 // pred_fallthru
          _
        // Predicated region
        $region21: #{tpu_custom_call.1} parent=15 // pred_check
          %p136 = pneg %p63
        $region22: #{tpu_custom_call.1} parent=15 // pred_check_branch
          %138 = sbr.rel (%p136) target = $region24
        $region23: #{tpu_custom_call.1} parent=15 // pred_region
          %s139 = sand.u32 %s53, 1
          %s140 = scalar_lea.sflag [#allocation6], %s139
          %s141 = sand.u32 %s53, 1
          %s142 = smul.addr %s141, 256
          %s143 = scalar_lea.vmem [#allocation5], %s142
          %s144 = smul.u32 16, %s17
          %s146 = ssub.s32 4096, 4096
          %147 = vsyncadd %s140, %s146
          %s148 = smul.addr %s144, 2
          %s149 = smul.addr %s148, 128
          %s150 = scalar_lea.hbm %s1, %s149
          %s151 = sshll.u32 %s143, 4
          %s152 = int_to_ptr.vmem [resolvable:$true] %s151
          %157 = dma.hbm_to_vmem [thread:$0]  %s150, 4096, %s152, %s140, 256, 256, 16
        $region24: #{tpu_custom_call.1} parent=15 // pred_fallthru
          _
      $region16: #{tpu_custom_call.1} parent=5 // pred_fallthru
        _
      %p158 = scmp.le.s32.totalorder 1, %s17
      %p159 = scmp.lt.s32.totalorder %s17, 3
      %p160 = pnand %p158, %p159
      %p161 = pneg %p160
      // Predicated region
      $region25: #{tpu_custom_call.1} parent=5 // pred_check
        _
      $region26: #{tpu_custom_call.1} parent=5 // pred_check_branch
        %163 = sbr.rel (%p160) target = $region28
      $region27: #{tpu_custom_call.1} parent=5 // pred_region
        %s164 = ssub.s32 %s17, 1
        %s165 = sand.u32 %s30, 1
        %s166 = scalar_lea.sflag [#allocation3], %s165
        %s167 = sand.u32 %s30, 1
        %s168 = smul.addr %s167, 256
        %s169 = scalar_lea.vmem [#allocation2], %s168
        // Predicated region
        $region29: #{tpu_custom_call.1} parent=27 // pred_check
          %p170 = pneg %p43
        $region30: #{tpu_custom_call.1} parent=27 // pred_check_branch
          %172 = sbr.rel (%p170) target = $region32
        $region31: #{tpu_custom_call.1} parent=27 // pred_region
          %173 = dma.done %s166, 4096
        $region32: #{tpu_custom_call.1} parent=27 // pred_fallthru
          _
        %s174 = sand.u32 %s56, 1
        %s175 = scalar_lea.sflag [#allocation6], %s174
        %s176 = sand.u32 %s56, 1
        %s177 = smul.addr %s176, 256
        %s178 = scalar_lea.vmem [#allocation5], %s177
        // Predicated region
        $region33: #{tpu_custom_call.1} parent=27 // pred_check
          %p179 = pneg %p69
        $region34: #{tpu_custom_call.1} parent=27 // pred_check_branch
          %181 = sbr.rel (%p179) target = $region36
        $region35: #{tpu_custom_call.1} parent=27 // pred_region
          %182 = dma.done %s175, 4096
        $region36: #{tpu_custom_call.1} parent=27 // pred_fallthru
          _
        %s183 = sand.u32 %s30, 1
        %s184 = scalar_lea.sflag [#allocation3], %s183
        %s185 = sand.u32 %s30, 1
        %s186 = smul.addr %s185, 256
        %s187 = scalar_lea.vmem [#allocation2], %s186
        %p188 = pneg %p43
        %p189 = pneg %p40
        %s190 = sand.u32 %s56, 1
        %s191 = scalar_lea.sflag [#allocation6], %s190
        %s192 = sand.u32 %s56, 1
        %s193 = smul.addr %s192, 256
        %s194 = scalar_lea.vmem [#allocation5], %s193
        %p195 = pneg %p69
        %p196 = pneg %p66
        %p197 = pneg %p95
        %p198 = pneg %p92
        %s199 = sand.u32 %s82, 1
        %s200 = scalar_lea.sflag [#allocation4], %s199
        %s201 = sand.u32 %s82, 1
        %s202 = smul.addr %s201, 768
        %s203 = scalar_lea.vmem [#allocation7], %s202
        %s204 = smul.u32 16, %s22
        %s205 = smul.u32 16, %s22
        %s206 = smul.u32 16, %s22
        %v207 = vld [vmem:[%s169] sm:$0xff]
        %v208 = vld [vmem:[%s169 + $0x8] sm:$0xff]
        %v209 = vld [vmem:[%s169 + $0x10] sm:$0xff]
        %v210 = vld [vmem:[%s169 + $0x18] sm:$0xff]
        %v211 = vld [vmem:[%s169 + $0x20] sm:$0xff]
        %v212 = vld [vmem:[%s169 + $0x28] sm:$0xff]
        %v213 = vld [vmem:[%s169 + $0x30] sm:$0xff]
        %v214 = vld [vmem:[%s169 + $0x38] sm:$0xff]
        %v215 = vld [vmem:[%s169 + $0x40] sm:$0xff]
        %v216 = vld [vmem:[%s169 + $0x48] sm:$0xff]
        %v217 = vld [vmem:[%s169 + $0x50] sm:$0xff]
        %v218 = vld [vmem:[%s169 + $0x58] sm:$0xff]
        %v219 = vld [vmem:[%s169 + $0x60] sm:$0xff]
        %v220 = vld [vmem:[%s169 + $0x68] sm:$0xff]
        %v221 = vld [vmem:[%s169 + $0x70] sm:$0xff]
        %v222 = vld [vmem:[%s169 + $0x78] sm:$0xff]
        %v223 = vld [vmem:[%s169 + $0x80] sm:$0xff]
        %v224 = vld [vmem:[%s169 + $0x88] sm:$0xff]
        %v225 = vld [vmem:[%s169 + $0x90] sm:$0xff]
        %v226 = vld [vmem:[%s169 + $0x98] sm:$0xff]
        %v227 = vld [vmem:[%s169 + $0xa0] sm:$0xff]
        %v228 = vld [vmem:[%s169 + $0xa8] sm:$0xff]
        %v229 = vld [vmem:[%s169 + $0xb0] sm:$0xff]
        %v230 = vld [vmem:[%s169 + $0xb8] sm:$0xff]
        %v231 = vld [vmem:[%s169 + $0xc0] sm:$0xff]
        %v232 = vld [vmem:[%s169 + $0xc8] sm:$0xff]
        %v233 = vld [vmem:[%s169 + $0xd0] sm:$0xff]
        %v234 = vld [vmem:[%s169 + $0xd8] sm:$0xff]
        %v235 = vld [vmem:[%s169 + $0xe0] sm:$0xff]
        %v236 = vld [vmem:[%s169 + $0xe8] sm:$0xff]
        %v237 = vld [vmem:[%s169 + $0xf0] sm:$0xff]
        %v238 = vld [vmem:[%s169 + $0xf8] sm:$0xff]
        %v239 = vrsqrt.pop %v207
        %v240 = vmul.f32 %v207, %v239
        %vm241 = vcmp.eq.f32.partialorder %v207, inf
        %v242 = vsel %vm241, %v207, %v240
        %vm243 = vcmp.eq.f32.partialorder %v207, 0.0
        %v244 = vand.u32 %v207, 2147483648
        %v245 = vsel %vm243, %v244, %v242
        %v246 = vrsqrt.pop %v208
        %v247 = vmul.f32 %v208, %v246
        %vm248 = vcmp.eq.f32.partialorder %v208, inf
        %v249 = vsel %vm248, %v208, %v247
        %vm250 = vcmp.eq.f32.partialorder %v208, 0.0
        %v251 = vand.u32 %v208, 2147483648
        %v252 = vsel %vm250, %v251, %v249
        %v253 = vrsqrt.pop %v209
        %v254 = vmul.f32 %v209, %v253
        %vm255 = vcmp.eq.f32.partialorder %v209, inf
        %v256 = vsel %vm255, %v209, %v254
        %vm257 = vcmp.eq.f32.partialorder %v209, 0.0
        %v258 = vand.u32 %v209, 2147483648
        %v259 = vsel %vm257, %v258, %v256
        %v260 = vrsqrt.pop %v210
        %v261 = vmul.f32 %v210, %v260
        %vm262 = vcmp.eq.f32.partialorder %v210, inf
        %v263 = vsel %vm262, %v210, %v261
        %vm264 = vcmp.eq.f32.partialorder %v210, 0.0
        %v265 = vand.u32 %v210, 2147483648
        %v266 = vsel %vm264, %v265, %v263
        %v267 = vrsqrt.pop %v211
        %v268 = vmul.f32 %v211, %v267
        %vm269 = vcmp.eq.f32.partialorder %v211, inf
        %v270 = vsel %vm269, %v211, %v268
        %vm271 = vcmp.eq.f32.partialorder %v211, 0.0
        %v272 = vand.u32 %v211, 2147483648
        %v273 = vsel %vm271, %v272, %v270
        %v274 = vrsqrt.pop %v212
        %v275 = vmul.f32 %v212, %v274
        %vm276 = vcmp.eq.f32.partialorder %v212, inf
        %v277 = vsel %vm276, %v212, %v275
        %vm278 = vcmp.eq.f32.partialorder %v212, 0.0
        %v279 = vand.u32 %v212, 2147483648
        %v280 = vsel %vm278, %v279, %v277
        %v281 = vrsqrt.pop %v213
        %v282 = vmul.f32 %v213, %v281
        %vm283 = vcmp.eq.f32.partialorder %v213, inf
        %v284 = vsel %vm283, %v213, %v282
        %vm285 = vcmp.eq.f32.partialorder %v213, 0.0
        %v286 = vand.u32 %v213, 2147483648
        %v287 = vsel %vm285, %v286, %v284
        %v288 = vrsqrt.pop %v214
        %v289 = vmul.f32 %v214, %v288
        %vm290 = vcmp.eq.f32.partialorder %v214, inf
        %v291 = vsel %vm290, %v214, %v289
        %vm292 = vcmp.eq.f32.partialorder %v214, 0.0
        %v293 = vand.u32 %v214, 2147483648
        %v294 = vsel %vm292, %v293, %v291
        %v295 = vrsqrt.pop %v215
        %v296 = vmul.f32 %v215, %v295
        %vm297 = vcmp.eq.f32.partialorder %v215, inf
        %v298 = vsel %vm297, %v215, %v296
        %vm299 = vcmp.eq.f32.partialorder %v215, 0.0
        %v300 = vand.u32 %v215, 2147483648
        %v301 = vsel %vm299, %v300, %v298
        %v302 = vrsqrt.pop %v216
        %v303 = vmul.f32 %v216, %v302
        %vm304 = vcmp.eq.f32.partialorder %v216, inf
        %v305 = vsel %vm304, %v216, %v303
        %vm306 = vcmp.eq.f32.partialorder %v216, 0.0
        %v307 = vand.u32 %v216, 2147483648
        %v308 = vsel %vm306, %v307, %v305
        %v309 = vrsqrt.pop %v217
        %v310 = vmul.f32 %v217, %v309
        %vm311 = vcmp.eq.f32.partialorder %v217, inf
        %v312 = vsel %vm311, %v217, %v310
        %vm313 = vcmp.eq.f32.partialorder %v217, 0.0
        %v314 = vand.u32 %v217, 2147483648
        %v315 = vsel %vm313, %v314, %v312
        %v316 = vrsqrt.pop %v218
        %v317 = vmul.f32 %v218, %v316
        %vm318 = vcmp.eq.f32.partialorder %v218, inf
        %v319 = vsel %vm318, %v218, %v317
        %vm320 = vcmp.eq.f32.partialorder %v218, 0.0
        %v321 = vand.u32 %v218, 2147483648
        %v322 = vsel %vm320, %v321, %v319
        %v323 = vrsqrt.pop %v219
        %v324 = vmul.f32 %v219, %v323
        %vm325 = vcmp.eq.f32.partialorder %v219, inf
        %v326 = vsel %vm325, %v219, %v324
        %vm327 = vcmp.eq.f32.partialorder %v219, 0.0
        %v328 = vand.u32 %v219, 2147483648
        %v329 = vsel %vm327, %v328, %v326
        %v330 = vrsqrt.pop %v220
        %v331 = vmul.f32 %v220, %v330
        %vm332 = vcmp.eq.f32.partialorder %v220, inf
        %v333 = vsel %vm332, %v220, %v331
        %vm334 = vcmp.eq.f32.partialorder %v220, 0.0
        %v335 = vand.u32 %v220, 2147483648
        %v336 = vsel %vm334, %v335, %v333
        %v337 = vrsqrt.pop %v221
        %v338 = vmul.f32 %v221, %v337
        %vm339 = vcmp.eq.f32.partialorder %v221, inf
        %v340 = vsel %vm339, %v221, %v338
        %vm341 = vcmp.eq.f32.partialorder %v221, 0.0
        %v342 = vand.u32 %v221, 2147483648
        %v343 = vsel %vm341, %v342, %v340
        %v344 = vrsqrt.pop %v222
        %v345 = vmul.f32 %v222, %v344
        %vm346 = vcmp.eq.f32.partialorder %v222, inf
        %v347 = vsel %vm346, %v222, %v345
        %vm348 = vcmp.eq.f32.partialorder %v222, 0.0
        %v349 = vand.u32 %v222, 2147483648
        %v350 = vsel %vm348, %v349, %v347
        %v351 = vrsqrt.pop %v223
        %v352 = vmul.f32 %v223, %v351
        %vm353 = vcmp.eq.f32.partialorder %v223, inf
        %v354 = vsel %vm353, %v223, %v352
        %vm355 = vcmp.eq.f32.partialorder %v223, 0.0
        %v356 = vand.u32 %v223, 2147483648
        %v357 = vsel %vm355, %v356, %v354
        %v358 = vrsqrt.pop %v224
        %v359 = vmul.f32 %v224, %v358
        %vm360 = vcmp.eq.f32.partialorder %v224, inf
        %v361 = vsel %vm360, %v224, %v359
        %vm362 = vcmp.eq.f32.partialorder %v224, 0.0
        %v363 = vand.u32 %v224, 2147483648
        %v364 = vsel %vm362, %v363, %v361
        %v365 = vrsqrt.pop %v225
        %v366 = vmul.f32 %v225, %v365
        %vm367 = vcmp.eq.f32.partialorder %v225, inf
        %v368 = vsel %vm367, %v225, %v366
        %vm369 = vcmp.eq.f32.partialorder %v225, 0.0
        %v370 = vand.u32 %v225, 2147483648
        %v371 = vsel %vm369, %v370, %v368
        %v372 = vrsqrt.pop %v226
        %v373 = vmul.f32 %v226, %v372
        %vm374 = vcmp.eq.f32.partialorder %v226, inf
        %v375 = vsel %vm374, %v226, %v373
        %vm376 = vcmp.eq.f32.partialorder %v226, 0.0
        %v377 = vand.u32 %v226, 2147483648
        %v378 = vsel %vm376, %v377, %v375
        %v379 = vrsqrt.pop %v227
        %v380 = vmul.f32 %v227, %v379
        %vm381 = vcmp.eq.f32.partialorder %v227, inf
        %v382 = vsel %vm381, %v227, %v380
        %vm383 = vcmp.eq.f32.partialorder %v227, 0.0
        %v384 = vand.u32 %v227, 2147483648
        %v385 = vsel %vm383, %v384, %v382
        %v386 = vrsqrt.pop %v228
        %v387 = vmul.f32 %v228, %v386
        %vm388 = vcmp.eq.f32.partialorder %v228, inf
        %v389 = vsel %vm388, %v228, %v387
        %vm390 = vcmp.eq.f32.partialorder %v228, 0.0
        %v391 = vand.u32 %v228, 2147483648
        %v392 = vsel %vm390, %v391, %v389
        %v393 = vrsqrt.pop %v229
        %v394 = vmul.f32 %v229, %v393
        %vm395 = vcmp.eq.f32.partialorder %v229, inf
        %v396 = vsel %vm395, %v229, %v394
        %vm397 = vcmp.eq.f32.partialorder %v229, 0.0
        %v398 = vand.u32 %v229, 2147483648
        %v399 = vsel %vm397, %v398, %v396
        %v400 = vrsqrt.pop %v230
        %v401 = vmul.f32 %v230, %v400
        %vm402 = vcmp.eq.f32.partialorder %v230, inf
        %v403 = vsel %vm402, %v230, %v401
        %vm404 = vcmp.eq.f32.partialorder %v230, 0.0
        %v405 = vand.u32 %v230, 2147483648
        %v406 = vsel %vm404, %v405, %v403
        %v407 = vrsqrt.pop %v231
        %v408 = vmul.f32 %v231, %v407
        %vm409 = vcmp.eq.f32.partialorder %v231, inf
        %v410 = vsel %vm409, %v231, %v408
        %vm411 = vcmp.eq.f32.partialorder %v231, 0.0
        %v412 = vand.u32 %v231, 2147483648
        %v413 = vsel %vm411, %v412, %v410
        %v414 = vrsqrt.pop %v232
        %v415 = vmul.f32 %v232, %v414
        %vm416 = vcmp.eq.f32.partialorder %v232, inf
        %v417 = vsel %vm416, %v232, %v415
        %vm418 = vcmp.eq.f32.partialorder %v232, 0.0
        %v419 = vand.u32 %v232, 2147483648
        %v420 = vsel %vm418, %v419, %v417
        %v421 = vrsqrt.pop %v233
        %v422 = vmul.f32 %v233, %v421
        %vm423 = vcmp.eq.f32.partialorder %v233, inf
        %v424 = vsel %vm423, %v233, %v422
        %vm425 = vcmp.eq.f32.partialorder %v233, 0.0
        %v426 = vand.u32 %v233, 2147483648
        %v427 = vsel %vm425, %v426, %v424
        %v428 = vrsqrt.pop %v234
        %v429 = vmul.f32 %v234, %v428
        %vm430 = vcmp.eq.f32.partialorder %v234, inf
        %v431 = vsel %vm430, %v234, %v429
        %vm432 = vcmp.eq.f32.partialorder %v234, 0.0
        %v433 = vand.u32 %v234, 2147483648
        %v434 = vsel %vm432, %v433, %v431
        %v435 = vrsqrt.pop %v235
        %v436 = vmul.f32 %v235, %v435
        %vm437 = vcmp.eq.f32.partialorder %v235, inf
        %v438 = vsel %vm437, %v235, %v436
        %vm439 = vcmp.eq.f32.partialorder %v235, 0.0
        %v440 = vand.u32 %v235, 2147483648
        %v441 = vsel %vm439, %v440, %v438
        %v442 = vrsqrt.pop %v236
        %v443 = vmul.f32 %v236, %v442
        %vm444 = vcmp.eq.f32.partialorder %v236, inf
        %v445 = vsel %vm444, %v236, %v443
        %vm446 = vcmp.eq.f32.partialorder %v236, 0.0
        %v447 = vand.u32 %v236, 2147483648
        %v448 = vsel %vm446, %v447, %v445
        %v449 = vrsqrt.pop %v237
        %v450 = vmul.f32 %v237, %v449
        %vm451 = vcmp.eq.f32.partialorder %v237, inf
        %v452 = vsel %vm451, %v237, %v450
        %vm453 = vcmp.eq.f32.partialorder %v237, 0.0
        %v454 = vand.u32 %v237, 2147483648
        %v455 = vsel %vm453, %v454, %v452
        %v456 = vrsqrt.pop %v238
        %v457 = vmul.f32 %v238, %v456
        %vm458 = vcmp.eq.f32.partialorder %v238, inf
        %v459 = vsel %vm458, %v238, %v457
        %vm460 = vcmp.eq.f32.partialorder %v238, 0.0
        %v461 = vand.u32 %v238, 2147483648
        %v462 = vsel %vm460, %v461, %v459
        %v463 = vld [vmem:[%s178] sm:$0xff]
        %v464 = vld [vmem:[%s178 + $0x8] sm:$0xff]
        %v465 = vld [vmem:[%s178 + $0x10] sm:$0xff]
        %v466 = vld [vmem:[%s178 + $0x18] sm:$0xff]
        %v467 = vld [vmem:[%s178 + $0x20] sm:$0xff]
        %v468 = vld [vmem:[%s178 + $0x28] sm:$0xff]
        %v469 = vld [vmem:[%s178 + $0x30] sm:$0xff]
        %v470 = vld [vmem:[%s178 + $0x38] sm:$0xff]
        %v471 = vld [vmem:[%s178 + $0x40] sm:$0xff]
        %v472 = vld [vmem:[%s178 + $0x48] sm:$0xff]
        %v473 = vld [vmem:[%s178 + $0x50] sm:$0xff]
        %v474 = vld [vmem:[%s178 + $0x58] sm:$0xff]
        %v475 = vld [vmem:[%s178 + $0x60] sm:$0xff]
        %v476 = vld [vmem:[%s178 + $0x68] sm:$0xff]
        %v477 = vld [vmem:[%s178 + $0x70] sm:$0xff]
        %v478 = vld [vmem:[%s178 + $0x78] sm:$0xff]
        %v479 = vld [vmem:[%s178 + $0x80] sm:$0xff]
        %v480 = vld [vmem:[%s178 + $0x88] sm:$0xff]
        %v481 = vld [vmem:[%s178 + $0x90] sm:$0xff]
        %v482 = vld [vmem:[%s178 + $0x98] sm:$0xff]
        %v483 = vld [vmem:[%s178 + $0xa0] sm:$0xff]
        %v484 = vld [vmem:[%s178 + $0xa8] sm:$0xff]
        %v485 = vld [vmem:[%s178 + $0xb0] sm:$0xff]
        %v486 = vld [vmem:[%s178 + $0xb8] sm:$0xff]
        %v487 = vld [vmem:[%s178 + $0xc0] sm:$0xff]
        %v488 = vld [vmem:[%s178 + $0xc8] sm:$0xff]
        %v489 = vld [vmem:[%s178 + $0xd0] sm:$0xff]
        %v490 = vld [vmem:[%s178 + $0xd8] sm:$0xff]
        %v491 = vld [vmem:[%s178 + $0xe0] sm:$0xff]
        %v492 = vld [vmem:[%s178 + $0xe8] sm:$0xff]
        %v493 = vld [vmem:[%s178 + $0xf0] sm:$0xff]
        %v494 = vld [vmem:[%s178 + $0xf8] sm:$0xff]
        %v495 = vmul.f32 %v463, 3.1415927
        %v496 = vmul.f32 %v464, 3.1415927
        %v497 = vmul.f32 %v465, 3.1415927
        %v498 = vmul.f32 %v466, 3.1415927
        %v499 = vmul.f32 %v467, 3.1415927
        %v500 = vmul.f32 %v468, 3.1415927
        %v501 = vmul.f32 %v469, 3.1415927
        %v502 = vmul.f32 %v470, 3.1415927
        %v503 = vmul.f32 %v471, 3.1415927
        %v504 = vmul.f32 %v472, 3.1415927
        %v505 = vmul.f32 %v473, 3.1415927
        %v506 = vmul.f32 %v474, 3.1415927
        %v507 = vmul.f32 %v475, 3.1415927
        %v508 = vmul.f32 %v476, 3.1415927
        %v509 = vmul.f32 %v477, 3.1415927
        %v510 = vmul.f32 %v478, 3.1415927
        %v511 = vmul.f32 %v479, 3.1415927
        %v512 = vmul.f32 %v480, 3.1415927
        %v513 = vmul.f32 %v481, 3.1415927
        %v514 = vmul.f32 %v482, 3.1415927
        %v515 = vmul.f32 %v483, 3.1415927
        %v516 = vmul.f32 %v484, 3.1415927
        %v517 = vmul.f32 %v485, 3.1415927
        %v518 = vmul.f32 %v486, 3.1415927
        %v519 = vmul.f32 %v487, 3.1415927
        %v520 = vmul.f32 %v488, 3.1415927
        %v521 = vmul.f32 %v489, 3.1415927
        %v522 = vmul.f32 %v490, 3.1415927
        %v523 = vmul.f32 %v491, 3.1415927
        %v524 = vmul.f32 %v492, 3.1415927
        %v525 = vmul.f32 %v493, 3.1415927
        %v526 = vmul.f32 %v494, 3.1415927
        %v527 = vand.u32 2147483647, %v495
        %vm528 = vcmp.le.f32.partialorder %v527, 0.7853982
        %vm529 = vcmp.lt.s32.totalorder %v495, 0
        %v530 = vand.u32 %v495, 2139095040
        %v531 = vshrl.u32 %v530, 23
        %v532 = vsub.s32 %v531, 127
        %v533 = vand.u32 2147483647, %v495
        %v534 = vand.u32 %v533, 8388607
        %v535 = vor.u32 %v534, 8388608
        %v536 = vsub.s32 0, %v535
        %v537 = vadd.s32 %v532, 1
        %vm538 = vcmp.gt.s32.totalorder %v537, 0
        %v539 = vsel %vm538, %v537, 0
        %v540 = vshrl.u32 %v539, 5
        %v541 = vand.u32 %v539, 31
        %v542 = vsub.s32 32, %v541
        %v543 = vshrl.u32 683565275, %v542
        %v544 = vshll.u32 683565275, %v541
        %v545 = vshrl.u32 2475754826, %v542
        %v546 = vor.u32 %v544, %v545
        %v547 = vshll.u32 2475754826, %v541
        %v548 = vshrl.u32 2131351028, %v542
        %v549 = vor.u32 %v547, %v548
        %v550 = vshll.u32 2131351028, %v541
        %v551 = vshrl.u32 2102212464, %v542
        %v552 = vor.u32 %v550, %v551
        %v553 = vshll.u32 2102212464, %v541
        %v554 = vshrl.u32 920167782, %v542
        %v555 = vor.u32 %v553, %v554
        %v556 = vshll.u32 920167782, %v541
        %v557 = vshrl.u32 1326507024, %v542
        %v558 = vor.u32 %v556, %v557
        %vm559 = vcmp.lt.s32.totalorder %v540, 1
        %vm560 = vcmp.lt.s32.totalorder %v540, 2
        %vm561 = vcmp.lt.s32.totalorder %v540, 3
        %vm562 = vcmp.lt.s32.totalorder %v540, 4
        %v563 = vsel %vm559, %v543, %v546
        %v564 = vsel %vm562, %v552, 2102212464
        %v565 = vsel %vm561, %v549, %v564
        %v566 = vsel %vm560, %v563, %v565
        %v567 = vsel %vm559, %v546, %v549
        %v568 = vsel %vm562, %v555, 920167782
        %v569 = vsel %vm561, %v552, %v568
        %v570 = vsel %vm560, %v567, %v569
        %v571 = vsel %vm559, %v549, %v552
        %v572 = vsel %vm562, %v558, 1326507024
        %v573 = vsel %vm561, %v555, %v572
        %v574 = vsel %vm560, %v571, %v573
        %v575 = vshll.u32 %v535, 8
        %v576 = vmul.u32.u64.compose %v575, %v574
        %v577 = vextract.low.u32 %v576
        %v578 = vextract.high.u32 %v576
        %v579 = vmul.u32.u64.compose %v575, %v570
        %v580 = vextract.low.u32 %v579
        %v581 = vextract.high.u32 %v579
        %v582 = vmul.u32 %v575, %v566
        %v583 = vadd.s32 %v578, %v580
        %vm584 = vc.u32 %v578, %v580
        %v585 = vadd.s32 %v581, 1
        %v586 = vsel %vm584, %v585, %v581
        %v587 = vadd.s32 %v582, %v586
        %v588 = vadd.s32 %v587, 536870912
        %v589 = vshrl.u32 %v588, 30
        %v590 = vshll.u32 %v589, 30
        %v591 = vsub.s32 %v587, %v590
        %vm592 = vcmp.lt.s32.totalorder %v591, 0
        %v593 = vsub.s32 0, %v591
        %v594 = vsel %vm592, %v593, %v591
        %v595 = vclz %v594
        %v596 = vsub.s32 %v595, 2
        %vm597 = vcmp.gt.s32.totalorder 0, %v596
        %v598 = vsel %vm597, 0, %v596
        %v599 = vsub.s32 32, %v598
        %v600 = vshll.u32 %v591, %v598
        %v601 = vshrl.u32 %v583, %v599
        %v602 = vor.u32 %v600, %v601
        %v603 = vsub.s32 4294967266, %v598
        %v604 = vadd.s32 %v603, 127
        %v605 = vshll.u32 %v604, 23
        %v606 = vor.u32 4788187, %v605
        %v607 = vand.u32 2147483647, %v606
        %v609 = vcvt.s32.f32 %v602
        %v610 = vmul.f32 %v609, %v607
        %v611 = vxor.u32 %v610, 2147483648
        %v612 = vsel %vm529, %v611, %v610
        %v613 = vsub.s32 4, %v589
        %v614 = vsel %vm529, %v613, %v589
        %v615 = vsel %vm528, %v495, %v612
        %v616 = vsel %vm528, 0, %v614
        %v617 = vcosq.f32.pop %v615
        %v618 = vsinq.f32.pop %v615
        %vm619 = vweird.f32 %v495
        %v620 = vand.u32 %v616, 3
        %vm621 = vcmp.lt.s32.totalorder %v620, 2
        %vm622 = vcmp.eq.s32.totalorder %v620, 0
        %v623 = vxor.u32 %v618, 2147483648
        %v624 = vsel %vm622, %v617, %v623
        %vm625 = vcmp.eq.s32.totalorder %v620, 2
        %v626 = vxor.u32 %v617, 2147483648
        %v627 = vsel %vm625, %v626, %v618
        %v628 = vsel %vm621, %v624, %v627
        %v629 = vsel %vm619, nan, %v628
        %v630 = vand.u32 2147483647, %v496
        %vm631 = vcmp.le.f32.partialorder %v630, 0.7853982
        %vm632 = vcmp.lt.s32.totalorder %v496, 0
        %v633 = vand.u32 %v496, 2139095040
        %v634 = vshrl.u32 %v633, 23
        %v635 = vsub.s32 %v634, 127
        %v636 = vand.u32 2147483647, %v496
        %v637 = vand.u32 %v636, 8388607
        %v638 = vor.u32 %v637, 8388608
        %v639 = vsub.s32 0, %v638
        %v640 = vadd.s32 %v635, 1
        %vm641 = vcmp.gt.s32.totalorder %v640, 0
        %v642 = vsel %vm641, %v640, 0
        %v643 = vshrl.u32 %v642, 5
        %v644 = vand.u32 %v642, 31
        %v645 = vsub.s32 32, %v644
        %v646 = vshrl.u32 683565275, %v645
        %v647 = vshll.u32 683565275, %v644
        %v648 = vshrl.u32 2475754826, %v645
        %v649 = vor.u32 %v647, %v648
        %v650 = vshll.u32 2475754826, %v644
        %v651 = vshrl.u32 2131351028, %v645
        %v652 = vor.u32 %v650, %v651
        %v653 = vshll.u32 2131351028, %v644
        %v654 = vshrl.u32 2102212464, %v645
        %v655 = vor.u32 %v653, %v654
        %v656 = vshll.u32 2102212464, %v644
        %v657 = vshrl.u32 920167782, %v645
        %v658 = vor.u32 %v656, %v657
        %v659 = vshll.u32 920167782, %v644
        %v660 = vshrl.u32 1326507024, %v645
        %v661 = vor.u32 %v659, %v660
        %vm662 = vcmp.lt.s32.totalorder %v643, 1
        %vm663 = vcmp.lt.s32.totalorder %v643, 2
        %vm664 = vcmp.lt.s32.totalorder %v643, 3
        %vm665 = vcmp.lt.s32.totalorder %v643, 4
        %v666 = vsel %vm662, %v646, %v649
        %v667 = vsel %vm665, %v655, 2102212464
        %v668 = vsel %vm664, %v652, %v667
        %v669 = vsel %vm663, %v666, %v668
        %v670 = vsel %vm662, %v649, %v652
        %v671 = vsel %vm665, %v658, 920167782
        %v672 = vsel %vm664, %v655, %v671
        %v673 = vsel %vm663, %v670, %v672
        %v674 = vsel %vm662, %v652, %v655
        %v675 = vsel %vm665, %v661, 1326507024
        %v676 = vsel %vm664, %v658, %v675
        %v677 = vsel %vm663, %v674, %v676
        %v678 = vshll.u32 %v638, 8
        %v679 = vmul.u32.u64.compose %v678, %v677
        %v680 = vextract.low.u32 %v679
        %v681 = vextract.high.u32 %v679
        %v682 = vmul.u32.u64.compose %v678, %v673
        %v683 = vextract.low.u32 %v682
        %v684 = vextract.high.u32 %v682
        %v685 = vmul.u32 %v678, %v669
        %v686 = vadd.s32 %v681, %v683
        %vm687 = vc.u32 %v681, %v683
        %v688 = vadd.s32 %v684, 1
        %v689 = vsel %vm687, %v688, %v684
        %v690 = vadd.s32 %v685, %v689
        %v691 = vadd.s32 %v690, 536870912
        %v692 = vshrl.u32 %v691, 30
        %v693 = vshll.u32 %v692, 30
        %v694 = vsub.s32 %v690, %v693
        %vm695 = vcmp.lt.s32.totalorder %v694, 0
        %v696 = vsub.s32 0, %v694
        %v697 = vsel %vm695, %v696, %v694
        %v698 = vclz %v697
        %v699 = vsub.s32 %v698, 2
        %vm700 = vcmp.gt.s32.totalorder 0, %v699
        %v701 = vsel %vm700, 0, %v699
        %v702 = vsub.s32 32, %v701
        %v703 = vshll.u32 %v694, %v701
        %v704 = vshrl.u32 %v686, %v702
        %v705 = vor.u32 %v703, %v704
        %v706 = vsub.s32 4294967266, %v701
        %v707 = vadd.s32 %v706, 127
        %v708 = vshll.u32 %v707, 23
        %v709 = vor.u32 4788187, %v708
        %v710 = vand.u32 2147483647, %v709
        %v712 = vcvt.s32.f32 %v705
        %v713 = vmul.f32 %v712, %v710
        %v714 = vxor.u32 %v713, 2147483648
        %v715 = vsel %vm632, %v714, %v713
        %v716 = vsub.s32 4, %v692
        %v717 = vsel %vm632, %v716, %v692
        %v718 = vsel %vm631, %v496, %v715
        %v719 = vsel %vm631, 0, %v717
        %v720 = vcosq.f32.pop %v718
        %v721 = vsinq.f32.pop %v718
        %vm722 = vweird.f32 %v496
        %v723 = vand.u32 %v719, 3
        %vm724 = vcmp.lt.s32.totalorder %v723, 2
        %vm725 = vcmp.eq.s32.totalorder %v723, 0
        %v726 = vxor.u32 %v721, 2147483648
        %v727 = vsel %vm725, %v720, %v726
        %vm728 = vcmp.eq.s32.totalorder %v723, 2
        %v729 = vxor.u32 %v720, 2147483648
        %v730 = vsel %vm728, %v729, %v721
        %v731 = vsel %vm724, %v727, %v730
        %v732 = vsel %vm722, nan, %v731
        %v733 = vand.u32 2147483647, %v497
        %vm734 = vcmp.le.f32.partialorder %v733, 0.7853982
        %vm735 = vcmp.lt.s32.totalorder %v497, 0
        %v736 = vand.u32 %v497, 2139095040
        %v737 = vshrl.u32 %v736, 23
        %v738 = vsub.s32 %v737, 127
        %v739 = vand.u32 2147483647, %v497
        %v740 = vand.u32 %v739, 8388607
        %v741 = vor.u32 %v740, 8388608
        %v742 = vsub.s32 0, %v741
        %v743 = vadd.s32 %v738, 1
        %vm744 = vcmp.gt.s32.totalorder %v743, 0
        %v745 = vsel %vm744, %v743, 0
        %v746 = vshrl.u32 %v745, 5
        %v747 = vand.u32 %v745, 31
        %v748 = vsub.s32 32, %v747
        %v749 = vshrl.u32 683565275, %v748
        %v750 = vshll.u32 683565275, %v747
        %v751 = vshrl.u32 2475754826, %v748
        %v752 = vor.u32 %v750, %v751
        %v753 = vshll.u32 2475754826, %v747
        %v754 = vshrl.u32 2131351028, %v748
        %v755 = vor.u32 %v753, %v754
        %v756 = vshll.u32 2131351028, %v747
        %v757 = vshrl.u32 2102212464, %v748
        %v758 = vor.u32 %v756, %v757
        %v759 = vshll.u32 2102212464, %v747
        %v760 = vshrl.u32 920167782, %v748
        %v761 = vor.u32 %v759, %v760
        %v762 = vshll.u32 920167782, %v747
        %v763 = vshrl.u32 1326507024, %v748
        %v764 = vor.u32 %v762, %v763
        %vm765 = vcmp.lt.s32.totalorder %v746, 1
        %vm766 = vcmp.lt.s32.totalorder %v746, 2
        %vm767 = vcmp.lt.s32.totalorder %v746, 3
        %vm768 = vcmp.lt.s32.totalorder %v746, 4
        %v769 = vsel %vm765, %v749, %v752
        %v770 = vsel %vm768, %v758, 2102212464
        %v771 = vsel %vm767, %v755, %v770
        %v772 = vsel %vm766, %v769, %v771
        %v773 = vsel %vm765, %v752, %v755
        %v774 = vsel %vm768, %v761, 920167782
        %v775 = vsel %vm767, %v758, %v774
        %v776 = vsel %vm766, %v773, %v775
        %v777 = vsel %vm765, %v755, %v758
        %v778 = vsel %vm768, %v764, 1326507024
        %v779 = vsel %vm767, %v761, %v778
        %v780 = vsel %vm766, %v777, %v779
        %v781 = vshll.u32 %v741, 8
        %v782 = vmul.u32.u64.compose %v781, %v780
        %v783 = vextract.low.u32 %v782
        %v784 = vextract.high.u32 %v782
        %v785 = vmul.u32.u64.compose %v781, %v776
        %v786 = vextract.low.u32 %v785
        %v787 = vextract.high.u32 %v785
        %v788 = vmul.u32 %v781, %v772
        %v789 = vadd.s32 %v784, %v786
        %vm790 = vc.u32 %v784, %v786
        %v791 = vadd.s32 %v787, 1
        %v792 = vsel %vm790, %v791, %v787
        %v793 = vadd.s32 %v788, %v792
        %v794 = vadd.s32 %v793, 536870912
        %v795 = vshrl.u32 %v794, 30
        %v796 = vshll.u32 %v795, 30
        %v797 = vsub.s32 %v793, %v796
        %vm798 = vcmp.lt.s32.totalorder %v797, 0
        %v799 = vsub.s32 0, %v797
        %v800 = vsel %vm798, %v799, %v797
        %v801 = vclz %v800
        %v802 = vsub.s32 %v801, 2
        %vm803 = vcmp.gt.s32.totalorder 0, %v802
        %v804 = vsel %vm803, 0, %v802
        %v805 = vsub.s32 32, %v804
        %v806 = vshll.u32 %v797, %v804
        %v807 = vshrl.u32 %v789, %v805
        %v808 = vor.u32 %v806, %v807
        %v809 = vsub.s32 4294967266, %v804
        %v810 = vadd.s32 %v809, 127
        %v811 = vshll.u32 %v810, 23
        %v812 = vor.u32 4788187, %v811
        %v813 = vand.u32 2147483647, %v812
        %v815 = vcvt.s32.f32 %v808
        %v816 = vmul.f32 %v815, %v813
        %v817 = vxor.u32 %v816, 2147483648
        %v818 = vsel %vm735, %v817, %v816
        %v819 = vsub.s32 4, %v795
        %v820 = vsel %vm735, %v819, %v795
        %v821 = vsel %vm734, %v497, %v818
        %v822 = vsel %vm734, 0, %v820
        %v823 = vcosq.f32.pop %v821
        %v824 = vsinq.f32.pop %v821
        %vm825 = vweird.f32 %v497
        %v826 = vand.u32 %v822, 3
        %vm827 = vcmp.lt.s32.totalorder %v826, 2
        %vm828 = vcmp.eq.s32.totalorder %v826, 0
        %v829 = vxor.u32 %v824, 2147483648
        %v830 = vsel %vm828, %v823, %v829
        %vm831 = vcmp.eq.s32.totalorder %v826, 2
        %v832 = vxor.u32 %v823, 2147483648
        %v833 = vsel %vm831, %v832, %v824
        %v834 = vsel %vm827, %v830, %v833
        %v835 = vsel %vm825, nan, %v834
        %v836 = vand.u32 2147483647, %v498
        %vm837 = vcmp.le.f32.partialorder %v836, 0.7853982
        %vm838 = vcmp.lt.s32.totalorder %v498, 0
        %v839 = vand.u32 %v498, 2139095040
        %v840 = vshrl.u32 %v839, 23
        %v841 = vsub.s32 %v840, 127
        %v842 = vand.u32 2147483647, %v498
        %v843 = vand.u32 %v842, 8388607
        %v844 = vor.u32 %v843, 8388608
        %v845 = vsub.s32 0, %v844
        %v846 = vadd.s32 %v841, 1
        %vm847 = vcmp.gt.s32.totalorder %v846, 0
        %v848 = vsel %vm847, %v846, 0
        %v849 = vshrl.u32 %v848, 5
        %v850 = vand.u32 %v848, 31
        %v851 = vsub.s32 32, %v850
        %v852 = vshrl.u32 683565275, %v851
        %v853 = vshll.u32 683565275, %v850
        %v854 = vshrl.u32 2475754826, %v851
        %v855 = vor.u32 %v853, %v854
        %v856 = vshll.u32 2475754826, %v850
        %v857 = vshrl.u32 2131351028, %v851
        %v858 = vor.u32 %v856, %v857
        %v859 = vshll.u32 2131351028, %v850
        %v860 = vshrl.u32 2102212464, %v851
        %v861 = vor.u32 %v859, %v860
        %v862 = vshll.u32 2102212464, %v850
        %v863 = vshrl.u32 920167782, %v851
        %v864 = vor.u32 %v862, %v863
        %v865 = vshll.u32 920167782, %v850
        %v866 = vshrl.u32 1326507024, %v851
        %v867 = vor.u32 %v865, %v866
        %vm868 = vcmp.lt.s32.totalorder %v849, 1
        %vm869 = vcmp.lt.s32.totalorder %v849, 2
        %vm870 = vcmp.lt.s32.totalorder %v849, 3
        %vm871 = vcmp.lt.s32.totalorder %v849, 4
        %v872 = vsel %vm868, %v852, %v855
        %v873 = vsel %vm871, %v861, 2102212464
        %v874 = vsel %vm870, %v858, %v873
        %v875 = vsel %vm869, %v872, %v874
        %v876 = vsel %vm868, %v855, %v858
        %v877 = vsel %vm871, %v864, 920167782
        %v878 = vsel %vm870, %v861, %v877
        %v879 = vsel %vm869, %v876, %v878
        %v880 = vsel %vm868, %v858, %v861
        %v881 = vsel %vm871, %v867, 1326507024
        %v882 = vsel %vm870, %v864, %v881
        %v883 = vsel %vm869, %v880, %v882
        %v884 = vshll.u32 %v844, 8
        %v885 = vmul.u32.u64.compose %v884, %v883
        %v886 = vextract.low.u32 %v885
        %v887 = vextract.high.u32 %v885
        %v888 = vmul.u32.u64.compose %v884, %v879
        %v889 = vextract.low.u32 %v888
        %v890 = vextract.high.u32 %v888
        %v891 = vmul.u32 %v884, %v875
        %v892 = vadd.s32 %v887, %v889
        %vm893 = vc.u32 %v887, %v889
        %v894 = vadd.s32 %v890, 1
        %v895 = vsel %vm893, %v894, %v890
        %v896 = vadd.s32 %v891, %v895
        %v897 = vadd.s32 %v896, 536870912
        %v898 = vshrl.u32 %v897, 30
        %v899 = vshll.u32 %v898, 30
        %v900 = vsub.s32 %v896, %v899
        %vm901 = vcmp.lt.s32.totalorder %v900, 0
        %v902 = vsub.s32 0, %v900
        %v903 = vsel %vm901, %v902, %v900
        %v904 = vclz %v903
        %v905 = vsub.s32 %v904, 2
        %vm906 = vcmp.gt.s32.totalorder 0, %v905
        %v907 = vsel %vm906, 0, %v905
        %v908 = vsub.s32 32, %v907
        %v909 = vshll.u32 %v900, %v907
        %v910 = vshrl.u32 %v892, %v908
        %v911 = vor.u32 %v909, %v910
        %v912 = vsub.s32 4294967266, %v907
        %v913 = vadd.s32 %v912, 127
        %v914 = vshll.u32 %v913, 23
        %v915 = vor.u32 4788187, %v914
        %v916 = vand.u32 2147483647, %v915
        %v918 = vcvt.s32.f32 %v911
        %v919 = vmul.f32 %v918, %v916
        %v920 = vxor.u32 %v919, 2147483648
        %v921 = vsel %vm838, %v920, %v919
        %v922 = vsub.s32 4, %v898
        %v923 = vsel %vm838, %v922, %v898
        %v924 = vsel %vm837, %v498, %v921
        %v925 = vsel %vm837, 0, %v923
        %v926 = vcosq.f32.pop %v924
        %v927 = vsinq.f32.pop %v924
        %vm928 = vweird.f32 %v498
        %v929 = vand.u32 %v925, 3
        %vm930 = vcmp.lt.s32.totalorder %v929, 2
        %vm931 = vcmp.eq.s32.totalorder %v929, 0
        %v932 = vxor.u32 %v927, 2147483648
        %v933 = vsel %vm931, %v926, %v932
        %vm934 = vcmp.eq.s32.totalorder %v929, 2
        %v935 = vxor.u32 %v926, 2147483648
        %v936 = vsel %vm934, %v935, %v927
        %v937 = vsel %vm930, %v933, %v936
        %v938 = vsel %vm928, nan, %v937
        %v939 = vand.u32 2147483647, %v499
        %vm940 = vcmp.le.f32.partialorder %v939, 0.7853982
        %vm941 = vcmp.lt.s32.totalorder %v499, 0
        %v942 = vand.u32 %v499, 2139095040
        %v943 = vshrl.u32 %v942, 23
        %v944 = vsub.s32 %v943, 127
        %v945 = vand.u32 2147483647, %v499
        %v946 = vand.u32 %v945, 8388607
        %v947 = vor.u32 %v946, 8388608
        %v948 = vsub.s32 0, %v947
        %v949 = vadd.s32 %v944, 1
        %vm950 = vcmp.gt.s32.totalorder %v949, 0
        %v951 = vsel %vm950, %v949, 0
        %v952 = vshrl.u32 %v951, 5
        %v953 = vand.u32 %v951, 31
        %v954 = vsub.s32 32, %v953
        %v955 = vshrl.u32 683565275, %v954
        %v956 = vshll.u32 683565275, %v953
        %v957 = vshrl.u32 2475754826, %v954
        %v958 = vor.u32 %v956, %v957
        %v959 = vshll.u32 2475754826, %v953
        %v960 = vshrl.u32 2131351028, %v954
        %v961 = vor.u32 %v959, %v960
        %v962 = vshll.u32 2131351028, %v953
        %v963 = vshrl.u32 2102212464, %v954
        %v964 = vor.u32 %v962, %v963
        %v965 = vshll.u32 2102212464, %v953
        %v966 = vshrl.u32 920167782, %v954
        %v967 = vor.u32 %v965, %v966
        %v968 = vshll.u32 920167782, %v953
        %v969 = vshrl.u32 1326507024, %v954
        %v970 = vor.u32 %v968, %v969
        %vm971 = vcmp.lt.s32.totalorder %v952, 1
        %vm972 = vcmp.lt.s32.totalorder %v952, 2
        %vm973 = vcmp.lt.s32.totalorder %v952, 3
        %vm974 = vcmp.lt.s32.totalorder %v952, 4
        %v975 = vsel %vm971, %v955, %v958
        %v976 = vsel %vm974, %v964, 2102212464
        %v977 = vsel %vm973, %v961, %v976
        %v978 = vsel %vm972, %v975, %v977
        %v979 = vsel %vm971, %v958, %v961
        %v980 = vsel %vm974, %v967, 920167782
        %v981 = vsel %vm973, %v964, %v980
        %v982 = vsel %vm972, %v979, %v981
        %v983 = vsel %vm971, %v961, %v964
        %v984 = vsel %vm974, %v970, 1326507024
        %v985 = vsel %vm973, %v967, %v984
        %v986 = vsel %vm972, %v983, %v985
        %v987 = vshll.u32 %v947, 8
        %v988 = vmul.u32.u64.compose %v987, %v986
        %v989 = vextract.low.u32 %v988
        %v990 = vextract.high.u32 %v988
        %v991 = vmul.u32.u64.compose %v987, %v982
        %v992 = vextract.low.u32 %v991
        %v993 = vextract.high.u32 %v991
        %v994 = vmul.u32 %v987, %v978
        %v995 = vadd.s32 %v990, %v992
        %vm996 = vc.u32 %v990, %v992
        %v997 = vadd.s32 %v993, 1
        %v998 = vsel %vm996, %v997, %v993
        %v999 = vadd.s32 %v994, %v998
        %v1000 = vadd.s32 %v999, 536870912
        %v1001 = vshrl.u32 %v1000, 30
        %v1002 = vshll.u32 %v1001, 30
        %v1003 = vsub.s32 %v999, %v1002
        %vm1004 = vcmp.lt.s32.totalorder %v1003, 0
        %v1005 = vsub.s32 0, %v1003
        %v1006 = vsel %vm1004, %v1005, %v1003
        %v1007 = vclz %v1006
        %v1008 = vsub.s32 %v1007, 2
        %vm1009 = vcmp.gt.s32.totalorder 0, %v1008
        %v1010 = vsel %vm1009, 0, %v1008
        %v1011 = vsub.s32 32, %v1010
        %v1012 = vshll.u32 %v1003, %v1010
        %v1013 = vshrl.u32 %v995, %v1011
        %v1014 = vor.u32 %v1012, %v1013
        %v1015 = vsub.s32 4294967266, %v1010
        %v1016 = vadd.s32 %v1015, 127
        %v1017 = vshll.u32 %v1016, 23
        %v1018 = vor.u32 4788187, %v1017
        %v1019 = vand.u32 2147483647, %v1018
        %v1021 = vcvt.s32.f32 %v1014
        %v1022 = vmul.f32 %v1021, %v1019
        %v1023 = vxor.u32 %v1022, 2147483648
        %v1024 = vsel %vm941, %v1023, %v1022
        %v1025 = vsub.s32 4, %v1001
        %v1026 = vsel %vm941, %v1025, %v1001
        %v1027 = vsel %vm940, %v499, %v1024
        %v1028 = vsel %vm940, 0, %v1026
        %v1029 = vcosq.f32.pop %v1027
        %v1030 = vsinq.f32.pop %v1027
        %vm1031 = vweird.f32 %v499
        %v1032 = vand.u32 %v1028, 3
        %vm1033 = vcmp.lt.s32.totalorder %v1032, 2
        %vm1034 = vcmp.eq.s32.totalorder %v1032, 0
        %v1035 = vxor.u32 %v1030, 2147483648
        %v1036 = vsel %vm1034, %v1029, %v1035
        %vm1037 = vcmp.eq.s32.totalorder %v1032, 2
        %v1038 = vxor.u32 %v1029, 2147483648
        %v1039 = vsel %vm1037, %v1038, %v1030
        %v1040 = vsel %vm1033, %v1036, %v1039
        %v1041 = vsel %vm1031, nan, %v1040
        %v1042 = vand.u32 2147483647, %v500
        %vm1043 = vcmp.le.f32.partialorder %v1042, 0.7853982
        %vm1044 = vcmp.lt.s32.totalorder %v500, 0
        %v1045 = vand.u32 %v500, 2139095040
        %v1046 = vshrl.u32 %v1045, 23
        %v1047 = vsub.s32 %v1046, 127
        %v1048 = vand.u32 2147483647, %v500
        %v1049 = vand.u32 %v1048, 8388607
        %v1050 = vor.u32 %v1049, 8388608
        %v1051 = vsub.s32 0, %v1050
        %v1052 = vadd.s32 %v1047, 1
        %vm1053 = vcmp.gt.s32.totalorder %v1052, 0
        %v1054 = vsel %vm1053, %v1052, 0
        %v1055 = vshrl.u32 %v1054, 5
        %v1056 = vand.u32 %v1054, 31
        %v1057 = vsub.s32 32, %v1056
        %v1058 = vshrl.u32 683565275, %v1057
        %v1059 = vshll.u32 683565275, %v1056
        %v1060 = vshrl.u32 2475754826, %v1057
        %v1061 = vor.u32 %v1059, %v1060
        %v1062 = vshll.u32 2475754826, %v1056
        %v1063 = vshrl.u32 2131351028, %v1057
        %v1064 = vor.u32 %v1062, %v1063
        %v1065 = vshll.u32 2131351028, %v1056
        %v1066 = vshrl.u32 2102212464, %v1057
        %v1067 = vor.u32 %v1065, %v1066
        %v1068 = vshll.u32 2102212464, %v1056
        %v1069 = vshrl.u32 920167782, %v1057
        %v1070 = vor.u32 %v1068, %v1069
        %v1071 = vshll.u32 920167782, %v1056
        %v1072 = vshrl.u32 1326507024, %v1057
        %v1073 = vor.u32 %v1071, %v1072
        %vm1074 = vcmp.lt.s32.totalorder %v1055, 1
        %vm1075 = vcmp.lt.s32.totalorder %v1055, 2
        %vm1076 = vcmp.lt.s32.totalorder %v1055, 3
        %vm1077 = vcmp.lt.s32.totalorder %v1055, 4
        %v1078 = vsel %vm1074, %v1058, %v1061
        %v1079 = vsel %vm1077, %v1067, 2102212464
        %v1080 = vsel %vm1076, %v1064, %v1079
        %v1081 = vsel %vm1075, %v1078, %v1080
        %v1082 = vsel %vm1074, %v1061, %v1064
        %v1083 = vsel %vm1077, %v1070, 920167782
        %v1084 = vsel %vm1076, %v1067, %v1083
        %v1085 = vsel %vm1075, %v1082, %v1084
        %v1086 = vsel %vm1074, %v1064, %v1067
        %v1087 = vsel %vm1077, %v1073, 1326507024
        %v1088 = vsel %vm1076, %v1070, %v1087
        %v1089 = vsel %vm1075, %v1086, %v1088
        %v1090 = vshll.u32 %v1050, 8
        %v1091 = vmul.u32.u64.compose %v1090, %v1089
        %v1092 = vextract.low.u32 %v1091
        %v1093 = vextract.high.u32 %v1091
        %v1094 = vmul.u32.u64.compose %v1090, %v1085
        %v1095 = vextract.low.u32 %v1094
        %v1096 = vextract.high.u32 %v1094
        %v1097 = vmul.u32 %v1090, %v1081
        %v1098 = vadd.s32 %v1093, %v1095
        %vm1099 = vc.u32 %v1093, %v1095
        %v1100 = vadd.s32 %v1096, 1
        %v1101 = vsel %vm1099, %v1100, %v1096
        %v1102 = vadd.s32 %v1097, %v1101
        %v1103 = vadd.s32 %v1102, 536870912
        %v1104 = vshrl.u32 %v1103, 30
        %v1105 = vshll.u32 %v1104, 30
        %v1106 = vsub.s32 %v1102, %v1105
        %vm1107 = vcmp.lt.s32.totalorder %v1106, 0
        %v1108 = vsub.s32 0, %v1106
        %v1109 = vsel %vm1107, %v1108, %v1106
        %v1110 = vclz %v1109
        %v1111 = vsub.s32 %v1110, 2
        %vm1112 = vcmp.gt.s32.totalorder 0, %v1111
        %v1113 = vsel %vm1112, 0, %v1111
        %v1114 = vsub.s32 32, %v1113
        %v1115 = vshll.u32 %v1106, %v1113
        %v1116 = vshrl.u32 %v1098, %v1114
        %v1117 = vor.u32 %v1115, %v1116
        %v1118 = vsub.s32 4294967266, %v1113
        %v1119 = vadd.s32 %v1118, 127
        %v1120 = vshll.u32 %v1119, 23
        %v1121 = vor.u32 4788187, %v1120
        %v1122 = vand.u32 2147483647, %v1121
        %v1124 = vcvt.s32.f32 %v1117
        %v1125 = vmul.f32 %v1124, %v1122
        %v1126 = vxor.u32 %v1125, 2147483648
        %v1127 = vsel %vm1044, %v1126, %v1125
        %v1128 = vsub.s32 4, %v1104
        %v1129 = vsel %vm1044, %v1128, %v1104
        %v1130 = vsel %vm1043, %v500, %v1127
        %v1131 = vsel %vm1043, 0, %v1129
        %v1132 = vcosq.f32.pop %v1130
        %v1133 = vsinq.f32.pop %v1130
        %vm1134 = vweird.f32 %v500
        %v1135 = vand.u32 %v1131, 3
        %vm1136 = vcmp.lt.s32.totalorder %v1135, 2
        %vm1137 = vcmp.eq.s32.totalorder %v1135, 0
        %v1138 = vxor.u32 %v1133, 2147483648
        %v1139 = vsel %vm1137, %v1132, %v1138
        %vm1140 = vcmp.eq.s32.totalorder %v1135, 2
        %v1141 = vxor.u32 %v1132, 2147483648
        %v1142 = vsel %vm1140, %v1141, %v1133
        %v1143 = vsel %vm1136, %v1139, %v1142
        %v1144 = vsel %vm1134, nan, %v1143
        %v1145 = vand.u32 2147483647, %v501
        %vm1146 = vcmp.le.f32.partialorder %v1145, 0.7853982
        %vm1147 = vcmp.lt.s32.totalorder %v501, 0
        %v1148 = vand.u32 %v501, 2139095040
        %v1149 = vshrl.u32 %v1148, 23
        %v1150 = vsub.s32 %v1149, 127
        %v1151 = vand.u32 2147483647, %v501
        %v1152 = vand.u32 %v1151, 8388607
        %v1153 = vor.u32 %v1152, 8388608
        %v1154 = vsub.s32 0, %v1153
        %v1155 = vadd.s32 %v1150, 1
        %vm1156 = vcmp.gt.s32.totalorder %v1155, 0
        %v1157 = vsel %vm1156, %v1155, 0
        %v1158 = vshrl.u32 %v1157, 5
        %v1159 = vand.u32 %v1157, 31
        %v1160 = vsub.s32 32, %v1159
        %v1161 = vshrl.u32 683565275, %v1160
        %v1162 = vshll.u32 683565275, %v1159
        %v1163 = vshrl.u32 2475754826, %v1160
        %v1164 = vor.u32 %v1162, %v1163
        %v1165 = vshll.u32 2475754826, %v1159
        %v1166 = vshrl.u32 2131351028, %v1160
        %v1167 = vor.u32 %v1165, %v1166
        %v1168 = vshll.u32 2131351028, %v1159
        %v1169 = vshrl.u32 2102212464, %v1160
        %v1170 = vor.u32 %v1168, %v1169
        %v1171 = vshll.u32 2102212464, %v1159
        %v1172 = vshrl.u32 920167782, %v1160
        %v1173 = vor.u32 %v1171, %v1172
        %v1174 = vshll.u32 920167782, %v1159
        %v1175 = vshrl.u32 1326507024, %v1160
        %v1176 = vor.u32 %v1174, %v1175
        %vm1177 = vcmp.lt.s32.totalorder %v1158, 1
        %vm1178 = vcmp.lt.s32.totalorder %v1158, 2
        %vm1179 = vcmp.lt.s32.totalorder %v1158, 3
        %vm1180 = vcmp.lt.s32.totalorder %v1158, 4
        %v1181 = vsel %vm1177, %v1161, %v1164
        %v1182 = vsel %vm1180, %v1170, 2102212464
        %v1183 = vsel %vm1179, %v1167, %v1182
        %v1184 = vsel %vm1178, %v1181, %v1183
        %v1185 = vsel %vm1177, %v1164, %v1167
        %v1186 = vsel %vm1180, %v1173, 920167782
        %v1187 = vsel %vm1179, %v1170, %v1186
        %v1188 = vsel %vm1178, %v1185, %v1187
        %v1189 = vsel %vm1177, %v1167, %v1170
        %v1190 = vsel %vm1180, %v1176, 1326507024
        %v1191 = vsel %vm1179, %v1173, %v1190
        %v1192 = vsel %vm1178, %v1189, %v1191
        %v1193 = vshll.u32 %v1153, 8
        %v1194 = vmul.u32.u64.compose %v1193, %v1192
        %v1195 = vextract.low.u32 %v1194
        %v1196 = vextract.high.u32 %v1194
        %v1197 = vmul.u32.u64.compose %v1193, %v1188
        %v1198 = vextract.low.u32 %v1197
        %v1199 = vextract.high.u32 %v1197
        %v1200 = vmul.u32 %v1193, %v1184
        %v1201 = vadd.s32 %v1196, %v1198
        %vm1202 = vc.u32 %v1196, %v1198
        %v1203 = vadd.s32 %v1199, 1
        %v1204 = vsel %vm1202, %v1203, %v1199
        %v1205 = vadd.s32 %v1200, %v1204
        %v1206 = vadd.s32 %v1205, 536870912
        %v1207 = vshrl.u32 %v1206, 30
        %v1208 = vshll.u32 %v1207, 30
        %v1209 = vsub.s32 %v1205, %v1208
        %vm1210 = vcmp.lt.s32.totalorder %v1209, 0
        %v1211 = vsub.s32 0, %v1209
        %v1212 = vsel %vm1210, %v1211, %v1209
        %v1213 = vclz %v1212
        %v1214 = vsub.s32 %v1213, 2
        %vm1215 = vcmp.gt.s32.totalorder 0, %v1214
        %v1216 = vsel %vm1215, 0, %v1214
        %v1217 = vsub.s32 32, %v1216
        %v1218 = vshll.u32 %v1209, %v1216
        %v1219 = vshrl.u32 %v1201, %v1217
        %v1220 = vor.u32 %v1218, %v1219
        %v1221 = vsub.s32 4294967266, %v1216
        %v1222 = vadd.s32 %v1221, 127
        %v1223 = vshll.u32 %v1222, 23
        %v1224 = vor.u32 4788187, %v1223
        %v1225 = vand.u32 2147483647, %v1224
        %v1227 = vcvt.s32.f32 %v1220
        %v1228 = vmul.f32 %v1227, %v1225
        %v1229 = vxor.u32 %v1228, 2147483648
        %v1230 = vsel %vm1147, %v1229, %v1228
        %v1231 = vsub.s32 4, %v1207
        %v1232 = vsel %vm1147, %v1231, %v1207
        %v1233 = vsel %vm1146, %v501, %v1230
        %v1234 = vsel %vm1146, 0, %v1232
        %v1235 = vcosq.f32.pop %v1233
        %v1236 = vsinq.f32.pop %v1233
        %vm1237 = vweird.f32 %v501
        %v1238 = vand.u32 %v1234, 3
        %vm1239 = vcmp.lt.s32.totalorder %v1238, 2
        %vm1240 = vcmp.eq.s32.totalorder %v1238, 0
        %v1241 = vxor.u32 %v1236, 2147483648
        %v1242 = vsel %vm1240, %v1235, %v1241
        %vm1243 = vcmp.eq.s32.totalorder %v1238, 2
        %v1244 = vxor.u32 %v1235, 2147483648
        %v1245 = vsel %vm1243, %v1244, %v1236
        %v1246 = vsel %vm1239, %v1242, %v1245
        %v1247 = vsel %vm1237, nan, %v1246
        %v1248 = vand.u32 2147483647, %v502
        %vm1249 = vcmp.le.f32.partialorder %v1248, 0.7853982
        %vm1250 = vcmp.lt.s32.totalorder %v502, 0
        %v1251 = vand.u32 %v502, 2139095040
        %v1252 = vshrl.u32 %v1251, 23
        %v1253 = vsub.s32 %v1252, 127
        %v1254 = vand.u32 2147483647, %v502
        %v1255 = vand.u32 %v1254, 8388607
        %v1256 = vor.u32 %v1255, 8388608
        %v1257 = vsub.s32 0, %v1256
        %v1258 = vadd.s32 %v1253, 1
        %vm1259 = vcmp.gt.s32.totalorder %v1258, 0
        %v1260 = vsel %vm1259, %v1258, 0
        %v1261 = vshrl.u32 %v1260, 5
        %v1262 = vand.u32 %v1260, 31
        %v1263 = vsub.s32 32, %v1262
        %v1264 = vshrl.u32 683565275, %v1263
        %v1265 = vshll.u32 683565275, %v1262
        %v1266 = vshrl.u32 2475754826, %v1263
        %v1267 = vor.u32 %v1265, %v1266
        %v1268 = vshll.u32 2475754826, %v1262
        %v1269 = vshrl.u32 2131351028, %v1263
        %v1270 = vor.u32 %v1268, %v1269
        %v1271 = vshll.u32 2131351028, %v1262
        %v1272 = vshrl.u32 2102212464, %v1263
        %v1273 = vor.u32 %v1271, %v1272
        %v1274 = vshll.u32 2102212464, %v1262
        %v1275 = vshrl.u32 920167782, %v1263
        %v1276 = vor.u32 %v1274, %v1275
        %v1277 = vshll.u32 920167782, %v1262
        %v1278 = vshrl.u32 1326507024, %v1263
        %v1279 = vor.u32 %v1277, %v1278
        %vm1280 = vcmp.lt.s32.totalorder %v1261, 1
        %vm1281 = vcmp.lt.s32.totalorder %v1261, 2
        %vm1282 = vcmp.lt.s32.totalorder %v1261, 3
        %vm1283 = vcmp.lt.s32.totalorder %v1261, 4
        %v1284 = vsel %vm1280, %v1264, %v1267
        %v1285 = vsel %vm1283, %v1273, 2102212464
        %v1286 = vsel %vm1282, %v1270, %v1285
        %v1287 = vsel %vm1281, %v1284, %v1286
        %v1288 = vsel %vm1280, %v1267, %v1270
        %v1289 = vsel %vm1283, %v1276, 920167782
        %v1290 = vsel %vm1282, %v1273, %v1289
        %v1291 = vsel %vm1281, %v1288, %v1290
        %v1292 = vsel %vm1280, %v1270, %v1273
        %v1293 = vsel %vm1283, %v1279, 1326507024
        %v1294 = vsel %vm1282, %v1276, %v1293
        %v1295 = vsel %vm1281, %v1292, %v1294
        %v1296 = vshll.u32 %v1256, 8
        %v1297 = vmul.u32.u64.compose %v1296, %v1295
        %v1298 = vextract.low.u32 %v1297
        %v1299 = vextract.high.u32 %v1297
        %v1300 = vmul.u32.u64.compose %v1296, %v1291
        %v1301 = vextract.low.u32 %v1300
        %v1302 = vextract.high.u32 %v1300
        %v1303 = vmul.u32 %v1296, %v1287
        %v1304 = vadd.s32 %v1299, %v1301
        %vm1305 = vc.u32 %v1299, %v1301
        %v1306 = vadd.s32 %v1302, 1
        %v1307 = vsel %vm1305, %v1306, %v1302
        %v1308 = vadd.s32 %v1303, %v1307
        %v1309 = vadd.s32 %v1308, 536870912
        %v1310 = vshrl.u32 %v1309, 30
        %v1311 = vshll.u32 %v1310, 30
        %v1312 = vsub.s32 %v1308, %v1311
        %vm1313 = vcmp.lt.s32.totalorder %v1312, 0
        %v1314 = vsub.s32 0, %v1312
        %v1315 = vsel %vm1313, %v1314, %v1312
        %v1316 = vclz %v1315
        %v1317 = vsub.s32 %v1316, 2
        %vm1318 = vcmp.gt.s32.totalorder 0, %v1317
        %v1319 = vsel %vm1318, 0, %v1317
        %v1320 = vsub.s32 32, %v1319
        %v1321 = vshll.u32 %v1312, %v1319
        %v1322 = vshrl.u32 %v1304, %v1320
        %v1323 = vor.u32 %v1321, %v1322
        %v1324 = vsub.s32 4294967266, %v1319
        %v1325 = vadd.s32 %v1324, 127
        %v1326 = vshll.u32 %v1325, 23
        %v1327 = vor.u32 4788187, %v1326
        %v1328 = vand.u32 2147483647, %v1327
        %v1330 = vcvt.s32.f32 %v1323
        %v1331 = vmul.f32 %v1330, %v1328
        %v1332 = vxor.u32 %v1331, 2147483648
        %v1333 = vsel %vm1250, %v1332, %v1331
        %v1334 = vsub.s32 4, %v1310
        %v1335 = vsel %vm1250, %v1334, %v1310
        %v1336 = vsel %vm1249, %v502, %v1333
        %v1337 = vsel %vm1249, 0, %v1335
        %v1338 = vcosq.f32.pop %v1336
        %v1339 = vsinq.f32.pop %v1336
        %vm1340 = vweird.f32 %v502
        %v1341 = vand.u32 %v1337, 3
        %vm1342 = vcmp.lt.s32.totalorder %v1341, 2
        %vm1343 = vcmp.eq.s32.totalorder %v1341, 0
        %v1344 = vxor.u32 %v1339, 2147483648
        %v1345 = vsel %vm1343, %v1338, %v1344
        %vm1346 = vcmp.eq.s32.totalorder %v1341, 2
        %v1347 = vxor.u32 %v1338, 2147483648
        %v1348 = vsel %vm1346, %v1347, %v1339
        %v1349 = vsel %vm1342, %v1345, %v1348
        %v1350 = vsel %vm1340, nan, %v1349
        %v1351 = vand.u32 2147483647, %v503
        %vm1352 = vcmp.le.f32.partialorder %v1351, 0.7853982
        %vm1353 = vcmp.lt.s32.totalorder %v503, 0
        %v1354 = vand.u32 %v503, 2139095040
        %v1355 = vshrl.u32 %v1354, 23
        %v1356 = vsub.s32 %v1355, 127
        %v1357 = vand.u32 2147483647, %v503
        %v1358 = vand.u32 %v1357, 8388607
        %v1359 = vor.u32 %v1358, 8388608
        %v1360 = vsub.s32 0, %v1359
        %v1361 = vadd.s32 %v1356, 1
        %vm1362 = vcmp.gt.s32.totalorder %v1361, 0
        %v1363 = vsel %vm1362, %v1361, 0
        %v1364 = vshrl.u32 %v1363, 5
        %v1365 = vand.u32 %v1363, 31
        %v1366 = vsub.s32 32, %v1365
        %v1367 = vshrl.u32 683565275, %v1366
        %v1368 = vshll.u32 683565275, %v1365
        %v1369 = vshrl.u32 2475754826, %v1366
        %v1370 = vor.u32 %v1368, %v1369
        %v1371 = vshll.u32 2475754826, %v1365
        %v1372 = vshrl.u32 2131351028, %v1366
        %v1373 = vor.u32 %v1371, %v1372
        %v1374 = vshll.u32 2131351028, %v1365
        %v1375 = vshrl.u32 2102212464, %v1366
        %v1376 = vor.u32 %v1374, %v1375
        %v1377 = vshll.u32 2102212464, %v1365
        %v1378 = vshrl.u32 920167782, %v1366
        %v1379 = vor.u32 %v1377, %v1378
        %v1380 = vshll.u32 920167782, %v1365
        %v1381 = vshrl.u32 1326507024, %v1366
        %v1382 = vor.u32 %v1380, %v1381
        %vm1383 = vcmp.lt.s32.totalorder %v1364, 1
        %vm1384 = vcmp.lt.s32.totalorder %v1364, 2
        %vm1385 = vcmp.lt.s32.totalorder %v1364, 3
        %vm1386 = vcmp.lt.s32.totalorder %v1364, 4
        %v1387 = vsel %vm1383, %v1367, %v1370
        %v1388 = vsel %vm1386, %v1376, 2102212464
        %v1389 = vsel %vm1385, %v1373, %v1388
        %v1390 = vsel %vm1384, %v1387, %v1389
        %v1391 = vsel %vm1383, %v1370, %v1373
        %v1392 = vsel %vm1386, %v1379, 920167782
        %v1393 = vsel %vm1385, %v1376, %v1392
        %v1394 = vsel %vm1384, %v1391, %v1393
        %v1395 = vsel %vm1383, %v1373, %v1376
        %v1396 = vsel %vm1386, %v1382, 1326507024
        %v1397 = vsel %vm1385, %v1379, %v1396
        %v1398 = vsel %vm1384, %v1395, %v1397
        %v1399 = vshll.u32 %v1359, 8
        %v1400 = vmul.u32.u64.compose %v1399, %v1398
        %v1401 = vextract.low.u32 %v1400
        %v1402 = vextract.high.u32 %v1400
        %v1403 = vmul.u32.u64.compose %v1399, %v1394
        %v1404 = vextract.low.u32 %v1403
        %v1405 = vextract.high.u32 %v1403
        %v1406 = vmul.u32 %v1399, %v1390
        %v1407 = vadd.s32 %v1402, %v1404
        %vm1408 = vc.u32 %v1402, %v1404
        %v1409 = vadd.s32 %v1405, 1
        %v1410 = vsel %vm1408, %v1409, %v1405
        %v1411 = vadd.s32 %v1406, %v1410
        %v1412 = vadd.s32 %v1411, 536870912
        %v1413 = vshrl.u32 %v1412, 30
        %v1414 = vshll.u32 %v1413, 30
        %v1415 = vsub.s32 %v1411, %v1414
        %vm1416 = vcmp.lt.s32.totalorder %v1415, 0
        %v1417 = vsub.s32 0, %v1415
        %v1418 = vsel %vm1416, %v1417, %v1415
        %v1419 = vclz %v1418
        %v1420 = vsub.s32 %v1419, 2
        %vm1421 = vcmp.gt.s32.totalorder 0, %v1420
        %v1422 = vsel %vm1421, 0, %v1420
        %v1423 = vsub.s32 32, %v1422
        %v1424 = vshll.u32 %v1415, %v1422
        %v1425 = vshrl.u32 %v1407, %v1423
        %v1426 = vor.u32 %v1424, %v1425
        %v1427 = vsub.s32 4294967266, %v1422
        %v1428 = vadd.s32 %v1427, 127
        %v1429 = vshll.u32 %v1428, 23
        %v1430 = vor.u32 4788187, %v1429
        %v1431 = vand.u32 2147483647, %v1430
        %v1433 = vcvt.s32.f32 %v1426
        %v1434 = vmul.f32 %v1433, %v1431
        %v1435 = vxor.u32 %v1434, 2147483648
        %v1436 = vsel %vm1353, %v1435, %v1434
        %v1437 = vsub.s32 4, %v1413
        %v1438 = vsel %vm1353, %v1437, %v1413
        %v1439 = vsel %vm1352, %v503, %v1436
        %v1440 = vsel %vm1352, 0, %v1438
        %v1441 = vcosq.f32.pop %v1439
        %v1442 = vsinq.f32.pop %v1439
        %vm1443 = vweird.f32 %v503
        %v1444 = vand.u32 %v1440, 3
        %vm1445 = vcmp.lt.s32.totalorder %v1444, 2
        %vm1446 = vcmp.eq.s32.totalorder %v1444, 0
        %v1447 = vxor.u32 %v1442, 2147483648
        %v1448 = vsel %vm1446, %v1441, %v1447
        %vm1449 = vcmp.eq.s32.totalorder %v1444, 2
        %v1450 = vxor.u32 %v1441, 2147483648
        %v1451 = vsel %vm1449, %v1450, %v1442
        %v1452 = vsel %vm1445, %v1448, %v1451
        %v1453 = vsel %vm1443, nan, %v1452
        %v1454 = vand.u32 2147483647, %v504
        %vm1455 = vcmp.le.f32.partialorder %v1454, 0.7853982
        %vm1456 = vcmp.lt.s32.totalorder %v504, 0
        %v1457 = vand.u32 %v504, 2139095040
        %v1458 = vshrl.u32 %v1457, 23
        %v1459 = vsub.s32 %v1458, 127
        %v1460 = vand.u32 2147483647, %v504
        %v1461 = vand.u32 %v1460, 8388607
        %v1462 = vor.u32 %v1461, 8388608
        %v1463 = vsub.s32 0, %v1462
        %v1464 = vadd.s32 %v1459, 1
        %vm1465 = vcmp.gt.s32.totalorder %v1464, 0
        %v1466 = vsel %vm1465, %v1464, 0
        %v1467 = vshrl.u32 %v1466, 5
        %v1468 = vand.u32 %v1466, 31
        %v1469 = vsub.s32 32, %v1468
        %v1470 = vshrl.u32 683565275, %v1469
        %v1471 = vshll.u32 683565275, %v1468
        %v1472 = vshrl.u32 2475754826, %v1469
        %v1473 = vor.u32 %v1471, %v1472
        %v1474 = vshll.u32 2475754826, %v1468
        %v1475 = vshrl.u32 2131351028, %v1469
        %v1476 = vor.u32 %v1474, %v1475
        %v1477 = vshll.u32 2131351028, %v1468
        %v1478 = vshrl.u32 2102212464, %v1469
        %v1479 = vor.u32 %v1477, %v1478
        %v1480 = vshll.u32 2102212464, %v1468
        %v1481 = vshrl.u32 920167782, %v1469
        %v1482 = vor.u32 %v1480, %v1481
        %v1483 = vshll.u32 920167782, %v1468
        %v1484 = vshrl.u32 1326507024, %v1469
        %v1485 = vor.u32 %v1483, %v1484
        %vm1486 = vcmp.lt.s32.totalorder %v1467, 1
        %vm1487 = vcmp.lt.s32.totalorder %v1467, 2
        %vm1488 = vcmp.lt.s32.totalorder %v1467, 3
        %vm1489 = vcmp.lt.s32.totalorder %v1467, 4
        %v1490 = vsel %vm1486, %v1470, %v1473
        %v1491 = vsel %vm1489, %v1479, 2102212464
        %v1492 = vsel %vm1488, %v1476, %v1491
        %v1493 = vsel %vm1487, %v1490, %v1492
        %v1494 = vsel %vm1486, %v1473, %v1476
        %v1495 = vsel %vm1489, %v1482, 920167782
        %v1496 = vsel %vm1488, %v1479, %v1495
        %v1497 = vsel %vm1487, %v1494, %v1496
        %v1498 = vsel %vm1486, %v1476, %v1479
        %v1499 = vsel %vm1489, %v1485, 1326507024
        %v1500 = vsel %vm1488, %v1482, %v1499
        %v1501 = vsel %vm1487, %v1498, %v1500
        %v1502 = vshll.u32 %v1462, 8
        %v1503 = vmul.u32.u64.compose %v1502, %v1501
        %v1504 = vextract.low.u32 %v1503
        %v1505 = vextract.high.u32 %v1503
        %v1506 = vmul.u32.u64.compose %v1502, %v1497
        %v1507 = vextract.low.u32 %v1506
        %v1508 = vextract.high.u32 %v1506
        %v1509 = vmul.u32 %v1502, %v1493
        %v1510 = vadd.s32 %v1505, %v1507
        %vm1511 = vc.u32 %v1505, %v1507
        %v1512 = vadd.s32 %v1508, 1
        %v1513 = vsel %vm1511, %v1512, %v1508
        %v1514 = vadd.s32 %v1509, %v1513
        %v1515 = vadd.s32 %v1514, 536870912
        %v1516 = vshrl.u32 %v1515, 30
        %v1517 = vshll.u32 %v1516, 30
        %v1518 = vsub.s32 %v1514, %v1517
        %vm1519 = vcmp.lt.s32.totalorder %v1518, 0
        %v1520 = vsub.s32 0, %v1518
        %v1521 = vsel %vm1519, %v1520, %v1518
        %v1522 = vclz %v1521
        %v1523 = vsub.s32 %v1522, 2
        %vm1524 = vcmp.gt.s32.totalorder 0, %v1523
        %v1525 = vsel %vm1524, 0, %v1523
        %v1526 = vsub.s32 32, %v1525
        %v1527 = vshll.u32 %v1518, %v1525
        %v1528 = vshrl.u32 %v1510, %v1526
        %v1529 = vor.u32 %v1527, %v1528
        %v1530 = vsub.s32 4294967266, %v1525
        %v1531 = vadd.s32 %v1530, 127
        %v1532 = vshll.u32 %v1531, 23
        %v1533 = vor.u32 4788187, %v1532
        %v1534 = vand.u32 2147483647, %v1533
        %v1536 = vcvt.s32.f32 %v1529
        %v1537 = vmul.f32 %v1536, %v1534
        %v1538 = vxor.u32 %v1537, 2147483648
        %v1539 = vsel %vm1456, %v1538, %v1537
        %v1540 = vsub.s32 4, %v1516
        %v1541 = vsel %vm1456, %v1540, %v1516
        %v1542 = vsel %vm1455, %v504, %v1539
        %v1543 = vsel %vm1455, 0, %v1541
        %v1544 = vcosq.f32.pop %v1542
        %v1545 = vsinq.f32.pop %v1542
        %vm1546 = vweird.f32 %v504
        %v1547 = vand.u32 %v1543, 3
        %vm1548 = vcmp.lt.s32.totalorder %v1547, 2
        %vm1549 = vcmp.eq.s32.totalorder %v1547, 0
        %v1550 = vxor.u32 %v1545, 2147483648
        %v1551 = vsel %vm1549, %v1544, %v1550
        %vm1552 = vcmp.eq.s32.totalorder %v1547, 2
        %v1553 = vxor.u32 %v1544, 2147483648
        %v1554 = vsel %vm1552, %v1553, %v1545
        %v1555 = vsel %vm1548, %v1551, %v1554
        %v1556 = vsel %vm1546, nan, %v1555
        %v1557 = vand.u32 2147483647, %v505
        %vm1558 = vcmp.le.f32.partialorder %v1557, 0.7853982
        %vm1559 = vcmp.lt.s32.totalorder %v505, 0
        %v1560 = vand.u32 %v505, 2139095040
        %v1561 = vshrl.u32 %v1560, 23
        %v1562 = vsub.s32 %v1561, 127
        %v1563 = vand.u32 2147483647, %v505
        %v1564 = vand.u32 %v1563, 8388607
        %v1565 = vor.u32 %v1564, 8388608
        %v1566 = vsub.s32 0, %v1565
        %v1567 = vadd.s32 %v1562, 1
        %vm1568 = vcmp.gt.s32.totalorder %v1567, 0
        %v1569 = vsel %vm1568, %v1567, 0
        %v1570 = vshrl.u32 %v1569, 5
        %v1571 = vand.u32 %v1569, 31
        %v1572 = vsub.s32 32, %v1571
        %v1573 = vshrl.u32 683565275, %v1572
        %v1574 = vshll.u32 683565275, %v1571
        %v1575 = vshrl.u32 2475754826, %v1572
        %v1576 = vor.u32 %v1574, %v1575
        %v1577 = vshll.u32 2475754826, %v1571
        %v1578 = vshrl.u32 2131351028, %v1572
        %v1579 = vor.u32 %v1577, %v1578
        %v1580 = vshll.u32 2131351028, %v1571
        %v1581 = vshrl.u32 2102212464, %v1572
        %v1582 = vor.u32 %v1580, %v1581
        %v1583 = vshll.u32 2102212464, %v1571
        %v1584 = vshrl.u32 920167782, %v1572
        %v1585 = vor.u32 %v1583, %v1584
        %v1586 = vshll.u32 920167782, %v1571
        %v1587 = vshrl.u32 1326507024, %v1572
        %v1588 = vor.u32 %v1586, %v1587
        %vm1589 = vcmp.lt.s32.totalorder %v1570, 1
        %vm1590 = vcmp.lt.s32.totalorder %v1570, 2
        %vm1591 = vcmp.lt.s32.totalorder %v1570, 3
        %vm1592 = vcmp.lt.s32.totalorder %v1570, 4
        %v1593 = vsel %vm1589, %v1573, %v1576
        %v1594 = vsel %vm1592, %v1582, 2102212464
        %v1595 = vsel %vm1591, %v1579, %v1594
        %v1596 = vsel %vm1590, %v1593, %v1595
        %v1597 = vsel %vm1589, %v1576, %v1579
        %v1598 = vsel %vm1592, %v1585, 920167782
        %v1599 = vsel %vm1591, %v1582, %v1598
        %v1600 = vsel %vm1590, %v1597, %v1599
        %v1601 = vsel %vm1589, %v1579, %v1582
        %v1602 = vsel %vm1592, %v1588, 1326507024
        %v1603 = vsel %vm1591, %v1585, %v1602
        %v1604 = vsel %vm1590, %v1601, %v1603
        %v1605 = vshll.u32 %v1565, 8
        %v1606 = vmul.u32.u64.compose %v1605, %v1604
        %v1607 = vextract.low.u32 %v1606
        %v1608 = vextract.high.u32 %v1606
        %v1609 = vmul.u32.u64.compose %v1605, %v1600
        %v1610 = vextract.low.u32 %v1609
        %v1611 = vextract.high.u32 %v1609
        %v1612 = vmul.u32 %v1605, %v1596
        %v1613 = vadd.s32 %v1608, %v1610
        %vm1614 = vc.u32 %v1608, %v1610
        %v1615 = vadd.s32 %v1611, 1
        %v1616 = vsel %vm1614, %v1615, %v1611
        %v1617 = vadd.s32 %v1612, %v1616
        %v1618 = vadd.s32 %v1617, 536870912
        %v1619 = vshrl.u32 %v1618, 30
        %v1620 = vshll.u32 %v1619, 30
        %v1621 = vsub.s32 %v1617, %v1620
        %vm1622 = vcmp.lt.s32.totalorder %v1621, 0
        %v1623 = vsub.s32 0, %v1621
        %v1624 = vsel %vm1622, %v1623, %v1621
        %v1625 = vclz %v1624
        %v1626 = vsub.s32 %v1625, 2
        %vm1627 = vcmp.gt.s32.totalorder 0, %v1626
        %v1628 = vsel %vm1627, 0, %v1626
        %v1629 = vsub.s32 32, %v1628
        %v1630 = vshll.u32 %v1621, %v1628
        %v1631 = vshrl.u32 %v1613, %v1629
        %v1632 = vor.u32 %v1630, %v1631
        %v1633 = vsub.s32 4294967266, %v1628
        %v1634 = vadd.s32 %v1633, 127
        %v1635 = vshll.u32 %v1634, 23
        %v1636 = vor.u32 4788187, %v1635
        %v1637 = vand.u32 2147483647, %v1636
        %v1639 = vcvt.s32.f32 %v1632
        %v1640 = vmul.f32 %v1639, %v1637
        %v1641 = vxor.u32 %v1640, 2147483648
        %v1642 = vsel %vm1559, %v1641, %v1640
        %v1643 = vsub.s32 4, %v1619
        %v1644 = vsel %vm1559, %v1643, %v1619
        %v1645 = vsel %vm1558, %v505, %v1642
        %v1646 = vsel %vm1558, 0, %v1644
        %v1647 = vcosq.f32.pop %v1645
        %v1648 = vsinq.f32.pop %v1645
        %vm1649 = vweird.f32 %v505
        %v1650 = vand.u32 %v1646, 3
        %vm1651 = vcmp.lt.s32.totalorder %v1650, 2
        %vm1652 = vcmp.eq.s32.totalorder %v1650, 0
        %v1653 = vxor.u32 %v1648, 2147483648
        %v1654 = vsel %vm1652, %v1647, %v1653
        %vm1655 = vcmp.eq.s32.totalorder %v1650, 2
        %v1656 = vxor.u32 %v1647, 2147483648
        %v1657 = vsel %vm1655, %v1656, %v1648
        %v1658 = vsel %vm1651, %v1654, %v1657
        %v1659 = vsel %vm1649, nan, %v1658
        %v1660 = vand.u32 2147483647, %v506
        %vm1661 = vcmp.le.f32.partialorder %v1660, 0.7853982
        %vm1662 = vcmp.lt.s32.totalorder %v506, 0
        %v1663 = vand.u32 %v506, 2139095040
        %v1664 = vshrl.u32 %v1663, 23
        %v1665 = vsub.s32 %v1664, 127
        %v1666 = vand.u32 2147483647, %v506
        %v1667 = vand.u32 %v1666, 8388607
        %v1668 = vor.u32 %v1667, 8388608
        %v1669 = vsub.s32 0, %v1668
        %v1670 = vadd.s32 %v1665, 1
        %vm1671 = vcmp.gt.s32.totalorder %v1670, 0
        %v1672 = vsel %vm1671, %v1670, 0
        %v1673 = vshrl.u32 %v1672, 5
        %v1674 = vand.u32 %v1672, 31
        %v1675 = vsub.s32 32, %v1674
        %v1676 = vshrl.u32 683565275, %v1675
        %v1677 = vshll.u32 683565275, %v1674
        %v1678 = vshrl.u32 2475754826, %v1675
        %v1679 = vor.u32 %v1677, %v1678
        %v1680 = vshll.u32 2475754826, %v1674
        %v1681 = vshrl.u32 2131351028, %v1675
        %v1682 = vor.u32 %v1680, %v1681
        %v1683 = vshll.u32 2131351028, %v1674
        %v1684 = vshrl.u32 2102212464, %v1675
        %v1685 = vor.u32 %v1683, %v1684
        %v1686 = vshll.u32 2102212464, %v1674
        %v1687 = vshrl.u32 920167782, %v1675
        %v1688 = vor.u32 %v1686, %v1687
        %v1689 = vshll.u32 920167782, %v1674
        %v1690 = vshrl.u32 1326507024, %v1675
        %v1691 = vor.u32 %v1689, %v1690
        %vm1692 = vcmp.lt.s32.totalorder %v1673, 1
        %vm1693 = vcmp.lt.s32.totalorder %v1673, 2
        %vm1694 = vcmp.lt.s32.totalorder %v1673, 3
        %vm1695 = vcmp.lt.s32.totalorder %v1673, 4
        %v1696 = vsel %vm1692, %v1676, %v1679
        %v1697 = vsel %vm1695, %v1685, 2102212464
        %v1698 = vsel %vm1694, %v1682, %v1697
        %v1699 = vsel %vm1693, %v1696, %v1698
        %v1700 = vsel %vm1692, %v1679, %v1682
        %v1701 = vsel %vm1695, %v1688, 920167782
        %v1702 = vsel %vm1694, %v1685, %v1701
        %v1703 = vsel %vm1693, %v1700, %v1702
        %v1704 = vsel %vm1692, %v1682, %v1685
        %v1705 = vsel %vm1695, %v1691, 1326507024
        %v1706 = vsel %vm1694, %v1688, %v1705
        %v1707 = vsel %vm1693, %v1704, %v1706
        %v1708 = vshll.u32 %v1668, 8
        %v1709 = vmul.u32.u64.compose %v1708, %v1707
        %v1710 = vextract.low.u32 %v1709
        %v1711 = vextract.high.u32 %v1709
        %v1712 = vmul.u32.u64.compose %v1708, %v1703
        %v1713 = vextract.low.u32 %v1712
        %v1714 = vextract.high.u32 %v1712
        %v1715 = vmul.u32 %v1708, %v1699
        %v1716 = vadd.s32 %v1711, %v1713
        %vm1717 = vc.u32 %v1711, %v1713
        %v1718 = vadd.s32 %v1714, 1
        %v1719 = vsel %vm1717, %v1718, %v1714
        %v1720 = vadd.s32 %v1715, %v1719
        %v1721 = vadd.s32 %v1720, 536870912
        %v1722 = vshrl.u32 %v1721, 30
        %v1723 = vshll.u32 %v1722, 30
        %v1724 = vsub.s32 %v1720, %v1723
        %vm1725 = vcmp.lt.s32.totalorder %v1724, 0
        %v1726 = vsub.s32 0, %v1724
        %v1727 = vsel %vm1725, %v1726, %v1724
        %v1728 = vclz %v1727
        %v1729 = vsub.s32 %v1728, 2
        %vm1730 = vcmp.gt.s32.totalorder 0, %v1729
        %v1731 = vsel %vm1730, 0, %v1729
        %v1732 = vsub.s32 32, %v1731
        %v1733 = vshll.u32 %v1724, %v1731
        %v1734 = vshrl.u32 %v1716, %v1732
        %v1735 = vor.u32 %v1733, %v1734
        %v1736 = vsub.s32 4294967266, %v1731
        %v1737 = vadd.s32 %v1736, 127
        %v1738 = vshll.u32 %v1737, 23
        %v1739 = vor.u32 4788187, %v1738
        %v1740 = vand.u32 2147483647, %v1739
        %v1742 = vcvt.s32.f32 %v1735
        %v1743 = vmul.f32 %v1742, %v1740
        %v1744 = vxor.u32 %v1743, 2147483648
        %v1745 = vsel %vm1662, %v1744, %v1743
        %v1746 = vsub.s32 4, %v1722
        %v1747 = vsel %vm1662, %v1746, %v1722
        %v1748 = vsel %vm1661, %v506, %v1745
        %v1749 = vsel %vm1661, 0, %v1747
        %v1750 = vcosq.f32.pop %v1748
        %v1751 = vsinq.f32.pop %v1748
        %vm1752 = vweird.f32 %v506
        %v1753 = vand.u32 %v1749, 3
        %vm1754 = vcmp.lt.s32.totalorder %v1753, 2
        %vm1755 = vcmp.eq.s32.totalorder %v1753, 0
        %v1756 = vxor.u32 %v1751, 2147483648
        %v1757 = vsel %vm1755, %v1750, %v1756
        %vm1758 = vcmp.eq.s32.totalorder %v1753, 2
        %v1759 = vxor.u32 %v1750, 2147483648
        %v1760 = vsel %vm1758, %v1759, %v1751
        %v1761 = vsel %vm1754, %v1757, %v1760
        %v1762 = vsel %vm1752, nan, %v1761
        %v1763 = vand.u32 2147483647, %v507
        %vm1764 = vcmp.le.f32.partialorder %v1763, 0.7853982
        %vm1765 = vcmp.lt.s32.totalorder %v507, 0
        %v1766 = vand.u32 %v507, 2139095040
        %v1767 = vshrl.u32 %v1766, 23
        %v1768 = vsub.s32 %v1767, 127
        %v1769 = vand.u32 2147483647, %v507
        %v1770 = vand.u32 %v1769, 8388607
        %v1771 = vor.u32 %v1770, 8388608
        %v1772 = vsub.s32 0, %v1771
        %v1773 = vadd.s32 %v1768, 1
        %vm1774 = vcmp.gt.s32.totalorder %v1773, 0
        %v1775 = vsel %vm1774, %v1773, 0
        %v1776 = vshrl.u32 %v1775, 5
        %v1777 = vand.u32 %v1775, 31
        %v1778 = vsub.s32 32, %v1777
        %v1779 = vshrl.u32 683565275, %v1778
        %v1780 = vshll.u32 683565275, %v1777
        %v1781 = vshrl.u32 2475754826, %v1778
        %v1782 = vor.u32 %v1780, %v1781
        %v1783 = vshll.u32 2475754826, %v1777
        %v1784 = vshrl.u32 2131351028, %v1778
        %v1785 = vor.u32 %v1783, %v1784
        %v1786 = vshll.u32 2131351028, %v1777
        %v1787 = vshrl.u32 2102212464, %v1778
        %v1788 = vor.u32 %v1786, %v1787
        %v1789 = vshll.u32 2102212464, %v1777
        %v1790 = vshrl.u32 920167782, %v1778
        %v1791 = vor.u32 %v1789, %v1790
        %v1792 = vshll.u32 920167782, %v1777
        %v1793 = vshrl.u32 1326507024, %v1778
        %v1794 = vor.u32 %v1792, %v1793
        %vm1795 = vcmp.lt.s32.totalorder %v1776, 1
        %vm1796 = vcmp.lt.s32.totalorder %v1776, 2
        %vm1797 = vcmp.lt.s32.totalorder %v1776, 3
        %vm1798 = vcmp.lt.s32.totalorder %v1776, 4
        %v1799 = vsel %vm1795, %v1779, %v1782
        %v1800 = vsel %vm1798, %v1788, 2102212464
        %v1801 = vsel %vm1797, %v1785, %v1800
        %v1802 = vsel %vm1796, %v1799, %v1801
        %v1803 = vsel %vm1795, %v1782, %v1785
        %v1804 = vsel %vm1798, %v1791, 920167782
        %v1805 = vsel %vm1797, %v1788, %v1804
        %v1806 = vsel %vm1796, %v1803, %v1805
        %v1807 = vsel %vm1795, %v1785, %v1788
        %v1808 = vsel %vm1798, %v1794, 1326507024
        %v1809 = vsel %vm1797, %v1791, %v1808
        %v1810 = vsel %vm1796, %v1807, %v1809
        %v1811 = vshll.u32 %v1771, 8
        %v1812 = vmul.u32.u64.compose %v1811, %v1810
        %v1813 = vextract.low.u32 %v1812
        %v1814 = vextract.high.u32 %v1812
        %v1815 = vmul.u32.u64.compose %v1811, %v1806
        %v1816 = vextract.low.u32 %v1815
        %v1817 = vextract.high.u32 %v1815
        %v1818 = vmul.u32 %v1811, %v1802
        %v1819 = vadd.s32 %v1814, %v1816
        %vm1820 = vc.u32 %v1814, %v1816
        %v1821 = vadd.s32 %v1817, 1
        %v1822 = vsel %vm1820, %v1821, %v1817
        %v1823 = vadd.s32 %v1818, %v1822
        %v1824 = vadd.s32 %v1823, 536870912
        %v1825 = vshrl.u32 %v1824, 30
        %v1826 = vshll.u32 %v1825, 30
        %v1827 = vsub.s32 %v1823, %v1826
        %vm1828 = vcmp.lt.s32.totalorder %v1827, 0
        %v1829 = vsub.s32 0, %v1827
        %v1830 = vsel %vm1828, %v1829, %v1827
        %v1831 = vclz %v1830
        %v1832 = vsub.s32 %v1831, 2
        %vm1833 = vcmp.gt.s32.totalorder 0, %v1832
        %v1834 = vsel %vm1833, 0, %v1832
        %v1835 = vsub.s32 32, %v1834
        %v1836 = vshll.u32 %v1827, %v1834
        %v1837 = vshrl.u32 %v1819, %v1835
        %v1838 = vor.u32 %v1836, %v1837
        %v1839 = vsub.s32 4294967266, %v1834
        %v1840 = vadd.s32 %v1839, 127
        %v1841 = vshll.u32 %v1840, 23
        %v1842 = vor.u32 4788187, %v1841
        %v1843 = vand.u32 2147483647, %v1842
        %v1845 = vcvt.s32.f32 %v1838
        %v1846 = vmul.f32 %v1845, %v1843
        %v1847 = vxor.u32 %v1846, 2147483648
        %v1848 = vsel %vm1765, %v1847, %v1846
        %v1849 = vsub.s32 4, %v1825
        %v1850 = vsel %vm1765, %v1849, %v1825
        %v1851 = vsel %vm1764, %v507, %v1848
        %v1852 = vsel %vm1764, 0, %v1850
        %v1853 = vcosq.f32.pop %v1851
        %v1854 = vsinq.f32.pop %v1851
        %vm1855 = vweird.f32 %v507
        %v1856 = vand.u32 %v1852, 3
        %vm1857 = vcmp.lt.s32.totalorder %v1856, 2
        %vm1858 = vcmp.eq.s32.totalorder %v1856, 0
        %v1859 = vxor.u32 %v1854, 2147483648
        %v1860 = vsel %vm1858, %v1853, %v1859
        %vm1861 = vcmp.eq.s32.totalorder %v1856, 2
        %v1862 = vxor.u32 %v1853, 2147483648
        %v1863 = vsel %vm1861, %v1862, %v1854
        %v1864 = vsel %vm1857, %v1860, %v1863
        %v1865 = vsel %vm1855, nan, %v1864
        %v1866 = vand.u32 2147483647, %v508
        %vm1867 = vcmp.le.f32.partialorder %v1866, 0.7853982
        %vm1868 = vcmp.lt.s32.totalorder %v508, 0
        %v1869 = vand.u32 %v508, 2139095040
        %v1870 = vshrl.u32 %v1869, 23
        %v1871 = vsub.s32 %v1870, 127
        %v1872 = vand.u32 2147483647, %v508
        %v1873 = vand.u32 %v1872, 8388607
        %v1874 = vor.u32 %v1873, 8388608
        %v1875 = vsub.s32 0, %v1874
        %v1876 = vadd.s32 %v1871, 1
        %vm1877 = vcmp.gt.s32.totalorder %v1876, 0
        %v1878 = vsel %vm1877, %v1876, 0
        %v1879 = vshrl.u32 %v1878, 5
        %v1880 = vand.u32 %v1878, 31
        %v1881 = vsub.s32 32, %v1880
        %v1882 = vshrl.u32 683565275, %v1881
        %v1883 = vshll.u32 683565275, %v1880
        %v1884 = vshrl.u32 2475754826, %v1881
        %v1885 = vor.u32 %v1883, %v1884
        %v1886 = vshll.u32 2475754826, %v1880
        %v1887 = vshrl.u32 2131351028, %v1881
        %v1888 = vor.u32 %v1886, %v1887
        %v1889 = vshll.u32 2131351028, %v1880
        %v1890 = vshrl.u32 2102212464, %v1881
        %v1891 = vor.u32 %v1889, %v1890
        %v1892 = vshll.u32 2102212464, %v1880
        %v1893 = vshrl.u32 920167782, %v1881
        %v1894 = vor.u32 %v1892, %v1893
        %v1895 = vshll.u32 920167782, %v1880
        %v1896 = vshrl.u32 1326507024, %v1881
        %v1897 = vor.u32 %v1895, %v1896
        %vm1898 = vcmp.lt.s32.totalorder %v1879, 1
        %vm1899 = vcmp.lt.s32.totalorder %v1879, 2
        %vm1900 = vcmp.lt.s32.totalorder %v1879, 3
        %vm1901 = vcmp.lt.s32.totalorder %v1879, 4
        %v1902 = vsel %vm1898, %v1882, %v1885
        %v1903 = vsel %vm1901, %v1891, 2102212464
        %v1904 = vsel %vm1900, %v1888, %v1903
        %v1905 = vsel %vm1899, %v1902, %v1904
        %v1906 = vsel %vm1898, %v1885, %v1888
        %v1907 = vsel %vm1901, %v1894, 920167782
        %v1908 = vsel %vm1900, %v1891, %v1907
        %v1909 = vsel %vm1899, %v1906, %v1908
        %v1910 = vsel %vm1898, %v1888, %v1891
        %v1911 = vsel %vm1901, %v1897, 1326507024
        %v1912 = vsel %vm1900, %v1894, %v1911
        %v1913 = vsel %vm1899, %v1910, %v1912
        %v1914 = vshll.u32 %v1874, 8
        %v1915 = vmul.u32.u64.compose %v1914, %v1913
        %v1916 = vextract.low.u32 %v1915
        %v1917 = vextract.high.u32 %v1915
        %v1918 = vmul.u32.u64.compose %v1914, %v1909
        %v1919 = vextract.low.u32 %v1918
        %v1920 = vextract.high.u32 %v1918
        %v1921 = vmul.u32 %v1914, %v1905
        %v1922 = vadd.s32 %v1917, %v1919
        %vm1923 = vc.u32 %v1917, %v1919
        %v1924 = vadd.s32 %v1920, 1
        %v1925 = vsel %vm1923, %v1924, %v1920
        %v1926 = vadd.s32 %v1921, %v1925
        %v1927 = vadd.s32 %v1926, 536870912
        %v1928 = vshrl.u32 %v1927, 30
        %v1929 = vshll.u32 %v1928, 30
        %v1930 = vsub.s32 %v1926, %v1929
        %vm1931 = vcmp.lt.s32.totalorder %v1930, 0
        %v1932 = vsub.s32 0, %v1930
        %v1933 = vsel %vm1931, %v1932, %v1930
        %v1934 = vclz %v1933
        %v1935 = vsub.s32 %v1934, 2
        %vm1936 = vcmp.gt.s32.totalorder 0, %v1935
        %v1937 = vsel %vm1936, 0, %v1935
        %v1938 = vsub.s32 32, %v1937
        %v1939 = vshll.u32 %v1930, %v1937
        %v1940 = vshrl.u32 %v1922, %v1938
        %v1941 = vor.u32 %v1939, %v1940
        %v1942 = vsub.s32 4294967266, %v1937
        %v1943 = vadd.s32 %v1942, 127
        %v1944 = vshll.u32 %v1943, 23
        %v1945 = vor.u32 4788187, %v1944
        %v1946 = vand.u32 2147483647, %v1945
        %v1948 = vcvt.s32.f32 %v1941
        %v1949 = vmul.f32 %v1948, %v1946
        %v1950 = vxor.u32 %v1949, 2147483648
        %v1951 = vsel %vm1868, %v1950, %v1949
        %v1952 = vsub.s32 4, %v1928
        %v1953 = vsel %vm1868, %v1952, %v1928
        %v1954 = vsel %vm1867, %v508, %v1951
        %v1955 = vsel %vm1867, 0, %v1953
        %v1956 = vcosq.f32.pop %v1954
        %v1957 = vsinq.f32.pop %v1954
        %vm1958 = vweird.f32 %v508
        %v1959 = vand.u32 %v1955, 3
        %vm1960 = vcmp.lt.s32.totalorder %v1959, 2
        %vm1961 = vcmp.eq.s32.totalorder %v1959, 0
        %v1962 = vxor.u32 %v1957, 2147483648
        %v1963 = vsel %vm1961, %v1956, %v1962
        %vm1964 = vcmp.eq.s32.totalorder %v1959, 2
        %v1965 = vxor.u32 %v1956, 2147483648
        %v1966 = vsel %vm1964, %v1965, %v1957
        %v1967 = vsel %vm1960, %v1963, %v1966
        %v1968 = vsel %vm1958, nan, %v1967
        %v1969 = vand.u32 2147483647, %v509
        %vm1970 = vcmp.le.f32.partialorder %v1969, 0.7853982
        %vm1971 = vcmp.lt.s32.totalorder %v509, 0
        %v1972 = vand.u32 %v509, 2139095040
        %v1973 = vshrl.u32 %v1972, 23
        %v1974 = vsub.s32 %v1973, 127
        %v1975 = vand.u32 2147483647, %v509
        %v1976 = vand.u32 %v1975, 8388607
        %v1977 = vor.u32 %v1976, 8388608
        %v1978 = vsub.s32 0, %v1977
        %v1979 = vadd.s32 %v1974, 1
        %vm1980 = vcmp.gt.s32.totalorder %v1979, 0
        %v1981 = vsel %vm1980, %v1979, 0
        %v1982 = vshrl.u32 %v1981, 5
        %v1983 = vand.u32 %v1981, 31
        %v1984 = vsub.s32 32, %v1983
        %v1985 = vshrl.u32 683565275, %v1984
        %v1986 = vshll.u32 683565275, %v1983
        %v1987 = vshrl.u32 2475754826, %v1984
        %v1988 = vor.u32 %v1986, %v1987
        %v1989 = vshll.u32 2475754826, %v1983
        %v1990 = vshrl.u32 2131351028, %v1984
        %v1991 = vor.u32 %v1989, %v1990
        %v1992 = vshll.u32 2131351028, %v1983
        %v1993 = vshrl.u32 2102212464, %v1984
        %v1994 = vor.u32 %v1992, %v1993
        %v1995 = vshll.u32 2102212464, %v1983
        %v1996 = vshrl.u32 920167782, %v1984
        %v1997 = vor.u32 %v1995, %v1996
        %v1998 = vshll.u32 920167782, %v1983
        %v1999 = vshrl.u32 1326507024, %v1984
        %v2000 = vor.u32 %v1998, %v1999
        %vm2001 = vcmp.lt.s32.totalorder %v1982, 1
        %vm2002 = vcmp.lt.s32.totalorder %v1982, 2
        %vm2003 = vcmp.lt.s32.totalorder %v1982, 3
        %vm2004 = vcmp.lt.s32.totalorder %v1982, 4
        %v2005 = vsel %vm2001, %v1985, %v1988
        %v2006 = vsel %vm2004, %v1994, 2102212464
        %v2007 = vsel %vm2003, %v1991, %v2006
        %v2008 = vsel %vm2002, %v2005, %v2007
        %v2009 = vsel %vm2001, %v1988, %v1991
        %v2010 = vsel %vm2004, %v1997, 920167782
        %v2011 = vsel %vm2003, %v1994, %v2010
        %v2012 = vsel %vm2002, %v2009, %v2011
        %v2013 = vsel %vm2001, %v1991, %v1994
        %v2014 = vsel %vm2004, %v2000, 1326507024
        %v2015 = vsel %vm2003, %v1997, %v2014
        %v2016 = vsel %vm2002, %v2013, %v2015
        %v2017 = vshll.u32 %v1977, 8
        %v2018 = vmul.u32.u64.compose %v2017, %v2016
        %v2019 = vextract.low.u32 %v2018
        %v2020 = vextract.high.u32 %v2018
        %v2021 = vmul.u32.u64.compose %v2017, %v2012
        %v2022 = vextract.low.u32 %v2021
        %v2023 = vextract.high.u32 %v2021
        %v2024 = vmul.u32 %v2017, %v2008
        %v2025 = vadd.s32 %v2020, %v2022
        %vm2026 = vc.u32 %v2020, %v2022
        %v2027 = vadd.s32 %v2023, 1
        %v2028 = vsel %vm2026, %v2027, %v2023
        %v2029 = vadd.s32 %v2024, %v2028
        %v2030 = vadd.s32 %v2029, 536870912
        %v2031 = vshrl.u32 %v2030, 30
        %v2032 = vshll.u32 %v2031, 30
        %v2033 = vsub.s32 %v2029, %v2032
        %vm2034 = vcmp.lt.s32.totalorder %v2033, 0
        %v2035 = vsub.s32 0, %v2033
        %v2036 = vsel %vm2034, %v2035, %v2033
        %v2037 = vclz %v2036
        %v2038 = vsub.s32 %v2037, 2
        %vm2039 = vcmp.gt.s32.totalorder 0, %v2038
        %v2040 = vsel %vm2039, 0, %v2038
        %v2041 = vsub.s32 32, %v2040
        %v2042 = vshll.u32 %v2033, %v2040
        %v2043 = vshrl.u32 %v2025, %v2041
        %v2044 = vor.u32 %v2042, %v2043
        %v2045 = vsub.s32 4294967266, %v2040
        %v2046 = vadd.s32 %v2045, 127
        %v2047 = vshll.u32 %v2046, 23
        %v2048 = vor.u32 4788187, %v2047
        %v2049 = vand.u32 2147483647, %v2048
        %v2051 = vcvt.s32.f32 %v2044
        %v2052 = vmul.f32 %v2051, %v2049
        %v2053 = vxor.u32 %v2052, 2147483648
        %v2054 = vsel %vm1971, %v2053, %v2052
        %v2055 = vsub.s32 4, %v2031
        %v2056 = vsel %vm1971, %v2055, %v2031
        %v2057 = vsel %vm1970, %v509, %v2054
        %v2058 = vsel %vm1970, 0, %v2056
        %v2059 = vcosq.f32.pop %v2057
        %v2060 = vsinq.f32.pop %v2057
        %vm2061 = vweird.f32 %v509
        %v2062 = vand.u32 %v2058, 3
        %vm2063 = vcmp.lt.s32.totalorder %v2062, 2
        %vm2064 = vcmp.eq.s32.totalorder %v2062, 0
        %v2065 = vxor.u32 %v2060, 2147483648
        %v2066 = vsel %vm2064, %v2059, %v2065
        %vm2067 = vcmp.eq.s32.totalorder %v2062, 2
        %v2068 = vxor.u32 %v2059, 2147483648
        %v2069 = vsel %vm2067, %v2068, %v2060
        %v2070 = vsel %vm2063, %v2066, %v2069
        %v2071 = vsel %vm2061, nan, %v2070
        %v2072 = vand.u32 2147483647, %v510
        %vm2073 = vcmp.le.f32.partialorder %v2072, 0.7853982
        %vm2074 = vcmp.lt.s32.totalorder %v510, 0
        %v2075 = vand.u32 %v510, 2139095040
        %v2076 = vshrl.u32 %v2075, 23
        %v2077 = vsub.s32 %v2076, 127
        %v2078 = vand.u32 2147483647, %v510
        %v2079 = vand.u32 %v2078, 8388607
        %v2080 = vor.u32 %v2079, 8388608
        %v2081 = vsub.s32 0, %v2080
        %v2082 = vadd.s32 %v2077, 1
        %vm2083 = vcmp.gt.s32.totalorder %v2082, 0
        %v2084 = vsel %vm2083, %v2082, 0
        %v2085 = vshrl.u32 %v2084, 5
        %v2086 = vand.u32 %v2084, 31
        %v2087 = vsub.s32 32, %v2086
        %v2088 = vshrl.u32 683565275, %v2087
        %v2089 = vshll.u32 683565275, %v2086
        %v2090 = vshrl.u32 2475754826, %v2087
        %v2091 = vor.u32 %v2089, %v2090
        %v2092 = vshll.u32 2475754826, %v2086
        %v2093 = vshrl.u32 2131351028, %v2087
        %v2094 = vor.u32 %v2092, %v2093
        %v2095 = vshll.u32 2131351028, %v2086
        %v2096 = vshrl.u32 2102212464, %v2087
        %v2097 = vor.u32 %v2095, %v2096
        %v2098 = vshll.u32 2102212464, %v2086
        %v2099 = vshrl.u32 920167782, %v2087
        %v2100 = vor.u32 %v2098, %v2099
        %v2101 = vshll.u32 920167782, %v2086
        %v2102 = vshrl.u32 1326507024, %v2087
        %v2103 = vor.u32 %v2101, %v2102
        %vm2104 = vcmp.lt.s32.totalorder %v2085, 1
        %vm2105 = vcmp.lt.s32.totalorder %v2085, 2
        %vm2106 = vcmp.lt.s32.totalorder %v2085, 3
        %vm2107 = vcmp.lt.s32.totalorder %v2085, 4
        %v2108 = vsel %vm2104, %v2088, %v2091
        %v2109 = vsel %vm2107, %v2097, 2102212464
        %v2110 = vsel %vm2106, %v2094, %v2109
        %v2111 = vsel %vm2105, %v2108, %v2110
        %v2112 = vsel %vm2104, %v2091, %v2094
        %v2113 = vsel %vm2107, %v2100, 920167782
        %v2114 = vsel %vm2106, %v2097, %v2113
        %v2115 = vsel %vm2105, %v2112, %v2114
        %v2116 = vsel %vm2104, %v2094, %v2097
        %v2117 = vsel %vm2107, %v2103, 1326507024
        %v2118 = vsel %vm2106, %v2100, %v2117
        %v2119 = vsel %vm2105, %v2116, %v2118
        %v2120 = vshll.u32 %v2080, 8
        %v2121 = vmul.u32.u64.compose %v2120, %v2119
        %v2122 = vextract.low.u32 %v2121
        %v2123 = vextract.high.u32 %v2121
        %v2124 = vmul.u32.u64.compose %v2120, %v2115
        %v2125 = vextract.low.u32 %v2124
        %v2126 = vextract.high.u32 %v2124
        %v2127 = vmul.u32 %v2120, %v2111
        %v2128 = vadd.s32 %v2123, %v2125
        %vm2129 = vc.u32 %v2123, %v2125
        %v2130 = vadd.s32 %v2126, 1
        %v2131 = vsel %vm2129, %v2130, %v2126
        %v2132 = vadd.s32 %v2127, %v2131
        %v2133 = vadd.s32 %v2132, 536870912
        %v2134 = vshrl.u32 %v2133, 30
        %v2135 = vshll.u32 %v2134, 30
        %v2136 = vsub.s32 %v2132, %v2135
        %vm2137 = vcmp.lt.s32.totalorder %v2136, 0
        %v2138 = vsub.s32 0, %v2136
        %v2139 = vsel %vm2137, %v2138, %v2136
        %v2140 = vclz %v2139
        %v2141 = vsub.s32 %v2140, 2
        %vm2142 = vcmp.gt.s32.totalorder 0, %v2141
        %v2143 = vsel %vm2142, 0, %v2141
        %v2144 = vsub.s32 32, %v2143
        %v2145 = vshll.u32 %v2136, %v2143
        %v2146 = vshrl.u32 %v2128, %v2144
        %v2147 = vor.u32 %v2145, %v2146
        %v2148 = vsub.s32 4294967266, %v2143
        %v2149 = vadd.s32 %v2148, 127
        %v2150 = vshll.u32 %v2149, 23
        %v2151 = vor.u32 4788187, %v2150
        %v2152 = vand.u32 2147483647, %v2151
        %v2154 = vcvt.s32.f32 %v2147
        %v2155 = vmul.f32 %v2154, %v2152
        %v2156 = vxor.u32 %v2155, 2147483648
        %v2157 = vsel %vm2074, %v2156, %v2155
        %v2158 = vsub.s32 4, %v2134
        %v2159 = vsel %vm2074, %v2158, %v2134
        %v2160 = vsel %vm2073, %v510, %v2157
        %v2161 = vsel %vm2073, 0, %v2159
        %v2162 = vcosq.f32.pop %v2160
        %v2163 = vsinq.f32.pop %v2160
        %vm2164 = vweird.f32 %v510
        %v2165 = vand.u32 %v2161, 3
        %vm2166 = vcmp.lt.s32.totalorder %v2165, 2
        %vm2167 = vcmp.eq.s32.totalorder %v2165, 0
        %v2168 = vxor.u32 %v2163, 2147483648
        %v2169 = vsel %vm2167, %v2162, %v2168
        %vm2170 = vcmp.eq.s32.totalorder %v2165, 2
        %v2171 = vxor.u32 %v2162, 2147483648
        %v2172 = vsel %vm2170, %v2171, %v2163
        %v2173 = vsel %vm2166, %v2169, %v2172
        %v2174 = vsel %vm2164, nan, %v2173
        %v2175 = vand.u32 2147483647, %v511
        %vm2176 = vcmp.le.f32.partialorder %v2175, 0.7853982
        %vm2177 = vcmp.lt.s32.totalorder %v511, 0
        %v2178 = vand.u32 %v511, 2139095040
        %v2179 = vshrl.u32 %v2178, 23
        %v2180 = vsub.s32 %v2179, 127
        %v2181 = vand.u32 2147483647, %v511
        %v2182 = vand.u32 %v2181, 8388607
        %v2183 = vor.u32 %v2182, 8388608
        %v2184 = vsub.s32 0, %v2183
        %v2185 = vadd.s32 %v2180, 1
        %vm2186 = vcmp.gt.s32.totalorder %v2185, 0
        %v2187 = vsel %vm2186, %v2185, 0
        %v2188 = vshrl.u32 %v2187, 5
        %v2189 = vand.u32 %v2187, 31
        %v2190 = vsub.s32 32, %v2189
        %v2191 = vshrl.u32 683565275, %v2190
        %v2192 = vshll.u32 683565275, %v2189
        %v2193 = vshrl.u32 2475754826, %v2190
        %v2194 = vor.u32 %v2192, %v2193
        %v2195 = vshll.u32 2475754826, %v2189
        %v2196 = vshrl.u32 2131351028, %v2190
        %v2197 = vor.u32 %v2195, %v2196
        %v2198 = vshll.u32 2131351028, %v2189
        %v2199 = vshrl.u32 2102212464, %v2190
        %v2200 = vor.u32 %v2198, %v2199
        %v2201 = vshll.u32 2102212464, %v2189
        %v2202 = vshrl.u32 920167782, %v2190
        %v2203 = vor.u32 %v2201, %v2202
        %v2204 = vshll.u32 920167782, %v2189
        %v2205 = vshrl.u32 1326507024, %v2190
        %v2206 = vor.u32 %v2204, %v2205
        %vm2207 = vcmp.lt.s32.totalorder %v2188, 1
        %vm2208 = vcmp.lt.s32.totalorder %v2188, 2
        %vm2209 = vcmp.lt.s32.totalorder %v2188, 3
        %vm2210 = vcmp.lt.s32.totalorder %v2188, 4
        %v2211 = vsel %vm2207, %v2191, %v2194
        %v2212 = vsel %vm2210, %v2200, 2102212464
        %v2213 = vsel %vm2209, %v2197, %v2212
        %v2214 = vsel %vm2208, %v2211, %v2213
        %v2215 = vsel %vm2207, %v2194, %v2197
        %v2216 = vsel %vm2210, %v2203, 920167782
        %v2217 = vsel %vm2209, %v2200, %v2216
        %v2218 = vsel %vm2208, %v2215, %v2217
        %v2219 = vsel %vm2207, %v2197, %v2200
        %v2220 = vsel %vm2210, %v2206, 1326507024
        %v2221 = vsel %vm2209, %v2203, %v2220
        %v2222 = vsel %vm2208, %v2219, %v2221
        %v2223 = vshll.u32 %v2183, 8
        %v2224 = vmul.u32.u64.compose %v2223, %v2222
        %v2225 = vextract.low.u32 %v2224
        %v2226 = vextract.high.u32 %v2224
        %v2227 = vmul.u32.u64.compose %v2223, %v2218
        %v2228 = vextract.low.u32 %v2227
        %v2229 = vextract.high.u32 %v2227
        %v2230 = vmul.u32 %v2223, %v2214
        %v2231 = vadd.s32 %v2226, %v2228
        %vm2232 = vc.u32 %v2226, %v2228
        %v2233 = vadd.s32 %v2229, 1
        %v2234 = vsel %vm2232, %v2233, %v2229
        %v2235 = vadd.s32 %v2230, %v2234
        %v2236 = vadd.s32 %v2235, 536870912
        %v2237 = vshrl.u32 %v2236, 30
        %v2238 = vshll.u32 %v2237, 30
        %v2239 = vsub.s32 %v2235, %v2238
        %vm2240 = vcmp.lt.s32.totalorder %v2239, 0
        %v2241 = vsub.s32 0, %v2239
        %v2242 = vsel %vm2240, %v2241, %v2239
        %v2243 = vclz %v2242
        %v2244 = vsub.s32 %v2243, 2
        %vm2245 = vcmp.gt.s32.totalorder 0, %v2244
        %v2246 = vsel %vm2245, 0, %v2244
        %v2247 = vsub.s32 32, %v2246
        %v2248 = vshll.u32 %v2239, %v2246
        %v2249 = vshrl.u32 %v2231, %v2247
        %v2250 = vor.u32 %v2248, %v2249
        %v2251 = vsub.s32 4294967266, %v2246
        %v2252 = vadd.s32 %v2251, 127
        %v2253 = vshll.u32 %v2252, 23
        %v2254 = vor.u32 4788187, %v2253
        %v2255 = vand.u32 2147483647, %v2254
        %v2257 = vcvt.s32.f32 %v2250
        %v2258 = vmul.f32 %v2257, %v2255
        %v2259 = vxor.u32 %v2258, 2147483648
        %v2260 = vsel %vm2177, %v2259, %v2258
        %v2261 = vsub.s32 4, %v2237
        %v2262 = vsel %vm2177, %v2261, %v2237
        %v2263 = vsel %vm2176, %v511, %v2260
        %v2264 = vsel %vm2176, 0, %v2262
        %v2265 = vcosq.f32.pop %v2263
        %v2266 = vsinq.f32.pop %v2263
        %vm2267 = vweird.f32 %v511
        %v2268 = vand.u32 %v2264, 3
        %vm2269 = vcmp.lt.s32.totalorder %v2268, 2
        %vm2270 = vcmp.eq.s32.totalorder %v2268, 0
        %v2271 = vxor.u32 %v2266, 2147483648
        %v2272 = vsel %vm2270, %v2265, %v2271
        %vm2273 = vcmp.eq.s32.totalorder %v2268, 2
        %v2274 = vxor.u32 %v2265, 2147483648
        %v2275 = vsel %vm2273, %v2274, %v2266
        %v2276 = vsel %vm2269, %v2272, %v2275
        %v2277 = vsel %vm2267, nan, %v2276
        %v2278 = vand.u32 2147483647, %v512
        %vm2279 = vcmp.le.f32.partialorder %v2278, 0.7853982
        %vm2280 = vcmp.lt.s32.totalorder %v512, 0
        %v2281 = vand.u32 %v512, 2139095040
        %v2282 = vshrl.u32 %v2281, 23
        %v2283 = vsub.s32 %v2282, 127
        %v2284 = vand.u32 2147483647, %v512
        %v2285 = vand.u32 %v2284, 8388607
        %v2286 = vor.u32 %v2285, 8388608
        %v2287 = vsub.s32 0, %v2286
        %v2288 = vadd.s32 %v2283, 1
        %vm2289 = vcmp.gt.s32.totalorder %v2288, 0
        %v2290 = vsel %vm2289, %v2288, 0
        %v2291 = vshrl.u32 %v2290, 5
        %v2292 = vand.u32 %v2290, 31
        %v2293 = vsub.s32 32, %v2292
        %v2294 = vshrl.u32 683565275, %v2293
        %v2295 = vshll.u32 683565275, %v2292
        %v2296 = vshrl.u32 2475754826, %v2293
        %v2297 = vor.u32 %v2295, %v2296
        %v2298 = vshll.u32 2475754826, %v2292
        %v2299 = vshrl.u32 2131351028, %v2293
        %v2300 = vor.u32 %v2298, %v2299
        %v2301 = vshll.u32 2131351028, %v2292
        %v2302 = vshrl.u32 2102212464, %v2293
        %v2303 = vor.u32 %v2301, %v2302
        %v2304 = vshll.u32 2102212464, %v2292
        %v2305 = vshrl.u32 920167782, %v2293
        %v2306 = vor.u32 %v2304, %v2305
        %v2307 = vshll.u32 920167782, %v2292
        %v2308 = vshrl.u32 1326507024, %v2293
        %v2309 = vor.u32 %v2307, %v2308
        %vm2310 = vcmp.lt.s32.totalorder %v2291, 1
        %vm2311 = vcmp.lt.s32.totalorder %v2291, 2
        %vm2312 = vcmp.lt.s32.totalorder %v2291, 3
        %vm2313 = vcmp.lt.s32.totalorder %v2291, 4
        %v2314 = vsel %vm2310, %v2294, %v2297
        %v2315 = vsel %vm2313, %v2303, 2102212464
        %v2316 = vsel %vm2312, %v2300, %v2315
        %v2317 = vsel %vm2311, %v2314, %v2316
        %v2318 = vsel %vm2310, %v2297, %v2300
        %v2319 = vsel %vm2313, %v2306, 920167782
        %v2320 = vsel %vm2312, %v2303, %v2319
        %v2321 = vsel %vm2311, %v2318, %v2320
        %v2322 = vsel %vm2310, %v2300, %v2303
        %v2323 = vsel %vm2313, %v2309, 1326507024
        %v2324 = vsel %vm2312, %v2306, %v2323
        %v2325 = vsel %vm2311, %v2322, %v2324
        %v2326 = vshll.u32 %v2286, 8
        %v2327 = vmul.u32.u64.compose %v2326, %v2325
        %v2328 = vextract.low.u32 %v2327
        %v2329 = vextract.high.u32 %v2327
        %v2330 = vmul.u32.u64.compose %v2326, %v2321
        %v2331 = vextract.low.u32 %v2330
        %v2332 = vextract.high.u32 %v2330
        %v2333 = vmul.u32 %v2326, %v2317
        %v2334 = vadd.s32 %v2329, %v2331
        %vm2335 = vc.u32 %v2329, %v2331
        %v2336 = vadd.s32 %v2332, 1
        %v2337 = vsel %vm2335, %v2336, %v2332
        %v2338 = vadd.s32 %v2333, %v2337
        %v2339 = vadd.s32 %v2338, 536870912
        %v2340 = vshrl.u32 %v2339, 30
        %v2341 = vshll.u32 %v2340, 30
        %v2342 = vsub.s32 %v2338, %v2341
        %vm2343 = vcmp.lt.s32.totalorder %v2342, 0
        %v2344 = vsub.s32 0, %v2342
        %v2345 = vsel %vm2343, %v2344, %v2342
        %v2346 = vclz %v2345
        %v2347 = vsub.s32 %v2346, 2
        %vm2348 = vcmp.gt.s32.totalorder 0, %v2347
        %v2349 = vsel %vm2348, 0, %v2347
        %v2350 = vsub.s32 32, %v2349
        %v2351 = vshll.u32 %v2342, %v2349
        %v2352 = vshrl.u32 %v2334, %v2350
        %v2353 = vor.u32 %v2351, %v2352
        %v2354 = vsub.s32 4294967266, %v2349
        %v2355 = vadd.s32 %v2354, 127
        %v2356 = vshll.u32 %v2355, 23
        %v2357 = vor.u32 4788187, %v2356
        %v2358 = vand.u32 2147483647, %v2357
        %v2360 = vcvt.s32.f32 %v2353
        %v2361 = vmul.f32 %v2360, %v2358
        %v2362 = vxor.u32 %v2361, 2147483648
        %v2363 = vsel %vm2280, %v2362, %v2361
        %v2364 = vsub.s32 4, %v2340
        %v2365 = vsel %vm2280, %v2364, %v2340
        %v2366 = vsel %vm2279, %v512, %v2363
        %v2367 = vsel %vm2279, 0, %v2365
        %v2368 = vcosq.f32.pop %v2366
        %v2369 = vsinq.f32.pop %v2366
        %vm2370 = vweird.f32 %v512
        %v2371 = vand.u32 %v2367, 3
        %vm2372 = vcmp.lt.s32.totalorder %v2371, 2
        %vm2373 = vcmp.eq.s32.totalorder %v2371, 0
        %v2374 = vxor.u32 %v2369, 2147483648
        %v2375 = vsel %vm2373, %v2368, %v2374
        %vm2376 = vcmp.eq.s32.totalorder %v2371, 2
        %v2377 = vxor.u32 %v2368, 2147483648
        %v2378 = vsel %vm2376, %v2377, %v2369
        %v2379 = vsel %vm2372, %v2375, %v2378
        %v2380 = vsel %vm2370, nan, %v2379
        %v2381 = vand.u32 2147483647, %v513
        %vm2382 = vcmp.le.f32.partialorder %v2381, 0.7853982
        %vm2383 = vcmp.lt.s32.totalorder %v513, 0
        %v2384 = vand.u32 %v513, 2139095040
        %v2385 = vshrl.u32 %v2384, 23
        %v2386 = vsub.s32 %v2385, 127
        %v2387 = vand.u32 2147483647, %v513
        %v2388 = vand.u32 %v2387, 8388607
        %v2389 = vor.u32 %v2388, 8388608
        %v2390 = vsub.s32 0, %v2389
        %v2391 = vadd.s32 %v2386, 1
        %vm2392 = vcmp.gt.s32.totalorder %v2391, 0
        %v2393 = vsel %vm2392, %v2391, 0
        %v2394 = vshrl.u32 %v2393, 5
        %v2395 = vand.u32 %v2393, 31
        %v2396 = vsub.s32 32, %v2395
        %v2397 = vshrl.u32 683565275, %v2396
        %v2398 = vshll.u32 683565275, %v2395
        %v2399 = vshrl.u32 2475754826, %v2396
        %v2400 = vor.u32 %v2398, %v2399
        %v2401 = vshll.u32 2475754826, %v2395
        %v2402 = vshrl.u32 2131351028, %v2396
        %v2403 = vor.u32 %v2401, %v2402
        %v2404 = vshll.u32 2131351028, %v2395
        %v2405 = vshrl.u32 2102212464, %v2396
        %v2406 = vor.u32 %v2404, %v2405
        %v2407 = vshll.u32 2102212464, %v2395
        %v2408 = vshrl.u32 920167782, %v2396
        %v2409 = vor.u32 %v2407, %v2408
        %v2410 = vshll.u32 920167782, %v2395
        %v2411 = vshrl.u32 1326507024, %v2396
        %v2412 = vor.u32 %v2410, %v2411
        %vm2413 = vcmp.lt.s32.totalorder %v2394, 1
        %vm2414 = vcmp.lt.s32.totalorder %v2394, 2
        %vm2415 = vcmp.lt.s32.totalorder %v2394, 3
        %vm2416 = vcmp.lt.s32.totalorder %v2394, 4
        %v2417 = vsel %vm2413, %v2397, %v2400
        %v2418 = vsel %vm2416, %v2406, 2102212464
        %v2419 = vsel %vm2415, %v2403, %v2418
        %v2420 = vsel %vm2414, %v2417, %v2419
        %v2421 = vsel %vm2413, %v2400, %v2403
        %v2422 = vsel %vm2416, %v2409, 920167782
        %v2423 = vsel %vm2415, %v2406, %v2422
        %v2424 = vsel %vm2414, %v2421, %v2423
        %v2425 = vsel %vm2413, %v2403, %v2406
        %v2426 = vsel %vm2416, %v2412, 1326507024
        %v2427 = vsel %vm2415, %v2409, %v2426
        %v2428 = vsel %vm2414, %v2425, %v2427
        %v2429 = vshll.u32 %v2389, 8
        %v2430 = vmul.u32.u64.compose %v2429, %v2428
        %v2431 = vextract.low.u32 %v2430
        %v2432 = vextract.high.u32 %v2430
        %v2433 = vmul.u32.u64.compose %v2429, %v2424
        %v2434 = vextract.low.u32 %v2433
        %v2435 = vextract.high.u32 %v2433
        %v2436 = vmul.u32 %v2429, %v2420
        %v2437 = vadd.s32 %v2432, %v2434
        %vm2438 = vc.u32 %v2432, %v2434
        %v2439 = vadd.s32 %v2435, 1
        %v2440 = vsel %vm2438, %v2439, %v2435
        %v2441 = vadd.s32 %v2436, %v2440
        %v2442 = vadd.s32 %v2441, 536870912
        %v2443 = vshrl.u32 %v2442, 30
        %v2444 = vshll.u32 %v2443, 30
        %v2445 = vsub.s32 %v2441, %v2444
        %vm2446 = vcmp.lt.s32.totalorder %v2445, 0
        %v2447 = vsub.s32 0, %v2445
        %v2448 = vsel %vm2446, %v2447, %v2445
        %v2449 = vclz %v2448
        %v2450 = vsub.s32 %v2449, 2
        %vm2451 = vcmp.gt.s32.totalorder 0, %v2450
        %v2452 = vsel %vm2451, 0, %v2450
        %v2453 = vsub.s32 32, %v2452
        %v2454 = vshll.u32 %v2445, %v2452
        %v2455 = vshrl.u32 %v2437, %v2453
        %v2456 = vor.u32 %v2454, %v2455
        %v2457 = vsub.s32 4294967266, %v2452
        %v2458 = vadd.s32 %v2457, 127
        %v2459 = vshll.u32 %v2458, 23
        %v2460 = vor.u32 4788187, %v2459
        %v2461 = vand.u32 2147483647, %v2460
        %v2463 = vcvt.s32.f32 %v2456
        %v2464 = vmul.f32 %v2463, %v2461
        %v2465 = vxor.u32 %v2464, 2147483648
        %v2466 = vsel %vm2383, %v2465, %v2464
        %v2467 = vsub.s32 4, %v2443
        %v2468 = vsel %vm2383, %v2467, %v2443
        %v2469 = vsel %vm2382, %v513, %v2466
        %v2470 = vsel %vm2382, 0, %v2468
        %v2471 = vcosq.f32.pop %v2469
        %v2472 = vsinq.f32.pop %v2469
        %vm2473 = vweird.f32 %v513
        %v2474 = vand.u32 %v2470, 3
        %vm2475 = vcmp.lt.s32.totalorder %v2474, 2
        %vm2476 = vcmp.eq.s32.totalorder %v2474, 0
        %v2477 = vxor.u32 %v2472, 2147483648
        %v2478 = vsel %vm2476, %v2471, %v2477
        %vm2479 = vcmp.eq.s32.totalorder %v2474, 2
        %v2480 = vxor.u32 %v2471, 2147483648
        %v2481 = vsel %vm2479, %v2480, %v2472
        %v2482 = vsel %vm2475, %v2478, %v2481
        %v2483 = vsel %vm2473, nan, %v2482
        %v2484 = vand.u32 2147483647, %v514
        %vm2485 = vcmp.le.f32.partialorder %v2484, 0.7853982
        %vm2486 = vcmp.lt.s32.totalorder %v514, 0
        %v2487 = vand.u32 %v514, 2139095040
        %v2488 = vshrl.u32 %v2487, 23
        %v2489 = vsub.s32 %v2488, 127
        %v2490 = vand.u32 2147483647, %v514
        %v2491 = vand.u32 %v2490, 8388607
        %v2492 = vor.u32 %v2491, 8388608
        %v2493 = vsub.s32 0, %v2492
        %v2494 = vadd.s32 %v2489, 1
        %vm2495 = vcmp.gt.s32.totalorder %v2494, 0
        %v2496 = vsel %vm2495, %v2494, 0
        %v2497 = vshrl.u32 %v2496, 5
        %v2498 = vand.u32 %v2496, 31
        %v2499 = vsub.s32 32, %v2498
        %v2500 = vshrl.u32 683565275, %v2499
        %v2501 = vshll.u32 683565275, %v2498
        %v2502 = vshrl.u32 2475754826, %v2499
        %v2503 = vor.u32 %v2501, %v2502
        %v2504 = vshll.u32 2475754826, %v2498
        %v2505 = vshrl.u32 2131351028, %v2499
        %v2506 = vor.u32 %v2504, %v2505
        %v2507 = vshll.u32 2131351028, %v2498
        %v2508 = vshrl.u32 2102212464, %v2499
        %v2509 = vor.u32 %v2507, %v2508
        %v2510 = vshll.u32 2102212464, %v2498
        %v2511 = vshrl.u32 920167782, %v2499
        %v2512 = vor.u32 %v2510, %v2511
        %v2513 = vshll.u32 920167782, %v2498
        %v2514 = vshrl.u32 1326507024, %v2499
        %v2515 = vor.u32 %v2513, %v2514
        %vm2516 = vcmp.lt.s32.totalorder %v2497, 1
        %vm2517 = vcmp.lt.s32.totalorder %v2497, 2
        %vm2518 = vcmp.lt.s32.totalorder %v2497, 3
        %vm2519 = vcmp.lt.s32.totalorder %v2497, 4
        %v2520 = vsel %vm2516, %v2500, %v2503
        %v2521 = vsel %vm2519, %v2509, 2102212464
        %v2522 = vsel %vm2518, %v2506, %v2521
        %v2523 = vsel %vm2517, %v2520, %v2522
        %v2524 = vsel %vm2516, %v2503, %v2506
        %v2525 = vsel %vm2519, %v2512, 920167782
        %v2526 = vsel %vm2518, %v2509, %v2525
        %v2527 = vsel %vm2517, %v2524, %v2526
        %v2528 = vsel %vm2516, %v2506, %v2509
        %v2529 = vsel %vm2519, %v2515, 1326507024
        %v2530 = vsel %vm2518, %v2512, %v2529
        %v2531 = vsel %vm2517, %v2528, %v2530
        %v2532 = vshll.u32 %v2492, 8
        %v2533 = vmul.u32.u64.compose %v2532, %v2531
        %v2534 = vextract.low.u32 %v2533
        %v2535 = vextract.high.u32 %v2533
        %v2536 = vmul.u32.u64.compose %v2532, %v2527
        %v2537 = vextract.low.u32 %v2536
        %v2538 = vextract.high.u32 %v2536
        %v2539 = vmul.u32 %v2532, %v2523
        %v2540 = vadd.s32 %v2535, %v2537
        %vm2541 = vc.u32 %v2535, %v2537
        %v2542 = vadd.s32 %v2538, 1
        %v2543 = vsel %vm2541, %v2542, %v2538
        %v2544 = vadd.s32 %v2539, %v2543
        %v2545 = vadd.s32 %v2544, 536870912
        %v2546 = vshrl.u32 %v2545, 30
        %v2547 = vshll.u32 %v2546, 30
        %v2548 = vsub.s32 %v2544, %v2547
        %vm2549 = vcmp.lt.s32.totalorder %v2548, 0
        %v2550 = vsub.s32 0, %v2548
        %v2551 = vsel %vm2549, %v2550, %v2548
        %v2552 = vclz %v2551
        %v2553 = vsub.s32 %v2552, 2
        %vm2554 = vcmp.gt.s32.totalorder 0, %v2553
        %v2555 = vsel %vm2554, 0, %v2553
        %v2556 = vsub.s32 32, %v2555
        %v2557 = vshll.u32 %v2548, %v2555
        %v2558 = vshrl.u32 %v2540, %v2556
        %v2559 = vor.u32 %v2557, %v2558
        %v2560 = vsub.s32 4294967266, %v2555
        %v2561 = vadd.s32 %v2560, 127
        %v2562 = vshll.u32 %v2561, 23
        %v2563 = vor.u32 4788187, %v2562
        %v2564 = vand.u32 2147483647, %v2563
        %v2566 = vcvt.s32.f32 %v2559
        %v2567 = vmul.f32 %v2566, %v2564
        %v2568 = vxor.u32 %v2567, 2147483648
        %v2569 = vsel %vm2486, %v2568, %v2567
        %v2570 = vsub.s32 4, %v2546
        %v2571 = vsel %vm2486, %v2570, %v2546
        %v2572 = vsel %vm2485, %v514, %v2569
        %v2573 = vsel %vm2485, 0, %v2571
        %v2574 = vcosq.f32.pop %v2572
        %v2575 = vsinq.f32.pop %v2572
        %vm2576 = vweird.f32 %v514
        %v2577 = vand.u32 %v2573, 3
        %vm2578 = vcmp.lt.s32.totalorder %v2577, 2
        %vm2579 = vcmp.eq.s32.totalorder %v2577, 0
        %v2580 = vxor.u32 %v2575, 2147483648
        %v2581 = vsel %vm2579, %v2574, %v2580
        %vm2582 = vcmp.eq.s32.totalorder %v2577, 2
        %v2583 = vxor.u32 %v2574, 2147483648
        %v2584 = vsel %vm2582, %v2583, %v2575
        %v2585 = vsel %vm2578, %v2581, %v2584
        %v2586 = vsel %vm2576, nan, %v2585
        %v2587 = vand.u32 2147483647, %v515
        %vm2588 = vcmp.le.f32.partialorder %v2587, 0.7853982
        %vm2589 = vcmp.lt.s32.totalorder %v515, 0
        %v2590 = vand.u32 %v515, 2139095040
        %v2591 = vshrl.u32 %v2590, 23
        %v2592 = vsub.s32 %v2591, 127
        %v2593 = vand.u32 2147483647, %v515
        %v2594 = vand.u32 %v2593, 8388607
        %v2595 = vor.u32 %v2594, 8388608
        %v2596 = vsub.s32 0, %v2595
        %v2597 = vadd.s32 %v2592, 1
        %vm2598 = vcmp.gt.s32.totalorder %v2597, 0
        %v2599 = vsel %vm2598, %v2597, 0
        %v2600 = vshrl.u32 %v2599, 5
        %v2601 = vand.u32 %v2599, 31
        %v2602 = vsub.s32 32, %v2601
        %v2603 = vshrl.u32 683565275, %v2602
        %v2604 = vshll.u32 683565275, %v2601
        %v2605 = vshrl.u32 2475754826, %v2602
        %v2606 = vor.u32 %v2604, %v2605
        %v2607 = vshll.u32 2475754826, %v2601
        %v2608 = vshrl.u32 2131351028, %v2602
        %v2609 = vor.u32 %v2607, %v2608
        %v2610 = vshll.u32 2131351028, %v2601
        %v2611 = vshrl.u32 2102212464, %v2602
        %v2612 = vor.u32 %v2610, %v2611
        %v2613 = vshll.u32 2102212464, %v2601
        %v2614 = vshrl.u32 920167782, %v2602
        %v2615 = vor.u32 %v2613, %v2614
        %v2616 = vshll.u32 920167782, %v2601
        %v2617 = vshrl.u32 1326507024, %v2602
        %v2618 = vor.u32 %v2616, %v2617
        %vm2619 = vcmp.lt.s32.totalorder %v2600, 1
        %vm2620 = vcmp.lt.s32.totalorder %v2600, 2
        %vm2621 = vcmp.lt.s32.totalorder %v2600, 3
        %vm2622 = vcmp.lt.s32.totalorder %v2600, 4
        %v2623 = vsel %vm2619, %v2603, %v2606
        %v2624 = vsel %vm2622, %v2612, 2102212464
        %v2625 = vsel %vm2621, %v2609, %v2624
        %v2626 = vsel %vm2620, %v2623, %v2625
        %v2627 = vsel %vm2619, %v2606, %v2609
        %v2628 = vsel %vm2622, %v2615, 920167782
        %v2629 = vsel %vm2621, %v2612, %v2628
        %v2630 = vsel %vm2620, %v2627, %v2629
        %v2631 = vsel %vm2619, %v2609, %v2612
        %v2632 = vsel %vm2622, %v2618, 1326507024
        %v2633 = vsel %vm2621, %v2615, %v2632
        %v2634 = vsel %vm2620, %v2631, %v2633
        %v2635 = vshll.u32 %v2595, 8
        %v2636 = vmul.u32.u64.compose %v2635, %v2634
        %v2637 = vextract.low.u32 %v2636
        %v2638 = vextract.high.u32 %v2636
        %v2639 = vmul.u32.u64.compose %v2635, %v2630
        %v2640 = vextract.low.u32 %v2639
        %v2641 = vextract.high.u32 %v2639
        %v2642 = vmul.u32 %v2635, %v2626
        %v2643 = vadd.s32 %v2638, %v2640
        %vm2644 = vc.u32 %v2638, %v2640
        %v2645 = vadd.s32 %v2641, 1
        %v2646 = vsel %vm2644, %v2645, %v2641
        %v2647 = vadd.s32 %v2642, %v2646
        %v2648 = vadd.s32 %v2647, 536870912
        %v2649 = vshrl.u32 %v2648, 30
        %v2650 = vshll.u32 %v2649, 30
        %v2651 = vsub.s32 %v2647, %v2650
        %vm2652 = vcmp.lt.s32.totalorder %v2651, 0
        %v2653 = vsub.s32 0, %v2651
        %v2654 = vsel %vm2652, %v2653, %v2651
        %v2655 = vclz %v2654
        %v2656 = vsub.s32 %v2655, 2
        %vm2657 = vcmp.gt.s32.totalorder 0, %v2656
        %v2658 = vsel %vm2657, 0, %v2656
        %v2659 = vsub.s32 32, %v2658
        %v2660 = vshll.u32 %v2651, %v2658
        %v2661 = vshrl.u32 %v2643, %v2659
        %v2662 = vor.u32 %v2660, %v2661
        %v2663 = vsub.s32 4294967266, %v2658
        %v2664 = vadd.s32 %v2663, 127
        %v2665 = vshll.u32 %v2664, 23
        %v2666 = vor.u32 4788187, %v2665
        %v2667 = vand.u32 2147483647, %v2666
        %v2669 = vcvt.s32.f32 %v2662
        %v2670 = vmul.f32 %v2669, %v2667
        %v2671 = vxor.u32 %v2670, 2147483648
        %v2672 = vsel %vm2589, %v2671, %v2670
        %v2673 = vsub.s32 4, %v2649
        %v2674 = vsel %vm2589, %v2673, %v2649
        %v2675 = vsel %vm2588, %v515, %v2672
        %v2676 = vsel %vm2588, 0, %v2674
        %v2677 = vcosq.f32.pop %v2675
        %v2678 = vsinq.f32.pop %v2675
        %vm2679 = vweird.f32 %v515
        %v2680 = vand.u32 %v2676, 3
        %vm2681 = vcmp.lt.s32.totalorder %v2680, 2
        %vm2682 = vcmp.eq.s32.totalorder %v2680, 0
        %v2683 = vxor.u32 %v2678, 2147483648
        %v2684 = vsel %vm2682, %v2677, %v2683
        %vm2685 = vcmp.eq.s32.totalorder %v2680, 2
        %v2686 = vxor.u32 %v2677, 2147483648
        %v2687 = vsel %vm2685, %v2686, %v2678
        %v2688 = vsel %vm2681, %v2684, %v2687
        %v2689 = vsel %vm2679, nan, %v2688
        %v2690 = vand.u32 2147483647, %v516
        %vm2691 = vcmp.le.f32.partialorder %v2690, 0.7853982
        %vm2692 = vcmp.lt.s32.totalorder %v516, 0
        %v2693 = vand.u32 %v516, 2139095040
        %v2694 = vshrl.u32 %v2693, 23
        %v2695 = vsub.s32 %v2694, 127
        %v2696 = vand.u32 2147483647, %v516
        %v2697 = vand.u32 %v2696, 8388607
        %v2698 = vor.u32 %v2697, 8388608
        %v2699 = vsub.s32 0, %v2698
        %v2700 = vadd.s32 %v2695, 1
        %vm2701 = vcmp.gt.s32.totalorder %v2700, 0
        %v2702 = vsel %vm2701, %v2700, 0
        %v2703 = vshrl.u32 %v2702, 5
        %v2704 = vand.u32 %v2702, 31
        %v2705 = vsub.s32 32, %v2704
        %v2706 = vshrl.u32 683565275, %v2705
        %v2707 = vshll.u32 683565275, %v2704
        %v2708 = vshrl.u32 2475754826, %v2705
        %v2709 = vor.u32 %v2707, %v2708
        %v2710 = vshll.u32 2475754826, %v2704
        %v2711 = vshrl.u32 2131351028, %v2705
        %v2712 = vor.u32 %v2710, %v2711
        %v2713 = vshll.u32 2131351028, %v2704
        %v2714 = vshrl.u32 2102212464, %v2705
        %v2715 = vor.u32 %v2713, %v2714
        %v2716 = vshll.u32 2102212464, %v2704
        %v2717 = vshrl.u32 920167782, %v2705
        %v2718 = vor.u32 %v2716, %v2717
        %v2719 = vshll.u32 920167782, %v2704
        %v2720 = vshrl.u32 1326507024, %v2705
        %v2721 = vor.u32 %v2719, %v2720
        %vm2722 = vcmp.lt.s32.totalorder %v2703, 1
        %vm2723 = vcmp.lt.s32.totalorder %v2703, 2
        %vm2724 = vcmp.lt.s32.totalorder %v2703, 3
        %vm2725 = vcmp.lt.s32.totalorder %v2703, 4
        %v2726 = vsel %vm2722, %v2706, %v2709
        %v2727 = vsel %vm2725, %v2715, 2102212464
        %v2728 = vsel %vm2724, %v2712, %v2727
        %v2729 = vsel %vm2723, %v2726, %v2728
        %v2730 = vsel %vm2722, %v2709, %v2712
        %v2731 = vsel %vm2725, %v2718, 920167782
        %v2732 = vsel %vm2724, %v2715, %v2731
        %v2733 = vsel %vm2723, %v2730, %v2732
        %v2734 = vsel %vm2722, %v2712, %v2715
        %v2735 = vsel %vm2725, %v2721, 1326507024
        %v2736 = vsel %vm2724, %v2718, %v2735
        %v2737 = vsel %vm2723, %v2734, %v2736
        %v2738 = vshll.u32 %v2698, 8
        %v2739 = vmul.u32.u64.compose %v2738, %v2737
        %v2740 = vextract.low.u32 %v2739
        %v2741 = vextract.high.u32 %v2739
        %v2742 = vmul.u32.u64.compose %v2738, %v2733
        %v2743 = vextract.low.u32 %v2742
        %v2744 = vextract.high.u32 %v2742
        %v2745 = vmul.u32 %v2738, %v2729
        %v2746 = vadd.s32 %v2741, %v2743
        %vm2747 = vc.u32 %v2741, %v2743
        %v2748 = vadd.s32 %v2744, 1
        %v2749 = vsel %vm2747, %v2748, %v2744
        %v2750 = vadd.s32 %v2745, %v2749
        %v2751 = vadd.s32 %v2750, 536870912
        %v2752 = vshrl.u32 %v2751, 30
        %v2753 = vshll.u32 %v2752, 30
        %v2754 = vsub.s32 %v2750, %v2753
        %vm2755 = vcmp.lt.s32.totalorder %v2754, 0
        %v2756 = vsub.s32 0, %v2754
        %v2757 = vsel %vm2755, %v2756, %v2754
        %v2758 = vclz %v2757
        %v2759 = vsub.s32 %v2758, 2
        %vm2760 = vcmp.gt.s32.totalorder 0, %v2759
        %v2761 = vsel %vm2760, 0, %v2759
        %v2762 = vsub.s32 32, %v2761
        %v2763 = vshll.u32 %v2754, %v2761
        %v2764 = vshrl.u32 %v2746, %v2762
        %v2765 = vor.u32 %v2763, %v2764
        %v2766 = vsub.s32 4294967266, %v2761
        %v2767 = vadd.s32 %v2766, 127
        %v2768 = vshll.u32 %v2767, 23
        %v2769 = vor.u32 4788187, %v2768
        %v2770 = vand.u32 2147483647, %v2769
        %v2772 = vcvt.s32.f32 %v2765
        %v2773 = vmul.f32 %v2772, %v2770
        %v2774 = vxor.u32 %v2773, 2147483648
        %v2775 = vsel %vm2692, %v2774, %v2773
        %v2776 = vsub.s32 4, %v2752
        %v2777 = vsel %vm2692, %v2776, %v2752
        %v2778 = vsel %vm2691, %v516, %v2775
        %v2779 = vsel %vm2691, 0, %v2777
        %v2780 = vcosq.f32.pop %v2778
        %v2781 = vsinq.f32.pop %v2778
        %vm2782 = vweird.f32 %v516
        %v2783 = vand.u32 %v2779, 3
        %vm2784 = vcmp.lt.s32.totalorder %v2783, 2
        %vm2785 = vcmp.eq.s32.totalorder %v2783, 0
        %v2786 = vxor.u32 %v2781, 2147483648
        %v2787 = vsel %vm2785, %v2780, %v2786
        %vm2788 = vcmp.eq.s32.totalorder %v2783, 2
        %v2789 = vxor.u32 %v2780, 2147483648
        %v2790 = vsel %vm2788, %v2789, %v2781
        %v2791 = vsel %vm2784, %v2787, %v2790
        %v2792 = vsel %vm2782, nan, %v2791
        %v2793 = vand.u32 2147483647, %v517
        %vm2794 = vcmp.le.f32.partialorder %v2793, 0.7853982
        %vm2795 = vcmp.lt.s32.totalorder %v517, 0
        %v2796 = vand.u32 %v517, 2139095040
        %v2797 = vshrl.u32 %v2796, 23
        %v2798 = vsub.s32 %v2797, 127
        %v2799 = vand.u32 2147483647, %v517
        %v2800 = vand.u32 %v2799, 8388607
        %v2801 = vor.u32 %v2800, 8388608
        %v2802 = vsub.s32 0, %v2801
        %v2803 = vadd.s32 %v2798, 1
        %vm2804 = vcmp.gt.s32.totalorder %v2803, 0
        %v2805 = vsel %vm2804, %v2803, 0
        %v2806 = vshrl.u32 %v2805, 5
        %v2807 = vand.u32 %v2805, 31
        %v2808 = vsub.s32 32, %v2807
        %v2809 = vshrl.u32 683565275, %v2808
        %v2810 = vshll.u32 683565275, %v2807
        %v2811 = vshrl.u32 2475754826, %v2808
        %v2812 = vor.u32 %v2810, %v2811
        %v2813 = vshll.u32 2475754826, %v2807
        %v2814 = vshrl.u32 2131351028, %v2808
        %v2815 = vor.u32 %v2813, %v2814
        %v2816 = vshll.u32 2131351028, %v2807
        %v2817 = vshrl.u32 2102212464, %v2808
        %v2818 = vor.u32 %v2816, %v2817
        %v2819 = vshll.u32 2102212464, %v2807
        %v2820 = vshrl.u32 920167782, %v2808
        %v2821 = vor.u32 %v2819, %v2820
        %v2822 = vshll.u32 920167782, %v2807
        %v2823 = vshrl.u32 1326507024, %v2808
        %v2824 = vor.u32 %v2822, %v2823
        %vm2825 = vcmp.lt.s32.totalorder %v2806, 1
        %vm2826 = vcmp.lt.s32.totalorder %v2806, 2
        %vm2827 = vcmp.lt.s32.totalorder %v2806, 3
        %vm2828 = vcmp.lt.s32.totalorder %v2806, 4
        %v2829 = vsel %vm2825, %v2809, %v2812
        %v2830 = vsel %vm2828, %v2818, 2102212464
        %v2831 = vsel %vm2827, %v2815, %v2830
        %v2832 = vsel %vm2826, %v2829, %v2831
        %v2833 = vsel %vm2825, %v2812, %v2815
        %v2834 = vsel %vm2828, %v2821, 920167782
        %v2835 = vsel %vm2827, %v2818, %v2834
        %v2836 = vsel %vm2826, %v2833, %v2835
        %v2837 = vsel %vm2825, %v2815, %v2818
        %v2838 = vsel %vm2828, %v2824, 1326507024
        %v2839 = vsel %vm2827, %v2821, %v2838
        %v2840 = vsel %vm2826, %v2837, %v2839
        %v2841 = vshll.u32 %v2801, 8
        %v2842 = vmul.u32.u64.compose %v2841, %v2840
        %v2843 = vextract.low.u32 %v2842
        %v2844 = vextract.high.u32 %v2842
        %v2845 = vmul.u32.u64.compose %v2841, %v2836
        %v2846 = vextract.low.u32 %v2845
        %v2847 = vextract.high.u32 %v2845
        %v2848 = vmul.u32 %v2841, %v2832
        %v2849 = vadd.s32 %v2844, %v2846
        %vm2850 = vc.u32 %v2844, %v2846
        %v2851 = vadd.s32 %v2847, 1
        %v2852 = vsel %vm2850, %v2851, %v2847
        %v2853 = vadd.s32 %v2848, %v2852
        %v2854 = vadd.s32 %v2853, 536870912
        %v2855 = vshrl.u32 %v2854, 30
        %v2856 = vshll.u32 %v2855, 30
        %v2857 = vsub.s32 %v2853, %v2856
        %vm2858 = vcmp.lt.s32.totalorder %v2857, 0
        %v2859 = vsub.s32 0, %v2857
        %v2860 = vsel %vm2858, %v2859, %v2857
        %v2861 = vclz %v2860
        %v2862 = vsub.s32 %v2861, 2
        %vm2863 = vcmp.gt.s32.totalorder 0, %v2862
        %v2864 = vsel %vm2863, 0, %v2862
        %v2865 = vsub.s32 32, %v2864
        %v2866 = vshll.u32 %v2857, %v2864
        %v2867 = vshrl.u32 %v2849, %v2865
        %v2868 = vor.u32 %v2866, %v2867
        %v2869 = vsub.s32 4294967266, %v2864
        %v2870 = vadd.s32 %v2869, 127
        %v2871 = vshll.u32 %v2870, 23
        %v2872 = vor.u32 4788187, %v2871
        %v2873 = vand.u32 2147483647, %v2872
        %v2875 = vcvt.s32.f32 %v2868
        %v2876 = vmul.f32 %v2875, %v2873
        %v2877 = vxor.u32 %v2876, 2147483648
        %v2878 = vsel %vm2795, %v2877, %v2876
        %v2879 = vsub.s32 4, %v2855
        %v2880 = vsel %vm2795, %v2879, %v2855
        %v2881 = vsel %vm2794, %v517, %v2878
        %v2882 = vsel %vm2794, 0, %v2880
        %v2883 = vcosq.f32.pop %v2881
        %v2884 = vsinq.f32.pop %v2881
        %vm2885 = vweird.f32 %v517
        %v2886 = vand.u32 %v2882, 3
        %vm2887 = vcmp.lt.s32.totalorder %v2886, 2
        %vm2888 = vcmp.eq.s32.totalorder %v2886, 0
        %v2889 = vxor.u32 %v2884, 2147483648
        %v2890 = vsel %vm2888, %v2883, %v2889
        %vm2891 = vcmp.eq.s32.totalorder %v2886, 2
        %v2892 = vxor.u32 %v2883, 2147483648
        %v2893 = vsel %vm2891, %v2892, %v2884
        %v2894 = vsel %vm2887, %v2890, %v2893
        %v2895 = vsel %vm2885, nan, %v2894
        %v2896 = vand.u32 2147483647, %v518
        %vm2897 = vcmp.le.f32.partialorder %v2896, 0.7853982
        %vm2898 = vcmp.lt.s32.totalorder %v518, 0
        %v2899 = vand.u32 %v518, 2139095040
        %v2900 = vshrl.u32 %v2899, 23
        %v2901 = vsub.s32 %v2900, 127
        %v2902 = vand.u32 2147483647, %v518
        %v2903 = vand.u32 %v2902, 8388607
        %v2904 = vor.u32 %v2903, 8388608
        %v2905 = vsub.s32 0, %v2904
        %v2906 = vadd.s32 %v2901, 1
        %vm2907 = vcmp.gt.s32.totalorder %v2906, 0
        %v2908 = vsel %vm2907, %v2906, 0
        %v2909 = vshrl.u32 %v2908, 5
        %v2910 = vand.u32 %v2908, 31
        %v2911 = vsub.s32 32, %v2910
        %v2912 = vshrl.u32 683565275, %v2911
        %v2913 = vshll.u32 683565275, %v2910
        %v2914 = vshrl.u32 2475754826, %v2911
        %v2915 = vor.u32 %v2913, %v2914
        %v2916 = vshll.u32 2475754826, %v2910
        %v2917 = vshrl.u32 2131351028, %v2911
        %v2918 = vor.u32 %v2916, %v2917
        %v2919 = vshll.u32 2131351028, %v2910
        %v2920 = vshrl.u32 2102212464, %v2911
        %v2921 = vor.u32 %v2919, %v2920
        %v2922 = vshll.u32 2102212464, %v2910
        %v2923 = vshrl.u32 920167782, %v2911
        %v2924 = vor.u32 %v2922, %v2923
        %v2925 = vshll.u32 920167782, %v2910
        %v2926 = vshrl.u32 1326507024, %v2911
        %v2927 = vor.u32 %v2925, %v2926
        %vm2928 = vcmp.lt.s32.totalorder %v2909, 1
        %vm2929 = vcmp.lt.s32.totalorder %v2909, 2
        %vm2930 = vcmp.lt.s32.totalorder %v2909, 3
        %vm2931 = vcmp.lt.s32.totalorder %v2909, 4
        %v2932 = vsel %vm2928, %v2912, %v2915
        %v2933 = vsel %vm2931, %v2921, 2102212464
        %v2934 = vsel %vm2930, %v2918, %v2933
        %v2935 = vsel %vm2929, %v2932, %v2934
        %v2936 = vsel %vm2928, %v2915, %v2918
        %v2937 = vsel %vm2931, %v2924, 920167782
        %v2938 = vsel %vm2930, %v2921, %v2937
        %v2939 = vsel %vm2929, %v2936, %v2938
        %v2940 = vsel %vm2928, %v2918, %v2921
        %v2941 = vsel %vm2931, %v2927, 1326507024
        %v2942 = vsel %vm2930, %v2924, %v2941
        %v2943 = vsel %vm2929, %v2940, %v2942
        %v2944 = vshll.u32 %v2904, 8
        %v2945 = vmul.u32.u64.compose %v2944, %v2943
        %v2946 = vextract.low.u32 %v2945
        %v2947 = vextract.high.u32 %v2945
        %v2948 = vmul.u32.u64.compose %v2944, %v2939
        %v2949 = vextract.low.u32 %v2948
        %v2950 = vextract.high.u32 %v2948
        %v2951 = vmul.u32 %v2944, %v2935
        %v2952 = vadd.s32 %v2947, %v2949
        %vm2953 = vc.u32 %v2947, %v2949
        %v2954 = vadd.s32 %v2950, 1
        %v2955 = vsel %vm2953, %v2954, %v2950
        %v2956 = vadd.s32 %v2951, %v2955
        %v2957 = vadd.s32 %v2956, 536870912
        %v2958 = vshrl.u32 %v2957, 30
        %v2959 = vshll.u32 %v2958, 30
        %v2960 = vsub.s32 %v2956, %v2959
        %vm2961 = vcmp.lt.s32.totalorder %v2960, 0
        %v2962 = vsub.s32 0, %v2960
        %v2963 = vsel %vm2961, %v2962, %v2960
        %v2964 = vclz %v2963
        %v2965 = vsub.s32 %v2964, 2
        %vm2966 = vcmp.gt.s32.totalorder 0, %v2965
        %v2967 = vsel %vm2966, 0, %v2965
        %v2968 = vsub.s32 32, %v2967
        %v2969 = vshll.u32 %v2960, %v2967
        %v2970 = vshrl.u32 %v2952, %v2968
        %v2971 = vor.u32 %v2969, %v2970
        %v2972 = vsub.s32 4294967266, %v2967
        %v2973 = vadd.s32 %v2972, 127
        %v2974 = vshll.u32 %v2973, 23
        %v2975 = vor.u32 4788187, %v2974
        %v2976 = vand.u32 2147483647, %v2975
        %v2978 = vcvt.s32.f32 %v2971
        %v2979 = vmul.f32 %v2978, %v2976
        %v2980 = vxor.u32 %v2979, 2147483648
        %v2981 = vsel %vm2898, %v2980, %v2979
        %v2982 = vsub.s32 4, %v2958
        %v2983 = vsel %vm2898, %v2982, %v2958
        %v2984 = vsel %vm2897, %v518, %v2981
        %v2985 = vsel %vm2897, 0, %v2983
        %v2986 = vcosq.f32.pop %v2984
        %v2987 = vsinq.f32.pop %v2984
        %vm2988 = vweird.f32 %v518
        %v2989 = vand.u32 %v2985, 3
        %vm2990 = vcmp.lt.s32.totalorder %v2989, 2
        %vm2991 = vcmp.eq.s32.totalorder %v2989, 0
        %v2992 = vxor.u32 %v2987, 2147483648
        %v2993 = vsel %vm2991, %v2986, %v2992
        %vm2994 = vcmp.eq.s32.totalorder %v2989, 2
        %v2995 = vxor.u32 %v2986, 2147483648
        %v2996 = vsel %vm2994, %v2995, %v2987
        %v2997 = vsel %vm2990, %v2993, %v2996
        %v2998 = vsel %vm2988, nan, %v2997
        %v2999 = vand.u32 2147483647, %v519
        %vm3000 = vcmp.le.f32.partialorder %v2999, 0.7853982
        %vm3001 = vcmp.lt.s32.totalorder %v519, 0
        %v3002 = vand.u32 %v519, 2139095040
        %v3003 = vshrl.u32 %v3002, 23
        %v3004 = vsub.s32 %v3003, 127
        %v3005 = vand.u32 2147483647, %v519
        %v3006 = vand.u32 %v3005, 8388607
        %v3007 = vor.u32 %v3006, 8388608
        %v3008 = vsub.s32 0, %v3007
        %v3009 = vadd.s32 %v3004, 1
        %vm3010 = vcmp.gt.s32.totalorder %v3009, 0
        %v3011 = vsel %vm3010, %v3009, 0
        %v3012 = vshrl.u32 %v3011, 5
        %v3013 = vand.u32 %v3011, 31
        %v3014 = vsub.s32 32, %v3013
        %v3015 = vshrl.u32 683565275, %v3014
        %v3016 = vshll.u32 683565275, %v3013
        %v3017 = vshrl.u32 2475754826, %v3014
        %v3018 = vor.u32 %v3016, %v3017
        %v3019 = vshll.u32 2475754826, %v3013
        %v3020 = vshrl.u32 2131351028, %v3014
        %v3021 = vor.u32 %v3019, %v3020
        %v3022 = vshll.u32 2131351028, %v3013
        %v3023 = vshrl.u32 2102212464, %v3014
        %v3024 = vor.u32 %v3022, %v3023
        %v3025 = vshll.u32 2102212464, %v3013
        %v3026 = vshrl.u32 920167782, %v3014
        %v3027 = vor.u32 %v3025, %v3026
        %v3028 = vshll.u32 920167782, %v3013
        %v3029 = vshrl.u32 1326507024, %v3014
        %v3030 = vor.u32 %v3028, %v3029
        %vm3031 = vcmp.lt.s32.totalorder %v3012, 1
        %vm3032 = vcmp.lt.s32.totalorder %v3012, 2
        %vm3033 = vcmp.lt.s32.totalorder %v3012, 3
        %vm3034 = vcmp.lt.s32.totalorder %v3012, 4
        %v3035 = vsel %vm3031, %v3015, %v3018
        %v3036 = vsel %vm3034, %v3024, 2102212464
        %v3037 = vsel %vm3033, %v3021, %v3036
        %v3038 = vsel %vm3032, %v3035, %v3037
        %v3039 = vsel %vm3031, %v3018, %v3021
        %v3040 = vsel %vm3034, %v3027, 920167782
        %v3041 = vsel %vm3033, %v3024, %v3040
        %v3042 = vsel %vm3032, %v3039, %v3041
        %v3043 = vsel %vm3031, %v3021, %v3024
        %v3044 = vsel %vm3034, %v3030, 1326507024
        %v3045 = vsel %vm3033, %v3027, %v3044
        %v3046 = vsel %vm3032, %v3043, %v3045
        %v3047 = vshll.u32 %v3007, 8
        %v3048 = vmul.u32.u64.compose %v3047, %v3046
        %v3049 = vextract.low.u32 %v3048
        %v3050 = vextract.high.u32 %v3048
        %v3051 = vmul.u32.u64.compose %v3047, %v3042
        %v3052 = vextract.low.u32 %v3051
        %v3053 = vextract.high.u32 %v3051
        %v3054 = vmul.u32 %v3047, %v3038
        %v3055 = vadd.s32 %v3050, %v3052
        %vm3056 = vc.u32 %v3050, %v3052
        %v3057 = vadd.s32 %v3053, 1
        %v3058 = vsel %vm3056, %v3057, %v3053
        %v3059 = vadd.s32 %v3054, %v3058
        %v3060 = vadd.s32 %v3059, 536870912
        %v3061 = vshrl.u32 %v3060, 30
        %v3062 = vshll.u32 %v3061, 30
        %v3063 = vsub.s32 %v3059, %v3062
        %vm3064 = vcmp.lt.s32.totalorder %v3063, 0
        %v3065 = vsub.s32 0, %v3063
        %v3066 = vsel %vm3064, %v3065, %v3063
        %v3067 = vclz %v3066
        %v3068 = vsub.s32 %v3067, 2
        %vm3069 = vcmp.gt.s32.totalorder 0, %v3068
        %v3070 = vsel %vm3069, 0, %v3068
        %v3071 = vsub.s32 32, %v3070
        %v3072 = vshll.u32 %v3063, %v3070
        %v3073 = vshrl.u32 %v3055, %v3071
        %v3074 = vor.u32 %v3072, %v3073
        %v3075 = vsub.s32 4294967266, %v3070
        %v3076 = vadd.s32 %v3075, 127
        %v3077 = vshll.u32 %v3076, 23
        %v3078 = vor.u32 4788187, %v3077
        %v3079 = vand.u32 2147483647, %v3078
        %v3081 = vcvt.s32.f32 %v3074
        %v3082 = vmul.f32 %v3081, %v3079
        %v3083 = vxor.u32 %v3082, 2147483648
        %v3084 = vsel %vm3001, %v3083, %v3082
        %v3085 = vsub.s32 4, %v3061
        %v3086 = vsel %vm3001, %v3085, %v3061
        %v3087 = vsel %vm3000, %v519, %v3084
        %v3088 = vsel %vm3000, 0, %v3086
        %v3089 = vcosq.f32.pop %v3087
        %v3090 = vsinq.f32.pop %v3087
        %vm3091 = vweird.f32 %v519
        %v3092 = vand.u32 %v3088, 3
        %vm3093 = vcmp.lt.s32.totalorder %v3092, 2
        %vm3094 = vcmp.eq.s32.totalorder %v3092, 0
        %v3095 = vxor.u32 %v3090, 2147483648
        %v3096 = vsel %vm3094, %v3089, %v3095
        %vm3097 = vcmp.eq.s32.totalorder %v3092, 2
        %v3098 = vxor.u32 %v3089, 2147483648
        %v3099 = vsel %vm3097, %v3098, %v3090
        %v3100 = vsel %vm3093, %v3096, %v3099
        %v3101 = vsel %vm3091, nan, %v3100
        %v3102 = vand.u32 2147483647, %v520
        %vm3103 = vcmp.le.f32.partialorder %v3102, 0.7853982
        %vm3104 = vcmp.lt.s32.totalorder %v520, 0
        %v3105 = vand.u32 %v520, 2139095040
        %v3106 = vshrl.u32 %v3105, 23
        %v3107 = vsub.s32 %v3106, 127
        %v3108 = vand.u32 2147483647, %v520
        %v3109 = vand.u32 %v3108, 8388607
        %v3110 = vor.u32 %v3109, 8388608
        %v3111 = vsub.s32 0, %v3110
        %v3112 = vadd.s32 %v3107, 1
        %vm3113 = vcmp.gt.s32.totalorder %v3112, 0
        %v3114 = vsel %vm3113, %v3112, 0
        %v3115 = vshrl.u32 %v3114, 5
        %v3116 = vand.u32 %v3114, 31
        %v3117 = vsub.s32 32, %v3116
        %v3118 = vshrl.u32 683565275, %v3117
        %v3119 = vshll.u32 683565275, %v3116
        %v3120 = vshrl.u32 2475754826, %v3117
        %v3121 = vor.u32 %v3119, %v3120
        %v3122 = vshll.u32 2475754826, %v3116
        %v3123 = vshrl.u32 2131351028, %v3117
        %v3124 = vor.u32 %v3122, %v3123
        %v3125 = vshll.u32 2131351028, %v3116
        %v3126 = vshrl.u32 2102212464, %v3117
        %v3127 = vor.u32 %v3125, %v3126
        %v3128 = vshll.u32 2102212464, %v3116
        %v3129 = vshrl.u32 920167782, %v3117
        %v3130 = vor.u32 %v3128, %v3129
        %v3131 = vshll.u32 920167782, %v3116
        %v3132 = vshrl.u32 1326507024, %v3117
        %v3133 = vor.u32 %v3131, %v3132
        %vm3134 = vcmp.lt.s32.totalorder %v3115, 1
        %vm3135 = vcmp.lt.s32.totalorder %v3115, 2
        %vm3136 = vcmp.lt.s32.totalorder %v3115, 3
        %vm3137 = vcmp.lt.s32.totalorder %v3115, 4
        %v3138 = vsel %vm3134, %v3118, %v3121
        %v3139 = vsel %vm3137, %v3127, 2102212464
        %v3140 = vsel %vm3136, %v3124, %v3139
        %v3141 = vsel %vm3135, %v3138, %v3140
        %v3142 = vsel %vm3134, %v3121, %v3124
        %v3143 = vsel %vm3137, %v3130, 920167782
        %v3144 = vsel %vm3136, %v3127, %v3143
        %v3145 = vsel %vm3135, %v3142, %v3144
        %v3146 = vsel %vm3134, %v3124, %v3127
        %v3147 = vsel %vm3137, %v3133, 1326507024
        %v3148 = vsel %vm3136, %v3130, %v3147
        %v3149 = vsel %vm3135, %v3146, %v3148
        %v3150 = vshll.u32 %v3110, 8
        %v3151 = vmul.u32.u64.compose %v3150, %v3149
        %v3152 = vextract.low.u32 %v3151
        %v3153 = vextract.high.u32 %v3151
        %v3154 = vmul.u32.u64.compose %v3150, %v3145
        %v3155 = vextract.low.u32 %v3154
        %v3156 = vextract.high.u32 %v3154
        %v3157 = vmul.u32 %v3150, %v3141
        %v3158 = vadd.s32 %v3153, %v3155
        %vm3159 = vc.u32 %v3153, %v3155
        %v3160 = vadd.s32 %v3156, 1
        %v3161 = vsel %vm3159, %v3160, %v3156
        %v3162 = vadd.s32 %v3157, %v3161
        %v3163 = vadd.s32 %v3162, 536870912
        %v3164 = vshrl.u32 %v3163, 30
        %v3165 = vshll.u32 %v3164, 30
        %v3166 = vsub.s32 %v3162, %v3165
        %vm3167 = vcmp.lt.s32.totalorder %v3166, 0
        %v3168 = vsub.s32 0, %v3166
        %v3169 = vsel %vm3167, %v3168, %v3166
        %v3170 = vclz %v3169
        %v3171 = vsub.s32 %v3170, 2
        %vm3172 = vcmp.gt.s32.totalorder 0, %v3171
        %v3173 = vsel %vm3172, 0, %v3171
        %v3174 = vsub.s32 32, %v3173
        %v3175 = vshll.u32 %v3166, %v3173
        %v3176 = vshrl.u32 %v3158, %v3174
        %v3177 = vor.u32 %v3175, %v3176
        %v3178 = vsub.s32 4294967266, %v3173
        %v3179 = vadd.s32 %v3178, 127
        %v3180 = vshll.u32 %v3179, 23
        %v3181 = vor.u32 4788187, %v3180
        %v3182 = vand.u32 2147483647, %v3181
        %v3184 = vcvt.s32.f32 %v3177
        %v3185 = vmul.f32 %v3184, %v3182
        %v3186 = vxor.u32 %v3185, 2147483648
        %v3187 = vsel %vm3104, %v3186, %v3185
        %v3188 = vsub.s32 4, %v3164
        %v3189 = vsel %vm3104, %v3188, %v3164
        %v3190 = vsel %vm3103, %v520, %v3187
        %v3191 = vsel %vm3103, 0, %v3189
        %v3192 = vcosq.f32.pop %v3190
        %v3193 = vsinq.f32.pop %v3190
        %vm3194 = vweird.f32 %v520
        %v3195 = vand.u32 %v3191, 3
        %vm3196 = vcmp.lt.s32.totalorder %v3195, 2
        %vm3197 = vcmp.eq.s32.totalorder %v3195, 0
        %v3198 = vxor.u32 %v3193, 2147483648
        %v3199 = vsel %vm3197, %v3192, %v3198
        %vm3200 = vcmp.eq.s32.totalorder %v3195, 2
        %v3201 = vxor.u32 %v3192, 2147483648
        %v3202 = vsel %vm3200, %v3201, %v3193
        %v3203 = vsel %vm3196, %v3199, %v3202
        %v3204 = vsel %vm3194, nan, %v3203
        %v3205 = vand.u32 2147483647, %v521
        %vm3206 = vcmp.le.f32.partialorder %v3205, 0.7853982
        %vm3207 = vcmp.lt.s32.totalorder %v521, 0
        %v3208 = vand.u32 %v521, 2139095040
        %v3209 = vshrl.u32 %v3208, 23
        %v3210 = vsub.s32 %v3209, 127
        %v3211 = vand.u32 2147483647, %v521
        %v3212 = vand.u32 %v3211, 8388607
        %v3213 = vor.u32 %v3212, 8388608
        %v3214 = vsub.s32 0, %v3213
        %v3215 = vadd.s32 %v3210, 1
        %vm3216 = vcmp.gt.s32.totalorder %v3215, 0
        %v3217 = vsel %vm3216, %v3215, 0
        %v3218 = vshrl.u32 %v3217, 5
        %v3219 = vand.u32 %v3217, 31
        %v3220 = vsub.s32 32, %v3219
        %v3221 = vshrl.u32 683565275, %v3220
        %v3222 = vshll.u32 683565275, %v3219
        %v3223 = vshrl.u32 2475754826, %v3220
        %v3224 = vor.u32 %v3222, %v3223
        %v3225 = vshll.u32 2475754826, %v3219
        %v3226 = vshrl.u32 2131351028, %v3220
        %v3227 = vor.u32 %v3225, %v3226
        %v3228 = vshll.u32 2131351028, %v3219
        %v3229 = vshrl.u32 2102212464, %v3220
        %v3230 = vor.u32 %v3228, %v3229
        %v3231 = vshll.u32 2102212464, %v3219
        %v3232 = vshrl.u32 920167782, %v3220
        %v3233 = vor.u32 %v3231, %v3232
        %v3234 = vshll.u32 920167782, %v3219
        %v3235 = vshrl.u32 1326507024, %v3220
        %v3236 = vor.u32 %v3234, %v3235
        %vm3237 = vcmp.lt.s32.totalorder %v3218, 1
        %vm3238 = vcmp.lt.s32.totalorder %v3218, 2
        %vm3239 = vcmp.lt.s32.totalorder %v3218, 3
        %vm3240 = vcmp.lt.s32.totalorder %v3218, 4
        %v3241 = vsel %vm3237, %v3221, %v3224
        %v3242 = vsel %vm3240, %v3230, 2102212464
        %v3243 = vsel %vm3239, %v3227, %v3242
        %v3244 = vsel %vm3238, %v3241, %v3243
        %v3245 = vsel %vm3237, %v3224, %v3227
        %v3246 = vsel %vm3240, %v3233, 920167782
        %v3247 = vsel %vm3239, %v3230, %v3246
        %v3248 = vsel %vm3238, %v3245, %v3247
        %v3249 = vsel %vm3237, %v3227, %v3230
        %v3250 = vsel %vm3240, %v3236, 1326507024
        %v3251 = vsel %vm3239, %v3233, %v3250
        %v3252 = vsel %vm3238, %v3249, %v3251
        %v3253 = vshll.u32 %v3213, 8
        %v3254 = vmul.u32.u64.compose %v3253, %v3252
        %v3255 = vextract.low.u32 %v3254
        %v3256 = vextract.high.u32 %v3254
        %v3257 = vmul.u32.u64.compose %v3253, %v3248
        %v3258 = vextract.low.u32 %v3257
        %v3259 = vextract.high.u32 %v3257
        %v3260 = vmul.u32 %v3253, %v3244
        %v3261 = vadd.s32 %v3256, %v3258
        %vm3262 = vc.u32 %v3256, %v3258
        %v3263 = vadd.s32 %v3259, 1
        %v3264 = vsel %vm3262, %v3263, %v3259
        %v3265 = vadd.s32 %v3260, %v3264
        %v3266 = vadd.s32 %v3265, 536870912
        %v3267 = vshrl.u32 %v3266, 30
        %v3268 = vshll.u32 %v3267, 30
        %v3269 = vsub.s32 %v3265, %v3268
        %vm3270 = vcmp.lt.s32.totalorder %v3269, 0
        %v3271 = vsub.s32 0, %v3269
        %v3272 = vsel %vm3270, %v3271, %v3269
        %v3273 = vclz %v3272
        %v3274 = vsub.s32 %v3273, 2
        %vm3275 = vcmp.gt.s32.totalorder 0, %v3274
        %v3276 = vsel %vm3275, 0, %v3274
        %v3277 = vsub.s32 32, %v3276
        %v3278 = vshll.u32 %v3269, %v3276
        %v3279 = vshrl.u32 %v3261, %v3277
        %v3280 = vor.u32 %v3278, %v3279
        %v3281 = vsub.s32 4294967266, %v3276
        %v3282 = vadd.s32 %v3281, 127
        %v3283 = vshll.u32 %v3282, 23
        %v3284 = vor.u32 4788187, %v3283
        %v3285 = vand.u32 2147483647, %v3284
        %v3287 = vcvt.s32.f32 %v3280
        %v3288 = vmul.f32 %v3287, %v3285
        %v3289 = vxor.u32 %v3288, 2147483648
        %v3290 = vsel %vm3207, %v3289, %v3288
        %v3291 = vsub.s32 4, %v3267
        %v3292 = vsel %vm3207, %v3291, %v3267
        %v3293 = vsel %vm3206, %v521, %v3290
        %v3294 = vsel %vm3206, 0, %v3292
        %v3295 = vcosq.f32.pop %v3293
        %v3296 = vsinq.f32.pop %v3293
        %vm3297 = vweird.f32 %v521
        %v3298 = vand.u32 %v3294, 3
        %vm3299 = vcmp.lt.s32.totalorder %v3298, 2
        %vm3300 = vcmp.eq.s32.totalorder %v3298, 0
        %v3301 = vxor.u32 %v3296, 2147483648
        %v3302 = vsel %vm3300, %v3295, %v3301
        %vm3303 = vcmp.eq.s32.totalorder %v3298, 2
        %v3304 = vxor.u32 %v3295, 2147483648
        %v3305 = vsel %vm3303, %v3304, %v3296
        %v3306 = vsel %vm3299, %v3302, %v3305
        %v3307 = vsel %vm3297, nan, %v3306
        %v3308 = vand.u32 2147483647, %v522
        %vm3309 = vcmp.le.f32.partialorder %v3308, 0.7853982
        %vm3310 = vcmp.lt.s32.totalorder %v522, 0
        %v3311 = vand.u32 %v522, 2139095040
        %v3312 = vshrl.u32 %v3311, 23
        %v3313 = vsub.s32 %v3312, 127
        %v3314 = vand.u32 2147483647, %v522
        %v3315 = vand.u32 %v3314, 8388607
        %v3316 = vor.u32 %v3315, 8388608
        %v3317 = vsub.s32 0, %v3316
        %v3318 = vadd.s32 %v3313, 1
        %vm3319 = vcmp.gt.s32.totalorder %v3318, 0
        %v3320 = vsel %vm3319, %v3318, 0
        %v3321 = vshrl.u32 %v3320, 5
        %v3322 = vand.u32 %v3320, 31
        %v3323 = vsub.s32 32, %v3322
        %v3324 = vshrl.u32 683565275, %v3323
        %v3325 = vshll.u32 683565275, %v3322
        %v3326 = vshrl.u32 2475754826, %v3323
        %v3327 = vor.u32 %v3325, %v3326
        %v3328 = vshll.u32 2475754826, %v3322
        %v3329 = vshrl.u32 2131351028, %v3323
        %v3330 = vor.u32 %v3328, %v3329
        %v3331 = vshll.u32 2131351028, %v3322
        %v3332 = vshrl.u32 2102212464, %v3323
        %v3333 = vor.u32 %v3331, %v3332
        %v3334 = vshll.u32 2102212464, %v3322
        %v3335 = vshrl.u32 920167782, %v3323
        %v3336 = vor.u32 %v3334, %v3335
        %v3337 = vshll.u32 920167782, %v3322
        %v3338 = vshrl.u32 1326507024, %v3323
        %v3339 = vor.u32 %v3337, %v3338
        %vm3340 = vcmp.lt.s32.totalorder %v3321, 1
        %vm3341 = vcmp.lt.s32.totalorder %v3321, 2
        %vm3342 = vcmp.lt.s32.totalorder %v3321, 3
        %vm3343 = vcmp.lt.s32.totalorder %v3321, 4
        %v3344 = vsel %vm3340, %v3324, %v3327
        %v3345 = vsel %vm3343, %v3333, 2102212464
        %v3346 = vsel %vm3342, %v3330, %v3345
        %v3347 = vsel %vm3341, %v3344, %v3346
        %v3348 = vsel %vm3340, %v3327, %v3330
        %v3349 = vsel %vm3343, %v3336, 920167782
        %v3350 = vsel %vm3342, %v3333, %v3349
        %v3351 = vsel %vm3341, %v3348, %v3350
        %v3352 = vsel %vm3340, %v3330, %v3333
        %v3353 = vsel %vm3343, %v3339, 1326507024
        %v3354 = vsel %vm3342, %v3336, %v3353
        %v3355 = vsel %vm3341, %v3352, %v3354
        %v3356 = vshll.u32 %v3316, 8
        %v3357 = vmul.u32.u64.compose %v3356, %v3355
        %v3358 = vextract.low.u32 %v3357
        %v3359 = vextract.high.u32 %v3357
        %v3360 = vmul.u32.u64.compose %v3356, %v3351
        %v3361 = vextract.low.u32 %v3360
        %v3362 = vextract.high.u32 %v3360
        %v3363 = vmul.u32 %v3356, %v3347
        %v3364 = vadd.s32 %v3359, %v3361
        %vm3365 = vc.u32 %v3359, %v3361
        %v3366 = vadd.s32 %v3362, 1
        %v3367 = vsel %vm3365, %v3366, %v3362
        %v3368 = vadd.s32 %v3363, %v3367
        %v3369 = vadd.s32 %v3368, 536870912
        %v3370 = vshrl.u32 %v3369, 30
        %v3371 = vshll.u32 %v3370, 30
        %v3372 = vsub.s32 %v3368, %v3371
        %vm3373 = vcmp.lt.s32.totalorder %v3372, 0
        %v3374 = vsub.s32 0, %v3372
        %v3375 = vsel %vm3373, %v3374, %v3372
        %v3376 = vclz %v3375
        %v3377 = vsub.s32 %v3376, 2
        %vm3378 = vcmp.gt.s32.totalorder 0, %v3377
        %v3379 = vsel %vm3378, 0, %v3377
        %v3380 = vsub.s32 32, %v3379
        %v3381 = vshll.u32 %v3372, %v3379
        %v3382 = vshrl.u32 %v3364, %v3380
        %v3383 = vor.u32 %v3381, %v3382
        %v3384 = vsub.s32 4294967266, %v3379
        %v3385 = vadd.s32 %v3384, 127
        %v3386 = vshll.u32 %v3385, 23
        %v3387 = vor.u32 4788187, %v3386
        %v3388 = vand.u32 2147483647, %v3387
        %v3390 = vcvt.s32.f32 %v3383
        %v3391 = vmul.f32 %v3390, %v3388
        %v3392 = vxor.u32 %v3391, 2147483648
        %v3393 = vsel %vm3310, %v3392, %v3391
        %v3394 = vsub.s32 4, %v3370
        %v3395 = vsel %vm3310, %v3394, %v3370
        %v3396 = vsel %vm3309, %v522, %v3393
        %v3397 = vsel %vm3309, 0, %v3395
        %v3398 = vcosq.f32.pop %v3396
        %v3399 = vsinq.f32.pop %v3396
        %vm3400 = vweird.f32 %v522
        %v3401 = vand.u32 %v3397, 3
        %vm3402 = vcmp.lt.s32.totalorder %v3401, 2
        %vm3403 = vcmp.eq.s32.totalorder %v3401, 0
        %v3404 = vxor.u32 %v3399, 2147483648
        %v3405 = vsel %vm3403, %v3398, %v3404
        %vm3406 = vcmp.eq.s32.totalorder %v3401, 2
        %v3407 = vxor.u32 %v3398, 2147483648
        %v3408 = vsel %vm3406, %v3407, %v3399
        %v3409 = vsel %vm3402, %v3405, %v3408
        %v3410 = vsel %vm3400, nan, %v3409
        %v3411 = vand.u32 2147483647, %v523
        %vm3412 = vcmp.le.f32.partialorder %v3411, 0.7853982
        %vm3413 = vcmp.lt.s32.totalorder %v523, 0
        %v3414 = vand.u32 %v523, 2139095040
        %v3415 = vshrl.u32 %v3414, 23
        %v3416 = vsub.s32 %v3415, 127
        %v3417 = vand.u32 2147483647, %v523
        %v3418 = vand.u32 %v3417, 8388607
        %v3419 = vor.u32 %v3418, 8388608
        %v3420 = vsub.s32 0, %v3419
        %v3421 = vadd.s32 %v3416, 1
        %vm3422 = vcmp.gt.s32.totalorder %v3421, 0
        %v3423 = vsel %vm3422, %v3421, 0
        %v3424 = vshrl.u32 %v3423, 5
        %v3425 = vand.u32 %v3423, 31
        %v3426 = vsub.s32 32, %v3425
        %v3427 = vshrl.u32 683565275, %v3426
        %v3428 = vshll.u32 683565275, %v3425
        %v3429 = vshrl.u32 2475754826, %v3426
        %v3430 = vor.u32 %v3428, %v3429
        %v3431 = vshll.u32 2475754826, %v3425
        %v3432 = vshrl.u32 2131351028, %v3426
        %v3433 = vor.u32 %v3431, %v3432
        %v3434 = vshll.u32 2131351028, %v3425
        %v3435 = vshrl.u32 2102212464, %v3426
        %v3436 = vor.u32 %v3434, %v3435
        %v3437 = vshll.u32 2102212464, %v3425
        %v3438 = vshrl.u32 920167782, %v3426
        %v3439 = vor.u32 %v3437, %v3438
        %v3440 = vshll.u32 920167782, %v3425
        %v3441 = vshrl.u32 1326507024, %v3426
        %v3442 = vor.u32 %v3440, %v3441
        %vm3443 = vcmp.lt.s32.totalorder %v3424, 1
        %vm3444 = vcmp.lt.s32.totalorder %v3424, 2
        %vm3445 = vcmp.lt.s32.totalorder %v3424, 3
        %vm3446 = vcmp.lt.s32.totalorder %v3424, 4
        %v3447 = vsel %vm3443, %v3427, %v3430
        %v3448 = vsel %vm3446, %v3436, 2102212464
        %v3449 = vsel %vm3445, %v3433, %v3448
        %v3450 = vsel %vm3444, %v3447, %v3449
        %v3451 = vsel %vm3443, %v3430, %v3433
        %v3452 = vsel %vm3446, %v3439, 920167782
        %v3453 = vsel %vm3445, %v3436, %v3452
        %v3454 = vsel %vm3444, %v3451, %v3453
        %v3455 = vsel %vm3443, %v3433, %v3436
        %v3456 = vsel %vm3446, %v3442, 1326507024
        %v3457 = vsel %vm3445, %v3439, %v3456
        %v3458 = vsel %vm3444, %v3455, %v3457
        %v3459 = vshll.u32 %v3419, 8
        %v3460 = vmul.u32.u64.compose %v3459, %v3458
        %v3461 = vextract.low.u32 %v3460
        %v3462 = vextract.high.u32 %v3460
        %v3463 = vmul.u32.u64.compose %v3459, %v3454
        %v3464 = vextract.low.u32 %v3463
        %v3465 = vextract.high.u32 %v3463
        %v3466 = vmul.u32 %v3459, %v3450
        %v3467 = vadd.s32 %v3462, %v3464
        %vm3468 = vc.u32 %v3462, %v3464
        %v3469 = vadd.s32 %v3465, 1
        %v3470 = vsel %vm3468, %v3469, %v3465
        %v3471 = vadd.s32 %v3466, %v3470
        %v3472 = vadd.s32 %v3471, 536870912
        %v3473 = vshrl.u32 %v3472, 30
        %v3474 = vshll.u32 %v3473, 30
        %v3475 = vsub.s32 %v3471, %v3474
        %vm3476 = vcmp.lt.s32.totalorder %v3475, 0
        %v3477 = vsub.s32 0, %v3475
        %v3478 = vsel %vm3476, %v3477, %v3475
        %v3479 = vclz %v3478
        %v3480 = vsub.s32 %v3479, 2
        %vm3481 = vcmp.gt.s32.totalorder 0, %v3480
        %v3482 = vsel %vm3481, 0, %v3480
        %v3483 = vsub.s32 32, %v3482
        %v3484 = vshll.u32 %v3475, %v3482
        %v3485 = vshrl.u32 %v3467, %v3483
        %v3486 = vor.u32 %v3484, %v3485
        %v3487 = vsub.s32 4294967266, %v3482
        %v3488 = vadd.s32 %v3487, 127
        %v3489 = vshll.u32 %v3488, 23
        %v3490 = vor.u32 4788187, %v3489
        %v3491 = vand.u32 2147483647, %v3490
        %v3493 = vcvt.s32.f32 %v3486
        %v3494 = vmul.f32 %v3493, %v3491
        %v3495 = vxor.u32 %v3494, 2147483648
        %v3496 = vsel %vm3413, %v3495, %v3494
        %v3497 = vsub.s32 4, %v3473
        %v3498 = vsel %vm3413, %v3497, %v3473
        %v3499 = vsel %vm3412, %v523, %v3496
        %v3500 = vsel %vm3412, 0, %v3498
        %v3501 = vcosq.f32.pop %v3499
        %v3502 = vsinq.f32.pop %v3499
        %vm3503 = vweird.f32 %v523
        %v3504 = vand.u32 %v3500, 3
        %vm3505 = vcmp.lt.s32.totalorder %v3504, 2
        %vm3506 = vcmp.eq.s32.totalorder %v3504, 0
        %v3507 = vxor.u32 %v3502, 2147483648
        %v3508 = vsel %vm3506, %v3501, %v3507
        %vm3509 = vcmp.eq.s32.totalorder %v3504, 2
        %v3510 = vxor.u32 %v3501, 2147483648
        %v3511 = vsel %vm3509, %v3510, %v3502
        %v3512 = vsel %vm3505, %v3508, %v3511
        %v3513 = vsel %vm3503, nan, %v3512
        %v3514 = vand.u32 2147483647, %v524
        %vm3515 = vcmp.le.f32.partialorder %v3514, 0.7853982
        %vm3516 = vcmp.lt.s32.totalorder %v524, 0
        %v3517 = vand.u32 %v524, 2139095040
        %v3518 = vshrl.u32 %v3517, 23
        %v3519 = vsub.s32 %v3518, 127
        %v3520 = vand.u32 2147483647, %v524
        %v3521 = vand.u32 %v3520, 8388607
        %v3522 = vor.u32 %v3521, 8388608
        %v3523 = vsub.s32 0, %v3522
        %v3524 = vadd.s32 %v3519, 1
        %vm3525 = vcmp.gt.s32.totalorder %v3524, 0
        %v3526 = vsel %vm3525, %v3524, 0
        %v3527 = vshrl.u32 %v3526, 5
        %v3528 = vand.u32 %v3526, 31
        %v3529 = vsub.s32 32, %v3528
        %v3530 = vshrl.u32 683565275, %v3529
        %v3531 = vshll.u32 683565275, %v3528
        %v3532 = vshrl.u32 2475754826, %v3529
        %v3533 = vor.u32 %v3531, %v3532
        %v3534 = vshll.u32 2475754826, %v3528
        %v3535 = vshrl.u32 2131351028, %v3529
        %v3536 = vor.u32 %v3534, %v3535
        %v3537 = vshll.u32 2131351028, %v3528
        %v3538 = vshrl.u32 2102212464, %v3529
        %v3539 = vor.u32 %v3537, %v3538
        %v3540 = vshll.u32 2102212464, %v3528
        %v3541 = vshrl.u32 920167782, %v3529
        %v3542 = vor.u32 %v3540, %v3541
        %v3543 = vshll.u32 920167782, %v3528
        %v3544 = vshrl.u32 1326507024, %v3529
        %v3545 = vor.u32 %v3543, %v3544
        %vm3546 = vcmp.lt.s32.totalorder %v3527, 1
        %vm3547 = vcmp.lt.s32.totalorder %v3527, 2
        %vm3548 = vcmp.lt.s32.totalorder %v3527, 3
        %vm3549 = vcmp.lt.s32.totalorder %v3527, 4
        %v3550 = vsel %vm3546, %v3530, %v3533
        %v3551 = vsel %vm3549, %v3539, 2102212464
        %v3552 = vsel %vm3548, %v3536, %v3551
        %v3553 = vsel %vm3547, %v3550, %v3552
        %v3554 = vsel %vm3546, %v3533, %v3536
        %v3555 = vsel %vm3549, %v3542, 920167782
        %v3556 = vsel %vm3548, %v3539, %v3555
        %v3557 = vsel %vm3547, %v3554, %v3556
        %v3558 = vsel %vm3546, %v3536, %v3539
        %v3559 = vsel %vm3549, %v3545, 1326507024
        %v3560 = vsel %vm3548, %v3542, %v3559
        %v3561 = vsel %vm3547, %v3558, %v3560
        %v3562 = vshll.u32 %v3522, 8
        %v3563 = vmul.u32.u64.compose %v3562, %v3561
        %v3564 = vextract.low.u32 %v3563
        %v3565 = vextract.high.u32 %v3563
        %v3566 = vmul.u32.u64.compose %v3562, %v3557
        %v3567 = vextract.low.u32 %v3566
        %v3568 = vextract.high.u32 %v3566
        %v3569 = vmul.u32 %v3562, %v3553
        %v3570 = vadd.s32 %v3565, %v3567
        %vm3571 = vc.u32 %v3565, %v3567
        %v3572 = vadd.s32 %v3568, 1
        %v3573 = vsel %vm3571, %v3572, %v3568
        %v3574 = vadd.s32 %v3569, %v3573
        %v3575 = vadd.s32 %v3574, 536870912
        %v3576 = vshrl.u32 %v3575, 30
        %v3577 = vshll.u32 %v3576, 30
        %v3578 = vsub.s32 %v3574, %v3577
        %vm3579 = vcmp.lt.s32.totalorder %v3578, 0
        %v3580 = vsub.s32 0, %v3578
        %v3581 = vsel %vm3579, %v3580, %v3578
        %v3582 = vclz %v3581
        %v3583 = vsub.s32 %v3582, 2
        %vm3584 = vcmp.gt.s32.totalorder 0, %v3583
        %v3585 = vsel %vm3584, 0, %v3583
        %v3586 = vsub.s32 32, %v3585
        %v3587 = vshll.u32 %v3578, %v3585
        %v3588 = vshrl.u32 %v3570, %v3586
        %v3589 = vor.u32 %v3587, %v3588
        %v3590 = vsub.s32 4294967266, %v3585
        %v3591 = vadd.s32 %v3590, 127
        %v3592 = vshll.u32 %v3591, 23
        %v3593 = vor.u32 4788187, %v3592
        %v3594 = vand.u32 2147483647, %v3593
        %v3596 = vcvt.s32.f32 %v3589
        %v3597 = vmul.f32 %v3596, %v3594
        %v3598 = vxor.u32 %v3597, 2147483648
        %v3599 = vsel %vm3516, %v3598, %v3597
        %v3600 = vsub.s32 4, %v3576
        %v3601 = vsel %vm3516, %v3600, %v3576
        %v3602 = vsel %vm3515, %v524, %v3599
        %v3603 = vsel %vm3515, 0, %v3601
        %v3604 = vcosq.f32.pop %v3602
        %v3605 = vsinq.f32.pop %v3602
        %vm3606 = vweird.f32 %v524
        %v3607 = vand.u32 %v3603, 3
        %vm3608 = vcmp.lt.s32.totalorder %v3607, 2
        %vm3609 = vcmp.eq.s32.totalorder %v3607, 0
        %v3610 = vxor.u32 %v3605, 2147483648
        %v3611 = vsel %vm3609, %v3604, %v3610
        %vm3612 = vcmp.eq.s32.totalorder %v3607, 2
        %v3613 = vxor.u32 %v3604, 2147483648
        %v3614 = vsel %vm3612, %v3613, %v3605
        %v3615 = vsel %vm3608, %v3611, %v3614
        %v3616 = vsel %vm3606, nan, %v3615
        %v3617 = vand.u32 2147483647, %v525
        %vm3618 = vcmp.le.f32.partialorder %v3617, 0.7853982
        %vm3619 = vcmp.lt.s32.totalorder %v525, 0
        %v3620 = vand.u32 %v525, 2139095040
        %v3621 = vshrl.u32 %v3620, 23
        %v3622 = vsub.s32 %v3621, 127
        %v3623 = vand.u32 2147483647, %v525
        %v3624 = vand.u32 %v3623, 8388607
        %v3625 = vor.u32 %v3624, 8388608
        %v3626 = vsub.s32 0, %v3625
        %v3627 = vadd.s32 %v3622, 1
        %vm3628 = vcmp.gt.s32.totalorder %v3627, 0
        %v3629 = vsel %vm3628, %v3627, 0
        %v3630 = vshrl.u32 %v3629, 5
        %v3631 = vand.u32 %v3629, 31
        %v3632 = vsub.s32 32, %v3631
        %v3633 = vshrl.u32 683565275, %v3632
        %v3634 = vshll.u32 683565275, %v3631
        %v3635 = vshrl.u32 2475754826, %v3632
        %v3636 = vor.u32 %v3634, %v3635
        %v3637 = vshll.u32 2475754826, %v3631
        %v3638 = vshrl.u32 2131351028, %v3632
        %v3639 = vor.u32 %v3637, %v3638
        %v3640 = vshll.u32 2131351028, %v3631
        %v3641 = vshrl.u32 2102212464, %v3632
        %v3642 = vor.u32 %v3640, %v3641
        %v3643 = vshll.u32 2102212464, %v3631
        %v3644 = vshrl.u32 920167782, %v3632
        %v3645 = vor.u32 %v3643, %v3644
        %v3646 = vshll.u32 920167782, %v3631
        %v3647 = vshrl.u32 1326507024, %v3632
        %v3648 = vor.u32 %v3646, %v3647
        %vm3649 = vcmp.lt.s32.totalorder %v3630, 1
        %vm3650 = vcmp.lt.s32.totalorder %v3630, 2
        %vm3651 = vcmp.lt.s32.totalorder %v3630, 3
        %vm3652 = vcmp.lt.s32.totalorder %v3630, 4
        %v3653 = vsel %vm3649, %v3633, %v3636
        %v3654 = vsel %vm3652, %v3642, 2102212464
        %v3655 = vsel %vm3651, %v3639, %v3654
        %v3656 = vsel %vm3650, %v3653, %v3655
        %v3657 = vsel %vm3649, %v3636, %v3639
        %v3658 = vsel %vm3652, %v3645, 920167782
        %v3659 = vsel %vm3651, %v3642, %v3658
        %v3660 = vsel %vm3650, %v3657, %v3659
        %v3661 = vsel %vm3649, %v3639, %v3642
        %v3662 = vsel %vm3652, %v3648, 1326507024
        %v3663 = vsel %vm3651, %v3645, %v3662
        %v3664 = vsel %vm3650, %v3661, %v3663
        %v3665 = vshll.u32 %v3625, 8
        %v3666 = vmul.u32.u64.compose %v3665, %v3664
        %v3667 = vextract.low.u32 %v3666
        %v3668 = vextract.high.u32 %v3666
        %v3669 = vmul.u32.u64.compose %v3665, %v3660
        %v3670 = vextract.low.u32 %v3669
        %v3671 = vextract.high.u32 %v3669
        %v3672 = vmul.u32 %v3665, %v3656
        %v3673 = vadd.s32 %v3668, %v3670
        %vm3674 = vc.u32 %v3668, %v3670
        %v3675 = vadd.s32 %v3671, 1
        %v3676 = vsel %vm3674, %v3675, %v3671
        %v3677 = vadd.s32 %v3672, %v3676
        %v3678 = vadd.s32 %v3677, 536870912
        %v3679 = vshrl.u32 %v3678, 30
        %v3680 = vshll.u32 %v3679, 30
        %v3681 = vsub.s32 %v3677, %v3680
        %vm3682 = vcmp.lt.s32.totalorder %v3681, 0
        %v3683 = vsub.s32 0, %v3681
        %v3684 = vsel %vm3682, %v3683, %v3681
        %v3685 = vclz %v3684
        %v3686 = vsub.s32 %v3685, 2
        %vm3687 = vcmp.gt.s32.totalorder 0, %v3686
        %v3688 = vsel %vm3687, 0, %v3686
        %v3689 = vsub.s32 32, %v3688
        %v3690 = vshll.u32 %v3681, %v3688
        %v3691 = vshrl.u32 %v3673, %v3689
        %v3692 = vor.u32 %v3690, %v3691
        %v3693 = vsub.s32 4294967266, %v3688
        %v3694 = vadd.s32 %v3693, 127
        %v3695 = vshll.u32 %v3694, 23
        %v3696 = vor.u32 4788187, %v3695
        %v3697 = vand.u32 2147483647, %v3696
        %v3699 = vcvt.s32.f32 %v3692
        %v3700 = vmul.f32 %v3699, %v3697
        %v3701 = vxor.u32 %v3700, 2147483648
        %v3702 = vsel %vm3619, %v3701, %v3700
        %v3703 = vsub.s32 4, %v3679
        %v3704 = vsel %vm3619, %v3703, %v3679
        %v3705 = vsel %vm3618, %v525, %v3702
        %v3706 = vsel %vm3618, 0, %v3704
        %v3707 = vcosq.f32.pop %v3705
        %v3708 = vsinq.f32.pop %v3705
        %vm3709 = vweird.f32 %v525
        %v3710 = vand.u32 %v3706, 3
        %vm3711 = vcmp.lt.s32.totalorder %v3710, 2
        %vm3712 = vcmp.eq.s32.totalorder %v3710, 0
        %v3713 = vxor.u32 %v3708, 2147483648
        %v3714 = vsel %vm3712, %v3707, %v3713
        %vm3715 = vcmp.eq.s32.totalorder %v3710, 2
        %v3716 = vxor.u32 %v3707, 2147483648
        %v3717 = vsel %vm3715, %v3716, %v3708
        %v3718 = vsel %vm3711, %v3714, %v3717
        %v3719 = vsel %vm3709, nan, %v3718
        %v3720 = vand.u32 2147483647, %v526
        %vm3721 = vcmp.le.f32.partialorder %v3720, 0.7853982
        %vm3722 = vcmp.lt.s32.totalorder %v526, 0
        %v3723 = vand.u32 %v526, 2139095040
        %v3724 = vshrl.u32 %v3723, 23
        %v3725 = vsub.s32 %v3724, 127
        %v3726 = vand.u32 2147483647, %v526
        %v3727 = vand.u32 %v3726, 8388607
        %v3728 = vor.u32 %v3727, 8388608
        %v3729 = vsub.s32 0, %v3728
        %v3730 = vadd.s32 %v3725, 1
        %vm3731 = vcmp.gt.s32.totalorder %v3730, 0
        %v3732 = vsel %vm3731, %v3730, 0
        %v3733 = vshrl.u32 %v3732, 5
        %v3734 = vand.u32 %v3732, 31
        %v3735 = vsub.s32 32, %v3734
        %v3736 = vshrl.u32 683565275, %v3735
        %v3737 = vshll.u32 683565275, %v3734
        %v3738 = vshrl.u32 2475754826, %v3735
        %v3739 = vor.u32 %v3737, %v3738
        %v3740 = vshll.u32 2475754826, %v3734
        %v3741 = vshrl.u32 2131351028, %v3735
        %v3742 = vor.u32 %v3740, %v3741
        %v3743 = vshll.u32 2131351028, %v3734
        %v3744 = vshrl.u32 2102212464, %v3735
        %v3745 = vor.u32 %v3743, %v3744
        %v3746 = vshll.u32 2102212464, %v3734
        %v3747 = vshrl.u32 920167782, %v3735
        %v3748 = vor.u32 %v3746, %v3747
        %v3749 = vshll.u32 920167782, %v3734
        %v3750 = vshrl.u32 1326507024, %v3735
        %v3751 = vor.u32 %v3749, %v3750
        %vm3752 = vcmp.lt.s32.totalorder %v3733, 1
        %vm3753 = vcmp.lt.s32.totalorder %v3733, 2
        %vm3754 = vcmp.lt.s32.totalorder %v3733, 3
        %vm3755 = vcmp.lt.s32.totalorder %v3733, 4
        %v3756 = vsel %vm3752, %v3736, %v3739
        %v3757 = vsel %vm3755, %v3745, 2102212464
        %v3758 = vsel %vm3754, %v3742, %v3757
        %v3759 = vsel %vm3753, %v3756, %v3758
        %v3760 = vsel %vm3752, %v3739, %v3742
        %v3761 = vsel %vm3755, %v3748, 920167782
        %v3762 = vsel %vm3754, %v3745, %v3761
        %v3763 = vsel %vm3753, %v3760, %v3762
        %v3764 = vsel %vm3752, %v3742, %v3745
        %v3765 = vsel %vm3755, %v3751, 1326507024
        %v3766 = vsel %vm3754, %v3748, %v3765
        %v3767 = vsel %vm3753, %v3764, %v3766
        %v3768 = vshll.u32 %v3728, 8
        %v3769 = vmul.u32.u64.compose %v3768, %v3767
        %v3770 = vextract.low.u32 %v3769
        %v3771 = vextract.high.u32 %v3769
        %v3772 = vmul.u32.u64.compose %v3768, %v3763
        %v3773 = vextract.low.u32 %v3772
        %v3774 = vextract.high.u32 %v3772
        %v3775 = vmul.u32 %v3768, %v3759
        %v3776 = vadd.s32 %v3771, %v3773
        %vm3777 = vc.u32 %v3771, %v3773
        %v3778 = vadd.s32 %v3774, 1
        %v3779 = vsel %vm3777, %v3778, %v3774
        %v3780 = vadd.s32 %v3775, %v3779
        %v3781 = vadd.s32 %v3780, 536870912
        %v3782 = vshrl.u32 %v3781, 30
        %v3783 = vshll.u32 %v3782, 30
        %v3784 = vsub.s32 %v3780, %v3783
        %vm3785 = vcmp.lt.s32.totalorder %v3784, 0
        %v3786 = vsub.s32 0, %v3784
        %v3787 = vsel %vm3785, %v3786, %v3784
        %v3788 = vclz %v3787
        %v3789 = vsub.s32 %v3788, 2
        %vm3790 = vcmp.gt.s32.totalorder 0, %v3789
        %v3791 = vsel %vm3790, 0, %v3789
        %v3792 = vsub.s32 32, %v3791
        %v3793 = vshll.u32 %v3784, %v3791
        %v3794 = vshrl.u32 %v3776, %v3792
        %v3795 = vor.u32 %v3793, %v3794
        %v3796 = vsub.s32 4294967266, %v3791
        %v3797 = vadd.s32 %v3796, 127
        %v3798 = vshll.u32 %v3797, 23
        %v3799 = vor.u32 4788187, %v3798
        %v3800 = vand.u32 2147483647, %v3799
        %v3802 = vcvt.s32.f32 %v3795
        %v3803 = vmul.f32 %v3802, %v3800
        %v3804 = vxor.u32 %v3803, 2147483648
        %v3805 = vsel %vm3722, %v3804, %v3803
        %v3806 = vsub.s32 4, %v3782
        %v3807 = vsel %vm3722, %v3806, %v3782
        %v3808 = vsel %vm3721, %v526, %v3805
        %v3809 = vsel %vm3721, 0, %v3807
        %v3810 = vcosq.f32.pop %v3808
        %v3811 = vsinq.f32.pop %v3808
        %vm3812 = vweird.f32 %v526
        %v3813 = vand.u32 %v3809, 3
        %vm3814 = vcmp.lt.s32.totalorder %v3813, 2
        %vm3815 = vcmp.eq.s32.totalorder %v3813, 0
        %v3816 = vxor.u32 %v3811, 2147483648
        %v3817 = vsel %vm3815, %v3810, %v3816
        %vm3818 = vcmp.eq.s32.totalorder %v3813, 2
        %v3819 = vxor.u32 %v3810, 2147483648
        %v3820 = vsel %vm3818, %v3819, %v3811
        %v3821 = vsel %vm3814, %v3817, %v3820
        %v3822 = vsel %vm3812, nan, %v3821
        %v3823 = vmul.f32 %v629, %v245
        %v3824 = vmul.f32 %v732, %v252
        %v3825 = vmul.f32 %v835, %v259
        %v3826 = vmul.f32 %v938, %v266
        %v3827 = vmul.f32 %v1041, %v273
        %v3828 = vmul.f32 %v1144, %v280
        %v3829 = vmul.f32 %v1247, %v287
        %v3830 = vmul.f32 %v1350, %v294
        %v3831 = vmul.f32 %v1453, %v301
        %v3832 = vmul.f32 %v1556, %v308
        %v3833 = vmul.f32 %v1659, %v315
        %v3834 = vmul.f32 %v1762, %v322
        %v3835 = vmul.f32 %v1865, %v329
        %v3836 = vmul.f32 %v1968, %v336
        %v3837 = vmul.f32 %v2071, %v343
        %v3838 = vmul.f32 %v2174, %v350
        %v3839 = vmul.f32 %v2277, %v357
        %v3840 = vmul.f32 %v2380, %v364
        %v3841 = vmul.f32 %v2483, %v371
        %v3842 = vmul.f32 %v2586, %v378
        %v3843 = vmul.f32 %v2689, %v385
        %v3844 = vmul.f32 %v2792, %v392
        %v3845 = vmul.f32 %v2895, %v399
        %v3846 = vmul.f32 %v2998, %v406
        %v3847 = vmul.f32 %v3101, %v413
        %v3848 = vmul.f32 %v3204, %v420
        %v3849 = vmul.f32 %v3307, %v427
        %v3850 = vmul.f32 %v3410, %v434
        %v3851 = vmul.f32 %v3513, %v441
        %v3852 = vmul.f32 %v3616, %v448
        %v3853 = vmul.f32 %v3719, %v455
        %v3854 = vmul.f32 %v3822, %v462
        %v3855 = vand.u32 2147483647, %v495
        %vm3856 = vcmp.le.f32.partialorder %v3855, 0.7853982
        %vm3857 = vcmp.lt.s32.totalorder %v495, 0
        %v3858 = vand.u32 %v495, 2139095040
        %v3859 = vshrl.u32 %v3858, 23
        %v3860 = vsub.s32 %v3859, 127
        %v3861 = vand.u32 2147483647, %v495
        %v3862 = vand.u32 %v3861, 8388607
        %v3863 = vor.u32 %v3862, 8388608
        %v3864 = vsub.s32 0, %v3863
        %v3865 = vadd.s32 %v3860, 1
        %vm3866 = vcmp.gt.s32.totalorder %v3865, 0
        %v3867 = vsel %vm3866, %v3865, 0
        %v3868 = vshrl.u32 %v3867, 5
        %v3869 = vand.u32 %v3867, 31
        %v3870 = vsub.s32 32, %v3869
        %v3871 = vshrl.u32 683565275, %v3870
        %v3872 = vshll.u32 683565275, %v3869
        %v3873 = vshrl.u32 2475754826, %v3870
        %v3874 = vor.u32 %v3872, %v3873
        %v3875 = vshll.u32 2475754826, %v3869
        %v3876 = vshrl.u32 2131351028, %v3870
        %v3877 = vor.u32 %v3875, %v3876
        %v3878 = vshll.u32 2131351028, %v3869
        %v3879 = vshrl.u32 2102212464, %v3870
        %v3880 = vor.u32 %v3878, %v3879
        %v3881 = vshll.u32 2102212464, %v3869
        %v3882 = vshrl.u32 920167782, %v3870
        %v3883 = vor.u32 %v3881, %v3882
        %v3884 = vshll.u32 920167782, %v3869
        %v3885 = vshrl.u32 1326507024, %v3870
        %v3886 = vor.u32 %v3884, %v3885
        %vm3887 = vcmp.lt.s32.totalorder %v3868, 1
        %vm3888 = vcmp.lt.s32.totalorder %v3868, 2
        %vm3889 = vcmp.lt.s32.totalorder %v3868, 3
        %vm3890 = vcmp.lt.s32.totalorder %v3868, 4
        %v3891 = vsel %vm3887, %v3871, %v3874
        %v3892 = vsel %vm3890, %v3880, 2102212464
        %v3893 = vsel %vm3889, %v3877, %v3892
        %v3894 = vsel %vm3888, %v3891, %v3893
        %v3895 = vsel %vm3887, %v3874, %v3877
        %v3896 = vsel %vm3890, %v3883, 920167782
        %v3897 = vsel %vm3889, %v3880, %v3896
        %v3898 = vsel %vm3888, %v3895, %v3897
        %v3899 = vsel %vm3887, %v3877, %v3880
        %v3900 = vsel %vm3890, %v3886, 1326507024
        %v3901 = vsel %vm3889, %v3883, %v3900
        %v3902 = vsel %vm3888, %v3899, %v3901
        %v3903 = vshll.u32 %v3863, 8
        %v3904 = vmul.u32.u64.compose %v3903, %v3902
        %v3905 = vextract.low.u32 %v3904
        %v3906 = vextract.high.u32 %v3904
        %v3907 = vmul.u32.u64.compose %v3903, %v3898
        %v3908 = vextract.low.u32 %v3907
        %v3909 = vextract.high.u32 %v3907
        %v3910 = vmul.u32 %v3903, %v3894
        %v3911 = vadd.s32 %v3906, %v3908
        %vm3912 = vc.u32 %v3906, %v3908
        %v3913 = vadd.s32 %v3909, 1
        %v3914 = vsel %vm3912, %v3913, %v3909
        %v3915 = vadd.s32 %v3910, %v3914
        %v3916 = vadd.s32 %v3915, 536870912
        %v3917 = vshrl.u32 %v3916, 30
        %v3918 = vshll.u32 %v3917, 30
        %v3919 = vsub.s32 %v3915, %v3918
        %vm3920 = vcmp.lt.s32.totalorder %v3919, 0
        %v3921 = vsub.s32 0, %v3919
        %v3922 = vsel %vm3920, %v3921, %v3919
        %v3923 = vclz %v3922
        %v3924 = vsub.s32 %v3923, 2
        %vm3925 = vcmp.gt.s32.totalorder 0, %v3924
        %v3926 = vsel %vm3925, 0, %v3924
        %v3927 = vsub.s32 32, %v3926
        %v3928 = vshll.u32 %v3919, %v3926
        %v3929 = vshrl.u32 %v3911, %v3927
        %v3930 = vor.u32 %v3928, %v3929
        %v3931 = vsub.s32 4294967266, %v3926
        %v3932 = vadd.s32 %v3931, 127
        %v3933 = vshll.u32 %v3932, 23
        %v3934 = vor.u32 4788187, %v3933
        %v3935 = vand.u32 2147483647, %v3934
        %v3937 = vcvt.s32.f32 %v3930
        %v3938 = vmul.f32 %v3937, %v3935
        %v3939 = vxor.u32 %v3938, 2147483648
        %v3940 = vsel %vm3857, %v3939, %v3938
        %v3941 = vsub.s32 4, %v3917
        %v3942 = vsel %vm3857, %v3941, %v3917
        %v3943 = vsel %vm3856, %v495, %v3940
        %v3944 = vsel %vm3856, 0, %v3942
        %v3945 = vcosq.f32.pop %v3943
        %v3946 = vsinq.f32.pop %v3943
        %vm3947 = vweird.f32 %v495
        %v3948 = vadd.s32 %v3944, 3
        %v3949 = vand.u32 %v3948, 3
        %vm3950 = vcmp.lt.s32.totalorder %v3949, 2
        %vm3951 = vcmp.eq.s32.totalorder %v3949, 0
        %v3952 = vxor.u32 %v3946, 2147483648
        %v3953 = vsel %vm3951, %v3945, %v3952
        %vm3954 = vcmp.eq.s32.totalorder %v3949, 2
        %v3955 = vxor.u32 %v3945, 2147483648
        %v3956 = vsel %vm3954, %v3955, %v3946
        %v3957 = vsel %vm3950, %v3953, %v3956
        %v3958 = vsel %vm3947, nan, %v3957
        %v3959 = vand.u32 2147483647, %v496
        %vm3960 = vcmp.le.f32.partialorder %v3959, 0.7853982
        %vm3961 = vcmp.lt.s32.totalorder %v496, 0
        %v3962 = vand.u32 %v496, 2139095040
        %v3963 = vshrl.u32 %v3962, 23
        %v3964 = vsub.s32 %v3963, 127
        %v3965 = vand.u32 2147483647, %v496
        %v3966 = vand.u32 %v3965, 8388607
        %v3967 = vor.u32 %v3966, 8388608
        %v3968 = vsub.s32 0, %v3967
        %v3969 = vadd.s32 %v3964, 1
        %vm3970 = vcmp.gt.s32.totalorder %v3969, 0
        %v3971 = vsel %vm3970, %v3969, 0
        %v3972 = vshrl.u32 %v3971, 5
        %v3973 = vand.u32 %v3971, 31
        %v3974 = vsub.s32 32, %v3973
        %v3975 = vshrl.u32 683565275, %v3974
        %v3976 = vshll.u32 683565275, %v3973
        %v3977 = vshrl.u32 2475754826, %v3974
        %v3978 = vor.u32 %v3976, %v3977
        %v3979 = vshll.u32 2475754826, %v3973
        %v3980 = vshrl.u32 2131351028, %v3974
        %v3981 = vor.u32 %v3979, %v3980
        %v3982 = vshll.u32 2131351028, %v3973
        %v3983 = vshrl.u32 2102212464, %v3974
        %v3984 = vor.u32 %v3982, %v3983
        %v3985 = vshll.u32 2102212464, %v3973
        %v3986 = vshrl.u32 920167782, %v3974
        %v3987 = vor.u32 %v3985, %v3986
        %v3988 = vshll.u32 920167782, %v3973
        %v3989 = vshrl.u32 1326507024, %v3974
        %v3990 = vor.u32 %v3988, %v3989
        %vm3991 = vcmp.lt.s32.totalorder %v3972, 1
        %vm3992 = vcmp.lt.s32.totalorder %v3972, 2
        %vm3993 = vcmp.lt.s32.totalorder %v3972, 3
        %vm3994 = vcmp.lt.s32.totalorder %v3972, 4
        %v3995 = vsel %vm3991, %v3975, %v3978
        %v3996 = vsel %vm3994, %v3984, 2102212464
        %v3997 = vsel %vm3993, %v3981, %v3996
        %v3998 = vsel %vm3992, %v3995, %v3997
        %v3999 = vsel %vm3991, %v3978, %v3981
        %v4000 = vsel %vm3994, %v3987, 920167782
        %v4001 = vsel %vm3993, %v3984, %v4000
        %v4002 = vsel %vm3992, %v3999, %v4001
        %v4003 = vsel %vm3991, %v3981, %v3984
        %v4004 = vsel %vm3994, %v3990, 1326507024
        %v4005 = vsel %vm3993, %v3987, %v4004
        %v4006 = vsel %vm3992, %v4003, %v4005
        %v4007 = vshll.u32 %v3967, 8
        %v4008 = vmul.u32.u64.compose %v4007, %v4006
        %v4009 = vextract.low.u32 %v4008
        %v4010 = vextract.high.u32 %v4008
        %v4011 = vmul.u32.u64.compose %v4007, %v4002
        %v4012 = vextract.low.u32 %v4011
        %v4013 = vextract.high.u32 %v4011
        %v4014 = vmul.u32 %v4007, %v3998
        %v4015 = vadd.s32 %v4010, %v4012
        %vm4016 = vc.u32 %v4010, %v4012
        %v4017 = vadd.s32 %v4013, 1
        %v4018 = vsel %vm4016, %v4017, %v4013
        %v4019 = vadd.s32 %v4014, %v4018
        %v4020 = vadd.s32 %v4019, 536870912
        %v4021 = vshrl.u32 %v4020, 30
        %v4022 = vshll.u32 %v4021, 30
        %v4023 = vsub.s32 %v4019, %v4022
        %vm4024 = vcmp.lt.s32.totalorder %v4023, 0
        %v4025 = vsub.s32 0, %v4023
        %v4026 = vsel %vm4024, %v4025, %v4023
        %v4027 = vclz %v4026
        %v4028 = vsub.s32 %v4027, 2
        %vm4029 = vcmp.gt.s32.totalorder 0, %v4028
        %v4030 = vsel %vm4029, 0, %v4028
        %v4031 = vsub.s32 32, %v4030
        %v4032 = vshll.u32 %v4023, %v4030
        %v4033 = vshrl.u32 %v4015, %v4031
        %v4034 = vor.u32 %v4032, %v4033
        %v4035 = vsub.s32 4294967266, %v4030
        %v4036 = vadd.s32 %v4035, 127
        %v4037 = vshll.u32 %v4036, 23
        %v4038 = vor.u32 4788187, %v4037
        %v4039 = vand.u32 2147483647, %v4038
        %v4041 = vcvt.s32.f32 %v4034
        %v4042 = vmul.f32 %v4041, %v4039
        %v4043 = vxor.u32 %v4042, 2147483648
        %v4044 = vsel %vm3961, %v4043, %v4042
        %v4045 = vsub.s32 4, %v4021
        %v4046 = vsel %vm3961, %v4045, %v4021
        %v4047 = vsel %vm3960, %v496, %v4044
        %v4048 = vsel %vm3960, 0, %v4046
        %v4049 = vcosq.f32.pop %v4047
        %v4050 = vsinq.f32.pop %v4047
        %vm4051 = vweird.f32 %v496
        %v4052 = vadd.s32 %v4048, 3
        %v4053 = vand.u32 %v4052, 3
        %vm4054 = vcmp.lt.s32.totalorder %v4053, 2
        %vm4055 = vcmp.eq.s32.totalorder %v4053, 0
        %v4056 = vxor.u32 %v4050, 2147483648
        %v4057 = vsel %vm4055, %v4049, %v4056
        %vm4058 = vcmp.eq.s32.totalorder %v4053, 2
        %v4059 = vxor.u32 %v4049, 2147483648
        %v4060 = vsel %vm4058, %v4059, %v4050
        %v4061 = vsel %vm4054, %v4057, %v4060
        %v4062 = vsel %vm4051, nan, %v4061
        %v4063 = vand.u32 2147483647, %v497
        %vm4064 = vcmp.le.f32.partialorder %v4063, 0.7853982
        %vm4065 = vcmp.lt.s32.totalorder %v497, 0
        %v4066 = vand.u32 %v497, 2139095040
        %v4067 = vshrl.u32 %v4066, 23
        %v4068 = vsub.s32 %v4067, 127
        %v4069 = vand.u32 2147483647, %v497
        %v4070 = vand.u32 %v4069, 8388607
        %v4071 = vor.u32 %v4070, 8388608
        %v4072 = vsub.s32 0, %v4071
        %v4073 = vadd.s32 %v4068, 1
        %vm4074 = vcmp.gt.s32.totalorder %v4073, 0
        %v4075 = vsel %vm4074, %v4073, 0
        %v4076 = vshrl.u32 %v4075, 5
        %v4077 = vand.u32 %v4075, 31
        %v4078 = vsub.s32 32, %v4077
        %v4079 = vshrl.u32 683565275, %v4078
        %v4080 = vshll.u32 683565275, %v4077
        %v4081 = vshrl.u32 2475754826, %v4078
        %v4082 = vor.u32 %v4080, %v4081
        %v4083 = vshll.u32 2475754826, %v4077
        %v4084 = vshrl.u32 2131351028, %v4078
        %v4085 = vor.u32 %v4083, %v4084
        %v4086 = vshll.u32 2131351028, %v4077
        %v4087 = vshrl.u32 2102212464, %v4078
        %v4088 = vor.u32 %v4086, %v4087
        %v4089 = vshll.u32 2102212464, %v4077
        %v4090 = vshrl.u32 920167782, %v4078
        %v4091 = vor.u32 %v4089, %v4090
        %v4092 = vshll.u32 920167782, %v4077
        %v4093 = vshrl.u32 1326507024, %v4078
        %v4094 = vor.u32 %v4092, %v4093
        %vm4095 = vcmp.lt.s32.totalorder %v4076, 1
        %vm4096 = vcmp.lt.s32.totalorder %v4076, 2
        %vm4097 = vcmp.lt.s32.totalorder %v4076, 3
        %vm4098 = vcmp.lt.s32.totalorder %v4076, 4
        %v4099 = vsel %vm4095, %v4079, %v4082
        %v4100 = vsel %vm4098, %v4088, 2102212464
        %v4101 = vsel %vm4097, %v4085, %v4100
        %v4102 = vsel %vm4096, %v4099, %v4101
        %v4103 = vsel %vm4095, %v4082, %v4085
        %v4104 = vsel %vm4098, %v4091, 920167782
        %v4105 = vsel %vm4097, %v4088, %v4104
        %v4106 = vsel %vm4096, %v4103, %v4105
        %v4107 = vsel %vm4095, %v4085, %v4088
        %v4108 = vsel %vm4098, %v4094, 1326507024
        %v4109 = vsel %vm4097, %v4091, %v4108
        %v4110 = vsel %vm4096, %v4107, %v4109
        %v4111 = vshll.u32 %v4071, 8
        %v4112 = vmul.u32.u64.compose %v4111, %v4110
        %v4113 = vextract.low.u32 %v4112
        %v4114 = vextract.high.u32 %v4112
        %v4115 = vmul.u32.u64.compose %v4111, %v4106
        %v4116 = vextract.low.u32 %v4115
        %v4117 = vextract.high.u32 %v4115
        %v4118 = vmul.u32 %v4111, %v4102
        %v4119 = vadd.s32 %v4114, %v4116
        %vm4120 = vc.u32 %v4114, %v4116
        %v4121 = vadd.s32 %v4117, 1
        %v4122 = vsel %vm4120, %v4121, %v4117
        %v4123 = vadd.s32 %v4118, %v4122
        %v4124 = vadd.s32 %v4123, 536870912
        %v4125 = vshrl.u32 %v4124, 30
        %v4126 = vshll.u32 %v4125, 30
        %v4127 = vsub.s32 %v4123, %v4126
        %vm4128 = vcmp.lt.s32.totalorder %v4127, 0
        %v4129 = vsub.s32 0, %v4127
        %v4130 = vsel %vm4128, %v4129, %v4127
        %v4131 = vclz %v4130
        %v4132 = vsub.s32 %v4131, 2
        %vm4133 = vcmp.gt.s32.totalorder 0, %v4132
        %v4134 = vsel %vm4133, 0, %v4132
        %v4135 = vsub.s32 32, %v4134
        %v4136 = vshll.u32 %v4127, %v4134
        %v4137 = vshrl.u32 %v4119, %v4135
        %v4138 = vor.u32 %v4136, %v4137
        %v4139 = vsub.s32 4294967266, %v4134
        %v4140 = vadd.s32 %v4139, 127
        %v4141 = vshll.u32 %v4140, 23
        %v4142 = vor.u32 4788187, %v4141
        %v4143 = vand.u32 2147483647, %v4142
        %v4145 = vcvt.s32.f32 %v4138
        %v4146 = vmul.f32 %v4145, %v4143
        %v4147 = vxor.u32 %v4146, 2147483648
        %v4148 = vsel %vm4065, %v4147, %v4146
        %v4149 = vsub.s32 4, %v4125
        %v4150 = vsel %vm4065, %v4149, %v4125
        %v4151 = vsel %vm4064, %v497, %v4148
        %v4152 = vsel %vm4064, 0, %v4150
        %v4153 = vcosq.f32.pop %v4151
        %v4154 = vsinq.f32.pop %v4151
        %vm4155 = vweird.f32 %v497
        %v4156 = vadd.s32 %v4152, 3
        %v4157 = vand.u32 %v4156, 3
        %vm4158 = vcmp.lt.s32.totalorder %v4157, 2
        %vm4159 = vcmp.eq.s32.totalorder %v4157, 0
        %v4160 = vxor.u32 %v4154, 2147483648
        %v4161 = vsel %vm4159, %v4153, %v4160
        %vm4162 = vcmp.eq.s32.totalorder %v4157, 2
        %v4163 = vxor.u32 %v4153, 2147483648
        %v4164 = vsel %vm4162, %v4163, %v4154
        %v4165 = vsel %vm4158, %v4161, %v4164
        %v4166 = vsel %vm4155, nan, %v4165
        %v4167 = vand.u32 2147483647, %v498
        %vm4168 = vcmp.le.f32.partialorder %v4167, 0.7853982
        %vm4169 = vcmp.lt.s32.totalorder %v498, 0
        %v4170 = vand.u32 %v498, 2139095040
        %v4171 = vshrl.u32 %v4170, 23
        %v4172 = vsub.s32 %v4171, 127
        %v4173 = vand.u32 2147483647, %v498
        %v4174 = vand.u32 %v4173, 8388607
        %v4175 = vor.u32 %v4174, 8388608
        %v4176 = vsub.s32 0, %v4175
        %v4177 = vadd.s32 %v4172, 1
        %vm4178 = vcmp.gt.s32.totalorder %v4177, 0
        %v4179 = vsel %vm4178, %v4177, 0
        %v4180 = vshrl.u32 %v4179, 5
        %v4181 = vand.u32 %v4179, 31
        %v4182 = vsub.s32 32, %v4181
        %v4183 = vshrl.u32 683565275, %v4182
        %v4184 = vshll.u32 683565275, %v4181
        %v4185 = vshrl.u32 2475754826, %v4182
        %v4186 = vor.u32 %v4184, %v4185
        %v4187 = vshll.u32 2475754826, %v4181
        %v4188 = vshrl.u32 2131351028, %v4182
        %v4189 = vor.u32 %v4187, %v4188
        %v4190 = vshll.u32 2131351028, %v4181
        %v4191 = vshrl.u32 2102212464, %v4182
        %v4192 = vor.u32 %v4190, %v4191
        %v4193 = vshll.u32 2102212464, %v4181
        %v4194 = vshrl.u32 920167782, %v4182
        %v4195 = vor.u32 %v4193, %v4194
        %v4196 = vshll.u32 920167782, %v4181
        %v4197 = vshrl.u32 1326507024, %v4182
        %v4198 = vor.u32 %v4196, %v4197
        %vm4199 = vcmp.lt.s32.totalorder %v4180, 1
        %vm4200 = vcmp.lt.s32.totalorder %v4180, 2
        %vm4201 = vcmp.lt.s32.totalorder %v4180, 3
        %vm4202 = vcmp.lt.s32.totalorder %v4180, 4
        %v4203 = vsel %vm4199, %v4183, %v4186
        %v4204 = vsel %vm4202, %v4192, 2102212464
        %v4205 = vsel %vm4201, %v4189, %v4204
        %v4206 = vsel %vm4200, %v4203, %v4205
        %v4207 = vsel %vm4199, %v4186, %v4189
        %v4208 = vsel %vm4202, %v4195, 920167782
        %v4209 = vsel %vm4201, %v4192, %v4208
        %v4210 = vsel %vm4200, %v4207, %v4209
        %v4211 = vsel %vm4199, %v4189, %v4192
        %v4212 = vsel %vm4202, %v4198, 1326507024
        %v4213 = vsel %vm4201, %v4195, %v4212
        %v4214 = vsel %vm4200, %v4211, %v4213
        %v4215 = vshll.u32 %v4175, 8
        %v4216 = vmul.u32.u64.compose %v4215, %v4214
        %v4217 = vextract.low.u32 %v4216
        %v4218 = vextract.high.u32 %v4216
        %v4219 = vmul.u32.u64.compose %v4215, %v4210
        %v4220 = vextract.low.u32 %v4219
        %v4221 = vextract.high.u32 %v4219
        %v4222 = vmul.u32 %v4215, %v4206
        %v4223 = vadd.s32 %v4218, %v4220
        %vm4224 = vc.u32 %v4218, %v4220
        %v4225 = vadd.s32 %v4221, 1
        %v4226 = vsel %vm4224, %v4225, %v4221
        %v4227 = vadd.s32 %v4222, %v4226
        %v4228 = vadd.s32 %v4227, 536870912
        %v4229 = vshrl.u32 %v4228, 30
        %v4230 = vshll.u32 %v4229, 30
        %v4231 = vsub.s32 %v4227, %v4230
        %vm4232 = vcmp.lt.s32.totalorder %v4231, 0
        %v4233 = vsub.s32 0, %v4231
        %v4234 = vsel %vm4232, %v4233, %v4231
        %v4235 = vclz %v4234
        %v4236 = vsub.s32 %v4235, 2
        %vm4237 = vcmp.gt.s32.totalorder 0, %v4236
        %v4238 = vsel %vm4237, 0, %v4236
        %v4239 = vsub.s32 32, %v4238
        %v4240 = vshll.u32 %v4231, %v4238
        %v4241 = vshrl.u32 %v4223, %v4239
        %v4242 = vor.u32 %v4240, %v4241
        %v4243 = vsub.s32 4294967266, %v4238
        %v4244 = vadd.s32 %v4243, 127
        %v4245 = vshll.u32 %v4244, 23
        %v4246 = vor.u32 4788187, %v4245
        %v4247 = vand.u32 2147483647, %v4246
        %v4249 = vcvt.s32.f32 %v4242
        %v4250 = vmul.f32 %v4249, %v4247
        %v4251 = vxor.u32 %v4250, 2147483648
        %v4252 = vsel %vm4169, %v4251, %v4250
        %v4253 = vsub.s32 4, %v4229
        %v4254 = vsel %vm4169, %v4253, %v4229
        %v4255 = vsel %vm4168, %v498, %v4252
        %v4256 = vsel %vm4168, 0, %v4254
        %v4257 = vcosq.f32.pop %v4255
        %v4258 = vsinq.f32.pop %v4255
        %vm4259 = vweird.f32 %v498
        %v4260 = vadd.s32 %v4256, 3
        %v4261 = vand.u32 %v4260, 3
        %vm4262 = vcmp.lt.s32.totalorder %v4261, 2
        %vm4263 = vcmp.eq.s32.totalorder %v4261, 0
        %v4264 = vxor.u32 %v4258, 2147483648
        %v4265 = vsel %vm4263, %v4257, %v4264
        %vm4266 = vcmp.eq.s32.totalorder %v4261, 2
        %v4267 = vxor.u32 %v4257, 2147483648
        %v4268 = vsel %vm4266, %v4267, %v4258
        %v4269 = vsel %vm4262, %v4265, %v4268
        %v4270 = vsel %vm4259, nan, %v4269
        %v4271 = vand.u32 2147483647, %v499
        %vm4272 = vcmp.le.f32.partialorder %v4271, 0.7853982
        %vm4273 = vcmp.lt.s32.totalorder %v499, 0
        %v4274 = vand.u32 %v499, 2139095040
        %v4275 = vshrl.u32 %v4274, 23
        %v4276 = vsub.s32 %v4275, 127
        %v4277 = vand.u32 2147483647, %v499
        %v4278 = vand.u32 %v4277, 8388607
        %v4279 = vor.u32 %v4278, 8388608
        %v4280 = vsub.s32 0, %v4279
        %v4281 = vadd.s32 %v4276, 1
        %vm4282 = vcmp.gt.s32.totalorder %v4281, 0
        %v4283 = vsel %vm4282, %v4281, 0
        %v4284 = vshrl.u32 %v4283, 5
        %v4285 = vand.u32 %v4283, 31
        %v4286 = vsub.s32 32, %v4285
        %v4287 = vshrl.u32 683565275, %v4286
        %v4288 = vshll.u32 683565275, %v4285
        %v4289 = vshrl.u32 2475754826, %v4286
        %v4290 = vor.u32 %v4288, %v4289
        %v4291 = vshll.u32 2475754826, %v4285
        %v4292 = vshrl.u32 2131351028, %v4286
        %v4293 = vor.u32 %v4291, %v4292
        %v4294 = vshll.u32 2131351028, %v4285
        %v4295 = vshrl.u32 2102212464, %v4286
        %v4296 = vor.u32 %v4294, %v4295
        %v4297 = vshll.u32 2102212464, %v4285
        %v4298 = vshrl.u32 920167782, %v4286
        %v4299 = vor.u32 %v4297, %v4298
        %v4300 = vshll.u32 920167782, %v4285
        %v4301 = vshrl.u32 1326507024, %v4286
        %v4302 = vor.u32 %v4300, %v4301
        %vm4303 = vcmp.lt.s32.totalorder %v4284, 1
        %vm4304 = vcmp.lt.s32.totalorder %v4284, 2
        %vm4305 = vcmp.lt.s32.totalorder %v4284, 3
        %vm4306 = vcmp.lt.s32.totalorder %v4284, 4
        %v4307 = vsel %vm4303, %v4287, %v4290
        %v4308 = vsel %vm4306, %v4296, 2102212464
        %v4309 = vsel %vm4305, %v4293, %v4308
        %v4310 = vsel %vm4304, %v4307, %v4309
        %v4311 = vsel %vm4303, %v4290, %v4293
        %v4312 = vsel %vm4306, %v4299, 920167782
        %v4313 = vsel %vm4305, %v4296, %v4312
        %v4314 = vsel %vm4304, %v4311, %v4313
        %v4315 = vsel %vm4303, %v4293, %v4296
        %v4316 = vsel %vm4306, %v4302, 1326507024
        %v4317 = vsel %vm4305, %v4299, %v4316
        %v4318 = vsel %vm4304, %v4315, %v4317
        %v4319 = vshll.u32 %v4279, 8
        %v4320 = vmul.u32.u64.compose %v4319, %v4318
        %v4321 = vextract.low.u32 %v4320
        %v4322 = vextract.high.u32 %v4320
        %v4323 = vmul.u32.u64.compose %v4319, %v4314
        %v4324 = vextract.low.u32 %v4323
        %v4325 = vextract.high.u32 %v4323
        %v4326 = vmul.u32 %v4319, %v4310
        %v4327 = vadd.s32 %v4322, %v4324
        %vm4328 = vc.u32 %v4322, %v4324
        %v4329 = vadd.s32 %v4325, 1
        %v4330 = vsel %vm4328, %v4329, %v4325
        %v4331 = vadd.s32 %v4326, %v4330
        %v4332 = vadd.s32 %v4331, 536870912
        %v4333 = vshrl.u32 %v4332, 30
        %v4334 = vshll.u32 %v4333, 30
        %v4335 = vsub.s32 %v4331, %v4334
        %vm4336 = vcmp.lt.s32.totalorder %v4335, 0
        %v4337 = vsub.s32 0, %v4335
        %v4338 = vsel %vm4336, %v4337, %v4335
        %v4339 = vclz %v4338
        %v4340 = vsub.s32 %v4339, 2
        %vm4341 = vcmp.gt.s32.totalorder 0, %v4340
        %v4342 = vsel %vm4341, 0, %v4340
        %v4343 = vsub.s32 32, %v4342
        %v4344 = vshll.u32 %v4335, %v4342
        %v4345 = vshrl.u32 %v4327, %v4343
        %v4346 = vor.u32 %v4344, %v4345
        %v4347 = vsub.s32 4294967266, %v4342
        %v4348 = vadd.s32 %v4347, 127
        %v4349 = vshll.u32 %v4348, 23
        %v4350 = vor.u32 4788187, %v4349
        %v4351 = vand.u32 2147483647, %v4350
        %v4353 = vcvt.s32.f32 %v4346
        %v4354 = vmul.f32 %v4353, %v4351
        %v4355 = vxor.u32 %v4354, 2147483648
        %v4356 = vsel %vm4273, %v4355, %v4354
        %v4357 = vsub.s32 4, %v4333
        %v4358 = vsel %vm4273, %v4357, %v4333
        %v4359 = vsel %vm4272, %v499, %v4356
        %v4360 = vsel %vm4272, 0, %v4358
        %v4361 = vcosq.f32.pop %v4359
        %v4362 = vsinq.f32.pop %v4359
        %vm4363 = vweird.f32 %v499
        %v4364 = vadd.s32 %v4360, 3
        %v4365 = vand.u32 %v4364, 3
        %vm4366 = vcmp.lt.s32.totalorder %v4365, 2
        %vm4367 = vcmp.eq.s32.totalorder %v4365, 0
        %v4368 = vxor.u32 %v4362, 2147483648
        %v4369 = vsel %vm4367, %v4361, %v4368
        %vm4370 = vcmp.eq.s32.totalorder %v4365, 2
        %v4371 = vxor.u32 %v4361, 2147483648
        %v4372 = vsel %vm4370, %v4371, %v4362
        %v4373 = vsel %vm4366, %v4369, %v4372
        %v4374 = vsel %vm4363, nan, %v4373
        %v4375 = vand.u32 2147483647, %v500
        %vm4376 = vcmp.le.f32.partialorder %v4375, 0.7853982
        %vm4377 = vcmp.lt.s32.totalorder %v500, 0
        %v4378 = vand.u32 %v500, 2139095040
        %v4379 = vshrl.u32 %v4378, 23
        %v4380 = vsub.s32 %v4379, 127
        %v4381 = vand.u32 2147483647, %v500
        %v4382 = vand.u32 %v4381, 8388607
        %v4383 = vor.u32 %v4382, 8388608
        %v4384 = vsub.s32 0, %v4383
        %v4385 = vadd.s32 %v4380, 1
        %vm4386 = vcmp.gt.s32.totalorder %v4385, 0
        %v4387 = vsel %vm4386, %v4385, 0
        %v4388 = vshrl.u32 %v4387, 5
        %v4389 = vand.u32 %v4387, 31
        %v4390 = vsub.s32 32, %v4389
        %v4391 = vshrl.u32 683565275, %v4390
        %v4392 = vshll.u32 683565275, %v4389
        %v4393 = vshrl.u32 2475754826, %v4390
        %v4394 = vor.u32 %v4392, %v4393
        %v4395 = vshll.u32 2475754826, %v4389
        %v4396 = vshrl.u32 2131351028, %v4390
        %v4397 = vor.u32 %v4395, %v4396
        %v4398 = vshll.u32 2131351028, %v4389
        %v4399 = vshrl.u32 2102212464, %v4390
        %v4400 = vor.u32 %v4398, %v4399
        %v4401 = vshll.u32 2102212464, %v4389
        %v4402 = vshrl.u32 920167782, %v4390
        %v4403 = vor.u32 %v4401, %v4402
        %v4404 = vshll.u32 920167782, %v4389
        %v4405 = vshrl.u32 1326507024, %v4390
        %v4406 = vor.u32 %v4404, %v4405
        %vm4407 = vcmp.lt.s32.totalorder %v4388, 1
        %vm4408 = vcmp.lt.s32.totalorder %v4388, 2
        %vm4409 = vcmp.lt.s32.totalorder %v4388, 3
        %vm4410 = vcmp.lt.s32.totalorder %v4388, 4
        %v4411 = vsel %vm4407, %v4391, %v4394
        %v4412 = vsel %vm4410, %v4400, 2102212464
        %v4413 = vsel %vm4409, %v4397, %v4412
        %v4414 = vsel %vm4408, %v4411, %v4413
        %v4415 = vsel %vm4407, %v4394, %v4397
        %v4416 = vsel %vm4410, %v4403, 920167782
        %v4417 = vsel %vm4409, %v4400, %v4416
        %v4418 = vsel %vm4408, %v4415, %v4417
        %v4419 = vsel %vm4407, %v4397, %v4400
        %v4420 = vsel %vm4410, %v4406, 1326507024
        %v4421 = vsel %vm4409, %v4403, %v4420
        %v4422 = vsel %vm4408, %v4419, %v4421
        %v4423 = vshll.u32 %v4383, 8
        %v4424 = vmul.u32.u64.compose %v4423, %v4422
        %v4425 = vextract.low.u32 %v4424
        %v4426 = vextract.high.u32 %v4424
        %v4427 = vmul.u32.u64.compose %v4423, %v4418
        %v4428 = vextract.low.u32 %v4427
        %v4429 = vextract.high.u32 %v4427
        %v4430 = vmul.u32 %v4423, %v4414
        %v4431 = vadd.s32 %v4426, %v4428
        %vm4432 = vc.u32 %v4426, %v4428
        %v4433 = vadd.s32 %v4429, 1
        %v4434 = vsel %vm4432, %v4433, %v4429
        %v4435 = vadd.s32 %v4430, %v4434
        %v4436 = vadd.s32 %v4435, 536870912
        %v4437 = vshrl.u32 %v4436, 30
        %v4438 = vshll.u32 %v4437, 30
        %v4439 = vsub.s32 %v4435, %v4438
        %vm4440 = vcmp.lt.s32.totalorder %v4439, 0
        %v4441 = vsub.s32 0, %v4439
        %v4442 = vsel %vm4440, %v4441, %v4439
        %v4443 = vclz %v4442
        %v4444 = vsub.s32 %v4443, 2
        %vm4445 = vcmp.gt.s32.totalorder 0, %v4444
        %v4446 = vsel %vm4445, 0, %v4444
        %v4447 = vsub.s32 32, %v4446
        %v4448 = vshll.u32 %v4439, %v4446
        %v4449 = vshrl.u32 %v4431, %v4447
        %v4450 = vor.u32 %v4448, %v4449
        %v4451 = vsub.s32 4294967266, %v4446
        %v4452 = vadd.s32 %v4451, 127
        %v4453 = vshll.u32 %v4452, 23
        %v4454 = vor.u32 4788187, %v4453
        %v4455 = vand.u32 2147483647, %v4454
        %v4457 = vcvt.s32.f32 %v4450
        %v4458 = vmul.f32 %v4457, %v4455
        %v4459 = vxor.u32 %v4458, 2147483648
        %v4460 = vsel %vm4377, %v4459, %v4458
        %v4461 = vsub.s32 4, %v4437
        %v4462 = vsel %vm4377, %v4461, %v4437
        %v4463 = vsel %vm4376, %v500, %v4460
        %v4464 = vsel %vm4376, 0, %v4462
        %v4465 = vcosq.f32.pop %v4463
        %v4466 = vsinq.f32.pop %v4463
        %vm4467 = vweird.f32 %v500
        %v4468 = vadd.s32 %v4464, 3
        %v4469 = vand.u32 %v4468, 3
        %vm4470 = vcmp.lt.s32.totalorder %v4469, 2
        %vm4471 = vcmp.eq.s32.totalorder %v4469, 0
        %v4472 = vxor.u32 %v4466, 2147483648
        %v4473 = vsel %vm4471, %v4465, %v4472
        %vm4474 = vcmp.eq.s32.totalorder %v4469, 2
        %v4475 = vxor.u32 %v4465, 2147483648
        %v4476 = vsel %vm4474, %v4475, %v4466
        %v4477 = vsel %vm4470, %v4473, %v4476
        %v4478 = vsel %vm4467, nan, %v4477
        %v4479 = vand.u32 2147483647, %v501
        %vm4480 = vcmp.le.f32.partialorder %v4479, 0.7853982
        %vm4481 = vcmp.lt.s32.totalorder %v501, 0
        %v4482 = vand.u32 %v501, 2139095040
        %v4483 = vshrl.u32 %v4482, 23
        %v4484 = vsub.s32 %v4483, 127
        %v4485 = vand.u32 2147483647, %v501
        %v4486 = vand.u32 %v4485, 8388607
        %v4487 = vor.u32 %v4486, 8388608
        %v4488 = vsub.s32 0, %v4487
        %v4489 = vadd.s32 %v4484, 1
        %vm4490 = vcmp.gt.s32.totalorder %v4489, 0
        %v4491 = vsel %vm4490, %v4489, 0
        %v4492 = vshrl.u32 %v4491, 5
        %v4493 = vand.u32 %v4491, 31
        %v4494 = vsub.s32 32, %v4493
        %v4495 = vshrl.u32 683565275, %v4494
        %v4496 = vshll.u32 683565275, %v4493
        %v4497 = vshrl.u32 2475754826, %v4494
        %v4498 = vor.u32 %v4496, %v4497
        %v4499 = vshll.u32 2475754826, %v4493
        %v4500 = vshrl.u32 2131351028, %v4494
        %v4501 = vor.u32 %v4499, %v4500
        %v4502 = vshll.u32 2131351028, %v4493
        %v4503 = vshrl.u32 2102212464, %v4494
        %v4504 = vor.u32 %v4502, %v4503
        %v4505 = vshll.u32 2102212464, %v4493
        %v4506 = vshrl.u32 920167782, %v4494
        %v4507 = vor.u32 %v4505, %v4506
        %v4508 = vshll.u32 920167782, %v4493
        %v4509 = vshrl.u32 1326507024, %v4494
        %v4510 = vor.u32 %v4508, %v4509
        %vm4511 = vcmp.lt.s32.totalorder %v4492, 1
        %vm4512 = vcmp.lt.s32.totalorder %v4492, 2
        %vm4513 = vcmp.lt.s32.totalorder %v4492, 3
        %vm4514 = vcmp.lt.s32.totalorder %v4492, 4
        %v4515 = vsel %vm4511, %v4495, %v4498
        %v4516 = vsel %vm4514, %v4504, 2102212464
        %v4517 = vsel %vm4513, %v4501, %v4516
        %v4518 = vsel %vm4512, %v4515, %v4517
        %v4519 = vsel %vm4511, %v4498, %v4501
        %v4520 = vsel %vm4514, %v4507, 920167782
        %v4521 = vsel %vm4513, %v4504, %v4520
        %v4522 = vsel %vm4512, %v4519, %v4521
        %v4523 = vsel %vm4511, %v4501, %v4504
        %v4524 = vsel %vm4514, %v4510, 1326507024
        %v4525 = vsel %vm4513, %v4507, %v4524
        %v4526 = vsel %vm4512, %v4523, %v4525
        %v4527 = vshll.u32 %v4487, 8
        %v4528 = vmul.u32.u64.compose %v4527, %v4526
        %v4529 = vextract.low.u32 %v4528
        %v4530 = vextract.high.u32 %v4528
        %v4531 = vmul.u32.u64.compose %v4527, %v4522
        %v4532 = vextract.low.u32 %v4531
        %v4533 = vextract.high.u32 %v4531
        %v4534 = vmul.u32 %v4527, %v4518
        %v4535 = vadd.s32 %v4530, %v4532
        %vm4536 = vc.u32 %v4530, %v4532
        %v4537 = vadd.s32 %v4533, 1
        %v4538 = vsel %vm4536, %v4537, %v4533
        %v4539 = vadd.s32 %v4534, %v4538
        %v4540 = vadd.s32 %v4539, 536870912
        %v4541 = vshrl.u32 %v4540, 30
        %v4542 = vshll.u32 %v4541, 30
        %v4543 = vsub.s32 %v4539, %v4542
        %vm4544 = vcmp.lt.s32.totalorder %v4543, 0
        %v4545 = vsub.s32 0, %v4543
        %v4546 = vsel %vm4544, %v4545, %v4543
        %v4547 = vclz %v4546
        %v4548 = vsub.s32 %v4547, 2
        %vm4549 = vcmp.gt.s32.totalorder 0, %v4548
        %v4550 = vsel %vm4549, 0, %v4548
        %v4551 = vsub.s32 32, %v4550
        %v4552 = vshll.u32 %v4543, %v4550
        %v4553 = vshrl.u32 %v4535, %v4551
        %v4554 = vor.u32 %v4552, %v4553
        %v4555 = vsub.s32 4294967266, %v4550
        %v4556 = vadd.s32 %v4555, 127
        %v4557 = vshll.u32 %v4556, 23
        %v4558 = vor.u32 4788187, %v4557
        %v4559 = vand.u32 2147483647, %v4558
        %v4561 = vcvt.s32.f32 %v4554
        %v4562 = vmul.f32 %v4561, %v4559
        %v4563 = vxor.u32 %v4562, 2147483648
        %v4564 = vsel %vm4481, %v4563, %v4562
        %v4565 = vsub.s32 4, %v4541
        %v4566 = vsel %vm4481, %v4565, %v4541
        %v4567 = vsel %vm4480, %v501, %v4564
        %v4568 = vsel %vm4480, 0, %v4566
        %v4569 = vcosq.f32.pop %v4567
        %v4570 = vsinq.f32.pop %v4567
        %vm4571 = vweird.f32 %v501
        %v4572 = vadd.s32 %v4568, 3
        %v4573 = vand.u32 %v4572, 3
        %vm4574 = vcmp.lt.s32.totalorder %v4573, 2
        %vm4575 = vcmp.eq.s32.totalorder %v4573, 0
        %v4576 = vxor.u32 %v4570, 2147483648
        %v4577 = vsel %vm4575, %v4569, %v4576
        %vm4578 = vcmp.eq.s32.totalorder %v4573, 2
        %v4579 = vxor.u32 %v4569, 2147483648
        %v4580 = vsel %vm4578, %v4579, %v4570
        %v4581 = vsel %vm4574, %v4577, %v4580
        %v4582 = vsel %vm4571, nan, %v4581
        %v4583 = vand.u32 2147483647, %v502
        %vm4584 = vcmp.le.f32.partialorder %v4583, 0.7853982
        %vm4585 = vcmp.lt.s32.totalorder %v502, 0
        %v4586 = vand.u32 %v502, 2139095040
        %v4587 = vshrl.u32 %v4586, 23
        %v4588 = vsub.s32 %v4587, 127
        %v4589 = vand.u32 2147483647, %v502
        %v4590 = vand.u32 %v4589, 8388607
        %v4591 = vor.u32 %v4590, 8388608
        %v4592 = vsub.s32 0, %v4591
        %v4593 = vadd.s32 %v4588, 1
        %vm4594 = vcmp.gt.s32.totalorder %v4593, 0
        %v4595 = vsel %vm4594, %v4593, 0
        %v4596 = vshrl.u32 %v4595, 5
        %v4597 = vand.u32 %v4595, 31
        %v4598 = vsub.s32 32, %v4597
        %v4599 = vshrl.u32 683565275, %v4598
        %v4600 = vshll.u32 683565275, %v4597
        %v4601 = vshrl.u32 2475754826, %v4598
        %v4602 = vor.u32 %v4600, %v4601
        %v4603 = vshll.u32 2475754826, %v4597
        %v4604 = vshrl.u32 2131351028, %v4598
        %v4605 = vor.u32 %v4603, %v4604
        %v4606 = vshll.u32 2131351028, %v4597
        %v4607 = vshrl.u32 2102212464, %v4598
        %v4608 = vor.u32 %v4606, %v4607
        %v4609 = vshll.u32 2102212464, %v4597
        %v4610 = vshrl.u32 920167782, %v4598
        %v4611 = vor.u32 %v4609, %v4610
        %v4612 = vshll.u32 920167782, %v4597
        %v4613 = vshrl.u32 1326507024, %v4598
        %v4614 = vor.u32 %v4612, %v4613
        %vm4615 = vcmp.lt.s32.totalorder %v4596, 1
        %vm4616 = vcmp.lt.s32.totalorder %v4596, 2
        %vm4617 = vcmp.lt.s32.totalorder %v4596, 3
        %vm4618 = vcmp.lt.s32.totalorder %v4596, 4
        %v4619 = vsel %vm4615, %v4599, %v4602
        %v4620 = vsel %vm4618, %v4608, 2102212464
        %v4621 = vsel %vm4617, %v4605, %v4620
        %v4622 = vsel %vm4616, %v4619, %v4621
        %v4623 = vsel %vm4615, %v4602, %v4605
        %v4624 = vsel %vm4618, %v4611, 920167782
        %v4625 = vsel %vm4617, %v4608, %v4624
        %v4626 = vsel %vm4616, %v4623, %v4625
        %v4627 = vsel %vm4615, %v4605, %v4608
        %v4628 = vsel %vm4618, %v4614, 1326507024
        %v4629 = vsel %vm4617, %v4611, %v4628
        %v4630 = vsel %vm4616, %v4627, %v4629
        %v4631 = vshll.u32 %v4591, 8
        %v4632 = vmul.u32.u64.compose %v4631, %v4630
        %v4633 = vextract.low.u32 %v4632
        %v4634 = vextract.high.u32 %v4632
        %v4635 = vmul.u32.u64.compose %v4631, %v4626
        %v4636 = vextract.low.u32 %v4635
        %v4637 = vextract.high.u32 %v4635
        %v4638 = vmul.u32 %v4631, %v4622
        %v4639 = vadd.s32 %v4634, %v4636
        %vm4640 = vc.u32 %v4634, %v4636
        %v4641 = vadd.s32 %v4637, 1
        %v4642 = vsel %vm4640, %v4641, %v4637
        %v4643 = vadd.s32 %v4638, %v4642
        %v4644 = vadd.s32 %v4643, 536870912
        %v4645 = vshrl.u32 %v4644, 30
        %v4646 = vshll.u32 %v4645, 30
        %v4647 = vsub.s32 %v4643, %v4646
        %vm4648 = vcmp.lt.s32.totalorder %v4647, 0
        %v4649 = vsub.s32 0, %v4647
        %v4650 = vsel %vm4648, %v4649, %v4647
        %v4651 = vclz %v4650
        %v4652 = vsub.s32 %v4651, 2
        %vm4653 = vcmp.gt.s32.totalorder 0, %v4652
        %v4654 = vsel %vm4653, 0, %v4652
        %v4655 = vsub.s32 32, %v4654
        %v4656 = vshll.u32 %v4647, %v4654
        %v4657 = vshrl.u32 %v4639, %v4655
        %v4658 = vor.u32 %v4656, %v4657
        %v4659 = vsub.s32 4294967266, %v4654
        %v4660 = vadd.s32 %v4659, 127
        %v4661 = vshll.u32 %v4660, 23
        %v4662 = vor.u32 4788187, %v4661
        %v4663 = vand.u32 2147483647, %v4662
        %v4665 = vcvt.s32.f32 %v4658
        %v4666 = vmul.f32 %v4665, %v4663
        %v4667 = vxor.u32 %v4666, 2147483648
        %v4668 = vsel %vm4585, %v4667, %v4666
        %v4669 = vsub.s32 4, %v4645
        %v4670 = vsel %vm4585, %v4669, %v4645
        %v4671 = vsel %vm4584, %v502, %v4668
        %v4672 = vsel %vm4584, 0, %v4670
        %v4673 = vcosq.f32.pop %v4671
        %v4674 = vsinq.f32.pop %v4671
        %vm4675 = vweird.f32 %v502
        %v4676 = vadd.s32 %v4672, 3
        %v4677 = vand.u32 %v4676, 3
        %vm4678 = vcmp.lt.s32.totalorder %v4677, 2
        %vm4679 = vcmp.eq.s32.totalorder %v4677, 0
        %v4680 = vxor.u32 %v4674, 2147483648
        %v4681 = vsel %vm4679, %v4673, %v4680
        %vm4682 = vcmp.eq.s32.totalorder %v4677, 2
        %v4683 = vxor.u32 %v4673, 2147483648
        %v4684 = vsel %vm4682, %v4683, %v4674
        %v4685 = vsel %vm4678, %v4681, %v4684
        %v4686 = vsel %vm4675, nan, %v4685
        %v4687 = vand.u32 2147483647, %v503
        %vm4688 = vcmp.le.f32.partialorder %v4687, 0.7853982
        %vm4689 = vcmp.lt.s32.totalorder %v503, 0
        %v4690 = vand.u32 %v503, 2139095040
        %v4691 = vshrl.u32 %v4690, 23
        %v4692 = vsub.s32 %v4691, 127
        %v4693 = vand.u32 2147483647, %v503
        %v4694 = vand.u32 %v4693, 8388607
        %v4695 = vor.u32 %v4694, 8388608
        %v4696 = vsub.s32 0, %v4695
        %v4697 = vadd.s32 %v4692, 1
        %vm4698 = vcmp.gt.s32.totalorder %v4697, 0
        %v4699 = vsel %vm4698, %v4697, 0
        %v4700 = vshrl.u32 %v4699, 5
        %v4701 = vand.u32 %v4699, 31
        %v4702 = vsub.s32 32, %v4701
        %v4703 = vshrl.u32 683565275, %v4702
        %v4704 = vshll.u32 683565275, %v4701
        %v4705 = vshrl.u32 2475754826, %v4702
        %v4706 = vor.u32 %v4704, %v4705
        %v4707 = vshll.u32 2475754826, %v4701
        %v4708 = vshrl.u32 2131351028, %v4702
        %v4709 = vor.u32 %v4707, %v4708
        %v4710 = vshll.u32 2131351028, %v4701
        %v4711 = vshrl.u32 2102212464, %v4702
        %v4712 = vor.u32 %v4710, %v4711
        %v4713 = vshll.u32 2102212464, %v4701
        %v4714 = vshrl.u32 920167782, %v4702
        %v4715 = vor.u32 %v4713, %v4714
        %v4716 = vshll.u32 920167782, %v4701
        %v4717 = vshrl.u32 1326507024, %v4702
        %v4718 = vor.u32 %v4716, %v4717
        %vm4719 = vcmp.lt.s32.totalorder %v4700, 1
        %vm4720 = vcmp.lt.s32.totalorder %v4700, 2
        %vm4721 = vcmp.lt.s32.totalorder %v4700, 3
        %vm4722 = vcmp.lt.s32.totalorder %v4700, 4
        %v4723 = vsel %vm4719, %v4703, %v4706
        %v4724 = vsel %vm4722, %v4712, 2102212464
        %v4725 = vsel %vm4721, %v4709, %v4724
        %v4726 = vsel %vm4720, %v4723, %v4725
        %v4727 = vsel %vm4719, %v4706, %v4709
        %v4728 = vsel %vm4722, %v4715, 920167782
        %v4729 = vsel %vm4721, %v4712, %v4728
        %v4730 = vsel %vm4720, %v4727, %v4729
        %v4731 = vsel %vm4719, %v4709, %v4712
        %v4732 = vsel %vm4722, %v4718, 1326507024
        %v4733 = vsel %vm4721, %v4715, %v4732
        %v4734 = vsel %vm4720, %v4731, %v4733
        %v4735 = vshll.u32 %v4695, 8
        %v4736 = vmul.u32.u64.compose %v4735, %v4734
        %v4737 = vextract.low.u32 %v4736
        %v4738 = vextract.high.u32 %v4736
        %v4739 = vmul.u32.u64.compose %v4735, %v4730
        %v4740 = vextract.low.u32 %v4739
        %v4741 = vextract.high.u32 %v4739
        %v4742 = vmul.u32 %v4735, %v4726
        %v4743 = vadd.s32 %v4738, %v4740
        %vm4744 = vc.u32 %v4738, %v4740
        %v4745 = vadd.s32 %v4741, 1
        %v4746 = vsel %vm4744, %v4745, %v4741
        %v4747 = vadd.s32 %v4742, %v4746
        %v4748 = vadd.s32 %v4747, 536870912
        %v4749 = vshrl.u32 %v4748, 30
        %v4750 = vshll.u32 %v4749, 30
        %v4751 = vsub.s32 %v4747, %v4750
        %vm4752 = vcmp.lt.s32.totalorder %v4751, 0
        %v4753 = vsub.s32 0, %v4751
        %v4754 = vsel %vm4752, %v4753, %v4751
        %v4755 = vclz %v4754
        %v4756 = vsub.s32 %v4755, 2
        %vm4757 = vcmp.gt.s32.totalorder 0, %v4756
        %v4758 = vsel %vm4757, 0, %v4756
        %v4759 = vsub.s32 32, %v4758
        %v4760 = vshll.u32 %v4751, %v4758
        %v4761 = vshrl.u32 %v4743, %v4759
        %v4762 = vor.u32 %v4760, %v4761
        %v4763 = vsub.s32 4294967266, %v4758
        %v4764 = vadd.s32 %v4763, 127
        %v4765 = vshll.u32 %v4764, 23
        %v4766 = vor.u32 4788187, %v4765
        %v4767 = vand.u32 2147483647, %v4766
        %v4769 = vcvt.s32.f32 %v4762
        %v4770 = vmul.f32 %v4769, %v4767
        %v4771 = vxor.u32 %v4770, 2147483648
        %v4772 = vsel %vm4689, %v4771, %v4770
        %v4773 = vsub.s32 4, %v4749
        %v4774 = vsel %vm4689, %v4773, %v4749
        %v4775 = vsel %vm4688, %v503, %v4772
        %v4776 = vsel %vm4688, 0, %v4774
        %v4777 = vcosq.f32.pop %v4775
        %v4778 = vsinq.f32.pop %v4775
        %vm4779 = vweird.f32 %v503
        %v4780 = vadd.s32 %v4776, 3
        %v4781 = vand.u32 %v4780, 3
        %vm4782 = vcmp.lt.s32.totalorder %v4781, 2
        %vm4783 = vcmp.eq.s32.totalorder %v4781, 0
        %v4784 = vxor.u32 %v4778, 2147483648
        %v4785 = vsel %vm4783, %v4777, %v4784
        %vm4786 = vcmp.eq.s32.totalorder %v4781, 2
        %v4787 = vxor.u32 %v4777, 2147483648
        %v4788 = vsel %vm4786, %v4787, %v4778
        %v4789 = vsel %vm4782, %v4785, %v4788
        %v4790 = vsel %vm4779, nan, %v4789
        %v4791 = vand.u32 2147483647, %v504
        %vm4792 = vcmp.le.f32.partialorder %v4791, 0.7853982
        %vm4793 = vcmp.lt.s32.totalorder %v504, 0
        %v4794 = vand.u32 %v504, 2139095040
        %v4795 = vshrl.u32 %v4794, 23
        %v4796 = vsub.s32 %v4795, 127
        %v4797 = vand.u32 2147483647, %v504
        %v4798 = vand.u32 %v4797, 8388607
        %v4799 = vor.u32 %v4798, 8388608
        %v4800 = vsub.s32 0, %v4799
        %v4801 = vadd.s32 %v4796, 1
        %vm4802 = vcmp.gt.s32.totalorder %v4801, 0
        %v4803 = vsel %vm4802, %v4801, 0
        %v4804 = vshrl.u32 %v4803, 5
        %v4805 = vand.u32 %v4803, 31
        %v4806 = vsub.s32 32, %v4805
        %v4807 = vshrl.u32 683565275, %v4806
        %v4808 = vshll.u32 683565275, %v4805
        %v4809 = vshrl.u32 2475754826, %v4806
        %v4810 = vor.u32 %v4808, %v4809
        %v4811 = vshll.u32 2475754826, %v4805
        %v4812 = vshrl.u32 2131351028, %v4806
        %v4813 = vor.u32 %v4811, %v4812
        %v4814 = vshll.u32 2131351028, %v4805
        %v4815 = vshrl.u32 2102212464, %v4806
        %v4816 = vor.u32 %v4814, %v4815
        %v4817 = vshll.u32 2102212464, %v4805
        %v4818 = vshrl.u32 920167782, %v4806
        %v4819 = vor.u32 %v4817, %v4818
        %v4820 = vshll.u32 920167782, %v4805
        %v4821 = vshrl.u32 1326507024, %v4806
        %v4822 = vor.u32 %v4820, %v4821
        %vm4823 = vcmp.lt.s32.totalorder %v4804, 1
        %vm4824 = vcmp.lt.s32.totalorder %v4804, 2
        %vm4825 = vcmp.lt.s32.totalorder %v4804, 3
        %vm4826 = vcmp.lt.s32.totalorder %v4804, 4
        %v4827 = vsel %vm4823, %v4807, %v4810
        %v4828 = vsel %vm4826, %v4816, 2102212464
        %v4829 = vsel %vm4825, %v4813, %v4828
        %v4830 = vsel %vm4824, %v4827, %v4829
        %v4831 = vsel %vm4823, %v4810, %v4813
        %v4832 = vsel %vm4826, %v4819, 920167782
        %v4833 = vsel %vm4825, %v4816, %v4832
        %v4834 = vsel %vm4824, %v4831, %v4833
        %v4835 = vsel %vm4823, %v4813, %v4816
        %v4836 = vsel %vm4826, %v4822, 1326507024
        %v4837 = vsel %vm4825, %v4819, %v4836
        %v4838 = vsel %vm4824, %v4835, %v4837
        %v4839 = vshll.u32 %v4799, 8
        %v4840 = vmul.u32.u64.compose %v4839, %v4838
        %v4841 = vextract.low.u32 %v4840
        %v4842 = vextract.high.u32 %v4840
        %v4843 = vmul.u32.u64.compose %v4839, %v4834
        %v4844 = vextract.low.u32 %v4843
        %v4845 = vextract.high.u32 %v4843
        %v4846 = vmul.u32 %v4839, %v4830
        %v4847 = vadd.s32 %v4842, %v4844
        %vm4848 = vc.u32 %v4842, %v4844
        %v4849 = vadd.s32 %v4845, 1
        %v4850 = vsel %vm4848, %v4849, %v4845
        %v4851 = vadd.s32 %v4846, %v4850
        %v4852 = vadd.s32 %v4851, 536870912
        %v4853 = vshrl.u32 %v4852, 30
        %v4854 = vshll.u32 %v4853, 30
        %v4855 = vsub.s32 %v4851, %v4854
        %vm4856 = vcmp.lt.s32.totalorder %v4855, 0
        %v4857 = vsub.s32 0, %v4855
        %v4858 = vsel %vm4856, %v4857, %v4855
        %v4859 = vclz %v4858
        %v4860 = vsub.s32 %v4859, 2
        %vm4861 = vcmp.gt.s32.totalorder 0, %v4860
        %v4862 = vsel %vm4861, 0, %v4860
        %v4863 = vsub.s32 32, %v4862
        %v4864 = vshll.u32 %v4855, %v4862
        %v4865 = vshrl.u32 %v4847, %v4863
        %v4866 = vor.u32 %v4864, %v4865
        %v4867 = vsub.s32 4294967266, %v4862
        %v4868 = vadd.s32 %v4867, 127
        %v4869 = vshll.u32 %v4868, 23
        %v4870 = vor.u32 4788187, %v4869
        %v4871 = vand.u32 2147483647, %v4870
        %v4873 = vcvt.s32.f32 %v4866
        %v4874 = vmul.f32 %v4873, %v4871
        %v4875 = vxor.u32 %v4874, 2147483648
        %v4876 = vsel %vm4793, %v4875, %v4874
        %v4877 = vsub.s32 4, %v4853
        %v4878 = vsel %vm4793, %v4877, %v4853
        %v4879 = vsel %vm4792, %v504, %v4876
        %v4880 = vsel %vm4792, 0, %v4878
        %v4881 = vcosq.f32.pop %v4879
        %v4882 = vsinq.f32.pop %v4879
        %vm4883 = vweird.f32 %v504
        %v4884 = vadd.s32 %v4880, 3
        %v4885 = vand.u32 %v4884, 3
        %vm4886 = vcmp.lt.s32.totalorder %v4885, 2
        %vm4887 = vcmp.eq.s32.totalorder %v4885, 0
        %v4888 = vxor.u32 %v4882, 2147483648
        %v4889 = vsel %vm4887, %v4881, %v4888
        %vm4890 = vcmp.eq.s32.totalorder %v4885, 2
        %v4891 = vxor.u32 %v4881, 2147483648
        %v4892 = vsel %vm4890, %v4891, %v4882
        %v4893 = vsel %vm4886, %v4889, %v4892
        %v4894 = vsel %vm4883, nan, %v4893
        %v4895 = vand.u32 2147483647, %v505
        %vm4896 = vcmp.le.f32.partialorder %v4895, 0.7853982
        %vm4897 = vcmp.lt.s32.totalorder %v505, 0
        %v4898 = vand.u32 %v505, 2139095040
        %v4899 = vshrl.u32 %v4898, 23
        %v4900 = vsub.s32 %v4899, 127
        %v4901 = vand.u32 2147483647, %v505
        %v4902 = vand.u32 %v4901, 8388607
        %v4903 = vor.u32 %v4902, 8388608
        %v4904 = vsub.s32 0, %v4903
        %v4905 = vadd.s32 %v4900, 1
        %vm4906 = vcmp.gt.s32.totalorder %v4905, 0
        %v4907 = vsel %vm4906, %v4905, 0
        %v4908 = vshrl.u32 %v4907, 5
        %v4909 = vand.u32 %v4907, 31
        %v4910 = vsub.s32 32, %v4909
        %v4911 = vshrl.u32 683565275, %v4910
        %v4912 = vshll.u32 683565275, %v4909
        %v4913 = vshrl.u32 2475754826, %v4910
        %v4914 = vor.u32 %v4912, %v4913
        %v4915 = vshll.u32 2475754826, %v4909
        %v4916 = vshrl.u32 2131351028, %v4910
        %v4917 = vor.u32 %v4915, %v4916
        %v4918 = vshll.u32 2131351028, %v4909
        %v4919 = vshrl.u32 2102212464, %v4910
        %v4920 = vor.u32 %v4918, %v4919
        %v4921 = vshll.u32 2102212464, %v4909
        %v4922 = vshrl.u32 920167782, %v4910
        %v4923 = vor.u32 %v4921, %v4922
        %v4924 = vshll.u32 920167782, %v4909
        %v4925 = vshrl.u32 1326507024, %v4910
        %v4926 = vor.u32 %v4924, %v4925
        %vm4927 = vcmp.lt.s32.totalorder %v4908, 1
        %vm4928 = vcmp.lt.s32.totalorder %v4908, 2
        %vm4929 = vcmp.lt.s32.totalorder %v4908, 3
        %vm4930 = vcmp.lt.s32.totalorder %v4908, 4
        %v4931 = vsel %vm4927, %v4911, %v4914
        %v4932 = vsel %vm4930, %v4920, 2102212464
        %v4933 = vsel %vm4929, %v4917, %v4932
        %v4934 = vsel %vm4928, %v4931, %v4933
        %v4935 = vsel %vm4927, %v4914, %v4917
        %v4936 = vsel %vm4930, %v4923, 920167782
        %v4937 = vsel %vm4929, %v4920, %v4936
        %v4938 = vsel %vm4928, %v4935, %v4937
        %v4939 = vsel %vm4927, %v4917, %v4920
        %v4940 = vsel %vm4930, %v4926, 1326507024
        %v4941 = vsel %vm4929, %v4923, %v4940
        %v4942 = vsel %vm4928, %v4939, %v4941
        %v4943 = vshll.u32 %v4903, 8
        %v4944 = vmul.u32.u64.compose %v4943, %v4942
        %v4945 = vextract.low.u32 %v4944
        %v4946 = vextract.high.u32 %v4944
        %v4947 = vmul.u32.u64.compose %v4943, %v4938
        %v4948 = vextract.low.u32 %v4947
        %v4949 = vextract.high.u32 %v4947
        %v4950 = vmul.u32 %v4943, %v4934
        %v4951 = vadd.s32 %v4946, %v4948
        %vm4952 = vc.u32 %v4946, %v4948
        %v4953 = vadd.s32 %v4949, 1
        %v4954 = vsel %vm4952, %v4953, %v4949
        %v4955 = vadd.s32 %v4950, %v4954
        %v4956 = vadd.s32 %v4955, 536870912
        %v4957 = vshrl.u32 %v4956, 30
        %v4958 = vshll.u32 %v4957, 30
        %v4959 = vsub.s32 %v4955, %v4958
        %vm4960 = vcmp.lt.s32.totalorder %v4959, 0
        %v4961 = vsub.s32 0, %v4959
        %v4962 = vsel %vm4960, %v4961, %v4959
        %v4963 = vclz %v4962
        %v4964 = vsub.s32 %v4963, 2
        %vm4965 = vcmp.gt.s32.totalorder 0, %v4964
        %v4966 = vsel %vm4965, 0, %v4964
        %v4967 = vsub.s32 32, %v4966
        %v4968 = vshll.u32 %v4959, %v4966
        %v4969 = vshrl.u32 %v4951, %v4967
        %v4970 = vor.u32 %v4968, %v4969
        %v4971 = vsub.s32 4294967266, %v4966
        %v4972 = vadd.s32 %v4971, 127
        %v4973 = vshll.u32 %v4972, 23
        %v4974 = vor.u32 4788187, %v4973
        %v4975 = vand.u32 2147483647, %v4974
        %v4977 = vcvt.s32.f32 %v4970
        %v4978 = vmul.f32 %v4977, %v4975
        %v4979 = vxor.u32 %v4978, 2147483648
        %v4980 = vsel %vm4897, %v4979, %v4978
        %v4981 = vsub.s32 4, %v4957
        %v4982 = vsel %vm4897, %v4981, %v4957
        %v4983 = vsel %vm4896, %v505, %v4980
        %v4984 = vsel %vm4896, 0, %v4982
        %v4985 = vcosq.f32.pop %v4983
        %v4986 = vsinq.f32.pop %v4983
        %vm4987 = vweird.f32 %v505
        %v4988 = vadd.s32 %v4984, 3
        %v4989 = vand.u32 %v4988, 3
        %vm4990 = vcmp.lt.s32.totalorder %v4989, 2
        %vm4991 = vcmp.eq.s32.totalorder %v4989, 0
        %v4992 = vxor.u32 %v4986, 2147483648
        %v4993 = vsel %vm4991, %v4985, %v4992
        %vm4994 = vcmp.eq.s32.totalorder %v4989, 2
        %v4995 = vxor.u32 %v4985, 2147483648
        %v4996 = vsel %vm4994, %v4995, %v4986
        %v4997 = vsel %vm4990, %v4993, %v4996
        %v4998 = vsel %vm4987, nan, %v4997
        %v4999 = vand.u32 2147483647, %v506
        %vm5000 = vcmp.le.f32.partialorder %v4999, 0.7853982
        %vm5001 = vcmp.lt.s32.totalorder %v506, 0
        %v5002 = vand.u32 %v506, 2139095040
        %v5003 = vshrl.u32 %v5002, 23
        %v5004 = vsub.s32 %v5003, 127
        %v5005 = vand.u32 2147483647, %v506
        %v5006 = vand.u32 %v5005, 8388607
        %v5007 = vor.u32 %v5006, 8388608
        %v5008 = vsub.s32 0, %v5007
        %v5009 = vadd.s32 %v5004, 1
        %vm5010 = vcmp.gt.s32.totalorder %v5009, 0
        %v5011 = vsel %vm5010, %v5009, 0
        %v5012 = vshrl.u32 %v5011, 5
        %v5013 = vand.u32 %v5011, 31
        %v5014 = vsub.s32 32, %v5013
        %v5015 = vshrl.u32 683565275, %v5014
        %v5016 = vshll.u32 683565275, %v5013
        %v5017 = vshrl.u32 2475754826, %v5014
        %v5018 = vor.u32 %v5016, %v5017
        %v5019 = vshll.u32 2475754826, %v5013
        %v5020 = vshrl.u32 2131351028, %v5014
        %v5021 = vor.u32 %v5019, %v5020
        %v5022 = vshll.u32 2131351028, %v5013
        %v5023 = vshrl.u32 2102212464, %v5014
        %v5024 = vor.u32 %v5022, %v5023
        %v5025 = vshll.u32 2102212464, %v5013
        %v5026 = vshrl.u32 920167782, %v5014
        %v5027 = vor.u32 %v5025, %v5026
        %v5028 = vshll.u32 920167782, %v5013
        %v5029 = vshrl.u32 1326507024, %v5014
        %v5030 = vor.u32 %v5028, %v5029
        %vm5031 = vcmp.lt.s32.totalorder %v5012, 1
        %vm5032 = vcmp.lt.s32.totalorder %v5012, 2
        %vm5033 = vcmp.lt.s32.totalorder %v5012, 3
        %vm5034 = vcmp.lt.s32.totalorder %v5012, 4
        %v5035 = vsel %vm5031, %v5015, %v5018
        %v5036 = vsel %vm5034, %v5024, 2102212464
        %v5037 = vsel %vm5033, %v5021, %v5036
        %v5038 = vsel %vm5032, %v5035, %v5037
        %v5039 = vsel %vm5031, %v5018, %v5021
        %v5040 = vsel %vm5034, %v5027, 920167782
        %v5041 = vsel %vm5033, %v5024, %v5040
        %v5042 = vsel %vm5032, %v5039, %v5041
        %v5043 = vsel %vm5031, %v5021, %v5024
        %v5044 = vsel %vm5034, %v5030, 1326507024
        %v5045 = vsel %vm5033, %v5027, %v5044
        %v5046 = vsel %vm5032, %v5043, %v5045
        %v5047 = vshll.u32 %v5007, 8
        %v5048 = vmul.u32.u64.compose %v5047, %v5046
        %v5049 = vextract.low.u32 %v5048
        %v5050 = vextract.high.u32 %v5048
        %v5051 = vmul.u32.u64.compose %v5047, %v5042
        %v5052 = vextract.low.u32 %v5051
        %v5053 = vextract.high.u32 %v5051
        %v5054 = vmul.u32 %v5047, %v5038
        %v5055 = vadd.s32 %v5050, %v5052
        %vm5056 = vc.u32 %v5050, %v5052
        %v5057 = vadd.s32 %v5053, 1
        %v5058 = vsel %vm5056, %v5057, %v5053
        %v5059 = vadd.s32 %v5054, %v5058
        %v5060 = vadd.s32 %v5059, 536870912
        %v5061 = vshrl.u32 %v5060, 30
        %v5062 = vshll.u32 %v5061, 30
        %v5063 = vsub.s32 %v5059, %v5062
        %vm5064 = vcmp.lt.s32.totalorder %v5063, 0
        %v5065 = vsub.s32 0, %v5063
        %v5066 = vsel %vm5064, %v5065, %v5063
        %v5067 = vclz %v5066
        %v5068 = vsub.s32 %v5067, 2
        %vm5069 = vcmp.gt.s32.totalorder 0, %v5068
        %v5070 = vsel %vm5069, 0, %v5068
        %v5071 = vsub.s32 32, %v5070
        %v5072 = vshll.u32 %v5063, %v5070
        %v5073 = vshrl.u32 %v5055, %v5071
        %v5074 = vor.u32 %v5072, %v5073
        %v5075 = vsub.s32 4294967266, %v5070
        %v5076 = vadd.s32 %v5075, 127
        %v5077 = vshll.u32 %v5076, 23
        %v5078 = vor.u32 4788187, %v5077
        %v5079 = vand.u32 2147483647, %v5078
        %v5081 = vcvt.s32.f32 %v5074
        %v5082 = vmul.f32 %v5081, %v5079
        %v5083 = vxor.u32 %v5082, 2147483648
        %v5084 = vsel %vm5001, %v5083, %v5082
        %v5085 = vsub.s32 4, %v5061
        %v5086 = vsel %vm5001, %v5085, %v5061
        %v5087 = vsel %vm5000, %v506, %v5084
        %v5088 = vsel %vm5000, 0, %v5086
        %v5089 = vcosq.f32.pop %v5087
        %v5090 = vsinq.f32.pop %v5087
        %vm5091 = vweird.f32 %v506
        %v5092 = vadd.s32 %v5088, 3
        %v5093 = vand.u32 %v5092, 3
        %vm5094 = vcmp.lt.s32.totalorder %v5093, 2
        %vm5095 = vcmp.eq.s32.totalorder %v5093, 0
        %v5096 = vxor.u32 %v5090, 2147483648
        %v5097 = vsel %vm5095, %v5089, %v5096
        %vm5098 = vcmp.eq.s32.totalorder %v5093, 2
        %v5099 = vxor.u32 %v5089, 2147483648
        %v5100 = vsel %vm5098, %v5099, %v5090
        %v5101 = vsel %vm5094, %v5097, %v5100
        %v5102 = vsel %vm5091, nan, %v5101
        %v5103 = vand.u32 2147483647, %v507
        %vm5104 = vcmp.le.f32.partialorder %v5103, 0.7853982
        %vm5105 = vcmp.lt.s32.totalorder %v507, 0
        %v5106 = vand.u32 %v507, 2139095040
        %v5107 = vshrl.u32 %v5106, 23
        %v5108 = vsub.s32 %v5107, 127
        %v5109 = vand.u32 2147483647, %v507
        %v5110 = vand.u32 %v5109, 8388607
        %v5111 = vor.u32 %v5110, 8388608
        %v5112 = vsub.s32 0, %v5111
        %v5113 = vadd.s32 %v5108, 1
        %vm5114 = vcmp.gt.s32.totalorder %v5113, 0
        %v5115 = vsel %vm5114, %v5113, 0
        %v5116 = vshrl.u32 %v5115, 5
        %v5117 = vand.u32 %v5115, 31
        %v5118 = vsub.s32 32, %v5117
        %v5119 = vshrl.u32 683565275, %v5118
        %v5120 = vshll.u32 683565275, %v5117
        %v5121 = vshrl.u32 2475754826, %v5118
        %v5122 = vor.u32 %v5120, %v5121
        %v5123 = vshll.u32 2475754826, %v5117
        %v5124 = vshrl.u32 2131351028, %v5118
        %v5125 = vor.u32 %v5123, %v5124
        %v5126 = vshll.u32 2131351028, %v5117
        %v5127 = vshrl.u32 2102212464, %v5118
        %v5128 = vor.u32 %v5126, %v5127
        %v5129 = vshll.u32 2102212464, %v5117
        %v5130 = vshrl.u32 920167782, %v5118
        %v5131 = vor.u32 %v5129, %v5130
        %v5132 = vshll.u32 920167782, %v5117
        %v5133 = vshrl.u32 1326507024, %v5118
        %v5134 = vor.u32 %v5132, %v5133
        %vm5135 = vcmp.lt.s32.totalorder %v5116, 1
        %vm5136 = vcmp.lt.s32.totalorder %v5116, 2
        %vm5137 = vcmp.lt.s32.totalorder %v5116, 3
        %vm5138 = vcmp.lt.s32.totalorder %v5116, 4
        %v5139 = vsel %vm5135, %v5119, %v5122
        %v5140 = vsel %vm5138, %v5128, 2102212464
        %v5141 = vsel %vm5137, %v5125, %v5140
        %v5142 = vsel %vm5136, %v5139, %v5141
        %v5143 = vsel %vm5135, %v5122, %v5125
        %v5144 = vsel %vm5138, %v5131, 920167782
        %v5145 = vsel %vm5137, %v5128, %v5144
        %v5146 = vsel %vm5136, %v5143, %v5145
        %v5147 = vsel %vm5135, %v5125, %v5128
        %v5148 = vsel %vm5138, %v5134, 1326507024
        %v5149 = vsel %vm5137, %v5131, %v5148
        %v5150 = vsel %vm5136, %v5147, %v5149
        %v5151 = vshll.u32 %v5111, 8
        %v5152 = vmul.u32.u64.compose %v5151, %v5150
        %v5153 = vextract.low.u32 %v5152
        %v5154 = vextract.high.u32 %v5152
        %v5155 = vmul.u32.u64.compose %v5151, %v5146
        %v5156 = vextract.low.u32 %v5155
        %v5157 = vextract.high.u32 %v5155
        %v5158 = vmul.u32 %v5151, %v5142
        %v5159 = vadd.s32 %v5154, %v5156
        %vm5160 = vc.u32 %v5154, %v5156
        %v5161 = vadd.s32 %v5157, 1
        %v5162 = vsel %vm5160, %v5161, %v5157
        %v5163 = vadd.s32 %v5158, %v5162
        %v5164 = vadd.s32 %v5163, 536870912
        %v5165 = vshrl.u32 %v5164, 30
        %v5166 = vshll.u32 %v5165, 30
        %v5167 = vsub.s32 %v5163, %v5166
        %vm5168 = vcmp.lt.s32.totalorder %v5167, 0
        %v5169 = vsub.s32 0, %v5167
        %v5170 = vsel %vm5168, %v5169, %v5167
        %v5171 = vclz %v5170
        %v5172 = vsub.s32 %v5171, 2
        %vm5173 = vcmp.gt.s32.totalorder 0, %v5172
        %v5174 = vsel %vm5173, 0, %v5172
        %v5175 = vsub.s32 32, %v5174
        %v5176 = vshll.u32 %v5167, %v5174
        %v5177 = vshrl.u32 %v5159, %v5175
        %v5178 = vor.u32 %v5176, %v5177
        %v5179 = vsub.s32 4294967266, %v5174
        %v5180 = vadd.s32 %v5179, 127
        %v5181 = vshll.u32 %v5180, 23
        %v5182 = vor.u32 4788187, %v5181
        %v5183 = vand.u32 2147483647, %v5182
        %v5185 = vcvt.s32.f32 %v5178
        %v5186 = vmul.f32 %v5185, %v5183
        %v5187 = vxor.u32 %v5186, 2147483648
        %v5188 = vsel %vm5105, %v5187, %v5186
        %v5189 = vsub.s32 4, %v5165
        %v5190 = vsel %vm5105, %v5189, %v5165
        %v5191 = vsel %vm5104, %v507, %v5188
        %v5192 = vsel %vm5104, 0, %v5190
        %v5193 = vcosq.f32.pop %v5191
        %v5194 = vsinq.f32.pop %v5191
        %vm5195 = vweird.f32 %v507
        %v5196 = vadd.s32 %v5192, 3
        %v5197 = vand.u32 %v5196, 3
        %vm5198 = vcmp.lt.s32.totalorder %v5197, 2
        %vm5199 = vcmp.eq.s32.totalorder %v5197, 0
        %v5200 = vxor.u32 %v5194, 2147483648
        %v5201 = vsel %vm5199, %v5193, %v5200
        %vm5202 = vcmp.eq.s32.totalorder %v5197, 2
        %v5203 = vxor.u32 %v5193, 2147483648
        %v5204 = vsel %vm5202, %v5203, %v5194
        %v5205 = vsel %vm5198, %v5201, %v5204
        %v5206 = vsel %vm5195, nan, %v5205
        %v5207 = vand.u32 2147483647, %v508
        %vm5208 = vcmp.le.f32.partialorder %v5207, 0.7853982
        %vm5209 = vcmp.lt.s32.totalorder %v508, 0
        %v5210 = vand.u32 %v508, 2139095040
        %v5211 = vshrl.u32 %v5210, 23
        %v5212 = vsub.s32 %v5211, 127
        %v5213 = vand.u32 2147483647, %v508
        %v5214 = vand.u32 %v5213, 8388607
        %v5215 = vor.u32 %v5214, 8388608
        %v5216 = vsub.s32 0, %v5215
        %v5217 = vadd.s32 %v5212, 1
        %vm5218 = vcmp.gt.s32.totalorder %v5217, 0
        %v5219 = vsel %vm5218, %v5217, 0
        %v5220 = vshrl.u32 %v5219, 5
        %v5221 = vand.u32 %v5219, 31
        %v5222 = vsub.s32 32, %v5221
        %v5223 = vshrl.u32 683565275, %v5222
        %v5224 = vshll.u32 683565275, %v5221
        %v5225 = vshrl.u32 2475754826, %v5222
        %v5226 = vor.u32 %v5224, %v5225
        %v5227 = vshll.u32 2475754826, %v5221
        %v5228 = vshrl.u32 2131351028, %v5222
        %v5229 = vor.u32 %v5227, %v5228
        %v5230 = vshll.u32 2131351028, %v5221
        %v5231 = vshrl.u32 2102212464, %v5222
        %v5232 = vor.u32 %v5230, %v5231
        %v5233 = vshll.u32 2102212464, %v5221
        %v5234 = vshrl.u32 920167782, %v5222
        %v5235 = vor.u32 %v5233, %v5234
        %v5236 = vshll.u32 920167782, %v5221
        %v5237 = vshrl.u32 1326507024, %v5222
        %v5238 = vor.u32 %v5236, %v5237
        %vm5239 = vcmp.lt.s32.totalorder %v5220, 1
        %vm5240 = vcmp.lt.s32.totalorder %v5220, 2
        %vm5241 = vcmp.lt.s32.totalorder %v5220, 3
        %vm5242 = vcmp.lt.s32.totalorder %v5220, 4
        %v5243 = vsel %vm5239, %v5223, %v5226
        %v5244 = vsel %vm5242, %v5232, 2102212464
        %v5245 = vsel %vm5241, %v5229, %v5244
        %v5246 = vsel %vm5240, %v5243, %v5245
        %v5247 = vsel %vm5239, %v5226, %v5229
        %v5248 = vsel %vm5242, %v5235, 920167782
        %v5249 = vsel %vm5241, %v5232, %v5248
        %v5250 = vsel %vm5240, %v5247, %v5249
        %v5251 = vsel %vm5239, %v5229, %v5232
        %v5252 = vsel %vm5242, %v5238, 1326507024
        %v5253 = vsel %vm5241, %v5235, %v5252
        %v5254 = vsel %vm5240, %v5251, %v5253
        %v5255 = vshll.u32 %v5215, 8
        %v5256 = vmul.u32.u64.compose %v5255, %v5254
        %v5257 = vextract.low.u32 %v5256
        %v5258 = vextract.high.u32 %v5256
        %v5259 = vmul.u32.u64.compose %v5255, %v5250
        %v5260 = vextract.low.u32 %v5259
        %v5261 = vextract.high.u32 %v5259
        %v5262 = vmul.u32 %v5255, %v5246
        %v5263 = vadd.s32 %v5258, %v5260
        %vm5264 = vc.u32 %v5258, %v5260
        %v5265 = vadd.s32 %v5261, 1
        %v5266 = vsel %vm5264, %v5265, %v5261
        %v5267 = vadd.s32 %v5262, %v5266
        %v5268 = vadd.s32 %v5267, 536870912
        %v5269 = vshrl.u32 %v5268, 30
        %v5270 = vshll.u32 %v5269, 30
        %v5271 = vsub.s32 %v5267, %v5270
        %vm5272 = vcmp.lt.s32.totalorder %v5271, 0
        %v5273 = vsub.s32 0, %v5271
        %v5274 = vsel %vm5272, %v5273, %v5271
        %v5275 = vclz %v5274
        %v5276 = vsub.s32 %v5275, 2
        %vm5277 = vcmp.gt.s32.totalorder 0, %v5276
        %v5278 = vsel %vm5277, 0, %v5276
        %v5279 = vsub.s32 32, %v5278
        %v5280 = vshll.u32 %v5271, %v5278
        %v5281 = vshrl.u32 %v5263, %v5279
        %v5282 = vor.u32 %v5280, %v5281
        %v5283 = vsub.s32 4294967266, %v5278
        %v5284 = vadd.s32 %v5283, 127
        %v5285 = vshll.u32 %v5284, 23
        %v5286 = vor.u32 4788187, %v5285
        %v5287 = vand.u32 2147483647, %v5286
        %v5289 = vcvt.s32.f32 %v5282
        %v5290 = vmul.f32 %v5289, %v5287
        %v5291 = vxor.u32 %v5290, 2147483648
        %v5292 = vsel %vm5209, %v5291, %v5290
        %v5293 = vsub.s32 4, %v5269
        %v5294 = vsel %vm5209, %v5293, %v5269
        %v5295 = vsel %vm5208, %v508, %v5292
        %v5296 = vsel %vm5208, 0, %v5294
        %v5297 = vcosq.f32.pop %v5295
        %v5298 = vsinq.f32.pop %v5295
        %vm5299 = vweird.f32 %v508
        %v5300 = vadd.s32 %v5296, 3
        %v5301 = vand.u32 %v5300, 3
        %vm5302 = vcmp.lt.s32.totalorder %v5301, 2
        %vm5303 = vcmp.eq.s32.totalorder %v5301, 0
        %v5304 = vxor.u32 %v5298, 2147483648
        %v5305 = vsel %vm5303, %v5297, %v5304
        %vm5306 = vcmp.eq.s32.totalorder %v5301, 2
        %v5307 = vxor.u32 %v5297, 2147483648
        %v5308 = vsel %vm5306, %v5307, %v5298
        %v5309 = vsel %vm5302, %v5305, %v5308
        %v5310 = vsel %vm5299, nan, %v5309
        %v5311 = vand.u32 2147483647, %v509
        %vm5312 = vcmp.le.f32.partialorder %v5311, 0.7853982
        %vm5313 = vcmp.lt.s32.totalorder %v509, 0
        %v5314 = vand.u32 %v509, 2139095040
        %v5315 = vshrl.u32 %v5314, 23
        %v5316 = vsub.s32 %v5315, 127
        %v5317 = vand.u32 2147483647, %v509
        %v5318 = vand.u32 %v5317, 8388607
        %v5319 = vor.u32 %v5318, 8388608
        %v5320 = vsub.s32 0, %v5319
        %v5321 = vadd.s32 %v5316, 1
        %vm5322 = vcmp.gt.s32.totalorder %v5321, 0
        %v5323 = vsel %vm5322, %v5321, 0
        %v5324 = vshrl.u32 %v5323, 5
        %v5325 = vand.u32 %v5323, 31
        %v5326 = vsub.s32 32, %v5325
        %v5327 = vshrl.u32 683565275, %v5326
        %v5328 = vshll.u32 683565275, %v5325
        %v5329 = vshrl.u32 2475754826, %v5326
        %v5330 = vor.u32 %v5328, %v5329
        %v5331 = vshll.u32 2475754826, %v5325
        %v5332 = vshrl.u32 2131351028, %v5326
        %v5333 = vor.u32 %v5331, %v5332
        %v5334 = vshll.u32 2131351028, %v5325
        %v5335 = vshrl.u32 2102212464, %v5326
        %v5336 = vor.u32 %v5334, %v5335
        %v5337 = vshll.u32 2102212464, %v5325
        %v5338 = vshrl.u32 920167782, %v5326
        %v5339 = vor.u32 %v5337, %v5338
        %v5340 = vshll.u32 920167782, %v5325
        %v5341 = vshrl.u32 1326507024, %v5326
        %v5342 = vor.u32 %v5340, %v5341
        %vm5343 = vcmp.lt.s32.totalorder %v5324, 1
        %vm5344 = vcmp.lt.s32.totalorder %v5324, 2
        %vm5345 = vcmp.lt.s32.totalorder %v5324, 3
        %vm5346 = vcmp.lt.s32.totalorder %v5324, 4
        %v5347 = vsel %vm5343, %v5327, %v5330
        %v5348 = vsel %vm5346, %v5336, 2102212464
        %v5349 = vsel %vm5345, %v5333, %v5348
        %v5350 = vsel %vm5344, %v5347, %v5349
        %v5351 = vsel %vm5343, %v5330, %v5333
        %v5352 = vsel %vm5346, %v5339, 920167782
        %v5353 = vsel %vm5345, %v5336, %v5352
        %v5354 = vsel %vm5344, %v5351, %v5353
        %v5355 = vsel %vm5343, %v5333, %v5336
        %v5356 = vsel %vm5346, %v5342, 1326507024
        %v5357 = vsel %vm5345, %v5339, %v5356
        %v5358 = vsel %vm5344, %v5355, %v5357
        %v5359 = vshll.u32 %v5319, 8
        %v5360 = vmul.u32.u64.compose %v5359, %v5358
        %v5361 = vextract.low.u32 %v5360
        %v5362 = vextract.high.u32 %v5360
        %v5363 = vmul.u32.u64.compose %v5359, %v5354
        %v5364 = vextract.low.u32 %v5363
        %v5365 = vextract.high.u32 %v5363
        %v5366 = vmul.u32 %v5359, %v5350
        %v5367 = vadd.s32 %v5362, %v5364
        %vm5368 = vc.u32 %v5362, %v5364
        %v5369 = vadd.s32 %v5365, 1
        %v5370 = vsel %vm5368, %v5369, %v5365
        %v5371 = vadd.s32 %v5366, %v5370
        %v5372 = vadd.s32 %v5371, 536870912
        %v5373 = vshrl.u32 %v5372, 30
        %v5374 = vshll.u32 %v5373, 30
        %v5375 = vsub.s32 %v5371, %v5374
        %vm5376 = vcmp.lt.s32.totalorder %v5375, 0
        %v5377 = vsub.s32 0, %v5375
        %v5378 = vsel %vm5376, %v5377, %v5375
        %v5379 = vclz %v5378
        %v5380 = vsub.s32 %v5379, 2
        %vm5381 = vcmp.gt.s32.totalorder 0, %v5380
        %v5382 = vsel %vm5381, 0, %v5380
        %v5383 = vsub.s32 32, %v5382
        %v5384 = vshll.u32 %v5375, %v5382
        %v5385 = vshrl.u32 %v5367, %v5383
        %v5386 = vor.u32 %v5384, %v5385
        %v5387 = vsub.s32 4294967266, %v5382
        %v5388 = vadd.s32 %v5387, 127
        %v5389 = vshll.u32 %v5388, 23
        %v5390 = vor.u32 4788187, %v5389
        %v5391 = vand.u32 2147483647, %v5390
        %v5393 = vcvt.s32.f32 %v5386
        %v5394 = vmul.f32 %v5393, %v5391
        %v5395 = vxor.u32 %v5394, 2147483648
        %v5396 = vsel %vm5313, %v5395, %v5394
        %v5397 = vsub.s32 4, %v5373
        %v5398 = vsel %vm5313, %v5397, %v5373
        %v5399 = vsel %vm5312, %v509, %v5396
        %v5400 = vsel %vm5312, 0, %v5398
        %v5401 = vcosq.f32.pop %v5399
        %v5402 = vsinq.f32.pop %v5399
        %vm5403 = vweird.f32 %v509
        %v5404 = vadd.s32 %v5400, 3
        %v5405 = vand.u32 %v5404, 3
        %vm5406 = vcmp.lt.s32.totalorder %v5405, 2
        %vm5407 = vcmp.eq.s32.totalorder %v5405, 0
        %v5408 = vxor.u32 %v5402, 2147483648
        %v5409 = vsel %vm5407, %v5401, %v5408
        %vm5410 = vcmp.eq.s32.totalorder %v5405, 2
        %v5411 = vxor.u32 %v5401, 2147483648
        %v5412 = vsel %vm5410, %v5411, %v5402
        %v5413 = vsel %vm5406, %v5409, %v5412
        %v5414 = vsel %vm5403, nan, %v5413
        %v5415 = vand.u32 2147483647, %v510
        %vm5416 = vcmp.le.f32.partialorder %v5415, 0.7853982
        %vm5417 = vcmp.lt.s32.totalorder %v510, 0
        %v5418 = vand.u32 %v510, 2139095040
        %v5419 = vshrl.u32 %v5418, 23
        %v5420 = vsub.s32 %v5419, 127
        %v5421 = vand.u32 2147483647, %v510
        %v5422 = vand.u32 %v5421, 8388607
        %v5423 = vor.u32 %v5422, 8388608
        %v5424 = vsub.s32 0, %v5423
        %v5425 = vadd.s32 %v5420, 1
        %vm5426 = vcmp.gt.s32.totalorder %v5425, 0
        %v5427 = vsel %vm5426, %v5425, 0
        %v5428 = vshrl.u32 %v5427, 5
        %v5429 = vand.u32 %v5427, 31
        %v5430 = vsub.s32 32, %v5429
        %v5431 = vshrl.u32 683565275, %v5430
        %v5432 = vshll.u32 683565275, %v5429
        %v5433 = vshrl.u32 2475754826, %v5430
        %v5434 = vor.u32 %v5432, %v5433
        %v5435 = vshll.u32 2475754826, %v5429
        %v5436 = vshrl.u32 2131351028, %v5430
        %v5437 = vor.u32 %v5435, %v5436
        %v5438 = vshll.u32 2131351028, %v5429
        %v5439 = vshrl.u32 2102212464, %v5430
        %v5440 = vor.u32 %v5438, %v5439
        %v5441 = vshll.u32 2102212464, %v5429
        %v5442 = vshrl.u32 920167782, %v5430
        %v5443 = vor.u32 %v5441, %v5442
        %v5444 = vshll.u32 920167782, %v5429
        %v5445 = vshrl.u32 1326507024, %v5430
        %v5446 = vor.u32 %v5444, %v5445
        %vm5447 = vcmp.lt.s32.totalorder %v5428, 1
        %vm5448 = vcmp.lt.s32.totalorder %v5428, 2
        %vm5449 = vcmp.lt.s32.totalorder %v5428, 3
        %vm5450 = vcmp.lt.s32.totalorder %v5428, 4
        %v5451 = vsel %vm5447, %v5431, %v5434
        %v5452 = vsel %vm5450, %v5440, 2102212464
        %v5453 = vsel %vm5449, %v5437, %v5452
        %v5454 = vsel %vm5448, %v5451, %v5453
        %v5455 = vsel %vm5447, %v5434, %v5437
        %v5456 = vsel %vm5450, %v5443, 920167782
        %v5457 = vsel %vm5449, %v5440, %v5456
        %v5458 = vsel %vm5448, %v5455, %v5457
        %v5459 = vsel %vm5447, %v5437, %v5440
        %v5460 = vsel %vm5450, %v5446, 1326507024
        %v5461 = vsel %vm5449, %v5443, %v5460
        %v5462 = vsel %vm5448, %v5459, %v5461
        %v5463 = vshll.u32 %v5423, 8
        %v5464 = vmul.u32.u64.compose %v5463, %v5462
        %v5465 = vextract.low.u32 %v5464
        %v5466 = vextract.high.u32 %v5464
        %v5467 = vmul.u32.u64.compose %v5463, %v5458
        %v5468 = vextract.low.u32 %v5467
        %v5469 = vextract.high.u32 %v5467
        %v5470 = vmul.u32 %v5463, %v5454
        %v5471 = vadd.s32 %v5466, %v5468
        %vm5472 = vc.u32 %v5466, %v5468
        %v5473 = vadd.s32 %v5469, 1
        %v5474 = vsel %vm5472, %v5473, %v5469
        %v5475 = vadd.s32 %v5470, %v5474
        %v5476 = vadd.s32 %v5475, 536870912
        %v5477 = vshrl.u32 %v5476, 30
        %v5478 = vshll.u32 %v5477, 30
        %v5479 = vsub.s32 %v5475, %v5478
        %vm5480 = vcmp.lt.s32.totalorder %v5479, 0
        %v5481 = vsub.s32 0, %v5479
        %v5482 = vsel %vm5480, %v5481, %v5479
        %v5483 = vclz %v5482
        %v5484 = vsub.s32 %v5483, 2
        %vm5485 = vcmp.gt.s32.totalorder 0, %v5484
        %v5486 = vsel %vm5485, 0, %v5484
        %v5487 = vsub.s32 32, %v5486
        %v5488 = vshll.u32 %v5479, %v5486
        %v5489 = vshrl.u32 %v5471, %v5487
        %v5490 = vor.u32 %v5488, %v5489
        %v5491 = vsub.s32 4294967266, %v5486
        %v5492 = vadd.s32 %v5491, 127
        %v5493 = vshll.u32 %v5492, 23
        %v5494 = vor.u32 4788187, %v5493
        %v5495 = vand.u32 2147483647, %v5494
        %v5497 = vcvt.s32.f32 %v5490
        %v5498 = vmul.f32 %v5497, %v5495
        %v5499 = vxor.u32 %v5498, 2147483648
        %v5500 = vsel %vm5417, %v5499, %v5498
        %v5501 = vsub.s32 4, %v5477
        %v5502 = vsel %vm5417, %v5501, %v5477
        %v5503 = vsel %vm5416, %v510, %v5500
        %v5504 = vsel %vm5416, 0, %v5502
        %v5505 = vcosq.f32.pop %v5503
        %v5506 = vsinq.f32.pop %v5503
        %vm5507 = vweird.f32 %v510
        %v5508 = vadd.s32 %v5504, 3
        %v5509 = vand.u32 %v5508, 3
        %vm5510 = vcmp.lt.s32.totalorder %v5509, 2
        %vm5511 = vcmp.eq.s32.totalorder %v5509, 0
        %v5512 = vxor.u32 %v5506, 2147483648
        %v5513 = vsel %vm5511, %v5505, %v5512
        %vm5514 = vcmp.eq.s32.totalorder %v5509, 2
        %v5515 = vxor.u32 %v5505, 2147483648
        %v5516 = vsel %vm5514, %v5515, %v5506
        %v5517 = vsel %vm5510, %v5513, %v5516
        %v5518 = vsel %vm5507, nan, %v5517
        %v5519 = vand.u32 2147483647, %v511
        %vm5520 = vcmp.le.f32.partialorder %v5519, 0.7853982
        %vm5521 = vcmp.lt.s32.totalorder %v511, 0
        %v5522 = vand.u32 %v511, 2139095040
        %v5523 = vshrl.u32 %v5522, 23
        %v5524 = vsub.s32 %v5523, 127
        %v5525 = vand.u32 2147483647, %v511
        %v5526 = vand.u32 %v5525, 8388607
        %v5527 = vor.u32 %v5526, 8388608
        %v5528 = vsub.s32 0, %v5527
        %v5529 = vadd.s32 %v5524, 1
        %vm5530 = vcmp.gt.s32.totalorder %v5529, 0
        %v5531 = vsel %vm5530, %v5529, 0
        %v5532 = vshrl.u32 %v5531, 5
        %v5533 = vand.u32 %v5531, 31
        %v5534 = vsub.s32 32, %v5533
        %v5535 = vshrl.u32 683565275, %v5534
        %v5536 = vshll.u32 683565275, %v5533
        %v5537 = vshrl.u32 2475754826, %v5534
        %v5538 = vor.u32 %v5536, %v5537
        %v5539 = vshll.u32 2475754826, %v5533
        %v5540 = vshrl.u32 2131351028, %v5534
        %v5541 = vor.u32 %v5539, %v5540
        %v5542 = vshll.u32 2131351028, %v5533
        %v5543 = vshrl.u32 2102212464, %v5534
        %v5544 = vor.u32 %v5542, %v5543
        %v5545 = vshll.u32 2102212464, %v5533
        %v5546 = vshrl.u32 920167782, %v5534
        %v5547 = vor.u32 %v5545, %v5546
        %v5548 = vshll.u32 920167782, %v5533
        %v5549 = vshrl.u32 1326507024, %v5534
        %v5550 = vor.u32 %v5548, %v5549
        %vm5551 = vcmp.lt.s32.totalorder %v5532, 1
        %vm5552 = vcmp.lt.s32.totalorder %v5532, 2
        %vm5553 = vcmp.lt.s32.totalorder %v5532, 3
        %vm5554 = vcmp.lt.s32.totalorder %v5532, 4
        %v5555 = vsel %vm5551, %v5535, %v5538
        %v5556 = vsel %vm5554, %v5544, 2102212464
        %v5557 = vsel %vm5553, %v5541, %v5556
        %v5558 = vsel %vm5552, %v5555, %v5557
        %v5559 = vsel %vm5551, %v5538, %v5541
        %v5560 = vsel %vm5554, %v5547, 920167782
        %v5561 = vsel %vm5553, %v5544, %v5560
        %v5562 = vsel %vm5552, %v5559, %v5561
        %v5563 = vsel %vm5551, %v5541, %v5544
        %v5564 = vsel %vm5554, %v5550, 1326507024
        %v5565 = vsel %vm5553, %v5547, %v5564
        %v5566 = vsel %vm5552, %v5563, %v5565
        %v5567 = vshll.u32 %v5527, 8
        %v5568 = vmul.u32.u64.compose %v5567, %v5566
        %v5569 = vextract.low.u32 %v5568
        %v5570 = vextract.high.u32 %v5568
        %v5571 = vmul.u32.u64.compose %v5567, %v5562
        %v5572 = vextract.low.u32 %v5571
        %v5573 = vextract.high.u32 %v5571
        %v5574 = vmul.u32 %v5567, %v5558
        %v5575 = vadd.s32 %v5570, %v5572
        %vm5576 = vc.u32 %v5570, %v5572
        %v5577 = vadd.s32 %v5573, 1
        %v5578 = vsel %vm5576, %v5577, %v5573
        %v5579 = vadd.s32 %v5574, %v5578
        %v5580 = vadd.s32 %v5579, 536870912
        %v5581 = vshrl.u32 %v5580, 30
        %v5582 = vshll.u32 %v5581, 30
        %v5583 = vsub.s32 %v5579, %v5582
        %vm5584 = vcmp.lt.s32.totalorder %v5583, 0
        %v5585 = vsub.s32 0, %v5583
        %v5586 = vsel %vm5584, %v5585, %v5583
        %v5587 = vclz %v5586
        %v5588 = vsub.s32 %v5587, 2
        %vm5589 = vcmp.gt.s32.totalorder 0, %v5588
        %v5590 = vsel %vm5589, 0, %v5588
        %v5591 = vsub.s32 32, %v5590
        %v5592 = vshll.u32 %v5583, %v5590
        %v5593 = vshrl.u32 %v5575, %v5591
        %v5594 = vor.u32 %v5592, %v5593
        %v5595 = vsub.s32 4294967266, %v5590
        %v5596 = vadd.s32 %v5595, 127
        %v5597 = vshll.u32 %v5596, 23
        %v5598 = vor.u32 4788187, %v5597
        %v5599 = vand.u32 2147483647, %v5598
        %v5601 = vcvt.s32.f32 %v5594
        %v5602 = vmul.f32 %v5601, %v5599
        %v5603 = vxor.u32 %v5602, 2147483648
        %v5604 = vsel %vm5521, %v5603, %v5602
        %v5605 = vsub.s32 4, %v5581
        %v5606 = vsel %vm5521, %v5605, %v5581
        %v5607 = vsel %vm5520, %v511, %v5604
        %v5608 = vsel %vm5520, 0, %v5606
        %v5609 = vcosq.f32.pop %v5607
        %v5610 = vsinq.f32.pop %v5607
        %vm5611 = vweird.f32 %v511
        %v5612 = vadd.s32 %v5608, 3
        %v5613 = vand.u32 %v5612, 3
        %vm5614 = vcmp.lt.s32.totalorder %v5613, 2
        %vm5615 = vcmp.eq.s32.totalorder %v5613, 0
        %v5616 = vxor.u32 %v5610, 2147483648
        %v5617 = vsel %vm5615, %v5609, %v5616
        %vm5618 = vcmp.eq.s32.totalorder %v5613, 2
        %v5619 = vxor.u32 %v5609, 2147483648
        %v5620 = vsel %vm5618, %v5619, %v5610
        %v5621 = vsel %vm5614, %v5617, %v5620
        %v5622 = vsel %vm5611, nan, %v5621
        %v5623 = vand.u32 2147483647, %v512
        %vm5624 = vcmp.le.f32.partialorder %v5623, 0.7853982
        %vm5625 = vcmp.lt.s32.totalorder %v512, 0
        %v5626 = vand.u32 %v512, 2139095040
        %v5627 = vshrl.u32 %v5626, 23
        %v5628 = vsub.s32 %v5627, 127
        %v5629 = vand.u32 2147483647, %v512
        %v5630 = vand.u32 %v5629, 8388607
        %v5631 = vor.u32 %v5630, 8388608
        %v5632 = vsub.s32 0, %v5631
        %v5633 = vadd.s32 %v5628, 1
        %vm5634 = vcmp.gt.s32.totalorder %v5633, 0
        %v5635 = vsel %vm5634, %v5633, 0
        %v5636 = vshrl.u32 %v5635, 5
        %v5637 = vand.u32 %v5635, 31
        %v5638 = vsub.s32 32, %v5637
        %v5639 = vshrl.u32 683565275, %v5638
        %v5640 = vshll.u32 683565275, %v5637
        %v5641 = vshrl.u32 2475754826, %v5638
        %v5642 = vor.u32 %v5640, %v5641
        %v5643 = vshll.u32 2475754826, %v5637
        %v5644 = vshrl.u32 2131351028, %v5638
        %v5645 = vor.u32 %v5643, %v5644
        %v5646 = vshll.u32 2131351028, %v5637
        %v5647 = vshrl.u32 2102212464, %v5638
        %v5648 = vor.u32 %v5646, %v5647
        %v5649 = vshll.u32 2102212464, %v5637
        %v5650 = vshrl.u32 920167782, %v5638
        %v5651 = vor.u32 %v5649, %v5650
        %v5652 = vshll.u32 920167782, %v5637
        %v5653 = vshrl.u32 1326507024, %v5638
        %v5654 = vor.u32 %v5652, %v5653
        %vm5655 = vcmp.lt.s32.totalorder %v5636, 1
        %vm5656 = vcmp.lt.s32.totalorder %v5636, 2
        %vm5657 = vcmp.lt.s32.totalorder %v5636, 3
        %vm5658 = vcmp.lt.s32.totalorder %v5636, 4
        %v5659 = vsel %vm5655, %v5639, %v5642
        %v5660 = vsel %vm5658, %v5648, 2102212464
        %v5661 = vsel %vm5657, %v5645, %v5660
        %v5662 = vsel %vm5656, %v5659, %v5661
        %v5663 = vsel %vm5655, %v5642, %v5645
        %v5664 = vsel %vm5658, %v5651, 920167782
        %v5665 = vsel %vm5657, %v5648, %v5664
        %v5666 = vsel %vm5656, %v5663, %v5665
        %v5667 = vsel %vm5655, %v5645, %v5648
        %v5668 = vsel %vm5658, %v5654, 1326507024
        %v5669 = vsel %vm5657, %v5651, %v5668
        %v5670 = vsel %vm5656, %v5667, %v5669
        %v5671 = vshll.u32 %v5631, 8
        %v5672 = vmul.u32.u64.compose %v5671, %v5670
        %v5673 = vextract.low.u32 %v5672
        %v5674 = vextract.high.u32 %v5672
        %v5675 = vmul.u32.u64.compose %v5671, %v5666
        %v5676 = vextract.low.u32 %v5675
        %v5677 = vextract.high.u32 %v5675
        %v5678 = vmul.u32 %v5671, %v5662
        %v5679 = vadd.s32 %v5674, %v5676
        %vm5680 = vc.u32 %v5674, %v5676
        %v5681 = vadd.s32 %v5677, 1
        %v5682 = vsel %vm5680, %v5681, %v5677
        %v5683 = vadd.s32 %v5678, %v5682
        %v5684 = vadd.s32 %v5683, 536870912
        %v5685 = vshrl.u32 %v5684, 30
        %v5686 = vshll.u32 %v5685, 30
        %v5687 = vsub.s32 %v5683, %v5686
        %vm5688 = vcmp.lt.s32.totalorder %v5687, 0
        %v5689 = vsub.s32 0, %v5687
        %v5690 = vsel %vm5688, %v5689, %v5687
        %v5691 = vclz %v5690
        %v5692 = vsub.s32 %v5691, 2
        %vm5693 = vcmp.gt.s32.totalorder 0, %v5692
        %v5694 = vsel %vm5693, 0, %v5692
        %v5695 = vsub.s32 32, %v5694
        %v5696 = vshll.u32 %v5687, %v5694
        %v5697 = vshrl.u32 %v5679, %v5695
        %v5698 = vor.u32 %v5696, %v5697
        %v5699 = vsub.s32 4294967266, %v5694
        %v5700 = vadd.s32 %v5699, 127
        %v5701 = vshll.u32 %v5700, 23
        %v5702 = vor.u32 4788187, %v5701
        %v5703 = vand.u32 2147483647, %v5702
        %v5705 = vcvt.s32.f32 %v5698
        %v5706 = vmul.f32 %v5705, %v5703
        %v5707 = vxor.u32 %v5706, 2147483648
        %v5708 = vsel %vm5625, %v5707, %v5706
        %v5709 = vsub.s32 4, %v5685
        %v5710 = vsel %vm5625, %v5709, %v5685
        %v5711 = vsel %vm5624, %v512, %v5708
        %v5712 = vsel %vm5624, 0, %v5710
        %v5713 = vcosq.f32.pop %v5711
        %v5714 = vsinq.f32.pop %v5711
        %vm5715 = vweird.f32 %v512
        %v5716 = vadd.s32 %v5712, 3
        %v5717 = vand.u32 %v5716, 3
        %vm5718 = vcmp.lt.s32.totalorder %v5717, 2
        %vm5719 = vcmp.eq.s32.totalorder %v5717, 0
        %v5720 = vxor.u32 %v5714, 2147483648
        %v5721 = vsel %vm5719, %v5713, %v5720
        %vm5722 = vcmp.eq.s32.totalorder %v5717, 2
        %v5723 = vxor.u32 %v5713, 2147483648
        %v5724 = vsel %vm5722, %v5723, %v5714
        %v5725 = vsel %vm5718, %v5721, %v5724
        %v5726 = vsel %vm5715, nan, %v5725
        %v5727 = vand.u32 2147483647, %v513
        %vm5728 = vcmp.le.f32.partialorder %v5727, 0.7853982
        %vm5729 = vcmp.lt.s32.totalorder %v513, 0
        %v5730 = vand.u32 %v513, 2139095040
        %v5731 = vshrl.u32 %v5730, 23
        %v5732 = vsub.s32 %v5731, 127
        %v5733 = vand.u32 2147483647, %v513
        %v5734 = vand.u32 %v5733, 8388607
        %v5735 = vor.u32 %v5734, 8388608
        %v5736 = vsub.s32 0, %v5735
        %v5737 = vadd.s32 %v5732, 1
        %vm5738 = vcmp.gt.s32.totalorder %v5737, 0
        %v5739 = vsel %vm5738, %v5737, 0
        %v5740 = vshrl.u32 %v5739, 5
        %v5741 = vand.u32 %v5739, 31
        %v5742 = vsub.s32 32, %v5741
        %v5743 = vshrl.u32 683565275, %v5742
        %v5744 = vshll.u32 683565275, %v5741
        %v5745 = vshrl.u32 2475754826, %v5742
        %v5746 = vor.u32 %v5744, %v5745
        %v5747 = vshll.u32 2475754826, %v5741
        %v5748 = vshrl.u32 2131351028, %v5742
        %v5749 = vor.u32 %v5747, %v5748
        %v5750 = vshll.u32 2131351028, %v5741
        %v5751 = vshrl.u32 2102212464, %v5742
        %v5752 = vor.u32 %v5750, %v5751
        %v5753 = vshll.u32 2102212464, %v5741
        %v5754 = vshrl.u32 920167782, %v5742
        %v5755 = vor.u32 %v5753, %v5754
        %v5756 = vshll.u32 920167782, %v5741
        %v5757 = vshrl.u32 1326507024, %v5742
        %v5758 = vor.u32 %v5756, %v5757
        %vm5759 = vcmp.lt.s32.totalorder %v5740, 1
        %vm5760 = vcmp.lt.s32.totalorder %v5740, 2
        %vm5761 = vcmp.lt.s32.totalorder %v5740, 3
        %vm5762 = vcmp.lt.s32.totalorder %v5740, 4
        %v5763 = vsel %vm5759, %v5743, %v5746
        %v5764 = vsel %vm5762, %v5752, 2102212464
        %v5765 = vsel %vm5761, %v5749, %v5764
        %v5766 = vsel %vm5760, %v5763, %v5765
        %v5767 = vsel %vm5759, %v5746, %v5749
        %v5768 = vsel %vm5762, %v5755, 920167782
        %v5769 = vsel %vm5761, %v5752, %v5768
        %v5770 = vsel %vm5760, %v5767, %v5769
        %v5771 = vsel %vm5759, %v5749, %v5752
        %v5772 = vsel %vm5762, %v5758, 1326507024
        %v5773 = vsel %vm5761, %v5755, %v5772
        %v5774 = vsel %vm5760, %v5771, %v5773
        %v5775 = vshll.u32 %v5735, 8
        %v5776 = vmul.u32.u64.compose %v5775, %v5774
        %v5777 = vextract.low.u32 %v5776
        %v5778 = vextract.high.u32 %v5776
        %v5779 = vmul.u32.u64.compose %v5775, %v5770
        %v5780 = vextract.low.u32 %v5779
        %v5781 = vextract.high.u32 %v5779
        %v5782 = vmul.u32 %v5775, %v5766
        %v5783 = vadd.s32 %v5778, %v5780
        %vm5784 = vc.u32 %v5778, %v5780
        %v5785 = vadd.s32 %v5781, 1
        %v5786 = vsel %vm5784, %v5785, %v5781
        %v5787 = vadd.s32 %v5782, %v5786
        %v5788 = vadd.s32 %v5787, 536870912
        %v5789 = vshrl.u32 %v5788, 30
        %v5790 = vshll.u32 %v5789, 30
        %v5791 = vsub.s32 %v5787, %v5790
        %vm5792 = vcmp.lt.s32.totalorder %v5791, 0
        %v5793 = vsub.s32 0, %v5791
        %v5794 = vsel %vm5792, %v5793, %v5791
        %v5795 = vclz %v5794
        %v5796 = vsub.s32 %v5795, 2
        %vm5797 = vcmp.gt.s32.totalorder 0, %v5796
        %v5798 = vsel %vm5797, 0, %v5796
        %v5799 = vsub.s32 32, %v5798
        %v5800 = vshll.u32 %v5791, %v5798
        %v5801 = vshrl.u32 %v5783, %v5799
        %v5802 = vor.u32 %v5800, %v5801
        %v5803 = vsub.s32 4294967266, %v5798
        %v5804 = vadd.s32 %v5803, 127
        %v5805 = vshll.u32 %v5804, 23
        %v5806 = vor.u32 4788187, %v5805
        %v5807 = vand.u32 2147483647, %v5806
        %v5809 = vcvt.s32.f32 %v5802
        %v5810 = vmul.f32 %v5809, %v5807
        %v5811 = vxor.u32 %v5810, 2147483648
        %v5812 = vsel %vm5729, %v5811, %v5810
        %v5813 = vsub.s32 4, %v5789
        %v5814 = vsel %vm5729, %v5813, %v5789
        %v5815 = vsel %vm5728, %v513, %v5812
        %v5816 = vsel %vm5728, 0, %v5814
        %v5817 = vcosq.f32.pop %v5815
        %v5818 = vsinq.f32.pop %v5815
        %vm5819 = vweird.f32 %v513
        %v5820 = vadd.s32 %v5816, 3
        %v5821 = vand.u32 %v5820, 3
        %vm5822 = vcmp.lt.s32.totalorder %v5821, 2
        %vm5823 = vcmp.eq.s32.totalorder %v5821, 0
        %v5824 = vxor.u32 %v5818, 2147483648
        %v5825 = vsel %vm5823, %v5817, %v5824
        %vm5826 = vcmp.eq.s32.totalorder %v5821, 2
        %v5827 = vxor.u32 %v5817, 2147483648
        %v5828 = vsel %vm5826, %v5827, %v5818
        %v5829 = vsel %vm5822, %v5825, %v5828
        %v5830 = vsel %vm5819, nan, %v5829
        %v5831 = vand.u32 2147483647, %v514
        %vm5832 = vcmp.le.f32.partialorder %v5831, 0.7853982
        %vm5833 = vcmp.lt.s32.totalorder %v514, 0
        %v5834 = vand.u32 %v514, 2139095040
        %v5835 = vshrl.u32 %v5834, 23
        %v5836 = vsub.s32 %v5835, 127
        %v5837 = vand.u32 2147483647, %v514
        %v5838 = vand.u32 %v5837, 8388607
        %v5839 = vor.u32 %v5838, 8388608
        %v5840 = vsub.s32 0, %v5839
        %v5841 = vadd.s32 %v5836, 1
        %vm5842 = vcmp.gt.s32.totalorder %v5841, 0
        %v5843 = vsel %vm5842, %v5841, 0
        %v5844 = vshrl.u32 %v5843, 5
        %v5845 = vand.u32 %v5843, 31
        %v5846 = vsub.s32 32, %v5845
        %v5847 = vshrl.u32 683565275, %v5846
        %v5848 = vshll.u32 683565275, %v5845
        %v5849 = vshrl.u32 2475754826, %v5846
        %v5850 = vor.u32 %v5848, %v5849
        %v5851 = vshll.u32 2475754826, %v5845
        %v5852 = vshrl.u32 2131351028, %v5846
        %v5853 = vor.u32 %v5851, %v5852
        %v5854 = vshll.u32 2131351028, %v5845
        %v5855 = vshrl.u32 2102212464, %v5846
        %v5856 = vor.u32 %v5854, %v5855
        %v5857 = vshll.u32 2102212464, %v5845
        %v5858 = vshrl.u32 920167782, %v5846
        %v5859 = vor.u32 %v5857, %v5858
        %v5860 = vshll.u32 920167782, %v5845
        %v5861 = vshrl.u32 1326507024, %v5846
        %v5862 = vor.u32 %v5860, %v5861
        %vm5863 = vcmp.lt.s32.totalorder %v5844, 1
        %vm5864 = vcmp.lt.s32.totalorder %v5844, 2
        %vm5865 = vcmp.lt.s32.totalorder %v5844, 3
        %vm5866 = vcmp.lt.s32.totalorder %v5844, 4
        %v5867 = vsel %vm5863, %v5847, %v5850
        %v5868 = vsel %vm5866, %v5856, 2102212464
        %v5869 = vsel %vm5865, %v5853, %v5868
        %v5870 = vsel %vm5864, %v5867, %v5869
        %v5871 = vsel %vm5863, %v5850, %v5853
        %v5872 = vsel %vm5866, %v5859, 920167782
        %v5873 = vsel %vm5865, %v5856, %v5872
        %v5874 = vsel %vm5864, %v5871, %v5873
        %v5875 = vsel %vm5863, %v5853, %v5856
        %v5876 = vsel %vm5866, %v5862, 1326507024
        %v5877 = vsel %vm5865, %v5859, %v5876
        %v5878 = vsel %vm5864, %v5875, %v5877
        %v5879 = vshll.u32 %v5839, 8
        %v5880 = vmul.u32.u64.compose %v5879, %v5878
        %v5881 = vextract.low.u32 %v5880
        %v5882 = vextract.high.u32 %v5880
        %v5883 = vmul.u32.u64.compose %v5879, %v5874
        %v5884 = vextract.low.u32 %v5883
        %v5885 = vextract.high.u32 %v5883
        %v5886 = vmul.u32 %v5879, %v5870
        %v5887 = vadd.s32 %v5882, %v5884
        %vm5888 = vc.u32 %v5882, %v5884
        %v5889 = vadd.s32 %v5885, 1
        %v5890 = vsel %vm5888, %v5889, %v5885
        %v5891 = vadd.s32 %v5886, %v5890
        %v5892 = vadd.s32 %v5891, 536870912
        %v5893 = vshrl.u32 %v5892, 30
        %v5894 = vshll.u32 %v5893, 30
        %v5895 = vsub.s32 %v5891, %v5894
        %vm5896 = vcmp.lt.s32.totalorder %v5895, 0
        %v5897 = vsub.s32 0, %v5895
        %v5898 = vsel %vm5896, %v5897, %v5895
        %v5899 = vclz %v5898
        %v5900 = vsub.s32 %v5899, 2
        %vm5901 = vcmp.gt.s32.totalorder 0, %v5900
        %v5902 = vsel %vm5901, 0, %v5900
        %v5903 = vsub.s32 32, %v5902
        %v5904 = vshll.u32 %v5895, %v5902
        %v5905 = vshrl.u32 %v5887, %v5903
        %v5906 = vor.u32 %v5904, %v5905
        %v5907 = vsub.s32 4294967266, %v5902
        %v5908 = vadd.s32 %v5907, 127
        %v5909 = vshll.u32 %v5908, 23
        %v5910 = vor.u32 4788187, %v5909
        %v5911 = vand.u32 2147483647, %v5910
        %v5913 = vcvt.s32.f32 %v5906
        %v5914 = vmul.f32 %v5913, %v5911
        %v5915 = vxor.u32 %v5914, 2147483648
        %v5916 = vsel %vm5833, %v5915, %v5914
        %v5917 = vsub.s32 4, %v5893
        %v5918 = vsel %vm5833, %v5917, %v5893
        %v5919 = vsel %vm5832, %v514, %v5916
        %v5920 = vsel %vm5832, 0, %v5918
        %v5921 = vcosq.f32.pop %v5919
        %v5922 = vsinq.f32.pop %v5919
        %vm5923 = vweird.f32 %v514
        %v5924 = vadd.s32 %v5920, 3
        %v5925 = vand.u32 %v5924, 3
        %vm5926 = vcmp.lt.s32.totalorder %v5925, 2
        %vm5927 = vcmp.eq.s32.totalorder %v5925, 0
        %v5928 = vxor.u32 %v5922, 2147483648
        %v5929 = vsel %vm5927, %v5921, %v5928
        %vm5930 = vcmp.eq.s32.totalorder %v5925, 2
        %v5931 = vxor.u32 %v5921, 2147483648
        %v5932 = vsel %vm5930, %v5931, %v5922
        %v5933 = vsel %vm5926, %v5929, %v5932
        %v5934 = vsel %vm5923, nan, %v5933
        %v5935 = vand.u32 2147483647, %v515
        %vm5936 = vcmp.le.f32.partialorder %v5935, 0.7853982
        %vm5937 = vcmp.lt.s32.totalorder %v515, 0
        %v5938 = vand.u32 %v515, 2139095040
        %v5939 = vshrl.u32 %v5938, 23
        %v5940 = vsub.s32 %v5939, 127
        %v5941 = vand.u32 2147483647, %v515
        %v5942 = vand.u32 %v5941, 8388607
        %v5943 = vor.u32 %v5942, 8388608
        %v5944 = vsub.s32 0, %v5943
        %v5945 = vadd.s32 %v5940, 1
        %vm5946 = vcmp.gt.s32.totalorder %v5945, 0
        %v5947 = vsel %vm5946, %v5945, 0
        %v5948 = vshrl.u32 %v5947, 5
        %v5949 = vand.u32 %v5947, 31
        %v5950 = vsub.s32 32, %v5949
        %v5951 = vshrl.u32 683565275, %v5950
        %v5952 = vshll.u32 683565275, %v5949
        %v5953 = vshrl.u32 2475754826, %v5950
        %v5954 = vor.u32 %v5952, %v5953
        %v5955 = vshll.u32 2475754826, %v5949
        %v5956 = vshrl.u32 2131351028, %v5950
        %v5957 = vor.u32 %v5955, %v5956
        %v5958 = vshll.u32 2131351028, %v5949
        %v5959 = vshrl.u32 2102212464, %v5950
        %v5960 = vor.u32 %v5958, %v5959
        %v5961 = vshll.u32 2102212464, %v5949
        %v5962 = vshrl.u32 920167782, %v5950
        %v5963 = vor.u32 %v5961, %v5962
        %v5964 = vshll.u32 920167782, %v5949
        %v5965 = vshrl.u32 1326507024, %v5950
        %v5966 = vor.u32 %v5964, %v5965
        %vm5967 = vcmp.lt.s32.totalorder %v5948, 1
        %vm5968 = vcmp.lt.s32.totalorder %v5948, 2
        %vm5969 = vcmp.lt.s32.totalorder %v5948, 3
        %vm5970 = vcmp.lt.s32.totalorder %v5948, 4
        %v5971 = vsel %vm5967, %v5951, %v5954
        %v5972 = vsel %vm5970, %v5960, 2102212464
        %v5973 = vsel %vm5969, %v5957, %v5972
        %v5974 = vsel %vm5968, %v5971, %v5973
        %v5975 = vsel %vm5967, %v5954, %v5957
        %v5976 = vsel %vm5970, %v5963, 920167782
        %v5977 = vsel %vm5969, %v5960, %v5976
        %v5978 = vsel %vm5968, %v5975, %v5977
        %v5979 = vsel %vm5967, %v5957, %v5960
        %v5980 = vsel %vm5970, %v5966, 1326507024
        %v5981 = vsel %vm5969, %v5963, %v5980
        %v5982 = vsel %vm5968, %v5979, %v5981
        %v5983 = vshll.u32 %v5943, 8
        %v5984 = vmul.u32.u64.compose %v5983, %v5982
        %v5985 = vextract.low.u32 %v5984
        %v5986 = vextract.high.u32 %v5984
        %v5987 = vmul.u32.u64.compose %v5983, %v5978
        %v5988 = vextract.low.u32 %v5987
        %v5989 = vextract.high.u32 %v5987
        %v5990 = vmul.u32 %v5983, %v5974
        %v5991 = vadd.s32 %v5986, %v5988
        %vm5992 = vc.u32 %v5986, %v5988
        %v5993 = vadd.s32 %v5989, 1
        %v5994 = vsel %vm5992, %v5993, %v5989
        %v5995 = vadd.s32 %v5990, %v5994
        %v5996 = vadd.s32 %v5995, 536870912
        %v5997 = vshrl.u32 %v5996, 30
        %v5998 = vshll.u32 %v5997, 30
        %v5999 = vsub.s32 %v5995, %v5998
        %vm6000 = vcmp.lt.s32.totalorder %v5999, 0
        %v6001 = vsub.s32 0, %v5999
        %v6002 = vsel %vm6000, %v6001, %v5999
        %v6003 = vclz %v6002
        %v6004 = vsub.s32 %v6003, 2
        %vm6005 = vcmp.gt.s32.totalorder 0, %v6004
        %v6006 = vsel %vm6005, 0, %v6004
        %v6007 = vsub.s32 32, %v6006
        %v6008 = vshll.u32 %v5999, %v6006
        %v6009 = vshrl.u32 %v5991, %v6007
        %v6010 = vor.u32 %v6008, %v6009
        %v6011 = vsub.s32 4294967266, %v6006
        %v6012 = vadd.s32 %v6011, 127
        %v6013 = vshll.u32 %v6012, 23
        %v6014 = vor.u32 4788187, %v6013
        %v6015 = vand.u32 2147483647, %v6014
        %v6017 = vcvt.s32.f32 %v6010
        %v6018 = vmul.f32 %v6017, %v6015
        %v6019 = vxor.u32 %v6018, 2147483648
        %v6020 = vsel %vm5937, %v6019, %v6018
        %v6021 = vsub.s32 4, %v5997
        %v6022 = vsel %vm5937, %v6021, %v5997
        %v6023 = vsel %vm5936, %v515, %v6020
        %v6024 = vsel %vm5936, 0, %v6022
        %v6025 = vcosq.f32.pop %v6023
        %v6026 = vsinq.f32.pop %v6023
        %vm6027 = vweird.f32 %v515
        %v6028 = vadd.s32 %v6024, 3
        %v6029 = vand.u32 %v6028, 3
        %vm6030 = vcmp.lt.s32.totalorder %v6029, 2
        %vm6031 = vcmp.eq.s32.totalorder %v6029, 0
        %v6032 = vxor.u32 %v6026, 2147483648
        %v6033 = vsel %vm6031, %v6025, %v6032
        %vm6034 = vcmp.eq.s32.totalorder %v6029, 2
        %v6035 = vxor.u32 %v6025, 2147483648
        %v6036 = vsel %vm6034, %v6035, %v6026
        %v6037 = vsel %vm6030, %v6033, %v6036
        %v6038 = vsel %vm6027, nan, %v6037
        %v6039 = vand.u32 2147483647, %v516
        %vm6040 = vcmp.le.f32.partialorder %v6039, 0.7853982
        %vm6041 = vcmp.lt.s32.totalorder %v516, 0
        %v6042 = vand.u32 %v516, 2139095040
        %v6043 = vshrl.u32 %v6042, 23
        %v6044 = vsub.s32 %v6043, 127
        %v6045 = vand.u32 2147483647, %v516
        %v6046 = vand.u32 %v6045, 8388607
        %v6047 = vor.u32 %v6046, 8388608
        %v6048 = vsub.s32 0, %v6047
        %v6049 = vadd.s32 %v6044, 1
        %vm6050 = vcmp.gt.s32.totalorder %v6049, 0
        %v6051 = vsel %vm6050, %v6049, 0
        %v6052 = vshrl.u32 %v6051, 5
        %v6053 = vand.u32 %v6051, 31
        %v6054 = vsub.s32 32, %v6053
        %v6055 = vshrl.u32 683565275, %v6054
        %v6056 = vshll.u32 683565275, %v6053
        %v6057 = vshrl.u32 2475754826, %v6054
        %v6058 = vor.u32 %v6056, %v6057
        %v6059 = vshll.u32 2475754826, %v6053
        %v6060 = vshrl.u32 2131351028, %v6054
        %v6061 = vor.u32 %v6059, %v6060
        %v6062 = vshll.u32 2131351028, %v6053
        %v6063 = vshrl.u32 2102212464, %v6054
        %v6064 = vor.u32 %v6062, %v6063
        %v6065 = vshll.u32 2102212464, %v6053
        %v6066 = vshrl.u32 920167782, %v6054
        %v6067 = vor.u32 %v6065, %v6066
        %v6068 = vshll.u32 920167782, %v6053
        %v6069 = vshrl.u32 1326507024, %v6054
        %v6070 = vor.u32 %v6068, %v6069
        %vm6071 = vcmp.lt.s32.totalorder %v6052, 1
        %vm6072 = vcmp.lt.s32.totalorder %v6052, 2
        %vm6073 = vcmp.lt.s32.totalorder %v6052, 3
        %vm6074 = vcmp.lt.s32.totalorder %v6052, 4
        %v6075 = vsel %vm6071, %v6055, %v6058
        %v6076 = vsel %vm6074, %v6064, 2102212464
        %v6077 = vsel %vm6073, %v6061, %v6076
        %v6078 = vsel %vm6072, %v6075, %v6077
        %v6079 = vsel %vm6071, %v6058, %v6061
        %v6080 = vsel %vm6074, %v6067, 920167782
        %v6081 = vsel %vm6073, %v6064, %v6080
        %v6082 = vsel %vm6072, %v6079, %v6081
        %v6083 = vsel %vm6071, %v6061, %v6064
        %v6084 = vsel %vm6074, %v6070, 1326507024
        %v6085 = vsel %vm6073, %v6067, %v6084
        %v6086 = vsel %vm6072, %v6083, %v6085
        %v6087 = vshll.u32 %v6047, 8
        %v6088 = vmul.u32.u64.compose %v6087, %v6086
        %v6089 = vextract.low.u32 %v6088
        %v6090 = vextract.high.u32 %v6088
        %v6091 = vmul.u32.u64.compose %v6087, %v6082
        %v6092 = vextract.low.u32 %v6091
        %v6093 = vextract.high.u32 %v6091
        %v6094 = vmul.u32 %v6087, %v6078
        %v6095 = vadd.s32 %v6090, %v6092
        %vm6096 = vc.u32 %v6090, %v6092
        %v6097 = vadd.s32 %v6093, 1
        %v6098 = vsel %vm6096, %v6097, %v6093
        %v6099 = vadd.s32 %v6094, %v6098
        %v6100 = vadd.s32 %v6099, 536870912
        %v6101 = vshrl.u32 %v6100, 30
        %v6102 = vshll.u32 %v6101, 30
        %v6103 = vsub.s32 %v6099, %v6102
        %vm6104 = vcmp.lt.s32.totalorder %v6103, 0
        %v6105 = vsub.s32 0, %v6103
        %v6106 = vsel %vm6104, %v6105, %v6103
        %v6107 = vclz %v6106
        %v6108 = vsub.s32 %v6107, 2
        %vm6109 = vcmp.gt.s32.totalorder 0, %v6108
        %v6110 = vsel %vm6109, 0, %v6108
        %v6111 = vsub.s32 32, %v6110
        %v6112 = vshll.u32 %v6103, %v6110
        %v6113 = vshrl.u32 %v6095, %v6111
        %v6114 = vor.u32 %v6112, %v6113
        %v6115 = vsub.s32 4294967266, %v6110
        %v6116 = vadd.s32 %v6115, 127
        %v6117 = vshll.u32 %v6116, 23
        %v6118 = vor.u32 4788187, %v6117
        %v6119 = vand.u32 2147483647, %v6118
        %v6121 = vcvt.s32.f32 %v6114
        %v6122 = vmul.f32 %v6121, %v6119
        %v6123 = vxor.u32 %v6122, 2147483648
        %v6124 = vsel %vm6041, %v6123, %v6122
        %v6125 = vsub.s32 4, %v6101
        %v6126 = vsel %vm6041, %v6125, %v6101
        %v6127 = vsel %vm6040, %v516, %v6124
        %v6128 = vsel %vm6040, 0, %v6126
        %v6129 = vcosq.f32.pop %v6127
        %v6130 = vsinq.f32.pop %v6127
        %vm6131 = vweird.f32 %v516
        %v6132 = vadd.s32 %v6128, 3
        %v6133 = vand.u32 %v6132, 3
        %vm6134 = vcmp.lt.s32.totalorder %v6133, 2
        %vm6135 = vcmp.eq.s32.totalorder %v6133, 0
        %v6136 = vxor.u32 %v6130, 2147483648
        %v6137 = vsel %vm6135, %v6129, %v6136
        %vm6138 = vcmp.eq.s32.totalorder %v6133, 2
        %v6139 = vxor.u32 %v6129, 2147483648
        %v6140 = vsel %vm6138, %v6139, %v6130
        %v6141 = vsel %vm6134, %v6137, %v6140
        %v6142 = vsel %vm6131, nan, %v6141
        %v6143 = vand.u32 2147483647, %v517
        %vm6144 = vcmp.le.f32.partialorder %v6143, 0.7853982
        %vm6145 = vcmp.lt.s32.totalorder %v517, 0
        %v6146 = vand.u32 %v517, 2139095040
        %v6147 = vshrl.u32 %v6146, 23
        %v6148 = vsub.s32 %v6147, 127
        %v6149 = vand.u32 2147483647, %v517
        %v6150 = vand.u32 %v6149, 8388607
        %v6151 = vor.u32 %v6150, 8388608
        %v6152 = vsub.s32 0, %v6151
        %v6153 = vadd.s32 %v6148, 1
        %vm6154 = vcmp.gt.s32.totalorder %v6153, 0
        %v6155 = vsel %vm6154, %v6153, 0
        %v6156 = vshrl.u32 %v6155, 5
        %v6157 = vand.u32 %v6155, 31
        %v6158 = vsub.s32 32, %v6157
        %v6159 = vshrl.u32 683565275, %v6158
        %v6160 = vshll.u32 683565275, %v6157
        %v6161 = vshrl.u32 2475754826, %v6158
        %v6162 = vor.u32 %v6160, %v6161
        %v6163 = vshll.u32 2475754826, %v6157
        %v6164 = vshrl.u32 2131351028, %v6158
        %v6165 = vor.u32 %v6163, %v6164
        %v6166 = vshll.u32 2131351028, %v6157
        %v6167 = vshrl.u32 2102212464, %v6158
        %v6168 = vor.u32 %v6166, %v6167
        %v6169 = vshll.u32 2102212464, %v6157
        %v6170 = vshrl.u32 920167782, %v6158
        %v6171 = vor.u32 %v6169, %v6170
        %v6172 = vshll.u32 920167782, %v6157
        %v6173 = vshrl.u32 1326507024, %v6158
        %v6174 = vor.u32 %v6172, %v6173
        %vm6175 = vcmp.lt.s32.totalorder %v6156, 1
        %vm6176 = vcmp.lt.s32.totalorder %v6156, 2
        %vm6177 = vcmp.lt.s32.totalorder %v6156, 3
        %vm6178 = vcmp.lt.s32.totalorder %v6156, 4
        %v6179 = vsel %vm6175, %v6159, %v6162
        %v6180 = vsel %vm6178, %v6168, 2102212464
        %v6181 = vsel %vm6177, %v6165, %v6180
        %v6182 = vsel %vm6176, %v6179, %v6181
        %v6183 = vsel %vm6175, %v6162, %v6165
        %v6184 = vsel %vm6178, %v6171, 920167782
        %v6185 = vsel %vm6177, %v6168, %v6184
        %v6186 = vsel %vm6176, %v6183, %v6185
        %v6187 = vsel %vm6175, %v6165, %v6168
        %v6188 = vsel %vm6178, %v6174, 1326507024
        %v6189 = vsel %vm6177, %v6171, %v6188
        %v6190 = vsel %vm6176, %v6187, %v6189
        %v6191 = vshll.u32 %v6151, 8
        %v6192 = vmul.u32.u64.compose %v6191, %v6190
        %v6193 = vextract.low.u32 %v6192
        %v6194 = vextract.high.u32 %v6192
        %v6195 = vmul.u32.u64.compose %v6191, %v6186
        %v6196 = vextract.low.u32 %v6195
        %v6197 = vextract.high.u32 %v6195
        %v6198 = vmul.u32 %v6191, %v6182
        %v6199 = vadd.s32 %v6194, %v6196
        %vm6200 = vc.u32 %v6194, %v6196
        %v6201 = vadd.s32 %v6197, 1
        %v6202 = vsel %vm6200, %v6201, %v6197
        %v6203 = vadd.s32 %v6198, %v6202
        %v6204 = vadd.s32 %v6203, 536870912
        %v6205 = vshrl.u32 %v6204, 30
        %v6206 = vshll.u32 %v6205, 30
        %v6207 = vsub.s32 %v6203, %v6206
        %vm6208 = vcmp.lt.s32.totalorder %v6207, 0
        %v6209 = vsub.s32 0, %v6207
        %v6210 = vsel %vm6208, %v6209, %v6207
        %v6211 = vclz %v6210
        %v6212 = vsub.s32 %v6211, 2
        %vm6213 = vcmp.gt.s32.totalorder 0, %v6212
        %v6214 = vsel %vm6213, 0, %v6212
        %v6215 = vsub.s32 32, %v6214
        %v6216 = vshll.u32 %v6207, %v6214
        %v6217 = vshrl.u32 %v6199, %v6215
        %v6218 = vor.u32 %v6216, %v6217
        %v6219 = vsub.s32 4294967266, %v6214
        %v6220 = vadd.s32 %v6219, 127
        %v6221 = vshll.u32 %v6220, 23
        %v6222 = vor.u32 4788187, %v6221
        %v6223 = vand.u32 2147483647, %v6222
        %v6225 = vcvt.s32.f32 %v6218
        %v6226 = vmul.f32 %v6225, %v6223
        %v6227 = vxor.u32 %v6226, 2147483648
        %v6228 = vsel %vm6145, %v6227, %v6226
        %v6229 = vsub.s32 4, %v6205
        %v6230 = vsel %vm6145, %v6229, %v6205
        %v6231 = vsel %vm6144, %v517, %v6228
        %v6232 = vsel %vm6144, 0, %v6230
        %v6233 = vcosq.f32.pop %v6231
        %v6234 = vsinq.f32.pop %v6231
        %vm6235 = vweird.f32 %v517
        %v6236 = vadd.s32 %v6232, 3
        %v6237 = vand.u32 %v6236, 3
        %vm6238 = vcmp.lt.s32.totalorder %v6237, 2
        %vm6239 = vcmp.eq.s32.totalorder %v6237, 0
        %v6240 = vxor.u32 %v6234, 2147483648
        %v6241 = vsel %vm6239, %v6233, %v6240
        %vm6242 = vcmp.eq.s32.totalorder %v6237, 2
        %v6243 = vxor.u32 %v6233, 2147483648
        %v6244 = vsel %vm6242, %v6243, %v6234
        %v6245 = vsel %vm6238, %v6241, %v6244
        %v6246 = vsel %vm6235, nan, %v6245
        %v6247 = vand.u32 2147483647, %v518
        %vm6248 = vcmp.le.f32.partialorder %v6247, 0.7853982
        %vm6249 = vcmp.lt.s32.totalorder %v518, 0
        %v6250 = vand.u32 %v518, 2139095040
        %v6251 = vshrl.u32 %v6250, 23
        %v6252 = vsub.s32 %v6251, 127
        %v6253 = vand.u32 2147483647, %v518
        %v6254 = vand.u32 %v6253, 8388607
        %v6255 = vor.u32 %v6254, 8388608
        %v6256 = vsub.s32 0, %v6255
        %v6257 = vadd.s32 %v6252, 1
        %vm6258 = vcmp.gt.s32.totalorder %v6257, 0
        %v6259 = vsel %vm6258, %v6257, 0
        %v6260 = vshrl.u32 %v6259, 5
        %v6261 = vand.u32 %v6259, 31
        %v6262 = vsub.s32 32, %v6261
        %v6263 = vshrl.u32 683565275, %v6262
        %v6264 = vshll.u32 683565275, %v6261
        %v6265 = vshrl.u32 2475754826, %v6262
        %v6266 = vor.u32 %v6264, %v6265
        %v6267 = vshll.u32 2475754826, %v6261
        %v6268 = vshrl.u32 2131351028, %v6262
        %v6269 = vor.u32 %v6267, %v6268
        %v6270 = vshll.u32 2131351028, %v6261
        %v6271 = vshrl.u32 2102212464, %v6262
        %v6272 = vor.u32 %v6270, %v6271
        %v6273 = vshll.u32 2102212464, %v6261
        %v6274 = vshrl.u32 920167782, %v6262
        %v6275 = vor.u32 %v6273, %v6274
        %v6276 = vshll.u32 920167782, %v6261
        %v6277 = vshrl.u32 1326507024, %v6262
        %v6278 = vor.u32 %v6276, %v6277
        %vm6279 = vcmp.lt.s32.totalorder %v6260, 1
        %vm6280 = vcmp.lt.s32.totalorder %v6260, 2
        %vm6281 = vcmp.lt.s32.totalorder %v6260, 3
        %vm6282 = vcmp.lt.s32.totalorder %v6260, 4
        %v6283 = vsel %vm6279, %v6263, %v6266
        %v6284 = vsel %vm6282, %v6272, 2102212464
        %v6285 = vsel %vm6281, %v6269, %v6284
        %v6286 = vsel %vm6280, %v6283, %v6285
        %v6287 = vsel %vm6279, %v6266, %v6269
        %v6288 = vsel %vm6282, %v6275, 920167782
        %v6289 = vsel %vm6281, %v6272, %v6288
        %v6290 = vsel %vm6280, %v6287, %v6289
        %v6291 = vsel %vm6279, %v6269, %v6272
        %v6292 = vsel %vm6282, %v6278, 1326507024
        %v6293 = vsel %vm6281, %v6275, %v6292
        %v6294 = vsel %vm6280, %v6291, %v6293
        %v6295 = vshll.u32 %v6255, 8
        %v6296 = vmul.u32.u64.compose %v6295, %v6294
        %v6297 = vextract.low.u32 %v6296
        %v6298 = vextract.high.u32 %v6296
        %v6299 = vmul.u32.u64.compose %v6295, %v6290
        %v6300 = vextract.low.u32 %v6299
        %v6301 = vextract.high.u32 %v6299
        %v6302 = vmul.u32 %v6295, %v6286
        %v6303 = vadd.s32 %v6298, %v6300
        %vm6304 = vc.u32 %v6298, %v6300
        %v6305 = vadd.s32 %v6301, 1
        %v6306 = vsel %vm6304, %v6305, %v6301
        %v6307 = vadd.s32 %v6302, %v6306
        %v6308 = vadd.s32 %v6307, 536870912
        %v6309 = vshrl.u32 %v6308, 30
        %v6310 = vshll.u32 %v6309, 30
        %v6311 = vsub.s32 %v6307, %v6310
        %vm6312 = vcmp.lt.s32.totalorder %v6311, 0
        %v6313 = vsub.s32 0, %v6311
        %v6314 = vsel %vm6312, %v6313, %v6311
        %v6315 = vclz %v6314
        %v6316 = vsub.s32 %v6315, 2
        %vm6317 = vcmp.gt.s32.totalorder 0, %v6316
        %v6318 = vsel %vm6317, 0, %v6316
        %v6319 = vsub.s32 32, %v6318
        %v6320 = vshll.u32 %v6311, %v6318
        %v6321 = vshrl.u32 %v6303, %v6319
        %v6322 = vor.u32 %v6320, %v6321
        %v6323 = vsub.s32 4294967266, %v6318
        %v6324 = vadd.s32 %v6323, 127
        %v6325 = vshll.u32 %v6324, 23
        %v6326 = vor.u32 4788187, %v6325
        %v6327 = vand.u32 2147483647, %v6326
        %v6329 = vcvt.s32.f32 %v6322
        %v6330 = vmul.f32 %v6329, %v6327
        %v6331 = vxor.u32 %v6330, 2147483648
        %v6332 = vsel %vm6249, %v6331, %v6330
        %v6333 = vsub.s32 4, %v6309
        %v6334 = vsel %vm6249, %v6333, %v6309
        %v6335 = vsel %vm6248, %v518, %v6332
        %v6336 = vsel %vm6248, 0, %v6334
        %v6337 = vcosq.f32.pop %v6335
        %v6338 = vsinq.f32.pop %v6335
        %vm6339 = vweird.f32 %v518
        %v6340 = vadd.s32 %v6336, 3
        %v6341 = vand.u32 %v6340, 3
        %vm6342 = vcmp.lt.s32.totalorder %v6341, 2
        %vm6343 = vcmp.eq.s32.totalorder %v6341, 0
        %v6344 = vxor.u32 %v6338, 2147483648
        %v6345 = vsel %vm6343, %v6337, %v6344
        %vm6346 = vcmp.eq.s32.totalorder %v6341, 2
        %v6347 = vxor.u32 %v6337, 2147483648
        %v6348 = vsel %vm6346, %v6347, %v6338
        %v6349 = vsel %vm6342, %v6345, %v6348
        %v6350 = vsel %vm6339, nan, %v6349
        %v6351 = vand.u32 2147483647, %v519
        %vm6352 = vcmp.le.f32.partialorder %v6351, 0.7853982
        %vm6353 = vcmp.lt.s32.totalorder %v519, 0
        %v6354 = vand.u32 %v519, 2139095040
        %v6355 = vshrl.u32 %v6354, 23
        %v6356 = vsub.s32 %v6355, 127
        %v6357 = vand.u32 2147483647, %v519
        %v6358 = vand.u32 %v6357, 8388607
        %v6359 = vor.u32 %v6358, 8388608
        %v6360 = vsub.s32 0, %v6359
        %v6361 = vadd.s32 %v6356, 1
        %vm6362 = vcmp.gt.s32.totalorder %v6361, 0
        %v6363 = vsel %vm6362, %v6361, 0
        %v6364 = vshrl.u32 %v6363, 5
        %v6365 = vand.u32 %v6363, 31
        %v6366 = vsub.s32 32, %v6365
        %v6367 = vshrl.u32 683565275, %v6366
        %v6368 = vshll.u32 683565275, %v6365
        %v6369 = vshrl.u32 2475754826, %v6366
        %v6370 = vor.u32 %v6368, %v6369
        %v6371 = vshll.u32 2475754826, %v6365
        %v6372 = vshrl.u32 2131351028, %v6366
        %v6373 = vor.u32 %v6371, %v6372
        %v6374 = vshll.u32 2131351028, %v6365
        %v6375 = vshrl.u32 2102212464, %v6366
        %v6376 = vor.u32 %v6374, %v6375
        %v6377 = vshll.u32 2102212464, %v6365
        %v6378 = vshrl.u32 920167782, %v6366
        %v6379 = vor.u32 %v6377, %v6378
        %v6380 = vshll.u32 920167782, %v6365
        %v6381 = vshrl.u32 1326507024, %v6366
        %v6382 = vor.u32 %v6380, %v6381
        %vm6383 = vcmp.lt.s32.totalorder %v6364, 1
        %vm6384 = vcmp.lt.s32.totalorder %v6364, 2
        %vm6385 = vcmp.lt.s32.totalorder %v6364, 3
        %vm6386 = vcmp.lt.s32.totalorder %v6364, 4
        %v6387 = vsel %vm6383, %v6367, %v6370
        %v6388 = vsel %vm6386, %v6376, 2102212464
        %v6389 = vsel %vm6385, %v6373, %v6388
        %v6390 = vsel %vm6384, %v6387, %v6389
        %v6391 = vsel %vm6383, %v6370, %v6373
        %v6392 = vsel %vm6386, %v6379, 920167782
        %v6393 = vsel %vm6385, %v6376, %v6392
        %v6394 = vsel %vm6384, %v6391, %v6393
        %v6395 = vsel %vm6383, %v6373, %v6376
        %v6396 = vsel %vm6386, %v6382, 1326507024
        %v6397 = vsel %vm6385, %v6379, %v6396
        %v6398 = vsel %vm6384, %v6395, %v6397
        %v6399 = vshll.u32 %v6359, 8
        %v6400 = vmul.u32.u64.compose %v6399, %v6398
        %v6401 = vextract.low.u32 %v6400
        %v6402 = vextract.high.u32 %v6400
        %v6403 = vmul.u32.u64.compose %v6399, %v6394
        %v6404 = vextract.low.u32 %v6403
        %v6405 = vextract.high.u32 %v6403
        %v6406 = vmul.u32 %v6399, %v6390
        %v6407 = vadd.s32 %v6402, %v6404
        %vm6408 = vc.u32 %v6402, %v6404
        %v6409 = vadd.s32 %v6405, 1
        %v6410 = vsel %vm6408, %v6409, %v6405
        %v6411 = vadd.s32 %v6406, %v6410
        %v6412 = vadd.s32 %v6411, 536870912
        %v6413 = vshrl.u32 %v6412, 30
        %v6414 = vshll.u32 %v6413, 30
        %v6415 = vsub.s32 %v6411, %v6414
        %vm6416 = vcmp.lt.s32.totalorder %v6415, 0
        %v6417 = vsub.s32 0, %v6415
        %v6418 = vsel %vm6416, %v6417, %v6415
        %v6419 = vclz %v6418
        %v6420 = vsub.s32 %v6419, 2
        %vm6421 = vcmp.gt.s32.totalorder 0, %v6420
        %v6422 = vsel %vm6421, 0, %v6420
        %v6423 = vsub.s32 32, %v6422
        %v6424 = vshll.u32 %v6415, %v6422
        %v6425 = vshrl.u32 %v6407, %v6423
        %v6426 = vor.u32 %v6424, %v6425
        %v6427 = vsub.s32 4294967266, %v6422
        %v6428 = vadd.s32 %v6427, 127
        %v6429 = vshll.u32 %v6428, 23
        %v6430 = vor.u32 4788187, %v6429
        %v6431 = vand.u32 2147483647, %v6430
        %v6433 = vcvt.s32.f32 %v6426
        %v6434 = vmul.f32 %v6433, %v6431
        %v6435 = vxor.u32 %v6434, 2147483648
        %v6436 = vsel %vm6353, %v6435, %v6434
        %v6437 = vsub.s32 4, %v6413
        %v6438 = vsel %vm6353, %v6437, %v6413
        %v6439 = vsel %vm6352, %v519, %v6436
        %v6440 = vsel %vm6352, 0, %v6438
        %v6441 = vcosq.f32.pop %v6439
        %v6442 = vsinq.f32.pop %v6439
        %vm6443 = vweird.f32 %v519
        %v6444 = vadd.s32 %v6440, 3
        %v6445 = vand.u32 %v6444, 3
        %vm6446 = vcmp.lt.s32.totalorder %v6445, 2
        %vm6447 = vcmp.eq.s32.totalorder %v6445, 0
        %v6448 = vxor.u32 %v6442, 2147483648
        %v6449 = vsel %vm6447, %v6441, %v6448
        %vm6450 = vcmp.eq.s32.totalorder %v6445, 2
        %v6451 = vxor.u32 %v6441, 2147483648
        %v6452 = vsel %vm6450, %v6451, %v6442
        %v6453 = vsel %vm6446, %v6449, %v6452
        %v6454 = vsel %vm6443, nan, %v6453
        %v6455 = vand.u32 2147483647, %v520
        %vm6456 = vcmp.le.f32.partialorder %v6455, 0.7853982
        %vm6457 = vcmp.lt.s32.totalorder %v520, 0
        %v6458 = vand.u32 %v520, 2139095040
        %v6459 = vshrl.u32 %v6458, 23
        %v6460 = vsub.s32 %v6459, 127
        %v6461 = vand.u32 2147483647, %v520
        %v6462 = vand.u32 %v6461, 8388607
        %v6463 = vor.u32 %v6462, 8388608
        %v6464 = vsub.s32 0, %v6463
        %v6465 = vadd.s32 %v6460, 1
        %vm6466 = vcmp.gt.s32.totalorder %v6465, 0
        %v6467 = vsel %vm6466, %v6465, 0
        %v6468 = vshrl.u32 %v6467, 5
        %v6469 = vand.u32 %v6467, 31
        %v6470 = vsub.s32 32, %v6469
        %v6471 = vshrl.u32 683565275, %v6470
        %v6472 = vshll.u32 683565275, %v6469
        %v6473 = vshrl.u32 2475754826, %v6470
        %v6474 = vor.u32 %v6472, %v6473
        %v6475 = vshll.u32 2475754826, %v6469
        %v6476 = vshrl.u32 2131351028, %v6470
        %v6477 = vor.u32 %v6475, %v6476
        %v6478 = vshll.u32 2131351028, %v6469
        %v6479 = vshrl.u32 2102212464, %v6470
        %v6480 = vor.u32 %v6478, %v6479
        %v6481 = vshll.u32 2102212464, %v6469
        %v6482 = vshrl.u32 920167782, %v6470
        %v6483 = vor.u32 %v6481, %v6482
        %v6484 = vshll.u32 920167782, %v6469
        %v6485 = vshrl.u32 1326507024, %v6470
        %v6486 = vor.u32 %v6484, %v6485
        %vm6487 = vcmp.lt.s32.totalorder %v6468, 1
        %vm6488 = vcmp.lt.s32.totalorder %v6468, 2
        %vm6489 = vcmp.lt.s32.totalorder %v6468, 3
        %vm6490 = vcmp.lt.s32.totalorder %v6468, 4
        %v6491 = vsel %vm6487, %v6471, %v6474
        %v6492 = vsel %vm6490, %v6480, 2102212464
        %v6493 = vsel %vm6489, %v6477, %v6492
        %v6494 = vsel %vm6488, %v6491, %v6493
        %v6495 = vsel %vm6487, %v6474, %v6477
        %v6496 = vsel %vm6490, %v6483, 920167782
        %v6497 = vsel %vm6489, %v6480, %v6496
        %v6498 = vsel %vm6488, %v6495, %v6497
        %v6499 = vsel %vm6487, %v6477, %v6480
        %v6500 = vsel %vm6490, %v6486, 1326507024
        %v6501 = vsel %vm6489, %v6483, %v6500
        %v6502 = vsel %vm6488, %v6499, %v6501
        %v6503 = vshll.u32 %v6463, 8
        %v6504 = vmul.u32.u64.compose %v6503, %v6502
        %v6505 = vextract.low.u32 %v6504
        %v6506 = vextract.high.u32 %v6504
        %v6507 = vmul.u32.u64.compose %v6503, %v6498
        %v6508 = vextract.low.u32 %v6507
        %v6509 = vextract.high.u32 %v6507
        %v6510 = vmul.u32 %v6503, %v6494
        %v6511 = vadd.s32 %v6506, %v6508
        %vm6512 = vc.u32 %v6506, %v6508
        %v6513 = vadd.s32 %v6509, 1
        %v6514 = vsel %vm6512, %v6513, %v6509
        %v6515 = vadd.s32 %v6510, %v6514
        %v6516 = vadd.s32 %v6515, 536870912
        %v6517 = vshrl.u32 %v6516, 30
        %v6518 = vshll.u32 %v6517, 30
        %v6519 = vsub.s32 %v6515, %v6518
        %vm6520 = vcmp.lt.s32.totalorder %v6519, 0
        %v6521 = vsub.s32 0, %v6519
        %v6522 = vsel %vm6520, %v6521, %v6519
        %v6523 = vclz %v6522
        %v6524 = vsub.s32 %v6523, 2
        %vm6525 = vcmp.gt.s32.totalorder 0, %v6524
        %v6526 = vsel %vm6525, 0, %v6524
        %v6527 = vsub.s32 32, %v6526
        %v6528 = vshll.u32 %v6519, %v6526
        %v6529 = vshrl.u32 %v6511, %v6527
        %v6530 = vor.u32 %v6528, %v6529
        %v6531 = vsub.s32 4294967266, %v6526
        %v6532 = vadd.s32 %v6531, 127
        %v6533 = vshll.u32 %v6532, 23
        %v6534 = vor.u32 4788187, %v6533
        %v6535 = vand.u32 2147483647, %v6534
        %v6537 = vcvt.s32.f32 %v6530
        %v6538 = vmul.f32 %v6537, %v6535
        %v6539 = vxor.u32 %v6538, 2147483648
        %v6540 = vsel %vm6457, %v6539, %v6538
        %v6541 = vsub.s32 4, %v6517
        %v6542 = vsel %vm6457, %v6541, %v6517
        %v6543 = vsel %vm6456, %v520, %v6540
        %v6544 = vsel %vm6456, 0, %v6542
        %v6545 = vcosq.f32.pop %v6543
        %v6546 = vsinq.f32.pop %v6543
        %vm6547 = vweird.f32 %v520
        %v6548 = vadd.s32 %v6544, 3
        %v6549 = vand.u32 %v6548, 3
        %vm6550 = vcmp.lt.s32.totalorder %v6549, 2
        %vm6551 = vcmp.eq.s32.totalorder %v6549, 0
        %v6552 = vxor.u32 %v6546, 2147483648
        %v6553 = vsel %vm6551, %v6545, %v6552
        %vm6554 = vcmp.eq.s32.totalorder %v6549, 2
        %v6555 = vxor.u32 %v6545, 2147483648
        %v6556 = vsel %vm6554, %v6555, %v6546
        %v6557 = vsel %vm6550, %v6553, %v6556
        %v6558 = vsel %vm6547, nan, %v6557
        %v6559 = vand.u32 2147483647, %v521
        %vm6560 = vcmp.le.f32.partialorder %v6559, 0.7853982
        %vm6561 = vcmp.lt.s32.totalorder %v521, 0
        %v6562 = vand.u32 %v521, 2139095040
        %v6563 = vshrl.u32 %v6562, 23
        %v6564 = vsub.s32 %v6563, 127
        %v6565 = vand.u32 2147483647, %v521
        %v6566 = vand.u32 %v6565, 8388607
        %v6567 = vor.u32 %v6566, 8388608
        %v6568 = vsub.s32 0, %v6567
        %v6569 = vadd.s32 %v6564, 1
        %vm6570 = vcmp.gt.s32.totalorder %v6569, 0
        %v6571 = vsel %vm6570, %v6569, 0
        %v6572 = vshrl.u32 %v6571, 5
        %v6573 = vand.u32 %v6571, 31
        %v6574 = vsub.s32 32, %v6573
        %v6575 = vshrl.u32 683565275, %v6574
        %v6576 = vshll.u32 683565275, %v6573
        %v6577 = vshrl.u32 2475754826, %v6574
        %v6578 = vor.u32 %v6576, %v6577
        %v6579 = vshll.u32 2475754826, %v6573
        %v6580 = vshrl.u32 2131351028, %v6574
        %v6581 = vor.u32 %v6579, %v6580
        %v6582 = vshll.u32 2131351028, %v6573
        %v6583 = vshrl.u32 2102212464, %v6574
        %v6584 = vor.u32 %v6582, %v6583
        %v6585 = vshll.u32 2102212464, %v6573
        %v6586 = vshrl.u32 920167782, %v6574
        %v6587 = vor.u32 %v6585, %v6586
        %v6588 = vshll.u32 920167782, %v6573
        %v6589 = vshrl.u32 1326507024, %v6574
        %v6590 = vor.u32 %v6588, %v6589
        %vm6591 = vcmp.lt.s32.totalorder %v6572, 1
        %vm6592 = vcmp.lt.s32.totalorder %v6572, 2
        %vm6593 = vcmp.lt.s32.totalorder %v6572, 3
        %vm6594 = vcmp.lt.s32.totalorder %v6572, 4
        %v6595 = vsel %vm6591, %v6575, %v6578
        %v6596 = vsel %vm6594, %v6584, 2102212464
        %v6597 = vsel %vm6593, %v6581, %v6596
        %v6598 = vsel %vm6592, %v6595, %v6597
        %v6599 = vsel %vm6591, %v6578, %v6581
        %v6600 = vsel %vm6594, %v6587, 920167782
        %v6601 = vsel %vm6593, %v6584, %v6600
        %v6602 = vsel %vm6592, %v6599, %v6601
        %v6603 = vsel %vm6591, %v6581, %v6584
        %v6604 = vsel %vm6594, %v6590, 1326507024
        %v6605 = vsel %vm6593, %v6587, %v6604
        %v6606 = vsel %vm6592, %v6603, %v6605
        %v6607 = vshll.u32 %v6567, 8
        %v6608 = vmul.u32.u64.compose %v6607, %v6606
        %v6609 = vextract.low.u32 %v6608
        %v6610 = vextract.high.u32 %v6608
        %v6611 = vmul.u32.u64.compose %v6607, %v6602
        %v6612 = vextract.low.u32 %v6611
        %v6613 = vextract.high.u32 %v6611
        %v6614 = vmul.u32 %v6607, %v6598
        %v6615 = vadd.s32 %v6610, %v6612
        %vm6616 = vc.u32 %v6610, %v6612
        %v6617 = vadd.s32 %v6613, 1
        %v6618 = vsel %vm6616, %v6617, %v6613
        %v6619 = vadd.s32 %v6614, %v6618
        %v6620 = vadd.s32 %v6619, 536870912
        %v6621 = vshrl.u32 %v6620, 30
        %v6622 = vshll.u32 %v6621, 30
        %v6623 = vsub.s32 %v6619, %v6622
        %vm6624 = vcmp.lt.s32.totalorder %v6623, 0
        %v6625 = vsub.s32 0, %v6623
        %v6626 = vsel %vm6624, %v6625, %v6623
        %v6627 = vclz %v6626
        %v6628 = vsub.s32 %v6627, 2
        %vm6629 = vcmp.gt.s32.totalorder 0, %v6628
        %v6630 = vsel %vm6629, 0, %v6628
        %v6631 = vsub.s32 32, %v6630
        %v6632 = vshll.u32 %v6623, %v6630
        %v6633 = vshrl.u32 %v6615, %v6631
        %v6634 = vor.u32 %v6632, %v6633
        %v6635 = vsub.s32 4294967266, %v6630
        %v6636 = vadd.s32 %v6635, 127
        %v6637 = vshll.u32 %v6636, 23
        %v6638 = vor.u32 4788187, %v6637
        %v6639 = vand.u32 2147483647, %v6638
        %v6641 = vcvt.s32.f32 %v6634
        %v6642 = vmul.f32 %v6641, %v6639
        %v6643 = vxor.u32 %v6642, 2147483648
        %v6644 = vsel %vm6561, %v6643, %v6642
        %v6645 = vsub.s32 4, %v6621
        %v6646 = vsel %vm6561, %v6645, %v6621
        %v6647 = vsel %vm6560, %v521, %v6644
        %v6648 = vsel %vm6560, 0, %v6646
        %v6649 = vcosq.f32.pop %v6647
        %v6650 = vsinq.f32.pop %v6647
        %vm6651 = vweird.f32 %v521
        %v6652 = vadd.s32 %v6648, 3
        %v6653 = vand.u32 %v6652, 3
        %vm6654 = vcmp.lt.s32.totalorder %v6653, 2
        %vm6655 = vcmp.eq.s32.totalorder %v6653, 0
        %v6656 = vxor.u32 %v6650, 2147483648
        %v6657 = vsel %vm6655, %v6649, %v6656
        %vm6658 = vcmp.eq.s32.totalorder %v6653, 2
        %v6659 = vxor.u32 %v6649, 2147483648
        %v6660 = vsel %vm6658, %v6659, %v6650
        %v6661 = vsel %vm6654, %v6657, %v6660
        %v6662 = vsel %vm6651, nan, %v6661
        %v6663 = vand.u32 2147483647, %v522
        %vm6664 = vcmp.le.f32.partialorder %v6663, 0.7853982
        %vm6665 = vcmp.lt.s32.totalorder %v522, 0
        %v6666 = vand.u32 %v522, 2139095040
        %v6667 = vshrl.u32 %v6666, 23
        %v6668 = vsub.s32 %v6667, 127
        %v6669 = vand.u32 2147483647, %v522
        %v6670 = vand.u32 %v6669, 8388607
        %v6671 = vor.u32 %v6670, 8388608
        %v6672 = vsub.s32 0, %v6671
        %v6673 = vadd.s32 %v6668, 1
        %vm6674 = vcmp.gt.s32.totalorder %v6673, 0
        %v6675 = vsel %vm6674, %v6673, 0
        %v6676 = vshrl.u32 %v6675, 5
        %v6677 = vand.u32 %v6675, 31
        %v6678 = vsub.s32 32, %v6677
        %v6679 = vshrl.u32 683565275, %v6678
        %v6680 = vshll.u32 683565275, %v6677
        %v6681 = vshrl.u32 2475754826, %v6678
        %v6682 = vor.u32 %v6680, %v6681
        %v6683 = vshll.u32 2475754826, %v6677
        %v6684 = vshrl.u32 2131351028, %v6678
        %v6685 = vor.u32 %v6683, %v6684
        %v6686 = vshll.u32 2131351028, %v6677
        %v6687 = vshrl.u32 2102212464, %v6678
        %v6688 = vor.u32 %v6686, %v6687
        %v6689 = vshll.u32 2102212464, %v6677
        %v6690 = vshrl.u32 920167782, %v6678
        %v6691 = vor.u32 %v6689, %v6690
        %v6692 = vshll.u32 920167782, %v6677
        %v6693 = vshrl.u32 1326507024, %v6678
        %v6694 = vor.u32 %v6692, %v6693
        %vm6695 = vcmp.lt.s32.totalorder %v6676, 1
        %vm6696 = vcmp.lt.s32.totalorder %v6676, 2
        %vm6697 = vcmp.lt.s32.totalorder %v6676, 3
        %vm6698 = vcmp.lt.s32.totalorder %v6676, 4
        %v6699 = vsel %vm6695, %v6679, %v6682
        %v6700 = vsel %vm6698, %v6688, 2102212464
        %v6701 = vsel %vm6697, %v6685, %v6700
        %v6702 = vsel %vm6696, %v6699, %v6701
        %v6703 = vsel %vm6695, %v6682, %v6685
        %v6704 = vsel %vm6698, %v6691, 920167782
        %v6705 = vsel %vm6697, %v6688, %v6704
        %v6706 = vsel %vm6696, %v6703, %v6705
        %v6707 = vsel %vm6695, %v6685, %v6688
        %v6708 = vsel %vm6698, %v6694, 1326507024
        %v6709 = vsel %vm6697, %v6691, %v6708
        %v6710 = vsel %vm6696, %v6707, %v6709
        %v6711 = vshll.u32 %v6671, 8
        %v6712 = vmul.u32.u64.compose %v6711, %v6710
        %v6713 = vextract.low.u32 %v6712
        %v6714 = vextract.high.u32 %v6712
        %v6715 = vmul.u32.u64.compose %v6711, %v6706
        %v6716 = vextract.low.u32 %v6715
        %v6717 = vextract.high.u32 %v6715
        %v6718 = vmul.u32 %v6711, %v6702
        %v6719 = vadd.s32 %v6714, %v6716
        %vm6720 = vc.u32 %v6714, %v6716
        %v6721 = vadd.s32 %v6717, 1
        %v6722 = vsel %vm6720, %v6721, %v6717
        %v6723 = vadd.s32 %v6718, %v6722
        %v6724 = vadd.s32 %v6723, 536870912
        %v6725 = vshrl.u32 %v6724, 30
        %v6726 = vshll.u32 %v6725, 30
        %v6727 = vsub.s32 %v6723, %v6726
        %vm6728 = vcmp.lt.s32.totalorder %v6727, 0
        %v6729 = vsub.s32 0, %v6727
        %v6730 = vsel %vm6728, %v6729, %v6727
        %v6731 = vclz %v6730
        %v6732 = vsub.s32 %v6731, 2
        %vm6733 = vcmp.gt.s32.totalorder 0, %v6732
        %v6734 = vsel %vm6733, 0, %v6732
        %v6735 = vsub.s32 32, %v6734
        %v6736 = vshll.u32 %v6727, %v6734
        %v6737 = vshrl.u32 %v6719, %v6735
        %v6738 = vor.u32 %v6736, %v6737
        %v6739 = vsub.s32 4294967266, %v6734
        %v6740 = vadd.s32 %v6739, 127
        %v6741 = vshll.u32 %v6740, 23
        %v6742 = vor.u32 4788187, %v6741
        %v6743 = vand.u32 2147483647, %v6742
        %v6745 = vcvt.s32.f32 %v6738
        %v6746 = vmul.f32 %v6745, %v6743
        %v6747 = vxor.u32 %v6746, 2147483648
        %v6748 = vsel %vm6665, %v6747, %v6746
        %v6749 = vsub.s32 4, %v6725
        %v6750 = vsel %vm6665, %v6749, %v6725
        %v6751 = vsel %vm6664, %v522, %v6748
        %v6752 = vsel %vm6664, 0, %v6750
        %v6753 = vcosq.f32.pop %v6751
        %v6754 = vsinq.f32.pop %v6751
        %vm6755 = vweird.f32 %v522
        %v6756 = vadd.s32 %v6752, 3
        %v6757 = vand.u32 %v6756, 3
        %vm6758 = vcmp.lt.s32.totalorder %v6757, 2
        %vm6759 = vcmp.eq.s32.totalorder %v6757, 0
        %v6760 = vxor.u32 %v6754, 2147483648
        %v6761 = vsel %vm6759, %v6753, %v6760
        %vm6762 = vcmp.eq.s32.totalorder %v6757, 2
        %v6763 = vxor.u32 %v6753, 2147483648
        %v6764 = vsel %vm6762, %v6763, %v6754
        %v6765 = vsel %vm6758, %v6761, %v6764
        %v6766 = vsel %vm6755, nan, %v6765
        %v6767 = vand.u32 2147483647, %v523
        %vm6768 = vcmp.le.f32.partialorder %v6767, 0.7853982
        %vm6769 = vcmp.lt.s32.totalorder %v523, 0
        %v6770 = vand.u32 %v523, 2139095040
        %v6771 = vshrl.u32 %v6770, 23
        %v6772 = vsub.s32 %v6771, 127
        %v6773 = vand.u32 2147483647, %v523
        %v6774 = vand.u32 %v6773, 8388607
        %v6775 = vor.u32 %v6774, 8388608
        %v6776 = vsub.s32 0, %v6775
        %v6777 = vadd.s32 %v6772, 1
        %vm6778 = vcmp.gt.s32.totalorder %v6777, 0
        %v6779 = vsel %vm6778, %v6777, 0
        %v6780 = vshrl.u32 %v6779, 5
        %v6781 = vand.u32 %v6779, 31
        %v6782 = vsub.s32 32, %v6781
        %v6783 = vshrl.u32 683565275, %v6782
        %v6784 = vshll.u32 683565275, %v6781
        %v6785 = vshrl.u32 2475754826, %v6782
        %v6786 = vor.u32 %v6784, %v6785
        %v6787 = vshll.u32 2475754826, %v6781
        %v6788 = vshrl.u32 2131351028, %v6782
        %v6789 = vor.u32 %v6787, %v6788
        %v6790 = vshll.u32 2131351028, %v6781
        %v6791 = vshrl.u32 2102212464, %v6782
        %v6792 = vor.u32 %v6790, %v6791
        %v6793 = vshll.u32 2102212464, %v6781
        %v6794 = vshrl.u32 920167782, %v6782
        %v6795 = vor.u32 %v6793, %v6794
        %v6796 = vshll.u32 920167782, %v6781
        %v6797 = vshrl.u32 1326507024, %v6782
        %v6798 = vor.u32 %v6796, %v6797
        %vm6799 = vcmp.lt.s32.totalorder %v6780, 1
        %vm6800 = vcmp.lt.s32.totalorder %v6780, 2
        %vm6801 = vcmp.lt.s32.totalorder %v6780, 3
        %vm6802 = vcmp.lt.s32.totalorder %v6780, 4
        %v6803 = vsel %vm6799, %v6783, %v6786
        %v6804 = vsel %vm6802, %v6792, 2102212464
        %v6805 = vsel %vm6801, %v6789, %v6804
        %v6806 = vsel %vm6800, %v6803, %v6805
        %v6807 = vsel %vm6799, %v6786, %v6789
        %v6808 = vsel %vm6802, %v6795, 920167782
        %v6809 = vsel %vm6801, %v6792, %v6808
        %v6810 = vsel %vm6800, %v6807, %v6809
        %v6811 = vsel %vm6799, %v6789, %v6792
        %v6812 = vsel %vm6802, %v6798, 1326507024
        %v6813 = vsel %vm6801, %v6795, %v6812
        %v6814 = vsel %vm6800, %v6811, %v6813
        %v6815 = vshll.u32 %v6775, 8
        %v6816 = vmul.u32.u64.compose %v6815, %v6814
        %v6817 = vextract.low.u32 %v6816
        %v6818 = vextract.high.u32 %v6816
        %v6819 = vmul.u32.u64.compose %v6815, %v6810
        %v6820 = vextract.low.u32 %v6819
        %v6821 = vextract.high.u32 %v6819
        %v6822 = vmul.u32 %v6815, %v6806
        %v6823 = vadd.s32 %v6818, %v6820
        %vm6824 = vc.u32 %v6818, %v6820
        %v6825 = vadd.s32 %v6821, 1
        %v6826 = vsel %vm6824, %v6825, %v6821
        %v6827 = vadd.s32 %v6822, %v6826
        %v6828 = vadd.s32 %v6827, 536870912
        %v6829 = vshrl.u32 %v6828, 30
        %v6830 = vshll.u32 %v6829, 30
        %v6831 = vsub.s32 %v6827, %v6830
        %vm6832 = vcmp.lt.s32.totalorder %v6831, 0
        %v6833 = vsub.s32 0, %v6831
        %v6834 = vsel %vm6832, %v6833, %v6831
        %v6835 = vclz %v6834
        %v6836 = vsub.s32 %v6835, 2
        %vm6837 = vcmp.gt.s32.totalorder 0, %v6836
        %v6838 = vsel %vm6837, 0, %v6836
        %v6839 = vsub.s32 32, %v6838
        %v6840 = vshll.u32 %v6831, %v6838
        %v6841 = vshrl.u32 %v6823, %v6839
        %v6842 = vor.u32 %v6840, %v6841
        %v6843 = vsub.s32 4294967266, %v6838
        %v6844 = vadd.s32 %v6843, 127
        %v6845 = vshll.u32 %v6844, 23
        %v6846 = vor.u32 4788187, %v6845
        %v6847 = vand.u32 2147483647, %v6846
        %v6849 = vcvt.s32.f32 %v6842
        %v6850 = vmul.f32 %v6849, %v6847
        %v6851 = vxor.u32 %v6850, 2147483648
        %v6852 = vsel %vm6769, %v6851, %v6850
        %v6853 = vsub.s32 4, %v6829
        %v6854 = vsel %vm6769, %v6853, %v6829
        %v6855 = vsel %vm6768, %v523, %v6852
        %v6856 = vsel %vm6768, 0, %v6854
        %v6857 = vcosq.f32.pop %v6855
        %v6858 = vsinq.f32.pop %v6855
        %vm6859 = vweird.f32 %v523
        %v6860 = vadd.s32 %v6856, 3
        %v6861 = vand.u32 %v6860, 3
        %vm6862 = vcmp.lt.s32.totalorder %v6861, 2
        %vm6863 = vcmp.eq.s32.totalorder %v6861, 0
        %v6864 = vxor.u32 %v6858, 2147483648
        %v6865 = vsel %vm6863, %v6857, %v6864
        %vm6866 = vcmp.eq.s32.totalorder %v6861, 2
        %v6867 = vxor.u32 %v6857, 2147483648
        %v6868 = vsel %vm6866, %v6867, %v6858
        %v6869 = vsel %vm6862, %v6865, %v6868
        %v6870 = vsel %vm6859, nan, %v6869
        %v6871 = vand.u32 2147483647, %v524
        %vm6872 = vcmp.le.f32.partialorder %v6871, 0.7853982
        %vm6873 = vcmp.lt.s32.totalorder %v524, 0
        %v6874 = vand.u32 %v524, 2139095040
        %v6875 = vshrl.u32 %v6874, 23
        %v6876 = vsub.s32 %v6875, 127
        %v6877 = vand.u32 2147483647, %v524
        %v6878 = vand.u32 %v6877, 8388607
        %v6879 = vor.u32 %v6878, 8388608
        %v6880 = vsub.s32 0, %v6879
        %v6881 = vadd.s32 %v6876, 1
        %vm6882 = vcmp.gt.s32.totalorder %v6881, 0
        %v6883 = vsel %vm6882, %v6881, 0
        %v6884 = vshrl.u32 %v6883, 5
        %v6885 = vand.u32 %v6883, 31
        %v6886 = vsub.s32 32, %v6885
        %v6887 = vshrl.u32 683565275, %v6886
        %v6888 = vshll.u32 683565275, %v6885
        %v6889 = vshrl.u32 2475754826, %v6886
        %v6890 = vor.u32 %v6888, %v6889
        %v6891 = vshll.u32 2475754826, %v6885
        %v6892 = vshrl.u32 2131351028, %v6886
        %v6893 = vor.u32 %v6891, %v6892
        %v6894 = vshll.u32 2131351028, %v6885
        %v6895 = vshrl.u32 2102212464, %v6886
        %v6896 = vor.u32 %v6894, %v6895
        %v6897 = vshll.u32 2102212464, %v6885
        %v6898 = vshrl.u32 920167782, %v6886
        %v6899 = vor.u32 %v6897, %v6898
        %v6900 = vshll.u32 920167782, %v6885
        %v6901 = vshrl.u32 1326507024, %v6886
        %v6902 = vor.u32 %v6900, %v6901
        %vm6903 = vcmp.lt.s32.totalorder %v6884, 1
        %vm6904 = vcmp.lt.s32.totalorder %v6884, 2
        %vm6905 = vcmp.lt.s32.totalorder %v6884, 3
        %vm6906 = vcmp.lt.s32.totalorder %v6884, 4
        %v6907 = vsel %vm6903, %v6887, %v6890
        %v6908 = vsel %vm6906, %v6896, 2102212464
        %v6909 = vsel %vm6905, %v6893, %v6908
        %v6910 = vsel %vm6904, %v6907, %v6909
        %v6911 = vsel %vm6903, %v6890, %v6893
        %v6912 = vsel %vm6906, %v6899, 920167782
        %v6913 = vsel %vm6905, %v6896, %v6912
        %v6914 = vsel %vm6904, %v6911, %v6913
        %v6915 = vsel %vm6903, %v6893, %v6896
        %v6916 = vsel %vm6906, %v6902, 1326507024
        %v6917 = vsel %vm6905, %v6899, %v6916
        %v6918 = vsel %vm6904, %v6915, %v6917
        %v6919 = vshll.u32 %v6879, 8
        %v6920 = vmul.u32.u64.compose %v6919, %v6918
        %v6921 = vextract.low.u32 %v6920
        %v6922 = vextract.high.u32 %v6920
        %v6923 = vmul.u32.u64.compose %v6919, %v6914
        %v6924 = vextract.low.u32 %v6923
        %v6925 = vextract.high.u32 %v6923
        %v6926 = vmul.u32 %v6919, %v6910
        %v6927 = vadd.s32 %v6922, %v6924
        %vm6928 = vc.u32 %v6922, %v6924
        %v6929 = vadd.s32 %v6925, 1
        %v6930 = vsel %vm6928, %v6929, %v6925
        %v6931 = vadd.s32 %v6926, %v6930
        %v6932 = vadd.s32 %v6931, 536870912
        %v6933 = vshrl.u32 %v6932, 30
        %v6934 = vshll.u32 %v6933, 30
        %v6935 = vsub.s32 %v6931, %v6934
        %vm6936 = vcmp.lt.s32.totalorder %v6935, 0
        %v6937 = vsub.s32 0, %v6935
        %v6938 = vsel %vm6936, %v6937, %v6935
        %v6939 = vclz %v6938
        %v6940 = vsub.s32 %v6939, 2
        %vm6941 = vcmp.gt.s32.totalorder 0, %v6940
        %v6942 = vsel %vm6941, 0, %v6940
        %v6943 = vsub.s32 32, %v6942
        %v6944 = vshll.u32 %v6935, %v6942
        %v6945 = vshrl.u32 %v6927, %v6943
        %v6946 = vor.u32 %v6944, %v6945
        %v6947 = vsub.s32 4294967266, %v6942
        %v6948 = vadd.s32 %v6947, 127
        %v6949 = vshll.u32 %v6948, 23
        %v6950 = vor.u32 4788187, %v6949
        %v6951 = vand.u32 2147483647, %v6950
        %v6953 = vcvt.s32.f32 %v6946
        %v6954 = vmul.f32 %v6953, %v6951
        %v6955 = vxor.u32 %v6954, 2147483648
        %v6956 = vsel %vm6873, %v6955, %v6954
        %v6957 = vsub.s32 4, %v6933
        %v6958 = vsel %vm6873, %v6957, %v6933
        %v6959 = vsel %vm6872, %v524, %v6956
        %v6960 = vsel %vm6872, 0, %v6958
        %v6961 = vcosq.f32.pop %v6959
        %v6962 = vsinq.f32.pop %v6959
        %vm6963 = vweird.f32 %v524
        %v6964 = vadd.s32 %v6960, 3
        %v6965 = vand.u32 %v6964, 3
        %vm6966 = vcmp.lt.s32.totalorder %v6965, 2
        %vm6967 = vcmp.eq.s32.totalorder %v6965, 0
        %v6968 = vxor.u32 %v6962, 2147483648
        %v6969 = vsel %vm6967, %v6961, %v6968
        %vm6970 = vcmp.eq.s32.totalorder %v6965, 2
        %v6971 = vxor.u32 %v6961, 2147483648
        %v6972 = vsel %vm6970, %v6971, %v6962
        %v6973 = vsel %vm6966, %v6969, %v6972
        %v6974 = vsel %vm6963, nan, %v6973
        %v6975 = vand.u32 2147483647, %v525
        %vm6976 = vcmp.le.f32.partialorder %v6975, 0.7853982
        %vm6977 = vcmp.lt.s32.totalorder %v525, 0
        %v6978 = vand.u32 %v525, 2139095040
        %v6979 = vshrl.u32 %v6978, 23
        %v6980 = vsub.s32 %v6979, 127
        %v6981 = vand.u32 2147483647, %v525
        %v6982 = vand.u32 %v6981, 8388607
        %v6983 = vor.u32 %v6982, 8388608
        %v6984 = vsub.s32 0, %v6983
        %v6985 = vadd.s32 %v6980, 1
        %vm6986 = vcmp.gt.s32.totalorder %v6985, 0
        %v6987 = vsel %vm6986, %v6985, 0
        %v6988 = vshrl.u32 %v6987, 5
        %v6989 = vand.u32 %v6987, 31
        %v6990 = vsub.s32 32, %v6989
        %v6991 = vshrl.u32 683565275, %v6990
        %v6992 = vshll.u32 683565275, %v6989
        %v6993 = vshrl.u32 2475754826, %v6990
        %v6994 = vor.u32 %v6992, %v6993
        %v6995 = vshll.u32 2475754826, %v6989
        %v6996 = vshrl.u32 2131351028, %v6990
        %v6997 = vor.u32 %v6995, %v6996
        %v6998 = vshll.u32 2131351028, %v6989
        %v6999 = vshrl.u32 2102212464, %v6990
        %v7000 = vor.u32 %v6998, %v6999
        %v7001 = vshll.u32 2102212464, %v6989
        %v7002 = vshrl.u32 920167782, %v6990
        %v7003 = vor.u32 %v7001, %v7002
        %v7004 = vshll.u32 920167782, %v6989
        %v7005 = vshrl.u32 1326507024, %v6990
        %v7006 = vor.u32 %v7004, %v7005
        %vm7007 = vcmp.lt.s32.totalorder %v6988, 1
        %vm7008 = vcmp.lt.s32.totalorder %v6988, 2
        %vm7009 = vcmp.lt.s32.totalorder %v6988, 3
        %vm7010 = vcmp.lt.s32.totalorder %v6988, 4
        %v7011 = vsel %vm7007, %v6991, %v6994
        %v7012 = vsel %vm7010, %v7000, 2102212464
        %v7013 = vsel %vm7009, %v6997, %v7012
        %v7014 = vsel %vm7008, %v7011, %v7013
        %v7015 = vsel %vm7007, %v6994, %v6997
        %v7016 = vsel %vm7010, %v7003, 920167782
        %v7017 = vsel %vm7009, %v7000, %v7016
        %v7018 = vsel %vm7008, %v7015, %v7017
        %v7019 = vsel %vm7007, %v6997, %v7000
        %v7020 = vsel %vm7010, %v7006, 1326507024
        %v7021 = vsel %vm7009, %v7003, %v7020
        %v7022 = vsel %vm7008, %v7019, %v7021
        %v7023 = vshll.u32 %v6983, 8
        %v7024 = vmul.u32.u64.compose %v7023, %v7022
        %v7025 = vextract.low.u32 %v7024
        %v7026 = vextract.high.u32 %v7024
        %v7027 = vmul.u32.u64.compose %v7023, %v7018
        %v7028 = vextract.low.u32 %v7027
        %v7029 = vextract.high.u32 %v7027
        %v7030 = vmul.u32 %v7023, %v7014
        %v7031 = vadd.s32 %v7026, %v7028
        %vm7032 = vc.u32 %v7026, %v7028
        %v7033 = vadd.s32 %v7029, 1
        %v7034 = vsel %vm7032, %v7033, %v7029
        %v7035 = vadd.s32 %v7030, %v7034
        %v7036 = vadd.s32 %v7035, 536870912
        %v7037 = vshrl.u32 %v7036, 30
        %v7038 = vshll.u32 %v7037, 30
        %v7039 = vsub.s32 %v7035, %v7038
        %vm7040 = vcmp.lt.s32.totalorder %v7039, 0
        %v7041 = vsub.s32 0, %v7039
        %v7042 = vsel %vm7040, %v7041, %v7039
        %v7043 = vclz %v7042
        %v7044 = vsub.s32 %v7043, 2
        %vm7045 = vcmp.gt.s32.totalorder 0, %v7044
        %v7046 = vsel %vm7045, 0, %v7044
        %v7047 = vsub.s32 32, %v7046
        %v7048 = vshll.u32 %v7039, %v7046
        %v7049 = vshrl.u32 %v7031, %v7047
        %v7050 = vor.u32 %v7048, %v7049
        %v7051 = vsub.s32 4294967266, %v7046
        %v7052 = vadd.s32 %v7051, 127
        %v7053 = vshll.u32 %v7052, 23
        %v7054 = vor.u32 4788187, %v7053
        %v7055 = vand.u32 2147483647, %v7054
        %v7057 = vcvt.s32.f32 %v7050
        %v7058 = vmul.f32 %v7057, %v7055
        %v7059 = vxor.u32 %v7058, 2147483648
        %v7060 = vsel %vm6977, %v7059, %v7058
        %v7061 = vsub.s32 4, %v7037
        %v7062 = vsel %vm6977, %v7061, %v7037
        %v7063 = vsel %vm6976, %v525, %v7060
        %v7064 = vsel %vm6976, 0, %v7062
        %v7065 = vcosq.f32.pop %v7063
        %v7066 = vsinq.f32.pop %v7063
        %vm7067 = vweird.f32 %v525
        %v7068 = vadd.s32 %v7064, 3
        %v7069 = vand.u32 %v7068, 3
        %vm7070 = vcmp.lt.s32.totalorder %v7069, 2
        %vm7071 = vcmp.eq.s32.totalorder %v7069, 0
        %v7072 = vxor.u32 %v7066, 2147483648
        %v7073 = vsel %vm7071, %v7065, %v7072
        %vm7074 = vcmp.eq.s32.totalorder %v7069, 2
        %v7075 = vxor.u32 %v7065, 2147483648
        %v7076 = vsel %vm7074, %v7075, %v7066
        %v7077 = vsel %vm7070, %v7073, %v7076
        %v7078 = vsel %vm7067, nan, %v7077
        %v7079 = vand.u32 2147483647, %v526
        %vm7080 = vcmp.le.f32.partialorder %v7079, 0.7853982
        %vm7081 = vcmp.lt.s32.totalorder %v526, 0
        %v7082 = vand.u32 %v526, 2139095040
        %v7083 = vshrl.u32 %v7082, 23
        %v7084 = vsub.s32 %v7083, 127
        %v7085 = vand.u32 2147483647, %v526
        %v7086 = vand.u32 %v7085, 8388607
        %v7087 = vor.u32 %v7086, 8388608
        %v7088 = vsub.s32 0, %v7087
        %v7089 = vadd.s32 %v7084, 1
        %vm7090 = vcmp.gt.s32.totalorder %v7089, 0
        %v7091 = vsel %vm7090, %v7089, 0
        %v7092 = vshrl.u32 %v7091, 5
        %v7093 = vand.u32 %v7091, 31
        %v7094 = vsub.s32 32, %v7093
        %v7095 = vshrl.u32 683565275, %v7094
        %v7096 = vshll.u32 683565275, %v7093
        %v7097 = vshrl.u32 2475754826, %v7094
        %v7098 = vor.u32 %v7096, %v7097
        %v7099 = vshll.u32 2475754826, %v7093
        %v7100 = vshrl.u32 2131351028, %v7094
        %v7101 = vor.u32 %v7099, %v7100
        %v7102 = vshll.u32 2131351028, %v7093
        %v7103 = vshrl.u32 2102212464, %v7094
        %v7104 = vor.u32 %v7102, %v7103
        %v7105 = vshll.u32 2102212464, %v7093
        %v7106 = vshrl.u32 920167782, %v7094
        %v7107 = vor.u32 %v7105, %v7106
        %v7108 = vshll.u32 920167782, %v7093
        %v7109 = vshrl.u32 1326507024, %v7094
        %v7110 = vor.u32 %v7108, %v7109
        %vm7111 = vcmp.lt.s32.totalorder %v7092, 1
        %vm7112 = vcmp.lt.s32.totalorder %v7092, 2
        %vm7113 = vcmp.lt.s32.totalorder %v7092, 3
        %vm7114 = vcmp.lt.s32.totalorder %v7092, 4
        %v7115 = vsel %vm7111, %v7095, %v7098
        %v7116 = vsel %vm7114, %v7104, 2102212464
        %v7117 = vsel %vm7113, %v7101, %v7116
        %v7118 = vsel %vm7112, %v7115, %v7117
        %v7119 = vsel %vm7111, %v7098, %v7101
        %v7120 = vsel %vm7114, %v7107, 920167782
        %v7121 = vsel %vm7113, %v7104, %v7120
        %v7122 = vsel %vm7112, %v7119, %v7121
        %v7123 = vsel %vm7111, %v7101, %v7104
        %v7124 = vsel %vm7114, %v7110, 1326507024
        %v7125 = vsel %vm7113, %v7107, %v7124
        %v7126 = vsel %vm7112, %v7123, %v7125
        %v7127 = vshll.u32 %v7087, 8
        %v7128 = vmul.u32.u64.compose %v7127, %v7126
        %v7129 = vextract.low.u32 %v7128
        %v7130 = vextract.high.u32 %v7128
        %v7131 = vmul.u32.u64.compose %v7127, %v7122
        %v7132 = vextract.low.u32 %v7131
        %v7133 = vextract.high.u32 %v7131
        %v7134 = vmul.u32 %v7127, %v7118
        %v7135 = vadd.s32 %v7130, %v7132
        %vm7136 = vc.u32 %v7130, %v7132
        %v7137 = vadd.s32 %v7133, 1
        %v7138 = vsel %vm7136, %v7137, %v7133
        %v7139 = vadd.s32 %v7134, %v7138
        %v7140 = vadd.s32 %v7139, 536870912
        %v7141 = vshrl.u32 %v7140, 30
        %v7142 = vshll.u32 %v7141, 30
        %v7143 = vsub.s32 %v7139, %v7142
        %vm7144 = vcmp.lt.s32.totalorder %v7143, 0
        %v7145 = vsub.s32 0, %v7143
        %v7146 = vsel %vm7144, %v7145, %v7143
        %v7147 = vclz %v7146
        %v7148 = vsub.s32 %v7147, 2
        %vm7149 = vcmp.gt.s32.totalorder 0, %v7148
        %v7150 = vsel %vm7149, 0, %v7148
        %v7151 = vsub.s32 32, %v7150
        %v7152 = vshll.u32 %v7143, %v7150
        %v7153 = vshrl.u32 %v7135, %v7151
        %v7154 = vor.u32 %v7152, %v7153
        %v7155 = vsub.s32 4294967266, %v7150
        %v7156 = vadd.s32 %v7155, 127
        %v7157 = vshll.u32 %v7156, 23
        %v7158 = vor.u32 4788187, %v7157
        %v7159 = vand.u32 2147483647, %v7158
        %v7161 = vcvt.s32.f32 %v7154
        %v7162 = vmul.f32 %v7161, %v7159
        %v7163 = vxor.u32 %v7162, 2147483648
        %v7164 = vsel %vm7081, %v7163, %v7162
        %v7165 = vsub.s32 4, %v7141
        %v7166 = vsel %vm7081, %v7165, %v7141
        %v7167 = vsel %vm7080, %v526, %v7164
        %v7168 = vsel %vm7080, 0, %v7166
        %v7169 = vcosq.f32.pop %v7167
        %v7170 = vsinq.f32.pop %v7167
        %vm7171 = vweird.f32 %v526
        %v7172 = vadd.s32 %v7168, 3
        %v7173 = vand.u32 %v7172, 3
        %vm7174 = vcmp.lt.s32.totalorder %v7173, 2
        %vm7175 = vcmp.eq.s32.totalorder %v7173, 0
        %v7176 = vxor.u32 %v7170, 2147483648
        %v7177 = vsel %vm7175, %v7169, %v7176
        %vm7178 = vcmp.eq.s32.totalorder %v7173, 2
        %v7179 = vxor.u32 %v7169, 2147483648
        %v7180 = vsel %vm7178, %v7179, %v7170
        %v7181 = vsel %vm7174, %v7177, %v7180
        %v7182 = vsel %vm7171, nan, %v7181
        %v7183 = vmul.f32 %v3958, %v245
        %v7184 = vmul.f32 %v4062, %v252
        %v7185 = vmul.f32 %v4166, %v259
        %v7186 = vmul.f32 %v4270, %v266
        %v7187 = vmul.f32 %v4374, %v273
        %v7188 = vmul.f32 %v4478, %v280
        %v7189 = vmul.f32 %v4582, %v287
        %v7190 = vmul.f32 %v4686, %v294
        %v7191 = vmul.f32 %v4790, %v301
        %v7192 = vmul.f32 %v4894, %v308
        %v7193 = vmul.f32 %v4998, %v315
        %v7194 = vmul.f32 %v5102, %v322
        %v7195 = vmul.f32 %v5206, %v329
        %v7196 = vmul.f32 %v5310, %v336
        %v7197 = vmul.f32 %v5414, %v343
        %v7198 = vmul.f32 %v5518, %v350
        %v7199 = vmul.f32 %v5622, %v357
        %v7200 = vmul.f32 %v5726, %v364
        %v7201 = vmul.f32 %v5830, %v371
        %v7202 = vmul.f32 %v5934, %v378
        %v7203 = vmul.f32 %v6038, %v385
        %v7204 = vmul.f32 %v6142, %v392
        %v7205 = vmul.f32 %v6246, %v399
        %v7206 = vmul.f32 %v6350, %v406
        %v7207 = vmul.f32 %v6454, %v413
        %v7208 = vmul.f32 %v6558, %v420
        %v7209 = vmul.f32 %v6662, %v427
        %v7210 = vmul.f32 %v6766, %v434
        %v7211 = vmul.f32 %v6870, %v441
        %v7212 = vmul.f32 %v6974, %v448
        %v7213 = vmul.f32 %v7078, %v455
        %v7214 = vmul.f32 %v7182, %v462
        %v7215 = vadd.f32 %v3823, %v7183
        %v7216 = vadd.f32 %v3824, %v7184
        %v7217 = vadd.f32 %v3825, %v7185
        %v7218 = vadd.f32 %v3826, %v7186
        %v7219 = vadd.f32 %v3827, %v7187
        %v7220 = vadd.f32 %v3828, %v7188
        %v7221 = vadd.f32 %v3829, %v7189
        %v7222 = vadd.f32 %v3830, %v7190
        %v7223 = vadd.f32 %v3831, %v7191
        %v7224 = vadd.f32 %v3832, %v7192
        %v7225 = vadd.f32 %v3833, %v7193
        %v7226 = vadd.f32 %v3834, %v7194
        %v7227 = vadd.f32 %v3835, %v7195
        %v7228 = vadd.f32 %v3836, %v7196
        %v7229 = vadd.f32 %v3837, %v7197
        %v7230 = vadd.f32 %v3838, %v7198
        %v7231 = vadd.f32 %v3839, %v7199
        %v7232 = vadd.f32 %v3840, %v7200
        %v7233 = vadd.f32 %v3841, %v7201
        %v7234 = vadd.f32 %v3842, %v7202
        %v7235 = vadd.f32 %v3843, %v7203
        %v7236 = vadd.f32 %v3844, %v7204
        %v7237 = vadd.f32 %v3845, %v7205
        %v7238 = vadd.f32 %v3846, %v7206
        %v7239 = vadd.f32 %v3847, %v7207
        %v7240 = vadd.f32 %v3848, %v7208
        %v7241 = vadd.f32 %v3849, %v7209
        %v7242 = vadd.f32 %v3850, %v7210
        %v7243 = vadd.f32 %v3851, %v7211
        %v7244 = vadd.f32 %v3852, %v7212
        %v7245 = vadd.f32 %v3853, %v7213
        %v7246 = vadd.f32 %v3854, %v7214
        %v7247 = vpack.c.bf16 %v3825, %v3823
        %v7248 = vpack.c.bf16 %v3826, %v3824
        %v7249 = vpack.c.bf16 %v3829, %v3827
        %v7250 = vpack.c.bf16 %v3830, %v3828
        %v7251 = vpack.c.bf16 %v3833, %v3831
        %v7252 = vpack.c.bf16 %v3834, %v3832
        %v7253 = vpack.c.bf16 %v3837, %v3835
        %v7254 = vpack.c.bf16 %v3838, %v3836
        %v7255 = vpack.c.bf16 %v3841, %v3839
        %v7256 = vpack.c.bf16 %v3842, %v3840
        %v7257 = vpack.c.bf16 %v3845, %v3843
        %v7258 = vpack.c.bf16 %v3846, %v3844
        %v7259 = vpack.c.bf16 %v3849, %v3847
        %v7260 = vpack.c.bf16 %v3850, %v3848
        %v7261 = vpack.c.bf16 %v3853, %v3851
        %v7262 = vpack.c.bf16 %v3854, %v3852
        %v7263 = vunpack.c.l.bf16 %v7247
        %v7264 = vunpack.c.l.bf16 %v7248
        %v7265 = vunpack.c.h.bf16 %v7247
        %v7266 = vunpack.c.h.bf16 %v7248
        %v7267 = vunpack.c.l.bf16 %v7249
        %v7268 = vunpack.c.l.bf16 %v7250
        %v7269 = vunpack.c.h.bf16 %v7249
        %v7270 = vunpack.c.h.bf16 %v7250
        %v7271 = vunpack.c.l.bf16 %v7251
        %v7272 = vunpack.c.l.bf16 %v7252
        %v7273 = vunpack.c.h.bf16 %v7251
        %v7274 = vunpack.c.h.bf16 %v7252
        %v7275 = vunpack.c.l.bf16 %v7253
        %v7276 = vunpack.c.l.bf16 %v7254
        %v7277 = vunpack.c.h.bf16 %v7253
        %v7278 = vunpack.c.h.bf16 %v7254
        %v7279 = vunpack.c.l.bf16 %v7255
        %v7280 = vunpack.c.l.bf16 %v7256
        %v7281 = vunpack.c.h.bf16 %v7255
        %v7282 = vunpack.c.h.bf16 %v7256
        %v7283 = vunpack.c.l.bf16 %v7257
        %v7284 = vunpack.c.l.bf16 %v7258
        %v7285 = vunpack.c.h.bf16 %v7257
        %v7286 = vunpack.c.h.bf16 %v7258
        %v7287 = vunpack.c.l.bf16 %v7259
        %v7288 = vunpack.c.l.bf16 %v7260
        %v7289 = vunpack.c.h.bf16 %v7259
        %v7290 = vunpack.c.h.bf16 %v7260
        %v7291 = vunpack.c.l.bf16 %v7261
        %v7292 = vunpack.c.l.bf16 %v7262
        %v7293 = vunpack.c.h.bf16 %v7261
        %v7294 = vunpack.c.h.bf16 %v7262
        %v7295 = vsub.f32 %v3823, %v7263
        %v7296 = vsub.f32 %v3824, %v7264
        %v7297 = vsub.f32 %v3825, %v7265
        %v7298 = vsub.f32 %v3826, %v7266
        %v7299 = vsub.f32 %v3827, %v7267
        %v7300 = vsub.f32 %v3828, %v7268
        %v7301 = vsub.f32 %v3829, %v7269
        %v7302 = vsub.f32 %v3830, %v7270
        %v7303 = vsub.f32 %v3831, %v7271
        %v7304 = vsub.f32 %v3832, %v7272
        %v7305 = vsub.f32 %v3833, %v7273
        %v7306 = vsub.f32 %v3834, %v7274
        %v7307 = vsub.f32 %v3835, %v7275
        %v7308 = vsub.f32 %v3836, %v7276
        %v7309 = vsub.f32 %v3837, %v7277
        %v7310 = vsub.f32 %v3838, %v7278
        %v7311 = vsub.f32 %v3839, %v7279
        %v7312 = vsub.f32 %v3840, %v7280
        %v7313 = vsub.f32 %v3841, %v7281
        %v7314 = vsub.f32 %v3842, %v7282
        %v7315 = vsub.f32 %v3843, %v7283
        %v7316 = vsub.f32 %v3844, %v7284
        %v7317 = vsub.f32 %v3845, %v7285
        %v7318 = vsub.f32 %v3846, %v7286
        %v7319 = vsub.f32 %v3847, %v7287
        %v7320 = vsub.f32 %v3848, %v7288
        %v7321 = vsub.f32 %v3849, %v7289
        %v7322 = vsub.f32 %v3850, %v7290
        %v7323 = vsub.f32 %v3851, %v7291
        %v7324 = vsub.f32 %v3852, %v7292
        %v7325 = vsub.f32 %v3853, %v7293
        %v7326 = vsub.f32 %v3854, %v7294
        %v7327 = vpack.c.bf16 %v7297, %v7295
        %v7328 = vpack.c.bf16 %v7298, %v7296
        %v7329 = vpack.c.bf16 %v7301, %v7299
        %v7330 = vpack.c.bf16 %v7302, %v7300
        %v7331 = vpack.c.bf16 %v7305, %v7303
        %v7332 = vpack.c.bf16 %v7306, %v7304
        %v7333 = vpack.c.bf16 %v7309, %v7307
        %v7334 = vpack.c.bf16 %v7310, %v7308
        %v7335 = vpack.c.bf16 %v7313, %v7311
        %v7336 = vpack.c.bf16 %v7314, %v7312
        %v7337 = vpack.c.bf16 %v7317, %v7315
        %v7338 = vpack.c.bf16 %v7318, %v7316
        %v7339 = vpack.c.bf16 %v7321, %v7319
        %v7340 = vpack.c.bf16 %v7322, %v7320
        %v7341 = vpack.c.bf16 %v7325, %v7323
        %v7342 = vpack.c.bf16 %v7326, %v7324
        %v7359 = vunpack.c.l.b16 %v7247
        %v7360 = vunpack.c.l.b16 %v7248
        %v7361 = vunpack.c.h.b16 %v7247
        %v7362 = vunpack.c.h.b16 %v7248
        %v7363 = vunpack.c.l.b16 %v7249
        %v7364 = vunpack.c.l.b16 %v7250
        %v7365 = vunpack.c.h.b16 %v7249
        %v7366 = vunpack.c.h.b16 %v7250
        %v7367 = vunpack.c.l.b16 %v7251
        %v7368 = vunpack.c.l.b16 %v7252
        %v7369 = vunpack.c.h.b16 %v7251
        %v7370 = vunpack.c.h.b16 %v7252
        %v7371 = vunpack.c.l.b16 %v7253
        %v7372 = vunpack.c.l.b16 %v7254
        %v7373 = vunpack.c.h.b16 %v7253
        %v7374 = vunpack.c.h.b16 %v7254
        %v7375 = vunpack.c.l.b16 %v7255
        %v7376 = vunpack.c.l.b16 %v7256
        %v7377 = vunpack.c.h.b16 %v7255
        %v7378 = vunpack.c.h.b16 %v7256
        %v7379 = vunpack.c.l.b16 %v7257
        %v7380 = vunpack.c.l.b16 %v7258
        %v7381 = vunpack.c.h.b16 %v7257
        %v7382 = vunpack.c.h.b16 %v7258
        %v7383 = vunpack.c.l.b16 %v7259
        %v7384 = vunpack.c.l.b16 %v7260
        %v7385 = vunpack.c.h.b16 %v7259
        %v7386 = vunpack.c.h.b16 %v7260
        %v7387 = vunpack.c.l.b16 %v7261
        %v7388 = vunpack.c.l.b16 %v7262
        %v7389 = vunpack.c.h.b16 %v7261
        %v7390 = vunpack.c.h.b16 %v7262
        %v7391 = vpack.c.b16 %v7360, %v7359
        %v7392 = vpack.c.b16 %v7362, %v7361
        %v7393 = vpack.c.b16 %v7364, %v7363
        %v7394 = vpack.c.b16 %v7366, %v7365
        %v7395 = vpack.c.b16 %v7368, %v7367
        %v7396 = vpack.c.b16 %v7370, %v7369
        %v7397 = vpack.c.b16 %v7372, %v7371
        %v7398 = vpack.c.b16 %v7374, %v7373
        %v7399 = vpack.c.b16 %v7376, %v7375
        %v7400 = vpack.c.b16 %v7378, %v7377
        %v7401 = vpack.c.b16 %v7380, %v7379
        %v7402 = vpack.c.b16 %v7382, %v7381
        %v7403 = vpack.c.b16 %v7384, %v7383
        %v7404 = vpack.c.b16 %v7386, %v7385
        %v7405 = vpack.c.b16 %v7388, %v7387
        %v7406 = vpack.c.b16 %v7390, %v7389
        %7423 = vst [vmem:[%s203] sm:$0xff] %v7391
        %7424 = vst [vmem:[%s203 + $0x8] sm:$0xff] %v7392
        %7425 = vst [vmem:[%s203 + $0x10] sm:$0xff] %v7393
        %7426 = vst [vmem:[%s203 + $0x18] sm:$0xff] %v7394
        %7427 = vst [vmem:[%s203 + $0x20] sm:$0xff] %v7395
        %7428 = vst [vmem:[%s203 + $0x28] sm:$0xff] %v7396
        %7429 = vst [vmem:[%s203 + $0x30] sm:$0xff] %v7397
        %7430 = vst [vmem:[%s203 + $0x38] sm:$0xff] %v7398
        %7431 = vst [vmem:[%s203 + $0x40] sm:$0xff] %v7399
        %7432 = vst [vmem:[%s203 + $0x48] sm:$0xff] %v7400
        %7433 = vst [vmem:[%s203 + $0x50] sm:$0xff] %v7401
        %7434 = vst [vmem:[%s203 + $0x58] sm:$0xff] %v7402
        %7435 = vst [vmem:[%s203 + $0x60] sm:$0xff] %v7403
        %7436 = vst [vmem:[%s203 + $0x68] sm:$0xff] %v7404
        %7437 = vst [vmem:[%s203 + $0x70] sm:$0xff] %v7405
        %7438 = vst [vmem:[%s203 + $0x78] sm:$0xff] %v7406
        %v7455 = vunpack.c.l.b16 %v7327
        %v7456 = vunpack.c.l.b16 %v7328
        %v7457 = vunpack.c.h.b16 %v7327
        %v7458 = vunpack.c.h.b16 %v7328
        %v7459 = vunpack.c.l.b16 %v7329
        %v7460 = vunpack.c.l.b16 %v7330
        %v7461 = vunpack.c.h.b16 %v7329
        %v7462 = vunpack.c.h.b16 %v7330
        %v7463 = vunpack.c.l.b16 %v7331
        %v7464 = vunpack.c.l.b16 %v7332
        %v7465 = vunpack.c.h.b16 %v7331
        %v7466 = vunpack.c.h.b16 %v7332
        %v7467 = vunpack.c.l.b16 %v7333
        %v7468 = vunpack.c.l.b16 %v7334
        %v7469 = vunpack.c.h.b16 %v7333
        %v7470 = vunpack.c.h.b16 %v7334
        %v7471 = vunpack.c.l.b16 %v7335
        %v7472 = vunpack.c.l.b16 %v7336
        %v7473 = vunpack.c.h.b16 %v7335
        %v7474 = vunpack.c.h.b16 %v7336
        %v7475 = vunpack.c.l.b16 %v7337
        %v7476 = vunpack.c.l.b16 %v7338
        %v7477 = vunpack.c.h.b16 %v7337
        %v7478 = vunpack.c.h.b16 %v7338
        %v7479 = vunpack.c.l.b16 %v7339
        %v7480 = vunpack.c.l.b16 %v7340
        %v7481 = vunpack.c.h.b16 %v7339
        %v7482 = vunpack.c.h.b16 %v7340
        %v7483 = vunpack.c.l.b16 %v7341
        %v7484 = vunpack.c.l.b16 %v7342
        %v7485 = vunpack.c.h.b16 %v7341
        %v7486 = vunpack.c.h.b16 %v7342
        %v7487 = vpack.c.b16 %v7456, %v7455
        %v7488 = vpack.c.b16 %v7458, %v7457
        %v7489 = vpack.c.b16 %v7460, %v7459
        %v7490 = vpack.c.b16 %v7462, %v7461
        %v7491 = vpack.c.b16 %v7464, %v7463
        %v7492 = vpack.c.b16 %v7466, %v7465
        %v7493 = vpack.c.b16 %v7468, %v7467
        %v7494 = vpack.c.b16 %v7470, %v7469
        %v7495 = vpack.c.b16 %v7472, %v7471
        %v7496 = vpack.c.b16 %v7474, %v7473
        %v7497 = vpack.c.b16 %v7476, %v7475
        %v7498 = vpack.c.b16 %v7478, %v7477
        %v7499 = vpack.c.b16 %v7480, %v7479
        %v7500 = vpack.c.b16 %v7482, %v7481
        %v7501 = vpack.c.b16 %v7484, %v7483
        %v7502 = vpack.c.b16 %v7486, %v7485
        %s7519 = scalar_lea.vmem %s203, 128 [#allocation7]
        %7520 = vst [vmem:[%s7519] sm:$0xff] %v7487
        %7521 = vst [vmem:[%s7519 + $0x8] sm:$0xff] %v7488
        %7522 = vst [vmem:[%s7519 + $0x10] sm:$0xff] %v7489
        %7523 = vst [vmem:[%s7519 + $0x18] sm:$0xff] %v7490
        %7524 = vst [vmem:[%s7519 + $0x20] sm:$0xff] %v7491
        %7525 = vst [vmem:[%s7519 + $0x28] sm:$0xff] %v7492
        %7526 = vst [vmem:[%s7519 + $0x30] sm:$0xff] %v7493
        %7527 = vst [vmem:[%s7519 + $0x38] sm:$0xff] %v7494
        %7528 = vst [vmem:[%s7519 + $0x40] sm:$0xff] %v7495
        %7529 = vst [vmem:[%s7519 + $0x48] sm:$0xff] %v7496
        %7530 = vst [vmem:[%s7519 + $0x50] sm:$0xff] %v7497
        %7531 = vst [vmem:[%s7519 + $0x58] sm:$0xff] %v7498
        %7532 = vst [vmem:[%s7519 + $0x60] sm:$0xff] %v7499
        %7533 = vst [vmem:[%s7519 + $0x68] sm:$0xff] %v7500
        %7534 = vst [vmem:[%s7519 + $0x70] sm:$0xff] %v7501
        %7535 = vst [vmem:[%s7519 + $0x78] sm:$0xff] %v7502
        %v7536 = vpack.c.bf16 %v7185, %v7183
        %v7537 = vpack.c.bf16 %v7186, %v7184
        %v7538 = vpack.c.bf16 %v7189, %v7187
        %v7539 = vpack.c.bf16 %v7190, %v7188
        %v7540 = vpack.c.bf16 %v7193, %v7191
        %v7541 = vpack.c.bf16 %v7194, %v7192
        %v7542 = vpack.c.bf16 %v7197, %v7195
        %v7543 = vpack.c.bf16 %v7198, %v7196
        %v7544 = vpack.c.bf16 %v7201, %v7199
        %v7545 = vpack.c.bf16 %v7202, %v7200
        %v7546 = vpack.c.bf16 %v7205, %v7203
        %v7547 = vpack.c.bf16 %v7206, %v7204
        %v7548 = vpack.c.bf16 %v7209, %v7207
        %v7549 = vpack.c.bf16 %v7210, %v7208
        %v7550 = vpack.c.bf16 %v7213, %v7211
        %v7551 = vpack.c.bf16 %v7214, %v7212
        %v7552 = vunpack.c.l.bf16 %v7536
        %v7553 = vunpack.c.l.bf16 %v7537
        %v7554 = vunpack.c.h.bf16 %v7536
        %v7555 = vunpack.c.h.bf16 %v7537
        %v7556 = vunpack.c.l.bf16 %v7538
        %v7557 = vunpack.c.l.bf16 %v7539
        %v7558 = vunpack.c.h.bf16 %v7538
        %v7559 = vunpack.c.h.bf16 %v7539
        %v7560 = vunpack.c.l.bf16 %v7540
        %v7561 = vunpack.c.l.bf16 %v7541
        %v7562 = vunpack.c.h.bf16 %v7540
        %v7563 = vunpack.c.h.bf16 %v7541
        %v7564 = vunpack.c.l.bf16 %v7542
        %v7565 = vunpack.c.l.bf16 %v7543
        %v7566 = vunpack.c.h.bf16 %v7542
        %v7567 = vunpack.c.h.bf16 %v7543
        %v7568 = vunpack.c.l.bf16 %v7544
        %v7569 = vunpack.c.l.bf16 %v7545
        %v7570 = vunpack.c.h.bf16 %v7544
        %v7571 = vunpack.c.h.bf16 %v7545
        %v7572 = vunpack.c.l.bf16 %v7546
        %v7573 = vunpack.c.l.bf16 %v7547
        %v7574 = vunpack.c.h.bf16 %v7546
        %v7575 = vunpack.c.h.bf16 %v7547
        %v7576 = vunpack.c.l.bf16 %v7548
        %v7577 = vunpack.c.l.bf16 %v7549
        %v7578 = vunpack.c.h.bf16 %v7548
        %v7579 = vunpack.c.h.bf16 %v7549
        %v7580 = vunpack.c.l.bf16 %v7550
        %v7581 = vunpack.c.l.bf16 %v7551
        %v7582 = vunpack.c.h.bf16 %v7550
        %v7583 = vunpack.c.h.bf16 %v7551
        %v7584 = vsub.f32 %v7183, %v7552
        %v7585 = vsub.f32 %v7184, %v7553
        %v7586 = vsub.f32 %v7185, %v7554
        %v7587 = vsub.f32 %v7186, %v7555
        %v7588 = vsub.f32 %v7187, %v7556
        %v7589 = vsub.f32 %v7188, %v7557
        %v7590 = vsub.f32 %v7189, %v7558
        %v7591 = vsub.f32 %v7190, %v7559
        %v7592 = vsub.f32 %v7191, %v7560
        %v7593 = vsub.f32 %v7192, %v7561
        %v7594 = vsub.f32 %v7193, %v7562
        %v7595 = vsub.f32 %v7194, %v7563
        %v7596 = vsub.f32 %v7195, %v7564
        %v7597 = vsub.f32 %v7196, %v7565
        %v7598 = vsub.f32 %v7197, %v7566
        %v7599 = vsub.f32 %v7198, %v7567
        %v7600 = vsub.f32 %v7199, %v7568
        %v7601 = vsub.f32 %v7200, %v7569
        %v7602 = vsub.f32 %v7201, %v7570
        %v7603 = vsub.f32 %v7202, %v7571
        %v7604 = vsub.f32 %v7203, %v7572
        %v7605 = vsub.f32 %v7204, %v7573
        %v7606 = vsub.f32 %v7205, %v7574
        %v7607 = vsub.f32 %v7206, %v7575
        %v7608 = vsub.f32 %v7207, %v7576
        %v7609 = vsub.f32 %v7208, %v7577
        %v7610 = vsub.f32 %v7209, %v7578
        %v7611 = vsub.f32 %v7210, %v7579
        %v7612 = vsub.f32 %v7211, %v7580
        %v7613 = vsub.f32 %v7212, %v7581
        %v7614 = vsub.f32 %v7213, %v7582
        %v7615 = vsub.f32 %v7214, %v7583
        %v7616 = vpack.c.bf16 %v7586, %v7584
        %v7617 = vpack.c.bf16 %v7587, %v7585
        %v7618 = vpack.c.bf16 %v7590, %v7588
        %v7619 = vpack.c.bf16 %v7591, %v7589
        %v7620 = vpack.c.bf16 %v7594, %v7592
        %v7621 = vpack.c.bf16 %v7595, %v7593
        %v7622 = vpack.c.bf16 %v7598, %v7596
        %v7623 = vpack.c.bf16 %v7599, %v7597
        %v7624 = vpack.c.bf16 %v7602, %v7600
        %v7625 = vpack.c.bf16 %v7603, %v7601
        %v7626 = vpack.c.bf16 %v7606, %v7604
        %v7627 = vpack.c.bf16 %v7607, %v7605
        %v7628 = vpack.c.bf16 %v7610, %v7608
        %v7629 = vpack.c.bf16 %v7611, %v7609
        %v7630 = vpack.c.bf16 %v7614, %v7612
        %v7631 = vpack.c.bf16 %v7615, %v7613
        %v7648 = vunpack.c.l.b16 %v7536
        %v7649 = vunpack.c.l.b16 %v7537
        %v7650 = vunpack.c.h.b16 %v7536
        %v7651 = vunpack.c.h.b16 %v7537
        %v7652 = vunpack.c.l.b16 %v7538
        %v7653 = vunpack.c.l.b16 %v7539
        %v7654 = vunpack.c.h.b16 %v7538
        %v7655 = vunpack.c.h.b16 %v7539
        %v7656 = vunpack.c.l.b16 %v7540
        %v7657 = vunpack.c.l.b16 %v7541
        %v7658 = vunpack.c.h.b16 %v7540
        %v7659 = vunpack.c.h.b16 %v7541
        %v7660 = vunpack.c.l.b16 %v7542
        %v7661 = vunpack.c.l.b16 %v7543
        %v7662 = vunpack.c.h.b16 %v7542
        %v7663 = vunpack.c.h.b16 %v7543
        %v7664 = vunpack.c.l.b16 %v7544
        %v7665 = vunpack.c.l.b16 %v7545
        %v7666 = vunpack.c.h.b16 %v7544
        %v7667 = vunpack.c.h.b16 %v7545
        %v7668 = vunpack.c.l.b16 %v7546
        %v7669 = vunpack.c.l.b16 %v7547
        %v7670 = vunpack.c.h.b16 %v7546
        %v7671 = vunpack.c.h.b16 %v7547
        %v7672 = vunpack.c.l.b16 %v7548
        %v7673 = vunpack.c.l.b16 %v7549
        %v7674 = vunpack.c.h.b16 %v7548
        %v7675 = vunpack.c.h.b16 %v7549
        %v7676 = vunpack.c.l.b16 %v7550
        %v7677 = vunpack.c.l.b16 %v7551
        %v7678 = vunpack.c.h.b16 %v7550
        %v7679 = vunpack.c.h.b16 %v7551
        %v7680 = vpack.c.b16 %v7649, %v7648
        %v7681 = vpack.c.b16 %v7651, %v7650
        %v7682 = vpack.c.b16 %v7653, %v7652
        %v7683 = vpack.c.b16 %v7655, %v7654
        %v7684 = vpack.c.b16 %v7657, %v7656
        %v7685 = vpack.c.b16 %v7659, %v7658
        %v7686 = vpack.c.b16 %v7661, %v7660
        %v7687 = vpack.c.b16 %v7663, %v7662
        %v7688 = vpack.c.b16 %v7665, %v7664
        %v7689 = vpack.c.b16 %v7667, %v7666
        %v7690 = vpack.c.b16 %v7669, %v7668
        %v7691 = vpack.c.b16 %v7671, %v7670
        %v7692 = vpack.c.b16 %v7673, %v7672
        %v7693 = vpack.c.b16 %v7675, %v7674
        %v7694 = vpack.c.b16 %v7677, %v7676
        %v7695 = vpack.c.b16 %v7679, %v7678
        %s7712 = scalar_lea.vmem %s203, 256 [#allocation7]
        %7713 = vst [vmem:[%s7712] sm:$0xff] %v7680
        %7714 = vst [vmem:[%s7712 + $0x8] sm:$0xff] %v7681
        %7715 = vst [vmem:[%s7712 + $0x10] sm:$0xff] %v7682
        %7716 = vst [vmem:[%s7712 + $0x18] sm:$0xff] %v7683
        %7717 = vst [vmem:[%s7712 + $0x20] sm:$0xff] %v7684
        %7718 = vst [vmem:[%s7712 + $0x28] sm:$0xff] %v7685
        %7719 = vst [vmem:[%s7712 + $0x30] sm:$0xff] %v7686
        %7720 = vst [vmem:[%s7712 + $0x38] sm:$0xff] %v7687
        %7721 = vst [vmem:[%s7712 + $0x40] sm:$0xff] %v7688
        %7722 = vst [vmem:[%s7712 + $0x48] sm:$0xff] %v7689
        %7723 = vst [vmem:[%s7712 + $0x50] sm:$0xff] %v7690
        %7724 = vst [vmem:[%s7712 + $0x58] sm:$0xff] %v7691
        %7725 = vst [vmem:[%s7712 + $0x60] sm:$0xff] %v7692
        %7726 = vst [vmem:[%s7712 + $0x68] sm:$0xff] %v7693
        %7727 = vst [vmem:[%s7712 + $0x70] sm:$0xff] %v7694
        %7728 = vst [vmem:[%s7712 + $0x78] sm:$0xff] %v7695
        %v7745 = vunpack.c.l.b16 %v7616
        %v7746 = vunpack.c.l.b16 %v7617
        %v7747 = vunpack.c.h.b16 %v7616
        %v7748 = vunpack.c.h.b16 %v7617
        %v7749 = vunpack.c.l.b16 %v7618
        %v7750 = vunpack.c.l.b16 %v7619
        %v7751 = vunpack.c.h.b16 %v7618
        %v7752 = vunpack.c.h.b16 %v7619
        %v7753 = vunpack.c.l.b16 %v7620
        %v7754 = vunpack.c.l.b16 %v7621
        %v7755 = vunpack.c.h.b16 %v7620
        %v7756 = vunpack.c.h.b16 %v7621
        %v7757 = vunpack.c.l.b16 %v7622
        %v7758 = vunpack.c.l.b16 %v7623
        %v7759 = vunpack.c.h.b16 %v7622
        %v7760 = vunpack.c.h.b16 %v7623
        %v7761 = vunpack.c.l.b16 %v7624
        %v7762 = vunpack.c.l.b16 %v7625
        %v7763 = vunpack.c.h.b16 %v7624
        %v7764 = vunpack.c.h.b16 %v7625
        %v7765 = vunpack.c.l.b16 %v7626
        %v7766 = vunpack.c.l.b16 %v7627
        %v7767 = vunpack.c.h.b16 %v7626
        %v7768 = vunpack.c.h.b16 %v7627
        %v7769 = vunpack.c.l.b16 %v7628
        %v7770 = vunpack.c.l.b16 %v7629
        %v7771 = vunpack.c.h.b16 %v7628
        %v7772 = vunpack.c.h.b16 %v7629
        %v7773 = vunpack.c.l.b16 %v7630
        %v7774 = vunpack.c.l.b16 %v7631
        %v7775 = vunpack.c.h.b16 %v7630
        %v7776 = vunpack.c.h.b16 %v7631
        %v7777 = vpack.c.b16 %v7746, %v7745
        %v7778 = vpack.c.b16 %v7748, %v7747
        %v7779 = vpack.c.b16 %v7750, %v7749
        %v7780 = vpack.c.b16 %v7752, %v7751
        %v7781 = vpack.c.b16 %v7754, %v7753
        %v7782 = vpack.c.b16 %v7756, %v7755
        %v7783 = vpack.c.b16 %v7758, %v7757
        %v7784 = vpack.c.b16 %v7760, %v7759
        %v7785 = vpack.c.b16 %v7762, %v7761
        %v7786 = vpack.c.b16 %v7764, %v7763
        %v7787 = vpack.c.b16 %v7766, %v7765
        %v7788 = vpack.c.b16 %v7768, %v7767
        %v7789 = vpack.c.b16 %v7770, %v7769
        %v7790 = vpack.c.b16 %v7772, %v7771
        %v7791 = vpack.c.b16 %v7774, %v7773
        %v7792 = vpack.c.b16 %v7776, %v7775
        %s7809 = scalar_lea.vmem %s203, 384 [#allocation7]
        %7810 = vst [vmem:[%s7809] sm:$0xff] %v7777
        %7811 = vst [vmem:[%s7809 + $0x8] sm:$0xff] %v7778
        %7812 = vst [vmem:[%s7809 + $0x10] sm:$0xff] %v7779
        %7813 = vst [vmem:[%s7809 + $0x18] sm:$0xff] %v7780
        %7814 = vst [vmem:[%s7809 + $0x20] sm:$0xff] %v7781
        %7815 = vst [vmem:[%s7809 + $0x28] sm:$0xff] %v7782
        %7816 = vst [vmem:[%s7809 + $0x30] sm:$0xff] %v7783
        %7817 = vst [vmem:[%s7809 + $0x38] sm:$0xff] %v7784
        %7818 = vst [vmem:[%s7809 + $0x40] sm:$0xff] %v7785
        %7819 = vst [vmem:[%s7809 + $0x48] sm:$0xff] %v7786
        %7820 = vst [vmem:[%s7809 + $0x50] sm:$0xff] %v7787
        %7821 = vst [vmem:[%s7809 + $0x58] sm:$0xff] %v7788
        %7822 = vst [vmem:[%s7809 + $0x60] sm:$0xff] %v7789
        %7823 = vst [vmem:[%s7809 + $0x68] sm:$0xff] %v7790
        %7824 = vst [vmem:[%s7809 + $0x70] sm:$0xff] %v7791
        %7825 = vst [vmem:[%s7809 + $0x78] sm:$0xff] %v7792
        %v7826 = vpack.c.bf16 %v7217, %v7215
        %v7827 = vpack.c.bf16 %v7218, %v7216
        %v7828 = vpack.c.bf16 %v7221, %v7219
        %v7829 = vpack.c.bf16 %v7222, %v7220
        %v7830 = vpack.c.bf16 %v7225, %v7223
        %v7831 = vpack.c.bf16 %v7226, %v7224
        %v7832 = vpack.c.bf16 %v7229, %v7227
        %v7833 = vpack.c.bf16 %v7230, %v7228
        %v7834 = vpack.c.bf16 %v7233, %v7231
        %v7835 = vpack.c.bf16 %v7234, %v7232
        %v7836 = vpack.c.bf16 %v7237, %v7235
        %v7837 = vpack.c.bf16 %v7238, %v7236
        %v7838 = vpack.c.bf16 %v7241, %v7239
        %v7839 = vpack.c.bf16 %v7242, %v7240
        %v7840 = vpack.c.bf16 %v7245, %v7243
        %v7841 = vpack.c.bf16 %v7246, %v7244
        %v7842 = vunpack.c.l.bf16 %v7826
        %v7843 = vunpack.c.l.bf16 %v7827
        %v7844 = vunpack.c.h.bf16 %v7826
        %v7845 = vunpack.c.h.bf16 %v7827
        %v7846 = vunpack.c.l.bf16 %v7828
        %v7847 = vunpack.c.l.bf16 %v7829
        %v7848 = vunpack.c.h.bf16 %v7828
        %v7849 = vunpack.c.h.bf16 %v7829
        %v7850 = vunpack.c.l.bf16 %v7830
        %v7851 = vunpack.c.l.bf16 %v7831
        %v7852 = vunpack.c.h.bf16 %v7830
        %v7853 = vunpack.c.h.bf16 %v7831
        %v7854 = vunpack.c.l.bf16 %v7832
        %v7855 = vunpack.c.l.bf16 %v7833
        %v7856 = vunpack.c.h.bf16 %v7832
        %v7857 = vunpack.c.h.bf16 %v7833
        %v7858 = vunpack.c.l.bf16 %v7834
        %v7859 = vunpack.c.l.bf16 %v7835
        %v7860 = vunpack.c.h.bf16 %v7834
        %v7861 = vunpack.c.h.bf16 %v7835
        %v7862 = vunpack.c.l.bf16 %v7836
        %v7863 = vunpack.c.l.bf16 %v7837
        %v7864 = vunpack.c.h.bf16 %v7836
        %v7865 = vunpack.c.h.bf16 %v7837
        %v7866 = vunpack.c.l.bf16 %v7838
        %v7867 = vunpack.c.l.bf16 %v7839
        %v7868 = vunpack.c.h.bf16 %v7838
        %v7869 = vunpack.c.h.bf16 %v7839
        %v7870 = vunpack.c.l.bf16 %v7840
        %v7871 = vunpack.c.l.bf16 %v7841
        %v7872 = vunpack.c.h.bf16 %v7840
        %v7873 = vunpack.c.h.bf16 %v7841
        %v7874 = vsub.f32 %v7215, %v7842
        %v7875 = vsub.f32 %v7216, %v7843
        %v7876 = vsub.f32 %v7217, %v7844
        %v7877 = vsub.f32 %v7218, %v7845
        %v7878 = vsub.f32 %v7219, %v7846
        %v7879 = vsub.f32 %v7220, %v7847
        %v7880 = vsub.f32 %v7221, %v7848
        %v7881 = vsub.f32 %v7222, %v7849
        %v7882 = vsub.f32 %v7223, %v7850
        %v7883 = vsub.f32 %v7224, %v7851
        %v7884 = vsub.f32 %v7225, %v7852
        %v7885 = vsub.f32 %v7226, %v7853
        %v7886 = vsub.f32 %v7227, %v7854
        %v7887 = vsub.f32 %v7228, %v7855
        %v7888 = vsub.f32 %v7229, %v7856
        %v7889 = vsub.f32 %v7230, %v7857
        %v7890 = vsub.f32 %v7231, %v7858
        %v7891 = vsub.f32 %v7232, %v7859
        %v7892 = vsub.f32 %v7233, %v7860
        %v7893 = vsub.f32 %v7234, %v7861
        %v7894 = vsub.f32 %v7235, %v7862
        %v7895 = vsub.f32 %v7236, %v7863
        %v7896 = vsub.f32 %v7237, %v7864
        %v7897 = vsub.f32 %v7238, %v7865
        %v7898 = vsub.f32 %v7239, %v7866
        %v7899 = vsub.f32 %v7240, %v7867
        %v7900 = vsub.f32 %v7241, %v7868
        %v7901 = vsub.f32 %v7242, %v7869
        %v7902 = vsub.f32 %v7243, %v7870
        %v7903 = vsub.f32 %v7244, %v7871
        %v7904 = vsub.f32 %v7245, %v7872
        %v7905 = vsub.f32 %v7246, %v7873
        %v7906 = vpack.c.bf16 %v7876, %v7874
        %v7907 = vpack.c.bf16 %v7877, %v7875
        %v7908 = vpack.c.bf16 %v7880, %v7878
        %v7909 = vpack.c.bf16 %v7881, %v7879
        %v7910 = vpack.c.bf16 %v7884, %v7882
        %v7911 = vpack.c.bf16 %v7885, %v7883
        %v7912 = vpack.c.bf16 %v7888, %v7886
        %v7913 = vpack.c.bf16 %v7889, %v7887
        %v7914 = vpack.c.bf16 %v7892, %v7890
        %v7915 = vpack.c.bf16 %v7893, %v7891
        %v7916 = vpack.c.bf16 %v7896, %v7894
        %v7917 = vpack.c.bf16 %v7897, %v7895
        %v7918 = vpack.c.bf16 %v7900, %v7898
        %v7919 = vpack.c.bf16 %v7901, %v7899
        %v7920 = vpack.c.bf16 %v7904, %v7902
        %v7921 = vpack.c.bf16 %v7905, %v7903
        %v7938 = vunpack.c.l.b16 %v7826
        %v7939 = vunpack.c.l.b16 %v7827
        %v7940 = vunpack.c.h.b16 %v7826
        %v7941 = vunpack.c.h.b16 %v7827
        %v7942 = vunpack.c.l.b16 %v7828
        %v7943 = vunpack.c.l.b16 %v7829
        %v7944 = vunpack.c.h.b16 %v7828
        %v7945 = vunpack.c.h.b16 %v7829
        %v7946 = vunpack.c.l.b16 %v7830
        %v7947 = vunpack.c.l.b16 %v7831
        %v7948 = vunpack.c.h.b16 %v7830
        %v7949 = vunpack.c.h.b16 %v7831
        %v7950 = vunpack.c.l.b16 %v7832
        %v7951 = vunpack.c.l.b16 %v7833
        %v7952 = vunpack.c.h.b16 %v7832
        %v7953 = vunpack.c.h.b16 %v7833
        %v7954 = vunpack.c.l.b16 %v7834
        %v7955 = vunpack.c.l.b16 %v7835
        %v7956 = vunpack.c.h.b16 %v7834
        %v7957 = vunpack.c.h.b16 %v7835
        %v7958 = vunpack.c.l.b16 %v7836
        %v7959 = vunpack.c.l.b16 %v7837
        %v7960 = vunpack.c.h.b16 %v7836
        %v7961 = vunpack.c.h.b16 %v7837
        %v7962 = vunpack.c.l.b16 %v7838
        %v7963 = vunpack.c.l.b16 %v7839
        %v7964 = vunpack.c.h.b16 %v7838
        %v7965 = vunpack.c.h.b16 %v7839
        %v7966 = vunpack.c.l.b16 %v7840
        %v7967 = vunpack.c.l.b16 %v7841
        %v7968 = vunpack.c.h.b16 %v7840
        %v7969 = vunpack.c.h.b16 %v7841
        %v7970 = vpack.c.b16 %v7939, %v7938
        %v7971 = vpack.c.b16 %v7941, %v7940
        %v7972 = vpack.c.b16 %v7943, %v7942
        %v7973 = vpack.c.b16 %v7945, %v7944
        %v7974 = vpack.c.b16 %v7947, %v7946
        %v7975 = vpack.c.b16 %v7949, %v7948
        %v7976 = vpack.c.b16 %v7951, %v7950
        %v7977 = vpack.c.b16 %v7953, %v7952
        %v7978 = vpack.c.b16 %v7955, %v7954
        %v7979 = vpack.c.b16 %v7957, %v7956
        %v7980 = vpack.c.b16 %v7959, %v7958
        %v7981 = vpack.c.b16 %v7961, %v7960
        %v7982 = vpack.c.b16 %v7963, %v7962
        %v7983 = vpack.c.b16 %v7965, %v7964
        %v7984 = vpack.c.b16 %v7967, %v7966
        %v7985 = vpack.c.b16 %v7969, %v7968
        %s8002 = scalar_lea.vmem %s203, 512 [#allocation7]
        %8003 = vst [vmem:[%s8002] sm:$0xff] %v7970
        %8004 = vst [vmem:[%s8002 + $0x8] sm:$0xff] %v7971
        %8005 = vst [vmem:[%s8002 + $0x10] sm:$0xff] %v7972
        %8006 = vst [vmem:[%s8002 + $0x18] sm:$0xff] %v7973
        %8007 = vst [vmem:[%s8002 + $0x20] sm:$0xff] %v7974
        %8008 = vst [vmem:[%s8002 + $0x28] sm:$0xff] %v7975
        %8009 = vst [vmem:[%s8002 + $0x30] sm:$0xff] %v7976
        %8010 = vst [vmem:[%s8002 + $0x38] sm:$0xff] %v7977
        %8011 = vst [vmem:[%s8002 + $0x40] sm:$0xff] %v7978
        %8012 = vst [vmem:[%s8002 + $0x48] sm:$0xff] %v7979
        %8013 = vst [vmem:[%s8002 + $0x50] sm:$0xff] %v7980
        %8014 = vst [vmem:[%s8002 + $0x58] sm:$0xff] %v7981
        %8015 = vst [vmem:[%s8002 + $0x60] sm:$0xff] %v7982
        %8016 = vst [vmem:[%s8002 + $0x68] sm:$0xff] %v7983
        %8017 = vst [vmem:[%s8002 + $0x70] sm:$0xff] %v7984
        %8018 = vst [vmem:[%s8002 + $0x78] sm:$0xff] %v7985
        %v8035 = vunpack.c.l.b16 %v7906
        %v8036 = vunpack.c.l.b16 %v7907
        %v8037 = vunpack.c.h.b16 %v7906
        %v8038 = vunpack.c.h.b16 %v7907
        %v8039 = vunpack.c.l.b16 %v7908
        %v8040 = vunpack.c.l.b16 %v7909
        %v8041 = vunpack.c.h.b16 %v7908
        %v8042 = vunpack.c.h.b16 %v7909
        %v8043 = vunpack.c.l.b16 %v7910
        %v8044 = vunpack.c.l.b16 %v7911
        %v8045 = vunpack.c.h.b16 %v7910
        %v8046 = vunpack.c.h.b16 %v7911
        %v8047 = vunpack.c.l.b16 %v7912
        %v8048 = vunpack.c.l.b16 %v7913
        %v8049 = vunpack.c.h.b16 %v7912
        %v8050 = vunpack.c.h.b16 %v7913
        %v8051 = vunpack.c.l.b16 %v7914
        %v8052 = vunpack.c.l.b16 %v7915
        %v8053 = vunpack.c.h.b16 %v7914
        %v8054 = vunpack.c.h.b16 %v7915
        %v8055 = vunpack.c.l.b16 %v7916
        %v8056 = vunpack.c.l.b16 %v7917
        %v8057 = vunpack.c.h.b16 %v7916
        %v8058 = vunpack.c.h.b16 %v7917
        %v8059 = vunpack.c.l.b16 %v7918
        %v8060 = vunpack.c.l.b16 %v7919
        %v8061 = vunpack.c.h.b16 %v7918
        %v8062 = vunpack.c.h.b16 %v7919
        %v8063 = vunpack.c.l.b16 %v7920
        %v8064 = vunpack.c.l.b16 %v7921
        %v8065 = vunpack.c.h.b16 %v7920
        %v8066 = vunpack.c.h.b16 %v7921
        %v8067 = vpack.c.b16 %v8036, %v8035
        %v8068 = vpack.c.b16 %v8038, %v8037
        %v8069 = vpack.c.b16 %v8040, %v8039
        %v8070 = vpack.c.b16 %v8042, %v8041
        %v8071 = vpack.c.b16 %v8044, %v8043
        %v8072 = vpack.c.b16 %v8046, %v8045
        %v8073 = vpack.c.b16 %v8048, %v8047
        %v8074 = vpack.c.b16 %v8050, %v8049
        %v8075 = vpack.c.b16 %v8052, %v8051
        %v8076 = vpack.c.b16 %v8054, %v8053
        %v8077 = vpack.c.b16 %v8056, %v8055
        %v8078 = vpack.c.b16 %v8058, %v8057
        %v8079 = vpack.c.b16 %v8060, %v8059
        %v8080 = vpack.c.b16 %v8062, %v8061
        %v8081 = vpack.c.b16 %v8064, %v8063
        %v8082 = vpack.c.b16 %v8066, %v8065
        %s8099 = scalar_lea.vmem %s203, 640 [#allocation7]
        %8100 = vst [vmem:[%s8099] sm:$0xff] %v8067
        %8101 = vst [vmem:[%s8099 + $0x8] sm:$0xff] %v8068
        %8102 = vst [vmem:[%s8099 + $0x10] sm:$0xff] %v8069
        %8103 = vst [vmem:[%s8099 + $0x18] sm:$0xff] %v8070
        %8104 = vst [vmem:[%s8099 + $0x20] sm:$0xff] %v8071
        %8105 = vst [vmem:[%s8099 + $0x28] sm:$0xff] %v8072
        %8106 = vst [vmem:[%s8099 + $0x30] sm:$0xff] %v8073
        %8107 = vst [vmem:[%s8099 + $0x38] sm:$0xff] %v8074
        %8108 = vst [vmem:[%s8099 + $0x40] sm:$0xff] %v8075
        %8109 = vst [vmem:[%s8099 + $0x48] sm:$0xff] %v8076
        %8110 = vst [vmem:[%s8099 + $0x50] sm:$0xff] %v8077
        %8111 = vst [vmem:[%s8099 + $0x58] sm:$0xff] %v8078
        %8112 = vst [vmem:[%s8099 + $0x60] sm:$0xff] %v8079
        %8113 = vst [vmem:[%s8099 + $0x68] sm:$0xff] %v8080
        %8114 = vst [vmem:[%s8099 + $0x70] sm:$0xff] %v8081
        %8115 = vst [vmem:[%s8099 + $0x78] sm:$0xff] %v8082
        %s8116 = sand.u32 %s82, 1
        %s8117 = scalar_lea.sflag [#allocation4], %s8116
        %s8118 = sand.u32 %s82, 1
        %s8119 = smul.addr %s8118, 768
        %s8120 = scalar_lea.vmem [#allocation7], %s8119
        // Predicated region
        $region37: #{tpu_custom_call.1} parent=27 // pred_check
          %p8121 = pneg %p92
        $region38: #{tpu_custom_call.1} parent=27 // pred_check_branch
          %8123 = sbr.rel (%p8121) target = $region40
        $region39: #{tpu_custom_call.1} parent=27 // pred_region
          #allocation9 [shape = 'u32[6]{0}', space=smem, size = 0x18, scoped, tag = 'DMA stride descriptor']
          %s8124 = smul.u32 16, %s22
          %s8126 = ssub.s32 12288, 12288
          %8127 = vsyncadd %s8117, %s8126
          %s8128 = smul.addr %s8124, 2
          %s8129 = smul.addr %s8128, 64
          %s8130 = scalar_lea.hbm %s2, %s8129
          %s8132 = sshll.u32 1, 14
          %s8133 = sxor.u32 4294967295, %s8132
          %s8136 = sshll.u32 7, 18
          %s8137 = sxor.u32 4294967295, %s8136
          %s8138 = sand.u32 0, %s8137
          %s8140 = sor.u32 %s8138, 0
          %s8142 = sshll.u32 3, 24
          %s8143 = sxor.u32 4294967295, %s8142
          %s8144 = sand.u32 %s8140, %s8143
          %s8146 = sor.u32 %s8144, 0
          %s8147 = sshll.u32 %s8120, 4
          %s8148 = int_to_ptr.vmem [resolvable:$true] %s8147
          %8154 = sst [smem:[#allocation9]] 2048
          %s8155 = scalar_lea.smem [#allocation9], 1
          %8156 = sst [smem:[%s8155]] 4096
          %s8157 = scalar_lea.smem [#allocation9], 2
          %8158 = sst [smem:[%s8157]] 16
          %s8159 = scalar_lea.smem [#allocation9], 3
          %8160 = sst [smem:[%s8159]] 128
          %s8161 = scalar_lea.smem [#allocation9], 4
          %8162 = sst [smem:[%s8161]] 128
          %s8163 = scalar_lea.smem [#allocation9], 5
          %8164 = sst [smem:[%s8163]] 8
          %8166 = dma.general %s8148, 12288, %s8130, %s8117, [#allocation8], [#allocation9], %s8146, 0
        $region40: #{tpu_custom_call.1} parent=27 // pred_fallthru
          _
      $region28: #{tpu_custom_call.1} parent=5 // pred_fallthru
        _
      %p8167 = scmp.le.s32.totalorder 2, %s17
      // Predicated region
      $region41: #{tpu_custom_call.1} parent=5 // pred_check
        %p8168 = pneg %p8167
      $region42: #{tpu_custom_call.1} parent=5 // pred_check_branch
        %8170 = sbr.rel (%p8168) target = $region44
      $region43: #{tpu_custom_call.1} parent=5 // pred_region
        %s8171 = ssub.s32 %s17, 2
        // Predicated region
        $region45: #{tpu_custom_call.1} parent=43 // pred_check
          %p8172 = pneg %p98
        $region46: #{tpu_custom_call.1} parent=43 // pred_check_branch
          %8174 = sbr.rel (%p8172) target = $region48
        $region47: #{tpu_custom_call.1} parent=43 // pred_region
          %s8175 = sand.u32 %s83, 1
          %s8176 = scalar_lea.sflag [#allocation4], %s8175
          %s8177 = sand.u32 %s83, 1
          %s8178 = smul.addr %s8177, 768
          %s8179 = scalar_lea.vmem [#allocation7], %s8178
          %8180 = dma.done %s8176, 12288
        $region48: #{tpu_custom_call.1} parent=43 // pred_fallthru
          _
      $region44: #{tpu_custom_call.1} parent=5 // pred_fallthru
        _
    $region6: #{tpu_custom_call.1} parent=1 // loop_footer
      %s21 = sadd.s32 1, %s17
    $region7: #{tpu_custom_call.1} parent=1 // loop_footer_branch
      %16 = sbr.rel target = $region3
    $region8: #{tpu_custom_call.1} parent=1 // loop_exit
      _
    %8181 = vsyncpa [#allocation3], 1
    %s8182 = scalar_lea.sflag [#allocation3], 1
    %8183 = vsyncpa %s8182, 1
    %8184 = vsyncpa [#allocation6], 1
    %s8185 = scalar_lea.sflag [#allocation6], 1
    %8186 = vsyncpa %s8185, 1
    %8187 = vsyncpa [#allocation4], 1
    %s8188 = scalar_lea.sflag [#allocation4], 1
    %8189 = vsyncpa %s8188, 1

</llo_original>
